<compile_context>
chip_gen: v7x
topology: tpu7x:2x2x1
jax: 0.10.0
libtpu: 0.0.40
codegen_flags: <defaults>
</compile_context>

<pallas_src>
import jax
import jax.numpy as jnp
from jax.experimental import pallas as pl
from jax.experimental.pallas import tpu as pltpu

BIT = 32                      # self.X_dim (the `bit` ctor arg)
C_DIM = 275                   # self.C_dim
BLOCK_DIM = 64                # self.block_dim
REDUCTION = 16
HID = C_DIM // REDUCTION      # 17
N_FLAT = C_DIM * BLOCK_DIM    # 17600


# ---------------------------------------------------------------------------
# Fused kernel: MLP + SE attention + final sigmoid, all on a [TB, *] batch tile
# ---------------------------------------------------------------------------
def fused_kernel(x_ref, w1_ref, b1_ref, w2_ref, b2_ref,
                 w2p_ref, b2p_ref, wse1_ref, wse2e_ref, out_ref):
    # Linear(bit, bit) -> Dropout (identity, eval) -> LeakyReLU(0.2)
    x = x_ref[...]                                                   # [TB, 32] f32
    h = jnp.dot(x, w1_ref[...], preferred_element_type=jnp.float32) + b1_ref[...]
    h = jnp.where(h >= 0.0, h, 0.2 * h)                              # LeakyReLU(0.2)

    # Linear(bit, C*D)  -> flat xb [TB, 17600]; bf16 MXU operands, f32 acc.
    h_bf16 = h.astype(jnp.bfloat16)
    xb = jnp.dot(h_bf16, w2_ref[...],
                 preferred_element_type=jnp.float32) + b2_ref[...]   # [TB, 17600]

    # SE attention.  AdaptiveAvgPool2d(1) folded into (w2_pool, b2_pool):
    #   y[b, c] = mean_d xb[b, c, d]  ==  h @ w2_pool + b2_pool   (exact)
    y = jnp.dot(h, w2p_ref[...], preferred_element_type=jnp.float32) + b2p_ref[...]
    h2 = jnp.maximum(
        jnp.dot(y, wse1_ref[...], preferred_element_type=jnp.float32), 0.0)
    # wse2 pre-expanded to [HID, 17600] so the scale arrives lane-dense/flat,
    # matching xb's layout without any in-kernel reshape.
    s_flat = jax.nn.sigmoid(
        jnp.dot(h2.astype(jnp.bfloat16), wse2e_ref[...],
                preferred_element_type=jnp.float32))                 # [TB, 17600]

    out_ref[...] = jax.nn.sigmoid(xb * s_flat)                       # [TB, 17600]


# ---------------------------------------------------------------------------
# Tile / VMEM selection per TPU generation
# ---------------------------------------------------------------------------
def _tile_config():
    try:
        cap = int(pltpu.get_tpu_info().vmem_capacity_bytes)
    except Exception:
        cap = 64 << 20
    if cap >= (96 << 20):      # v5e / v6e: 128 MiB VMEM
        return 128, 64 << 20
    else:                      # v7x: 64 MiB VMEM per TensorCore
        return 64, 40 << 20


# ---------------------------------------------------------------------------
# Wrapper
# ---------------------------------------------------------------------------
def semantic_match(x, kernel_params):
    (w1t, b1, w2t_bf16, b2, w2_pool, b2_pool, wse1t, wse2e_bf16) = kernel_params
    B = x.shape[0]

    tb_hw, vmem_limit = _tile_config()
    tb = B if B <= tb_hw else tb_hw       # blocks == full dim when B is small
    grid = (pl.cdiv(B, tb),)

    out_flat = pl.pallas_call(
        fused_kernel,
        grid=grid,
        out_shape=jax.ShapeDtypeStruct((B, N_FLAT), jnp.float32),
        in_specs=[
            pl.BlockSpec((tb, BIT), lambda i: (i, 0)),        # x
            pl.BlockSpec((BIT, BIT), lambda i: (0, 0)),       # w1t
            pl.BlockSpec((1, BIT), lambda i: (0, 0)),         # b1
            pl.BlockSpec((BIT, N_FLAT), lambda i: (0, 0)),    # w2t (bf16)
            pl.BlockSpec((1, N_FLAT), lambda i: (0, 0)),      # b2
            pl.BlockSpec((BIT, C_DIM), lambda i: (0, 0)),     # w2_pool
            pl.BlockSpec((1, C_DIM), lambda i: (0, 0)),       # b2_pool
            pl.BlockSpec((C_DIM, HID), lambda i: (0, 0)),     # wse1t
            pl.BlockSpec((HID, N_FLAT), lambda i: (0, 0)),    # wse2 expanded (bf16)
        ],
        out_specs=pl.BlockSpec((tb, N_FLAT), lambda i: (i, 0)),
        compiler_params=pltpu.CompilerParams(
            dimension_semantics=("parallel",),
            vmem_limit_bytes=vmem_limit,
        ),
    )(x, w1t, b1, w2t_bf16, b2, w2_pool, b2_pool, wse1t, wse2e_bf16)

    # Free, metadata-only reshape to the PyTorch [B, 275, 64] layout.
    return out_flat.reshape(B, C_DIM, BLOCK_DIM)


# ---------------------------------------------------------------------------
# Parameter handling
# ---------------------------------------------------------------------------
def init_params(key):
    """PyTorch-equivalent f32 parameters (weights stored pre-transposed)."""
    ks = jax.random.split(key, 6)
    scale = 0.05
    w1t = scale * jax.random.normal(ks[0], (BIT, BIT), jnp.float32)
    b1 = scale * jax.random.normal(ks[1], (1, BIT), jnp.float32)
    w2t = scale * jax.random.normal(ks[2], (BIT, N_FLAT), jnp.float32)
    b2 = scale * jax.random.normal(ks[3], (1, N_FLAT), jnp.float32)
    wse1t = scale * jax.random.normal(ks[4], (C_DIM, HID), jnp.float32)   # no bias
    wse2t = scale * jax.random.normal(ks[5], (HID, C_DIM), jnp.float32)   # no bias
    return (w1t, b1, w2t, b2, wse1t, wse2t)


def prepare_kernel_params(raw):
    """One-time param prep: pool-fold, SE-scale expansion, bf16 MXU weights."""
    w1t, b1, w2t, b2, wse1t, wse2t = raw
    w2_pool = w2t.reshape(BIT, C_DIM, BLOCK_DIM).mean(-1)          # [32, 275]
    b2_pool = b2.reshape(1, C_DIM, BLOCK_DIM).mean(-1)             # [1, 275]
    wse2_exp = jnp.repeat(wse2t, BLOCK_DIM, axis=1)                # [17, 17600]
    return (w1t, b1,
            w2t.astype(jnp.bfloat16), b2,
            w2_pool, b2_pool,
            wse1t, wse2_exp.astype(jnp.bfloat16))


# Pure-JAX f32 reference (exact PyTorch semantics) for self-check
def reference(x, raw):
    w1t, b1, w2t, b2, wse1t, wse2t = raw
    h = x @ w1t + b1
    h = jnp.where(h >= 0.0, h, 0.2 * h)
    xb = (h @ w2t + b2).reshape(x.shape[0], C_DIM, BLOCK_DIM)
    y = xb.mean(-1)
    s = jax.nn.sigmoid(jnp.maximum(y @ wse1t, 0.0) @ wse2t)
    return jax.nn.sigmoid(xb * s[:, :, None])


if __name__ == "__main__":
    key = jax.random.PRNGKey(0)
    pkey, xkey = jax.random.split(key)
    raw_params = init_params(pkey)
    kernel_params = prepare_kernel_params(raw_params)

    B = 2
    x = jax.random.normal(xkey, (B, BIT), jnp.float32)

    out = jax.block_until_ready(semantic_match(x, kernel_params))
    ref = jax.block_until_ready(reference(x, raw_params))

    assert out.shape == (B, C_DIM, BLOCK_DIM), out.shape
    # bf16 MXU operands => compare at bf16-appropriate tolerance vs f32 ref.
    err = float(jnp.max(jnp.abs(out - ref)))
    assert jnp.allclose(out, ref, atol=2e-3, rtol=2e-3), err
    print("KERNEL_OK")
</pallas_src>

<mosaic_0001>
module attributes {stable_mosaic.version = 11 : i64} {
  func.func @fused_kernel(%arg0: i32, %arg1: memref<2x32xf32, #tpu.memory_space<vmem>>, %arg2: memref<32x32xf32, #tpu.memory_space<vmem>>, %arg3: memref<1x32xf32, #tpu.memory_space<vmem>>, %arg4: memref<32x17600xbf16, #tpu.memory_space<vmem>>, %arg5: memref<1x17600xf32, #tpu.memory_space<vmem>>, %arg6: memref<32x275xf32, #tpu.memory_space<vmem>>, %arg7: memref<1x275xf32, #tpu.memory_space<vmem>>, %arg8: memref<275x17xf32, #tpu.memory_space<vmem>>, %arg9: memref<17x17600xbf16, #tpu.memory_space<vmem>>, %arg10: memref<2x17600xf32, #tpu.memory_space<vmem>>) attributes {dimension_semantics = [#tpu.dimension_semantics<parallel>], iteration_bounds = array<i64: 1>, scalar_prefetch = 0 : i64, scratch_operands = 0 : i64, tpu.core_type = #tpu.core_type<tc>, window_params = [{transform_indices = @transform_0, window_bounds = array<i64: 2, 32>}, {pipeline_mode = #tpu.pipeline_mode<synchronous>, transform_indices = @transform_1, window_bounds = array<i64: 32, 32>}, {pipeline_mode = #tpu.pipeline_mode<synchronous>, transform_indices = @transform_2, window_bounds = array<i64: 1, 32>}, {pipeline_mode = #tpu.pipeline_mode<synchronous>, transform_indices = @transform_3, window_bounds = array<i64: 32, 17600>}, {pipeline_mode = #tpu.pipeline_mode<synchronous>, transform_indices = @transform_4, window_bounds = array<i64: 1, 17600>}, {pipeline_mode = #tpu.pipeline_mode<synchronous>, transform_indices = @transform_5, window_bounds = array<i64: 32, 275>}, {pipeline_mode = #tpu.pipeline_mode<synchronous>, transform_indices = @transform_6, window_bounds = array<i64: 1, 275>}, {pipeline_mode = #tpu.pipeline_mode<synchronous>, transform_indices = @transform_7, window_bounds = array<i64: 275, 17>}, {pipeline_mode = #tpu.pipeline_mode<synchronous>, transform_indices = @transform_8, window_bounds = array<i64: 17, 17600>}, {transform_indices = @transform_9, window_bounds = array<i64: 2, 17600>}]} {
    %c0 = arith.constant 0 : index
    %c0_0 = arith.constant 0 : index
    %0 = vector.load %arg1[%c0, %c0_0] : memref<2x32xf32, #tpu.memory_space<vmem>>, vector<2x32xf32>
    %c0_1 = arith.constant 0 : index
    %c0_2 = arith.constant 0 : index
    %1 = vector.load %arg2[%c0_1, %c0_2] : memref<32x32xf32, #tpu.memory_space<vmem>>, vector<32x32xf32>
    %cst = arith.constant dense<0.000000e+00> : vector<2x32xf32>
    %2 = tpu.matmul %0, %1, %cst {dimension_numbers = #tpu.dot_dimension_numbers<[1], [0], [0], [1], [0, 0, 1, 1], [], []>} : vector<2x32xf32>, vector<32x32xf32>, vector<2x32xf32> -> vector<2x32xf32>
    %c0_3 = arith.constant 0 : index
    %c0_4 = arith.constant 0 : index
    %3 = vector.load %arg3[%c0_3, %c0_4] : memref<1x32xf32, #tpu.memory_space<vmem>>, vector<1x32xf32>
    %4 = vector.broadcast %3 : vector<1x32xf32> to vector<2x32xf32>
    %5 = arith.addf %2, %4 : vector<2x32xf32>
    %cst_5 = arith.constant 0.000000e+00 : f32
    %6 = vector.broadcast %cst_5 : f32 to vector<2x32xf32>
    %7 = arith.cmpf oge, %5, %6 : vector<2x32xf32>
    %cst_6 = arith.constant 2.000000e-01 : f32
    %8 = vector.broadcast %cst_6 : f32 to vector<2x32xf32>
    %9 = arith.mulf %8, %5 : vector<2x32xf32>
    %10 = arith.select %7, %5, %9 : vector<2x32xi1>, vector<2x32xf32>
    %11 = arith.truncf %10 : vector<2x32xf32> to vector<2x32xbf16>
    %c0_7 = arith.constant 0 : index
    %c0_8 = arith.constant 0 : index
    %12 = vector.load %arg4[%c0_7, %c0_8] : memref<32x17600xbf16, #tpu.memory_space<vmem>>, vector<32x17600xbf16>
    %cst_9 = arith.constant dense<0.000000e+00> : vector<2x17600xf32>
    %13 = tpu.matmul %11, %12, %cst_9 {dimension_numbers = #tpu.dot_dimension_numbers<[1], [0], [0], [1], [0, 0, 1, 1], [], []>} : vector<2x32xbf16>, vector<32x17600xbf16>, vector<2x17600xf32> -> vector<2x17600xf32>
    %c0_10 = arith.constant 0 : index
    %c0_11 = arith.constant 0 : index
    %14 = vector.load %arg5[%c0_10, %c0_11] : memref<1x17600xf32, #tpu.memory_space<vmem>>, vector<1x17600xf32>
    %15 = vector.broadcast %14 : vector<1x17600xf32> to vector<2x17600xf32>
    %16 = arith.addf %13, %15 : vector<2x17600xf32>
    %c0_12 = arith.constant 0 : index
    %c0_13 = arith.constant 0 : index
    %17 = vector.load %arg6[%c0_12, %c0_13] : memref<32x275xf32, #tpu.memory_space<vmem>>, vector<32x275xf32>
    %cst_14 = arith.constant dense<0.000000e+00> : vector<2x275xf32>
    %18 = tpu.matmul %10, %17, %cst_14 {dimension_numbers = #tpu.dot_dimension_numbers<[1], [0], [0], [1], [0, 0, 1, 1], [], []>} : vector<2x32xf32>, vector<32x275xf32>, vector<2x275xf32> -> vector<2x275xf32>
    %c0_15 = arith.constant 0 : index
    %c0_16 = arith.constant 0 : index
    %19 = vector.load %arg7[%c0_15, %c0_16] : memref<1x275xf32, #tpu.memory_space<vmem>>, vector<1x275xf32>
    %20 = vector.broadcast %19 : vector<1x275xf32> to vector<2x275xf32>
    %21 = arith.addf %18, %20 : vector<2x275xf32>
    %c0_17 = arith.constant 0 : index
    %c0_18 = arith.constant 0 : index
    %22 = vector.load %arg8[%c0_17, %c0_18] : memref<275x17xf32, #tpu.memory_space<vmem>>, vector<275x17xf32>
    %cst_19 = arith.constant dense<0.000000e+00> : vector<2x17xf32>
    %23 = tpu.matmul %21, %22, %cst_19 {dimension_numbers = #tpu.dot_dimension_numbers<[1], [0], [0], [1], [0, 0, 1, 1], [], []>} : vector<2x275xf32>, vector<275x17xf32>, vector<2x17xf32> -> vector<2x17xf32>
    %cst_20 = arith.constant 0.000000e+00 : f32
    %24 = vector.broadcast %cst_20 : f32 to vector<2x17xf32>
    %25 = arith.maximumf %23, %24 : vector<2x17xf32>
    %26 = arith.truncf %25 : vector<2x17xf32> to vector<2x17xbf16>
    %c0_21 = arith.constant 0 : index
    %c0_22 = arith.constant 0 : index
    %27 = vector.load %arg9[%c0_21, %c0_22] : memref<17x17600xbf16, #tpu.memory_space<vmem>>, vector<17x17600xbf16>
    %cst_23 = arith.constant dense<0.000000e+00> : vector<2x17600xf32>
    %28 = tpu.matmul %26, %27, %cst_23 {dimension_numbers = #tpu.dot_dimension_numbers<[1], [0], [0], [1], [0, 0, 1, 1], [], []>} : vector<2x17xbf16>, vector<17x17600xbf16>, vector<2x17600xf32> -> vector<2x17600xf32>
    %29 = arith.negf %28 : vector<2x17600xf32>
    %30 = math.exp %29 : vector<2x17600xf32>
    %cst_24 = arith.constant 1.000000e+00 : f32
    %31 = vector.broadcast %cst_24 : f32 to vector<2x17600xf32>
    %32 = arith.addf %31, %30 : vector<2x17600xf32>
    %33 = arith.divf %31, %32 : vector<2x17600xf32>
    %34 = arith.mulf %16, %33 : vector<2x17600xf32>
    %35 = arith.negf %34 : vector<2x17600xf32>
    %36 = math.exp %35 : vector<2x17600xf32>
    %cst_25 = arith.constant 1.000000e+00 : f32
    %37 = vector.broadcast %cst_25 : f32 to vector<2x17600xf32>
    %38 = arith.addf %37, %36 : vector<2x17600xf32>
    %39 = arith.divf %37, %38 : vector<2x17600xf32>
    %c0_26 = arith.constant 0 : index
    %c0_27 = arith.constant 0 : index
    %40 = vector.load %arg10[%c0_26, %c0_27] : memref<2x17600xf32, #tpu.memory_space<vmem>>, vector<2x17600xf32>
    tpu.vector_store %arg10[%c0_26, %c0_27], %39 {strides = array<i32>} : memref<2x17600xf32, #tpu.memory_space<vmem>>, vector<2x17600xf32>,
    return
  }
  func.func @transform_0(%arg0: i32) -> (i32, i32) {
    %c0_i32 = arith.constant 0 : i32
    %c0_i32_0 = arith.constant 0 : i32
    return %arg0, %c0_i32 : i32, i32
  }
  func.func @transform_1(%arg0: i32) -> (i32, i32) {
    %c0_i32 = arith.constant 0 : i32
    %c0_i32_0 = arith.constant 0 : i32
    %c0_i32_1 = arith.constant 0 : i32
    return %c0_i32, %c0_i32_0 : i32, i32
  }
  func.func @transform_2(%arg0: i32) -> (i32, i32) {
    %c0_i32 = arith.constant 0 : i32
    %c0_i32_0 = arith.constant 0 : i32
    %c0_i32_1 = arith.constant 0 : i32
    return %c0_i32, %c0_i32_0 : i32, i32
  }
  func.func @transform_3(%arg0: i32) -> (i32, i32) {
    %c0_i32 = arith.constant 0 : i32
    %c0_i32_0 = arith.constant 0 : i32
    %c0_i32_1 = arith.constant 0 : i32
    return %c0_i32, %c0_i32_0 : i32, i32
  }
  func.func @transform_4(%arg0: i32) -> (i32, i32) {
    %c0_i32 = arith.constant 0 : i32
    %c0_i32_0 = arith.constant 0 : i32
    %c0_i32_1 = arith.constant 0 : i32
    return %c0_i32, %c0_i32_0 : i32, i32
  }
  func.func @transform_5(%arg0: i32) -> (i32, i32) {
    %c0_i32 = arith.constant 0 : i32
    %c0_i32_0 = arith.constant 0 : i32
    %c0_i32_1 = arith.constant 0 : i32
    return %c0_i32, %c0_i32_0 : i32, i32
  }
  func.func @transform_6(%arg0: i32) -> (i32, i32) {
    %c0_i32 = arith.constant 0 : i32
    %c0_i32_0 = arith.constant 0 : i32
    %c0_i32_1 = arith.constant 0 : i32
    return %c0_i32, %c0_i32_0 : i32, i32
  }
  func.func @transform_7(%arg0: i32) -> (i32, i32) {
    %c0_i32 = arith.constant 0 : i32
    %c0_i32_0 = arith.constant 0 : i32
    %c0_i32_1 = arith.constant 0 : i32
    return %c0_i32, %c0_i32_0 : i32, i32
  }
  func.func @transform_8(%arg0: i32) -> (i32, i32) {
    %c0_i32 = arith.constant 0 : i32
    %c0_i32_0 = arith.constant 0 : i32
    %c0_i32_1 = arith.constant 0 : i32
    return %c0_i32, %c0_i32_0 : i32, i32
  }
  func.func @transform_9(%arg0: i32) -> (i32, i32) {
    %c0_i32 = arith.constant 0 : i32
    %c0_i32_0 = arith.constant 0 : i32
    return %arg0, %c0_i32 : i32, i32
  }
}

</mosaic_0001>

<llo_original>
// kernel: tpu_custom_call.1
$region0: #{tpu_custom_call.1}
  #allocation0 [shape = 'u32[]', space=smem, size = 0x4, offset = 0x4, fixed_abs, tag = 'smem constant byte address 0x4 - core index']
  #allocation1 [shape = 'u32[144,128]{1,0:T(1,128)}', space=vmem, size = 0x12000, scoped, tag = 'internal scratch']
  %s0 = inlined_call_operand.hbm [shape: f32[2,32], index: 0, kind: input, shape index: {}]
  %s1 = inlined_call_operand.hbm [shape: f32[32,32], index: 1, kind: input, shape index: {}]
  %s2 = inlined_call_operand.hbm [shape: f32[1,32], index: 2, kind: input, shape index: {}]
  %s3 = inlined_call_operand.hbm [shape: bf16[32,17600], index: 3, kind: input, shape index: {}]
  %s4 = inlined_call_operand.hbm [shape: f32[1,17600], index: 4, kind: input, shape index: {}]
  %s5 = inlined_call_operand.hbm [shape: f32[32,275], index: 5, kind: input, shape index: {}]
  %s6 = inlined_call_operand.hbm [shape: f32[1,275], index: 6, kind: input, shape index: {}]
  %s7 = inlined_call_operand.vmem [shape: f32[275,17], index: 7, kind: input, shape index: {}]
  %s8 = inlined_call_operand.hbm [shape: bf16[17,17600], index: 8, kind: input, shape index: {}]
  %s9 = inlined_call_operand.hbm [shape: f32[2,17600], index: 9, kind: output, shape index: {}]
  %s10 = sld [smem:[#allocation0]]
  $region78: #{tpu_custom_call.1} parent=0
    _
  %s12 = ssub.s32 1, %s10
  %s13 = scalar_select 0, %s12, %s10
  $region1: #{tpu_custom_call.1} parent=0
    #allocation2 [shape = 'u8[1024]{0}', space=vmem, size = 0x400, scoped, tag = 'input window, operand 0, single buffered']
    #allocation3 [shape = 's32[1]{0}', space=sflag, size = 0x4, scoped, tag = 'scoped memory for tpu_custom_call.1']
    #allocation4 [shape = 's32[1]{0}', space=sflag, size = 0x4, scoped, tag = 'scoped memory for tpu_custom_call.1']
    #allocation5 [shape = 'u8[16384]{0}', space=vmem, size = 0x4000, scoped, tag = 'input window, operand 1, single buffered']
    #allocation6 [shape = 's32[1]{0}', space=sflag, size = 0x4, scoped, tag = 'scoped memory for tpu_custom_call.1']
    #allocation7 [shape = 'u8[512]{0}', space=vmem, size = 0x400, scoped, tag = 'input window, operand 2, single buffered']
    #allocation8 [shape = 'u8[1130496]{0}', space=vmem, size = 0x114000, scoped, tag = 'input window, operand 3, single buffered']
    #allocation9 [shape = 's32[1]{0}', space=sflag, size = 0x4, scoped, tag = 'scoped memory for tpu_custom_call.1']
    #allocation10 [shape = 'u8[70656]{0}', space=vmem, size = 0x11400, scoped, tag = 'input window, operand 4, single buffered']
    #allocation11 [shape = 'u8[49152]{0}', space=vmem, size = 0xc000, scoped, tag = 'input window, operand 5, single buffered']
    #allocation12 [shape = 's32[1]{0}', space=sflag, size = 0x4, scoped, tag = 'scoped memory for tpu_custom_call.1']
    #allocation13 [shape = 'u8[1536]{0}', space=vmem, size = 0x800, scoped, tag = 'input window, operand 6, single buffered']
    #allocation14 [shape = 'u8[847872]{0}', space=vmem, size = 0xcf000, scoped, tag = 'input window, operand 8, single buffered']
    #allocation15 [shape = 's32[1]{0}', space=sflag, size = 0x4, scoped, tag = 'scoped memory for tpu_custom_call.1']
    #allocation16 [shape = 'u8[141312]{0}', space=vmem, size = 0x22800, scoped, tag = 'output window, operand 0, single buffered']
    %14 = vsyncpa [#allocation3], 0
    %15 = vsyncpa [#allocation6], 0
    %16 = vsyncpa [#allocation9], 0
    %17 = vsyncpa [#allocation12], 0
    %18 = vsyncpa [#allocation15], 0
    %19 = vsyncpa [#allocation4], 0
    // Predicated region
    $region2: #{tpu_custom_call.1} parent=1 // pred_check
      _
    $region3: #{tpu_custom_call.1} parent=1 // pred_check_branch
      %21 = sbr.rel (0) target = $region5
    $region4: #{tpu_custom_call.1} parent=1 // pred_region
      %s23 = ssub.s32 32, 32
      %24 = vsyncadd [#allocation3], %s23
      %s26 = sshll.u32 [#allocation2], 4
      %s27 = int_to_ptr.vmem [resolvable:$true] %s26
      %29 = dma.hbm_to_vmem [thread:$0]  %s0, 32, %s27, [#allocation3]
    $region5: #{tpu_custom_call.1} parent=1 // pred_fallthru
      _
    // Predicated region
    $region6: #{tpu_custom_call.1} parent=1 // pred_check
      _
    $region7: #{tpu_custom_call.1} parent=1 // pred_check_branch
      %31 = sbr.rel (0) target = $region9
    $region8: #{tpu_custom_call.1} parent=1 // pred_region
      %s33 = ssub.s32 512, 512
      %34 = vsyncadd [#allocation6], %s33
      %s35 = sshll.u32 [#allocation5], 4
      %s36 = int_to_ptr.vmem [resolvable:$true] %s35
      %41 = dma.hbm_to_vmem [thread:$0]  %s1, 512, %s36, [#allocation6], 128, 128, 8
    $region9: #{tpu_custom_call.1} parent=1 // pred_fallthru
      _
    // Predicated region
    $region10: #{tpu_custom_call.1} parent=1 // pred_check
      _
    $region11: #{tpu_custom_call.1} parent=1 // pred_check_branch
      %43 = sbr.rel (0) target = $region13
    $region12: #{tpu_custom_call.1} parent=1 // pred_region
      %s45 = ssub.s32 16, 16
      %46 = vsyncadd [#allocation6], %s45
      %s48 = sshll.u32 [#allocation7], 4
      %s49 = int_to_ptr.vmem [resolvable:$true] %s48
      %51 = dma.hbm_to_vmem [thread:$0]  %s2, 16, %s49, [#allocation6]
    $region13: #{tpu_custom_call.1} parent=1 // pred_fallthru
      _
    // Predicated region
    $region14: #{tpu_custom_call.1} parent=1 // pred_check
      _
    $region15: #{tpu_custom_call.1} parent=1 // pred_check_branch
      %53 = sbr.rel (0) target = $region17
    $region16: #{tpu_custom_call.1} parent=1 // pred_region
      %s55 = ssub.s32 35328, 35328
      %56 = vsyncadd [#allocation9], %s55
      %s57 = sshll.u32 [#allocation8], 4
      %s58 = int_to_ptr.vmem [resolvable:$true] %s57
      %63 = dma.hbm_to_vmem [thread:$0]  %s3, 35328, %s58, [#allocation9], 8832, 8832, 552
    $region17: #{tpu_custom_call.1} parent=1 // pred_fallthru
      _
    // Predicated region
    $region18: #{tpu_custom_call.1} parent=1 // pred_check
      _
    $region19: #{tpu_custom_call.1} parent=1 // pred_check_branch
      %65 = sbr.rel (0) target = $region21
    $region20: #{tpu_custom_call.1} parent=1 // pred_region
      %s67 = ssub.s32 2208, 2208
      %68 = vsyncadd [#allocation9], %s67
      %s70 = sshll.u32 [#allocation10], 4
      %s71 = int_to_ptr.vmem [resolvable:$true] %s70
      %73 = dma.hbm_to_vmem [thread:$0]  %s4, 2208, %s71, [#allocation9]
    $region21: #{tpu_custom_call.1} parent=1 // pred_fallthru
      _
    // Predicated region
    $region22: #{tpu_custom_call.1} parent=1 // pred_check
      _
    $region23: #{tpu_custom_call.1} parent=1 // pred_check_branch
      %75 = sbr.rel (0) target = $region25
    $region24: #{tpu_custom_call.1} parent=1 // pred_region
      %s77 = ssub.s32 1536, 1536
      %78 = vsyncadd [#allocation12], %s77
      %s79 = sshll.u32 [#allocation11], 4
      %s80 = int_to_ptr.vmem [resolvable:$true] %s79
      %85 = dma.hbm_to_vmem [thread:$0]  %s5, 1536, %s80, [#allocation12], 384, 384, 24
    $region25: #{tpu_custom_call.1} parent=1 // pred_fallthru
      _
    // Predicated region
    $region26: #{tpu_custom_call.1} parent=1 // pred_check
      _
    $region27: #{tpu_custom_call.1} parent=1 // pred_check_branch
      %87 = sbr.rel (0) target = $region29
    $region28: #{tpu_custom_call.1} parent=1 // pred_region
      %s89 = ssub.s32 48, 48
      %90 = vsyncadd [#allocation12], %s89
      %s92 = sshll.u32 [#allocation13], 4
      %s93 = int_to_ptr.vmem [resolvable:$true] %s92
      %95 = dma.hbm_to_vmem [thread:$0]  %s6, 48, %s93, [#allocation12]
    $region29: #{tpu_custom_call.1} parent=1 // pred_fallthru
      _
    // Predicated region
    $region30: #{tpu_custom_call.1} parent=1 // pred_check
      _
    $region31: #{tpu_custom_call.1} parent=1 // pred_check_branch
      %97 = sbr.rel (0) target = $region33
    $region32: #{tpu_custom_call.1} parent=1 // pred_region
      _
    $region33: #{tpu_custom_call.1} parent=1 // pred_fallthru
      _
    // Predicated region
    $region34: #{tpu_custom_call.1} parent=1 // pred_check
      _
    $region35: #{tpu_custom_call.1} parent=1 // pred_check_branch
      %99 = sbr.rel (0) target = $region37
    $region36: #{tpu_custom_call.1} parent=1 // pred_region
      %s101 = ssub.s32 26496, 26496
      %102 = vsyncadd [#allocation15], %s101
      %s103 = sshll.u32 [#allocation14], 4
      %s104 = int_to_ptr.vmem [resolvable:$true] %s103
      %109 = dma.hbm_to_vmem [thread:$0]  %s8, 26496, %s104, [#allocation15], 8832, 8832, 552
    $region37: #{tpu_custom_call.1} parent=1 // pred_fallthru
      _
    // Predicated region
    $region38: #{tpu_custom_call.1} parent=1 // pred_check
      _
    $region39: #{tpu_custom_call.1} parent=1 // pred_check_branch
      %111 = sbr.rel (0) target = $region41
    $region40: #{tpu_custom_call.1} parent=1 // pred_region
      %112 = dma.done [#allocation3], 32
    $region41: #{tpu_custom_call.1} parent=1 // pred_fallthru
      _
    // Predicated region
    $region42: #{tpu_custom_call.1} parent=1 // pred_check
      _
    $region43: #{tpu_custom_call.1} parent=1 // pred_check_branch
      %114 = sbr.rel (0) target = $region45
    $region44: #{tpu_custom_call.1} parent=1 // pred_region
      %115 = dma.done [#allocation6], 512
    $region45: #{tpu_custom_call.1} parent=1 // pred_fallthru
      _
    // Predicated region
    $region46: #{tpu_custom_call.1} parent=1 // pred_check
      _
    $region47: #{tpu_custom_call.1} parent=1 // pred_check_branch
      %117 = sbr.rel (0) target = $region49
    $region48: #{tpu_custom_call.1} parent=1 // pred_region
      %118 = dma.done [#allocation6], 16
    $region49: #{tpu_custom_call.1} parent=1 // pred_fallthru
      _
    // Predicated region
    $region50: #{tpu_custom_call.1} parent=1 // pred_check
      _
    $region51: #{tpu_custom_call.1} parent=1 // pred_check_branch
      %120 = sbr.rel (0) target = $region53
    $region52: #{tpu_custom_call.1} parent=1 // pred_region
      %121 = dma.done [#allocation9], 35328
    $region53: #{tpu_custom_call.1} parent=1 // pred_fallthru
      _
    // Predicated region
    $region54: #{tpu_custom_call.1} parent=1 // pred_check
      _
    $region55: #{tpu_custom_call.1} parent=1 // pred_check_branch
      %123 = sbr.rel (0) target = $region57
    $region56: #{tpu_custom_call.1} parent=1 // pred_region
      %124 = dma.done [#allocation9], 2208
    $region57: #{tpu_custom_call.1} parent=1 // pred_fallthru
      _
    // Predicated region
    $region58: #{tpu_custom_call.1} parent=1 // pred_check
      _
    $region59: #{tpu_custom_call.1} parent=1 // pred_check_branch
      %126 = sbr.rel (0) target = $region61
    $region60: #{tpu_custom_call.1} parent=1 // pred_region
      %127 = dma.done [#allocation12], 1536
    $region61: #{tpu_custom_call.1} parent=1 // pred_fallthru
      _
    // Predicated region
    $region62: #{tpu_custom_call.1} parent=1 // pred_check
      _
    $region63: #{tpu_custom_call.1} parent=1 // pred_check_branch
      %129 = sbr.rel (0) target = $region65
    $region64: #{tpu_custom_call.1} parent=1 // pred_region
      %130 = dma.done [#allocation12], 48
    $region65: #{tpu_custom_call.1} parent=1 // pred_fallthru
      _
    // Predicated region
    $region66: #{tpu_custom_call.1} parent=1 // pred_check
      _
    $region67: #{tpu_custom_call.1} parent=1 // pred_check_branch
      %132 = sbr.rel (0) target = $region69
    $region68: #{tpu_custom_call.1} parent=1 // pred_region
      %133 = dma.done [#allocation15], 26496
    $region69: #{tpu_custom_call.1} parent=1 // pred_fallthru
      _
    %v135 = vld [vmem:[#allocation2] sm:$0x3]
    %v136 = vld [vmem:[#allocation5] sm:$0xff]
    %v137 = vld [vmem:[#allocation5 + $0x8] sm:$0xff]
    %v138 = vld [vmem:[#allocation5 + $0x10] sm:$0xff]
    %v139 = vld [vmem:[#allocation5 + $0x18] sm:$0xff]
    %v140 = vld [vmem:[#allocation7] sm:$0x1]
    %v142 = vlaneseq
    %v143 = vshrl.u32 %v142, 7
    %v144 = vsub.s32 0, %v143
    %v145 = vrot.slane %v140, %v144
    %vm147 = vcmask 261120
    %v149 = vsel %vm147, %v135, 0
    %151 = vmatprep.subr.mxu0 0.0
    %152 = vmatpush1.msra.mxu0 %v136
    %153 = vmatprep.subr.mxu0 0.0
    %154 = vmatpush1.msra.mxu0 %v137
    %155 = vmatprep.subr.mxu0 0.0
    %156 = vmatpush1.msra.mxu0 %v138
    %157 = vmatprep.subr.mxu0 0.0
    %158 = vmatpush1.msra.mxu0 %v139
    %159 = vmatprep.subr.mxu0 0.0
    %160 = vmatpush1.msra.mxu0 0.0
    %161 = vmatprep.subr.mxu0 0.0
    %162 = vmatpush1.msra.mxu0 0.0
    %163 = vmatprep.subr.mxu0 0.0
    %164 = vmatpush1.msra.mxu0 0.0
    %165 = vmatprep.subr.mxu0 0.0
    %166 = vmatpush1.msra.mxu0 0.0
    %167 = vmatprep.subr.mxu0 0.0
    %168 = vmatpush1.msra.mxu0 0.0
    %169 = vmatprep.subr.mxu0 0.0
    %170 = vmatpush1.msra.mxu0 0.0
    %171 = vmatprep.subr.mxu0 0.0
    %172 = vmatpush1.msra.mxu0 0.0
    %173 = vmatprep.subr.mxu0 0.0
    %174 = vmatpush1.msra.mxu0 0.0
    %175 = vmatprep.subr.mxu0 0.0
    %176 = vmatpush1.msra.mxu0 0.0
    %177 = vmatprep.subr.mxu0 0.0
    %178 = vmatpush1.msra.mxu0 0.0
    %179 = vmatprep.subr.mxu0 0.0
    %180 = vmatpush1.msra.mxu0 0.0
    %181 = vmatprep.subr.mxu0 0.0
    %182 = vmatpush1.msra.mxu0 0.0
    %183 = vmatprep.subr.mxu0 0.0
    %184 = vmatpush1.msra.mxu0 0.0
    %185 = vmatprep.subr.mxu0 0.0
    %186 = vmatpush1.msra.mxu0 0.0
    %187 = vmatprep.subr.mxu0 0.0
    %188 = vmatpush1.msra.mxu0 0.0
    %189 = vmatprep.subr.mxu0 0.0
    %190 = vmatpush1.msra.mxu0 0.0
    %191 = vmatprep.subr.mxu0 0.0
    %192 = vmatpush1.msra.mxu0 0.0
    %193 = vmatprep.subr.mxu0 0.0
    %194 = vmatpush1.msra.mxu0 0.0
    %195 = vmatprep.subr.mxu0 0.0
    %196 = vmatpush1.msra.mxu0 0.0
    %197 = vmatprep.subr.mxu0 0.0
    %198 = vmatpush1.msra.mxu0 0.0
    %199 = vmatprep.subr.mxu0 0.0
    %200 = vmatpush1.msra.mxu0 0.0
    %201 = vmatprep.subr.mxu0 0.0
    %202 = vmatpush1.msra.mxu0 0.0
    %203 = vmatprep.subr.mxu0 0.0
    %204 = vmatpush1.msra.mxu0 0.0
    %205 = vmatprep.subr.mxu0 0.0
    %206 = vmatpush1.msra.mxu0 0.0
    %207 = vmatprep.subr.mxu0 0.0
    %208 = vmatpush1.msra.mxu0 0.0
    %209 = vmatprep.subr.mxu0 0.0
    %210 = vmatpush1.msra.mxu0 0.0
    %211 = vmatprep.subr.mxu0 0.0
    %212 = vmatpush1.msra.mxu0 0.0
    %213 = vmatprep.subr.mxu0 0.0
    %214 = vmatpush1.msra.mxu0 0.0
    %215 = vmatprep.mubr.f32.mxu0 0.0
    %216 = vmatmul.mubr.f32.gmra.mrb[0].mxu0 %v149
    %v217 = vpop.f32.mrb[0].mxu0
    %v218 = vadd.f32 %v145, %v217
    %v219 = vpop.f32.mrb[0].mxu0
    %220 = vdwg.mxu0
    %vm221 = vcmp.ge.f32.partialorder %v218, 0.0
    %v222 = vmul.f32 %v218, 0.2
    %v223 = vsel %vm221, %v218, %v222
    %v224 = vpack.c.bf16 %v223, %v223
    %v225 = vld [vmem:[#allocation8] sm:$0xff]
    %v226 = vld [vmem:[#allocation8 + $0x8] sm:$0xff]
    %v227 = vld [vmem:[#allocation8 + $0x10] sm:$0xff]
    %v228 = vld [vmem:[#allocation8 + $0x18] sm:$0xff]
    %v229 = vld [vmem:[#allocation8 + $0x20] sm:$0xff]
    %v230 = vld [vmem:[#allocation8 + $0x28] sm:$0xff]
    %v231 = vld [vmem:[#allocation8 + $0x30] sm:$0xff]
    %v232 = vld [vmem:[#allocation8 + $0x38] sm:$0xff]
    %v233 = vld [vmem:[#allocation8 + $0x40] sm:$0xff]
    %v234 = vld [vmem:[#allocation8 + $0x48] sm:$0xff]
    %v235 = vld [vmem:[#allocation8 + $0x50] sm:$0xff]
    %v236 = vld [vmem:[#allocation8 + $0x58] sm:$0xff]
    %v237 = vld [vmem:[#allocation8 + $0x60] sm:$0xff]
    %v238 = vld [vmem:[#allocation8 + $0x68] sm:$0xff]
    %v239 = vld [vmem:[#allocation8 + $0x70] sm:$0xff]
    %v240 = vld [vmem:[#allocation8 + $0x78] sm:$0xff]
    %v241 = vld [vmem:[#allocation8 + $0x80] sm:$0xff]
    %v242 = vld [vmem:[#allocation8 + $0x88] sm:$0xff]
    %v243 = vld [vmem:[#allocation8 + $0x90] sm:$0xff]
    %v244 = vld [vmem:[#allocation8 + $0x98] sm:$0xff]
    %v245 = vld [vmem:[#allocation8 + $0xa0] sm:$0xff]
    %v246 = vld [vmem:[#allocation8 + $0xa8] sm:$0xff]
    %v247 = vld [vmem:[#allocation8 + $0xb0] sm:$0xff]
    %v248 = vld [vmem:[#allocation8 + $0xb8] sm:$0xff]
    %v249 = vld [vmem:[#allocation8 + $0xc0] sm:$0xff]
    %v250 = vld [vmem:[#allocation8 + $0xc8] sm:$0xff]
    %v251 = vld [vmem:[#allocation8 + $0xd0] sm:$0xff]
    %v252 = vld [vmem:[#allocation8 + $0xd8] sm:$0xff]
    %v253 = vld [vmem:[#allocation8 + $0xe0] sm:$0xff]
    %v254 = vld [vmem:[#allocation8 + $0xe8] sm:$0xff]
    %v255 = vld [vmem:[#allocation8 + $0xf0] sm:$0xff]
    %v256 = vld [vmem:[#allocation8 + $0xf8] sm:$0xff]
    %v257 = vld [vmem:[#allocation8 + $0x100] sm:$0xff]
    %v258 = vld [vmem:[#allocation8 + $0x108] sm:$0xff]
    %v259 = vld [vmem:[#allocation8 + $0x110] sm:$0xff]
    %v260 = vld [vmem:[#allocation8 + $0x118] sm:$0xff]
    %v261 = vld [vmem:[#allocation8 + $0x120] sm:$0xff]
    %v262 = vld [vmem:[#allocation8 + $0x128] sm:$0xff]
    %v263 = vld [vmem:[#allocation8 + $0x130] sm:$0xff]
    %v264 = vld [vmem:[#allocation8 + $0x138] sm:$0xff]
    %v265 = vld [vmem:[#allocation8 + $0x140] sm:$0xff]
    %v266 = vld [vmem:[#allocation8 + $0x148] sm:$0xff]
    %v267 = vld [vmem:[#allocation8 + $0x150] sm:$0xff]
    %v268 = vld [vmem:[#allocation8 + $0x158] sm:$0xff]
    %v269 = vld [vmem:[#allocation8 + $0x160] sm:$0xff]
    %v270 = vld [vmem:[#allocation8 + $0x168] sm:$0xff]
    %v271 = vld [vmem:[#allocation8 + $0x170] sm:$0xff]
    %v272 = vld [vmem:[#allocation8 + $0x178] sm:$0xff]
    %v273 = vld [vmem:[#allocation8 + $0x180] sm:$0xff]
    %v274 = vld [vmem:[#allocation8 + $0x188] sm:$0xff]
    %v275 = vld [vmem:[#allocation8 + $0x190] sm:$0xff]
    %v276 = vld [vmem:[#allocation8 + $0x198] sm:$0xff]
    %v277 = vld [vmem:[#allocation8 + $0x1a0] sm:$0xff]
    %v278 = vld [vmem:[#allocation8 + $0x1a8] sm:$0xff]
    %v279 = vld [vmem:[#allocation8 + $0x1b0] sm:$0xff]
    %v280 = vld [vmem:[#allocation8 + $0x1b8] sm:$0xff]
    %v281 = vld [vmem:[#allocation8 + $0x1c0] sm:$0xff]
    %v282 = vld [vmem:[#allocation8 + $0x1c8] sm:$0xff]
    %v283 = vld [vmem:[#allocation8 + $0x1d0] sm:$0xff]
    %v284 = vld [vmem:[#allocation8 + $0x1d8] sm:$0xff]
    %v285 = vld [vmem:[#allocation8 + $0x1e0] sm:$0xff]
    %v286 = vld [vmem:[#allocation8 + $0x1e8] sm:$0xff]
    %v287 = vld [vmem:[#allocation8 + $0x1f0] sm:$0xff]
    %v288 = vld [vmem:[#allocation8 + $0x1f8] sm:$0xff]
    %v289 = vld [vmem:[#allocation8 + $0x200] sm:$0xff]
    %v290 = vld [vmem:[#allocation8 + $0x208] sm:$0xff]
    %v291 = vld [vmem:[#allocation8 + $0x210] sm:$0xff]
    %v292 = vld [vmem:[#allocation8 + $0x218] sm:$0xff]
    %v293 = vld [vmem:[#allocation8 + $0x220] sm:$0xff]
    %v294 = vld [vmem:[#allocation8 + $0x228] sm:$0xff]
    %v295 = vld [vmem:[#allocation8 + $0x230] sm:$0xff]
    %v296 = vld [vmem:[#allocation8 + $0x238] sm:$0xff]
    %v297 = vld [vmem:[#allocation8 + $0x240] sm:$0xff]
    %v298 = vld [vmem:[#allocation8 + $0x248] sm:$0xff]
    %v299 = vld [vmem:[#allocation8 + $0x250] sm:$0xff]
    %v300 = vld [vmem:[#allocation8 + $0x258] sm:$0xff]
    %v301 = vld [vmem:[#allocation8 + $0x260] sm:$0xff]
    %v302 = vld [vmem:[#allocation8 + $0x268] sm:$0xff]
    %v303 = vld [vmem:[#allocation8 + $0x270] sm:$0xff]
    %v304 = vld [vmem:[#allocation8 + $0x278] sm:$0xff]
    %v305 = vld [vmem:[#allocation8 + $0x280] sm:$0xff]
    %v306 = vld [vmem:[#allocation8 + $0x288] sm:$0xff]
    %v307 = vld [vmem:[#allocation8 + $0x290] sm:$0xff]
    %v308 = vld [vmem:[#allocation8 + $0x298] sm:$0xff]
    %v309 = vld [vmem:[#allocation8 + $0x2a0] sm:$0xff]
    %v310 = vld [vmem:[#allocation8 + $0x2a8] sm:$0xff]
    %v311 = vld [vmem:[#allocation8 + $0x2b0] sm:$0xff]
    %v312 = vld [vmem:[#allocation8 + $0x2b8] sm:$0xff]
    %v313 = vld [vmem:[#allocation8 + $0x2c0] sm:$0xff]
    %v314 = vld [vmem:[#allocation8 + $0x2c8] sm:$0xff]
    %v315 = vld [vmem:[#allocation8 + $0x2d0] sm:$0xff]
    %v316 = vld [vmem:[#allocation8 + $0x2d8] sm:$0xff]
    %v317 = vld [vmem:[#allocation8 + $0x2e0] sm:$0xff]
    %v318 = vld [vmem:[#allocation8 + $0x2e8] sm:$0xff]
    %v319 = vld [vmem:[#allocation8 + $0x2f0] sm:$0xff]
    %v320 = vld [vmem:[#allocation8 + $0x2f8] sm:$0xff]
    %v321 = vld [vmem:[#allocation8 + $0x300] sm:$0xff]
    %v322 = vld [vmem:[#allocation8 + $0x308] sm:$0xff]
    %v323 = vld [vmem:[#allocation8 + $0x310] sm:$0xff]
    %v324 = vld [vmem:[#allocation8 + $0x318] sm:$0xff]
    %v325 = vld [vmem:[#allocation8 + $0x320] sm:$0xff]
    %v326 = vld [vmem:[#allocation8 + $0x328] sm:$0xff]
    %v327 = vld [vmem:[#allocation8 + $0x330] sm:$0xff]
    %v328 = vld [vmem:[#allocation8 + $0x338] sm:$0xff]
    %v329 = vld [vmem:[#allocation8 + $0x340] sm:$0xff]
    %v330 = vld [vmem:[#allocation8 + $0x348] sm:$0xff]
    %v331 = vld [vmem:[#allocation8 + $0x350] sm:$0xff]
    %v332 = vld [vmem:[#allocation8 + $0x358] sm:$0xff]
    %v333 = vld [vmem:[#allocation8 + $0x360] sm:$0xff]
    %v334 = vld [vmem:[#allocation8 + $0x368] sm:$0xff]
    %v335 = vld [vmem:[#allocation8 + $0x370] sm:$0xff]
    %v336 = vld [vmem:[#allocation8 + $0x378] sm:$0xff]
    %v337 = vld [vmem:[#allocation8 + $0x380] sm:$0xff]
    %v338 = vld [vmem:[#allocation8 + $0x388] sm:$0xff]
    %v339 = vld [vmem:[#allocation8 + $0x390] sm:$0xff]
    %v340 = vld [vmem:[#allocation8 + $0x398] sm:$0xff]
    %v341 = vld [vmem:[#allocation8 + $0x3a0] sm:$0xff]
    %v342 = vld [vmem:[#allocation8 + $0x3a8] sm:$0xff]
    %v343 = vld [vmem:[#allocation8 + $0x3b0] sm:$0xff]
    %v344 = vld [vmem:[#allocation8 + $0x3b8] sm:$0xff]
    %v345 = vld [vmem:[#allocation8 + $0x3c0] sm:$0xff]
    %v346 = vld [vmem:[#allocation8 + $0x3c8] sm:$0xff]
    %v347 = vld [vmem:[#allocation8 + $0x3d0] sm:$0xff]
    %v348 = vld [vmem:[#allocation8 + $0x3d8] sm:$0xff]
    %v349 = vld [vmem:[#allocation8 + $0x3e0] sm:$0xff]
    %v350 = vld [vmem:[#allocation8 + $0x3e8] sm:$0xff]
    %v351 = vld [vmem:[#allocation8 + $0x3f0] sm:$0xff]
    %v352 = vld [vmem:[#allocation8 + $0x3f8] sm:$0xff]
    %v353 = vld [vmem:[#allocation8 + $0x400] sm:$0xff]
    %v354 = vld [vmem:[#allocation8 + $0x408] sm:$0xff]
    %v355 = vld [vmem:[#allocation8 + $0x410] sm:$0xff]
    %v356 = vld [vmem:[#allocation8 + $0x418] sm:$0xff]
    %v357 = vld [vmem:[#allocation8 + $0x420] sm:$0xff]
    %v358 = vld [vmem:[#allocation8 + $0x428] sm:$0xff]
    %v359 = vld [vmem:[#allocation8 + $0x430] sm:$0xff]
    %v360 = vld [vmem:[#allocation8 + $0x438] sm:$0xff]
    %v361 = vld [vmem:[#allocation8 + $0x440] sm:$0xff]
    %v362 = vld [vmem:[#allocation8 + $0x448] sm:$0xff]
    %v363 = vld [vmem:[#allocation8 + $0x450] sm:$0xff]
    %v364 = vld [vmem:[#allocation8 + $0x458] sm:$0xff]
    %v365 = vld [vmem:[#allocation8 + $0x460] sm:$0xff]
    %v366 = vld [vmem:[#allocation8 + $0x468] sm:$0xff]
    %v367 = vld [vmem:[#allocation8 + $0x470] sm:$0xff]
    %v368 = vld [vmem:[#allocation8 + $0x478] sm:$0xff]
    %v369 = vld [vmem:[#allocation8 + $0x480] sm:$0xff]
    %v370 = vld [vmem:[#allocation8 + $0x488] sm:$0xff]
    %v371 = vld [vmem:[#allocation8 + $0x490] sm:$0xff]
    %v372 = vld [vmem:[#allocation8 + $0x498] sm:$0xff]
    %v373 = vld [vmem:[#allocation8 + $0x4a0] sm:$0xff]
    %v374 = vld [vmem:[#allocation8 + $0x4a8] sm:$0xff]
    %v375 = vld [vmem:[#allocation8 + $0x4b0] sm:$0xff]
    %v376 = vld [vmem:[#allocation8 + $0x4b8] sm:$0xff]
    %v377 = vld [vmem:[#allocation8 + $0x4c0] sm:$0xff]
    %v378 = vld [vmem:[#allocation8 + $0x4c8] sm:$0xff]
    %v379 = vld [vmem:[#allocation8 + $0x4d0] sm:$0xff]
    %v380 = vld [vmem:[#allocation8 + $0x4d8] sm:$0xff]
    %v381 = vld [vmem:[#allocation8 + $0x4e0] sm:$0xff]
    %v382 = vld [vmem:[#allocation8 + $0x4e8] sm:$0xff]
    %v383 = vld [vmem:[#allocation8 + $0x4f0] sm:$0xff]
    %v384 = vld [vmem:[#allocation8 + $0x4f8] sm:$0xff]
    %v385 = vld [vmem:[#allocation8 + $0x500] sm:$0xff]
    %v386 = vld [vmem:[#allocation8 + $0x508] sm:$0xff]
    %v387 = vld [vmem:[#allocation8 + $0x510] sm:$0xff]
    %v388 = vld [vmem:[#allocation8 + $0x518] sm:$0xff]
    %v389 = vld [vmem:[#allocation8 + $0x520] sm:$0xff]
    %v390 = vld [vmem:[#allocation8 + $0x528] sm:$0xff]
    %v391 = vld [vmem:[#allocation8 + $0x530] sm:$0xff]
    %v392 = vld [vmem:[#allocation8 + $0x538] sm:$0xff]
    %v393 = vld [vmem:[#allocation8 + $0x540] sm:$0xff]
    %v394 = vld [vmem:[#allocation8 + $0x548] sm:$0xff]
    %v395 = vld [vmem:[#allocation8 + $0x550] sm:$0xff]
    %v396 = vld [vmem:[#allocation8 + $0x558] sm:$0xff]
    %v397 = vld [vmem:[#allocation8 + $0x560] sm:$0xff]
    %v398 = vld [vmem:[#allocation8 + $0x568] sm:$0xff]
    %v399 = vld [vmem:[#allocation8 + $0x570] sm:$0xff]
    %v400 = vld [vmem:[#allocation8 + $0x578] sm:$0xff]
    %v401 = vld [vmem:[#allocation8 + $0x580] sm:$0xff]
    %v402 = vld [vmem:[#allocation8 + $0x588] sm:$0xff]
    %v403 = vld [vmem:[#allocation8 + $0x590] sm:$0xff]
    %v404 = vld [vmem:[#allocation8 + $0x598] sm:$0xff]
    %v405 = vld [vmem:[#allocation8 + $0x5a0] sm:$0xff]
    %v406 = vld [vmem:[#allocation8 + $0x5a8] sm:$0xff]
    %v407 = vld [vmem:[#allocation8 + $0x5b0] sm:$0xff]
    %v408 = vld [vmem:[#allocation8 + $0x5b8] sm:$0xff]
    %v409 = vld [vmem:[#allocation8 + $0x5c0] sm:$0xff]
    %v410 = vld [vmem:[#allocation8 + $0x5c8] sm:$0xff]
    %v411 = vld [vmem:[#allocation8 + $0x5d0] sm:$0xff]
    %v412 = vld [vmem:[#allocation8 + $0x5d8] sm:$0xff]
    %v413 = vld [vmem:[#allocation8 + $0x5e0] sm:$0xff]
    %v414 = vld [vmem:[#allocation8 + $0x5e8] sm:$0xff]
    %v415 = vld [vmem:[#allocation8 + $0x5f0] sm:$0xff]
    %v416 = vld [vmem:[#allocation8 + $0x5f8] sm:$0xff]
    %v417 = vld [vmem:[#allocation8 + $0x600] sm:$0xff]
    %v418 = vld [vmem:[#allocation8 + $0x608] sm:$0xff]
    %v419 = vld [vmem:[#allocation8 + $0x610] sm:$0xff]
    %v420 = vld [vmem:[#allocation8 + $0x618] sm:$0xff]
    %v421 = vld [vmem:[#allocation8 + $0x620] sm:$0xff]
    %v422 = vld [vmem:[#allocation8 + $0x628] sm:$0xff]
    %v423 = vld [vmem:[#allocation8 + $0x630] sm:$0xff]
    %v424 = vld [vmem:[#allocation8 + $0x638] sm:$0xff]
    %v425 = vld [vmem:[#allocation8 + $0x640] sm:$0xff]
    %v426 = vld [vmem:[#allocation8 + $0x648] sm:$0xff]
    %v427 = vld [vmem:[#allocation8 + $0x650] sm:$0xff]
    %v428 = vld [vmem:[#allocation8 + $0x658] sm:$0xff]
    %v429 = vld [vmem:[#allocation8 + $0x660] sm:$0xff]
    %v430 = vld [vmem:[#allocation8 + $0x668] sm:$0xff]
    %v431 = vld [vmem:[#allocation8 + $0x670] sm:$0xff]
    %v432 = vld [vmem:[#allocation8 + $0x678] sm:$0xff]
    %v433 = vld [vmem:[#allocation8 + $0x680] sm:$0xff]
    %v434 = vld [vmem:[#allocation8 + $0x688] sm:$0xff]
    %v435 = vld [vmem:[#allocation8 + $0x690] sm:$0xff]
    %v436 = vld [vmem:[#allocation8 + $0x698] sm:$0xff]
    %v437 = vld [vmem:[#allocation8 + $0x6a0] sm:$0xff]
    %v438 = vld [vmem:[#allocation8 + $0x6a8] sm:$0xff]
    %v439 = vld [vmem:[#allocation8 + $0x6b0] sm:$0xff]
    %v440 = vld [vmem:[#allocation8 + $0x6b8] sm:$0xff]
    %v441 = vld [vmem:[#allocation8 + $0x6c0] sm:$0xff]
    %v442 = vld [vmem:[#allocation8 + $0x6c8] sm:$0xff]
    %v443 = vld [vmem:[#allocation8 + $0x6d0] sm:$0xff]
    %v444 = vld [vmem:[#allocation8 + $0x6d8] sm:$0xff]
    %v445 = vld [vmem:[#allocation8 + $0x6e0] sm:$0xff]
    %v446 = vld [vmem:[#allocation8 + $0x6e8] sm:$0xff]
    %v447 = vld [vmem:[#allocation8 + $0x6f0] sm:$0xff]
    %v448 = vld [vmem:[#allocation8 + $0x6f8] sm:$0xff]
    %v449 = vld [vmem:[#allocation8 + $0x700] sm:$0xff]
    %v450 = vld [vmem:[#allocation8 + $0x708] sm:$0xff]
    %v451 = vld [vmem:[#allocation8 + $0x710] sm:$0xff]
    %v452 = vld [vmem:[#allocation8 + $0x718] sm:$0xff]
    %v453 = vld [vmem:[#allocation8 + $0x720] sm:$0xff]
    %v454 = vld [vmem:[#allocation8 + $0x728] sm:$0xff]
    %v455 = vld [vmem:[#allocation8 + $0x730] sm:$0xff]
    %v456 = vld [vmem:[#allocation8 + $0x738] sm:$0xff]
    %v457 = vld [vmem:[#allocation8 + $0x740] sm:$0xff]
    %v458 = vld [vmem:[#allocation8 + $0x748] sm:$0xff]
    %v459 = vld [vmem:[#allocation8 + $0x750] sm:$0xff]
    %v460 = vld [vmem:[#allocation8 + $0x758] sm:$0xff]
    %v461 = vld [vmem:[#allocation8 + $0x760] sm:$0xff]
    %v462 = vld [vmem:[#allocation8 + $0x768] sm:$0xff]
    %v463 = vld [vmem:[#allocation8 + $0x770] sm:$0xff]
    %v464 = vld [vmem:[#allocation8 + $0x778] sm:$0xff]
    %v465 = vld [vmem:[#allocation8 + $0x780] sm:$0xff]
    %v466 = vld [vmem:[#allocation8 + $0x788] sm:$0xff]
    %v467 = vld [vmem:[#allocation8 + $0x790] sm:$0xff]
    %v468 = vld [vmem:[#allocation8 + $0x798] sm:$0xff]
    %v469 = vld [vmem:[#allocation8 + $0x7a0] sm:$0xff]
    %v470 = vld [vmem:[#allocation8 + $0x7a8] sm:$0xff]
    %v471 = vld [vmem:[#allocation8 + $0x7b0] sm:$0xff]
    %v472 = vld [vmem:[#allocation8 + $0x7b8] sm:$0xff]
    %v473 = vld [vmem:[#allocation8 + $0x7c0] sm:$0xff]
    %v474 = vld [vmem:[#allocation8 + $0x7c8] sm:$0xff]
    %v475 = vld [vmem:[#allocation8 + $0x7d0] sm:$0xff]
    %v476 = vld [vmem:[#allocation8 + $0x7d8] sm:$0xff]
    %v477 = vld [vmem:[#allocation8 + $0x7e0] sm:$0xff]
    %v478 = vld [vmem:[#allocation8 + $0x7e8] sm:$0xff]
    %v479 = vld [vmem:[#allocation8 + $0x7f0] sm:$0xff]
    %v480 = vld [vmem:[#allocation8 + $0x7f8] sm:$0xff]
    %v481 = vld [vmem:[#allocation8 + $0x800] sm:$0xff]
    %v482 = vld [vmem:[#allocation8 + $0x808] sm:$0xff]
    %v483 = vld [vmem:[#allocation8 + $0x810] sm:$0xff]
    %v484 = vld [vmem:[#allocation8 + $0x818] sm:$0xff]
    %v485 = vld [vmem:[#allocation8 + $0x820] sm:$0xff]
    %v486 = vld [vmem:[#allocation8 + $0x828] sm:$0xff]
    %v487 = vld [vmem:[#allocation8 + $0x830] sm:$0xff]
    %v488 = vld [vmem:[#allocation8 + $0x838] sm:$0xff]
    %v489 = vld [vmem:[#allocation8 + $0x840] sm:$0xff]
    %v490 = vld [vmem:[#allocation8 + $0x848] sm:$0xff]
    %v491 = vld [vmem:[#allocation8 + $0x850] sm:$0xff]
    %v492 = vld [vmem:[#allocation8 + $0x858] sm:$0xff]
    %v493 = vld [vmem:[#allocation8 + $0x860] sm:$0xff]
    %v494 = vld [vmem:[#allocation8 + $0x868] sm:$0xff]
    %v495 = vld [vmem:[#allocation8 + $0x870] sm:$0xff]
    %v496 = vld [vmem:[#allocation8 + $0x878] sm:$0xff]
    %v497 = vld [vmem:[#allocation8 + $0x880] sm:$0xff]
    %v498 = vld [vmem:[#allocation8 + $0x888] sm:$0xff]
    %v499 = vld [vmem:[#allocation8 + $0x890] sm:$0xff]
    %v500 = vld [vmem:[#allocation8 + $0x898] sm:$0xff]
    %v501 = vld [vmem:[#allocation10] sm:$0xff]
    %v502 = vld [vmem:[#allocation10 + $0x8] sm:$0xff]
    %v503 = vld [vmem:[#allocation10 + $0x10] sm:$0xff]
    %v504 = vld [vmem:[#allocation10 + $0x18] sm:$0xff]
    %v505 = vld [vmem:[#allocation10 + $0x20] sm:$0xff]
    %v506 = vld [vmem:[#allocation10 + $0x28] sm:$0xff]
    %v507 = vld [vmem:[#allocation10 + $0x30] sm:$0xff]
    %v508 = vld [vmem:[#allocation10 + $0x38] sm:$0xff]
    %v509 = vld [vmem:[#allocation10 + $0x40] sm:$0xff]
    %v510 = vld [vmem:[#allocation10 + $0x48] sm:$0xff]
    %v511 = vld [vmem:[#allocation10 + $0x50] sm:$0xff]
    %v512 = vld [vmem:[#allocation10 + $0x58] sm:$0xff]
    %v513 = vld [vmem:[#allocation10 + $0x60] sm:$0xff]
    %v514 = vld [vmem:[#allocation10 + $0x68] sm:$0xff]
    %v515 = vld [vmem:[#allocation10 + $0x70] sm:$0xff]
    %v516 = vld [vmem:[#allocation10 + $0x78] sm:$0xff]
    %v517 = vld [vmem:[#allocation10 + $0x80] sm:$0xff]
    %v518 = vld [vmem:[#allocation10 + $0x88] sm:$0x3]
    %v537 = vlaneseq
    %v538 = vshrl.u32 %v537, 7
    %v539 = vsub.s32 0, %v538
    %v540 = vrot.slane %v501, %v539
    %v541 = vlaneseq
    %v542 = vshrl.u32 %v541, 7
    %v543 = vsub.s32 1, %v542
    %v544 = vrot.slane %v501, %v543
    %v545 = vlaneseq
    %v546 = vshrl.u32 %v545, 7
    %v547 = vsub.s32 2, %v546
    %v548 = vrot.slane %v501, %v547
    %v549 = vlaneseq
    %v550 = vshrl.u32 %v549, 7
    %v551 = vsub.s32 3, %v550
    %v552 = vrot.slane %v501, %v551
    %v553 = vlaneseq
    %v554 = vshrl.u32 %v553, 7
    %v555 = vsub.s32 4, %v554
    %v556 = vrot.slane %v501, %v555
    %v557 = vlaneseq
    %v558 = vshrl.u32 %v557, 7
    %v559 = vsub.s32 5, %v558
    %v560 = vrot.slane %v501, %v559
    %v561 = vlaneseq
    %v562 = vshrl.u32 %v561, 7
    %v563 = vsub.s32 6, %v562
    %v564 = vrot.slane %v501, %v563
    %v565 = vlaneseq
    %v566 = vshrl.u32 %v565, 7
    %v567 = vsub.s32 7, %v566
    %v568 = vrot.slane %v501, %v567
    %v569 = vlaneseq
    %v570 = vshrl.u32 %v569, 7
    %v571 = vsub.s32 0, %v570
    %v572 = vrot.slane %v502, %v571
    %v573 = vlaneseq
    %v574 = vshrl.u32 %v573, 7
    %v575 = vsub.s32 1, %v574
    %v576 = vrot.slane %v502, %v575
    %v577 = vlaneseq
    %v578 = vshrl.u32 %v577, 7
    %v579 = vsub.s32 2, %v578
    %v580 = vrot.slane %v502, %v579
    %v581 = vlaneseq
    %v582 = vshrl.u32 %v581, 7
    %v583 = vsub.s32 3, %v582
    %v584 = vrot.slane %v502, %v583
    %v585 = vlaneseq
    %v586 = vshrl.u32 %v585, 7
    %v587 = vsub.s32 4, %v586
    %v588 = vrot.slane %v502, %v587
    %v589 = vlaneseq
    %v590 = vshrl.u32 %v589, 7
    %v591 = vsub.s32 5, %v590
    %v592 = vrot.slane %v502, %v591
    %v593 = vlaneseq
    %v594 = vshrl.u32 %v593, 7
    %v595 = vsub.s32 6, %v594
    %v596 = vrot.slane %v502, %v595
    %v597 = vlaneseq
    %v598 = vshrl.u32 %v597, 7
    %v599 = vsub.s32 7, %v598
    %v600 = vrot.slane %v502, %v599
    %v601 = vlaneseq
    %v602 = vshrl.u32 %v601, 7
    %v603 = vsub.s32 0, %v602
    %v604 = vrot.slane %v503, %v603
    %v605 = vlaneseq
    %v606 = vshrl.u32 %v605, 7
    %v607 = vsub.s32 1, %v606
    %v608 = vrot.slane %v503, %v607
    %v609 = vlaneseq
    %v610 = vshrl.u32 %v609, 7
    %v611 = vsub.s32 2, %v610
    %v612 = vrot.slane %v503, %v611
    %v613 = vlaneseq
    %v614 = vshrl.u32 %v613, 7
    %v615 = vsub.s32 3, %v614
    %v616 = vrot.slane %v503, %v615
    %v617 = vlaneseq
    %v618 = vshrl.u32 %v617, 7
    %v619 = vsub.s32 4, %v618
    %v620 = vrot.slane %v503, %v619
    %v621 = vlaneseq
    %v622 = vshrl.u32 %v621, 7
    %v623 = vsub.s32 5, %v622
    %v624 = vrot.slane %v503, %v623
    %v625 = vlaneseq
    %v626 = vshrl.u32 %v625, 7
    %v627 = vsub.s32 6, %v626
    %v628 = vrot.slane %v503, %v627
    %v629 = vlaneseq
    %v630 = vshrl.u32 %v629, 7
    %v631 = vsub.s32 7, %v630
    %v632 = vrot.slane %v503, %v631
    %v633 = vlaneseq
    %v634 = vshrl.u32 %v633, 7
    %v635 = vsub.s32 0, %v634
    %v636 = vrot.slane %v504, %v635
    %v637 = vlaneseq
    %v638 = vshrl.u32 %v637, 7
    %v639 = vsub.s32 1, %v638
    %v640 = vrot.slane %v504, %v639
    %v641 = vlaneseq
    %v642 = vshrl.u32 %v641, 7
    %v643 = vsub.s32 2, %v642
    %v644 = vrot.slane %v504, %v643
    %v645 = vlaneseq
    %v646 = vshrl.u32 %v645, 7
    %v647 = vsub.s32 3, %v646
    %v648 = vrot.slane %v504, %v647
    %v649 = vlaneseq
    %v650 = vshrl.u32 %v649, 7
    %v651 = vsub.s32 4, %v650
    %v652 = vrot.slane %v504, %v651
    %v653 = vlaneseq
    %v654 = vshrl.u32 %v653, 7
    %v655 = vsub.s32 5, %v654
    %v656 = vrot.slane %v504, %v655
    %v657 = vlaneseq
    %v658 = vshrl.u32 %v657, 7
    %v659 = vsub.s32 6, %v658
    %v660 = vrot.slane %v504, %v659
    %v661 = vlaneseq
    %v662 = vshrl.u32 %v661, 7
    %v663 = vsub.s32 7, %v662
    %v664 = vrot.slane %v504, %v663
    %v665 = vlaneseq
    %v666 = vshrl.u32 %v665, 7
    %v667 = vsub.s32 0, %v666
    %v668 = vrot.slane %v505, %v667
    %v669 = vlaneseq
    %v670 = vshrl.u32 %v669, 7
    %v671 = vsub.s32 1, %v670
    %v672 = vrot.slane %v505, %v671
    %v673 = vlaneseq
    %v674 = vshrl.u32 %v673, 7
    %v675 = vsub.s32 2, %v674
    %v676 = vrot.slane %v505, %v675
    %v677 = vlaneseq
    %v678 = vshrl.u32 %v677, 7
    %v679 = vsub.s32 3, %v678
    %v680 = vrot.slane %v505, %v679
    %v681 = vlaneseq
    %v682 = vshrl.u32 %v681, 7
    %v683 = vsub.s32 4, %v682
    %v684 = vrot.slane %v505, %v683
    %v685 = vlaneseq
    %v686 = vshrl.u32 %v685, 7
    %v687 = vsub.s32 5, %v686
    %v688 = vrot.slane %v505, %v687
    %v689 = vlaneseq
    %v690 = vshrl.u32 %v689, 7
    %v691 = vsub.s32 6, %v690
    %v692 = vrot.slane %v505, %v691
    %v693 = vlaneseq
    %v694 = vshrl.u32 %v693, 7
    %v695 = vsub.s32 7, %v694
    %v696 = vrot.slane %v505, %v695
    %v697 = vlaneseq
    %v698 = vshrl.u32 %v697, 7
    %v699 = vsub.s32 0, %v698
    %v700 = vrot.slane %v506, %v699
    %v701 = vlaneseq
    %v702 = vshrl.u32 %v701, 7
    %v703 = vsub.s32 1, %v702
    %v704 = vrot.slane %v506, %v703
    %v705 = vlaneseq
    %v706 = vshrl.u32 %v705, 7
    %v707 = vsub.s32 2, %v706
    %v708 = vrot.slane %v506, %v707
    %v709 = vlaneseq
    %v710 = vshrl.u32 %v709, 7
    %v711 = vsub.s32 3, %v710
    %v712 = vrot.slane %v506, %v711
    %v713 = vlaneseq
    %v714 = vshrl.u32 %v713, 7
    %v715 = vsub.s32 4, %v714
    %v716 = vrot.slane %v506, %v715
    %v717 = vlaneseq
    %v718 = vshrl.u32 %v717, 7
    %v719 = vsub.s32 5, %v718
    %v720 = vrot.slane %v506, %v719
    %v721 = vlaneseq
    %v722 = vshrl.u32 %v721, 7
    %v723 = vsub.s32 6, %v722
    %v724 = vrot.slane %v506, %v723
    %v725 = vlaneseq
    %v726 = vshrl.u32 %v725, 7
    %v727 = vsub.s32 7, %v726
    %v728 = vrot.slane %v506, %v727
    %v729 = vlaneseq
    %v730 = vshrl.u32 %v729, 7
    %v731 = vsub.s32 0, %v730
    %v732 = vrot.slane %v507, %v731
    %v733 = vlaneseq
    %v734 = vshrl.u32 %v733, 7
    %v735 = vsub.s32 1, %v734
    %v736 = vrot.slane %v507, %v735
    %v737 = vlaneseq
    %v738 = vshrl.u32 %v737, 7
    %v739 = vsub.s32 2, %v738
    %v740 = vrot.slane %v507, %v739
    %v741 = vlaneseq
    %v742 = vshrl.u32 %v741, 7
    %v743 = vsub.s32 3, %v742
    %v744 = vrot.slane %v507, %v743
    %v745 = vlaneseq
    %v746 = vshrl.u32 %v745, 7
    %v747 = vsub.s32 4, %v746
    %v748 = vrot.slane %v507, %v747
    %v749 = vlaneseq
    %v750 = vshrl.u32 %v749, 7
    %v751 = vsub.s32 5, %v750
    %v752 = vrot.slane %v507, %v751
    %v753 = vlaneseq
    %v754 = vshrl.u32 %v753, 7
    %v755 = vsub.s32 6, %v754
    %v756 = vrot.slane %v507, %v755
    %v757 = vlaneseq
    %v758 = vshrl.u32 %v757, 7
    %v759 = vsub.s32 7, %v758
    %v760 = vrot.slane %v507, %v759
    %v761 = vlaneseq
    %v762 = vshrl.u32 %v761, 7
    %v763 = vsub.s32 0, %v762
    %v764 = vrot.slane %v508, %v763
    %v765 = vlaneseq
    %v766 = vshrl.u32 %v765, 7
    %v767 = vsub.s32 1, %v766
    %v768 = vrot.slane %v508, %v767
    %v769 = vlaneseq
    %v770 = vshrl.u32 %v769, 7
    %v771 = vsub.s32 2, %v770
    %v772 = vrot.slane %v508, %v771
    %v773 = vlaneseq
    %v774 = vshrl.u32 %v773, 7
    %v775 = vsub.s32 3, %v774
    %v776 = vrot.slane %v508, %v775
    %v777 = vlaneseq
    %v778 = vshrl.u32 %v777, 7
    %v779 = vsub.s32 4, %v778
    %v780 = vrot.slane %v508, %v779
    %v781 = vlaneseq
    %v782 = vshrl.u32 %v781, 7
    %v783 = vsub.s32 5, %v782
    %v784 = vrot.slane %v508, %v783
    %v785 = vlaneseq
    %v786 = vshrl.u32 %v785, 7
    %v787 = vsub.s32 6, %v786
    %v788 = vrot.slane %v508, %v787
    %v789 = vlaneseq
    %v790 = vshrl.u32 %v789, 7
    %v791 = vsub.s32 7, %v790
    %v792 = vrot.slane %v508, %v791
    %v793 = vlaneseq
    %v794 = vshrl.u32 %v793, 7
    %v795 = vsub.s32 0, %v794
    %v796 = vrot.slane %v509, %v795
    %v797 = vlaneseq
    %v798 = vshrl.u32 %v797, 7
    %v799 = vsub.s32 1, %v798
    %v800 = vrot.slane %v509, %v799
    %v801 = vlaneseq
    %v802 = vshrl.u32 %v801, 7
    %v803 = vsub.s32 2, %v802
    %v804 = vrot.slane %v509, %v803
    %v805 = vlaneseq
    %v806 = vshrl.u32 %v805, 7
    %v807 = vsub.s32 3, %v806
    %v808 = vrot.slane %v509, %v807
    %v809 = vlaneseq
    %v810 = vshrl.u32 %v809, 7
    %v811 = vsub.s32 4, %v810
    %v812 = vrot.slane %v509, %v811
    %v813 = vlaneseq
    %v814 = vshrl.u32 %v813, 7
    %v815 = vsub.s32 5, %v814
    %v816 = vrot.slane %v509, %v815
    %v817 = vlaneseq
    %v818 = vshrl.u32 %v817, 7
    %v819 = vsub.s32 6, %v818
    %v820 = vrot.slane %v509, %v819
    %v821 = vlaneseq
    %v822 = vshrl.u32 %v821, 7
    %v823 = vsub.s32 7, %v822
    %v824 = vrot.slane %v509, %v823
    %v825 = vlaneseq
    %v826 = vshrl.u32 %v825, 7
    %v827 = vsub.s32 0, %v826
    %v828 = vrot.slane %v510, %v827
    %v829 = vlaneseq
    %v830 = vshrl.u32 %v829, 7
    %v831 = vsub.s32 1, %v830
    %v832 = vrot.slane %v510, %v831
    %v833 = vlaneseq
    %v834 = vshrl.u32 %v833, 7
    %v835 = vsub.s32 2, %v834
    %v836 = vrot.slane %v510, %v835
    %v837 = vlaneseq
    %v838 = vshrl.u32 %v837, 7
    %v839 = vsub.s32 3, %v838
    %v840 = vrot.slane %v510, %v839
    %v841 = vlaneseq
    %v842 = vshrl.u32 %v841, 7
    %v843 = vsub.s32 4, %v842
    %v844 = vrot.slane %v510, %v843
    %v845 = vlaneseq
    %v846 = vshrl.u32 %v845, 7
    %v847 = vsub.s32 5, %v846
    %v848 = vrot.slane %v510, %v847
    %v849 = vlaneseq
    %v850 = vshrl.u32 %v849, 7
    %v851 = vsub.s32 6, %v850
    %v852 = vrot.slane %v510, %v851
    %v853 = vlaneseq
    %v854 = vshrl.u32 %v853, 7
    %v855 = vsub.s32 7, %v854
    %v856 = vrot.slane %v510, %v855
    %v857 = vlaneseq
    %v858 = vshrl.u32 %v857, 7
    %v859 = vsub.s32 0, %v858
    %v860 = vrot.slane %v511, %v859
    %v861 = vlaneseq
    %v862 = vshrl.u32 %v861, 7
    %v863 = vsub.s32 1, %v862
    %v864 = vrot.slane %v511, %v863
    %v865 = vlaneseq
    %v866 = vshrl.u32 %v865, 7
    %v867 = vsub.s32 2, %v866
    %v868 = vrot.slane %v511, %v867
    %v869 = vlaneseq
    %v870 = vshrl.u32 %v869, 7
    %v871 = vsub.s32 3, %v870
    %v872 = vrot.slane %v511, %v871
    %v873 = vlaneseq
    %v874 = vshrl.u32 %v873, 7
    %v875 = vsub.s32 4, %v874
    %v876 = vrot.slane %v511, %v875
    %v877 = vlaneseq
    %v878 = vshrl.u32 %v877, 7
    %v879 = vsub.s32 5, %v878
    %v880 = vrot.slane %v511, %v879
    %v881 = vlaneseq
    %v882 = vshrl.u32 %v881, 7
    %v883 = vsub.s32 6, %v882
    %v884 = vrot.slane %v511, %v883
    %v885 = vlaneseq
    %v886 = vshrl.u32 %v885, 7
    %v887 = vsub.s32 7, %v886
    %v888 = vrot.slane %v511, %v887
    %v889 = vlaneseq
    %v890 = vshrl.u32 %v889, 7
    %v891 = vsub.s32 0, %v890
    %v892 = vrot.slane %v512, %v891
    %v893 = vlaneseq
    %v894 = vshrl.u32 %v893, 7
    %v895 = vsub.s32 1, %v894
    %v896 = vrot.slane %v512, %v895
    %v897 = vlaneseq
    %v898 = vshrl.u32 %v897, 7
    %v899 = vsub.s32 2, %v898
    %v900 = vrot.slane %v512, %v899
    %v901 = vlaneseq
    %v902 = vshrl.u32 %v901, 7
    %v903 = vsub.s32 3, %v902
    %v904 = vrot.slane %v512, %v903
    %v905 = vlaneseq
    %v906 = vshrl.u32 %v905, 7
    %v907 = vsub.s32 4, %v906
    %v908 = vrot.slane %v512, %v907
    %v909 = vlaneseq
    %v910 = vshrl.u32 %v909, 7
    %v911 = vsub.s32 5, %v910
    %v912 = vrot.slane %v512, %v911
    %v913 = vlaneseq
    %v914 = vshrl.u32 %v913, 7
    %v915 = vsub.s32 6, %v914
    %v916 = vrot.slane %v512, %v915
    %v917 = vlaneseq
    %v918 = vshrl.u32 %v917, 7
    %v919 = vsub.s32 7, %v918
    %v920 = vrot.slane %v512, %v919
    %v921 = vlaneseq
    %v922 = vshrl.u32 %v921, 7
    %v923 = vsub.s32 0, %v922
    %v924 = vrot.slane %v513, %v923
    %v925 = vlaneseq
    %v926 = vshrl.u32 %v925, 7
    %v927 = vsub.s32 1, %v926
    %v928 = vrot.slane %v513, %v927
    %v929 = vlaneseq
    %v930 = vshrl.u32 %v929, 7
    %v931 = vsub.s32 2, %v930
    %v932 = vrot.slane %v513, %v931
    %v933 = vlaneseq
    %v934 = vshrl.u32 %v933, 7
    %v935 = vsub.s32 3, %v934
    %v936 = vrot.slane %v513, %v935
    %v937 = vlaneseq
    %v938 = vshrl.u32 %v937, 7
    %v939 = vsub.s32 4, %v938
    %v940 = vrot.slane %v513, %v939
    %v941 = vlaneseq
    %v942 = vshrl.u32 %v941, 7
    %v943 = vsub.s32 5, %v942
    %v944 = vrot.slane %v513, %v943
    %v945 = vlaneseq
    %v946 = vshrl.u32 %v945, 7
    %v947 = vsub.s32 6, %v946
    %v948 = vrot.slane %v513, %v947
    %v949 = vlaneseq
    %v950 = vshrl.u32 %v949, 7
    %v951 = vsub.s32 7, %v950
    %v952 = vrot.slane %v513, %v951
    %v953 = vlaneseq
    %v954 = vshrl.u32 %v953, 7
    %v955 = vsub.s32 0, %v954
    %v956 = vrot.slane %v514, %v955
    %v957 = vlaneseq
    %v958 = vshrl.u32 %v957, 7
    %v959 = vsub.s32 1, %v958
    %v960 = vrot.slane %v514, %v959
    %v961 = vlaneseq
    %v962 = vshrl.u32 %v961, 7
    %v963 = vsub.s32 2, %v962
    %v964 = vrot.slane %v514, %v963
    %v965 = vlaneseq
    %v966 = vshrl.u32 %v965, 7
    %v967 = vsub.s32 3, %v966
    %v968 = vrot.slane %v514, %v967
    %v969 = vlaneseq
    %v970 = vshrl.u32 %v969, 7
    %v971 = vsub.s32 4, %v970
    %v972 = vrot.slane %v514, %v971
    %v973 = vlaneseq
    %v974 = vshrl.u32 %v973, 7
    %v975 = vsub.s32 5, %v974
    %v976 = vrot.slane %v514, %v975
    %v977 = vlaneseq
    %v978 = vshrl.u32 %v977, 7
    %v979 = vsub.s32 6, %v978
    %v980 = vrot.slane %v514, %v979
    %v981 = vlaneseq
    %v982 = vshrl.u32 %v981, 7
    %v983 = vsub.s32 7, %v982
    %v984 = vrot.slane %v514, %v983
    %v985 = vlaneseq
    %v986 = vshrl.u32 %v985, 7
    %v987 = vsub.s32 0, %v986
    %v988 = vrot.slane %v515, %v987
    %v989 = vlaneseq
    %v990 = vshrl.u32 %v989, 7
    %v991 = vsub.s32 1, %v990
    %v992 = vrot.slane %v515, %v991
    %v993 = vlaneseq
    %v994 = vshrl.u32 %v993, 7
    %v995 = vsub.s32 2, %v994
    %v996 = vrot.slane %v515, %v995
    %v997 = vlaneseq
    %v998 = vshrl.u32 %v997, 7
    %v999 = vsub.s32 3, %v998
    %v1000 = vrot.slane %v515, %v999
    %v1001 = vlaneseq
    %v1002 = vshrl.u32 %v1001, 7
    %v1003 = vsub.s32 4, %v1002
    %v1004 = vrot.slane %v515, %v1003
    %v1005 = vlaneseq
    %v1006 = vshrl.u32 %v1005, 7
    %v1007 = vsub.s32 5, %v1006
    %v1008 = vrot.slane %v515, %v1007
    %v1009 = vlaneseq
    %v1010 = vshrl.u32 %v1009, 7
    %v1011 = vsub.s32 6, %v1010
    %v1012 = vrot.slane %v515, %v1011
    %v1013 = vlaneseq
    %v1014 = vshrl.u32 %v1013, 7
    %v1015 = vsub.s32 7, %v1014
    %v1016 = vrot.slane %v515, %v1015
    %v1017 = vlaneseq
    %v1018 = vshrl.u32 %v1017, 7
    %v1019 = vsub.s32 0, %v1018
    %v1020 = vrot.slane %v516, %v1019
    %v1021 = vlaneseq
    %v1022 = vshrl.u32 %v1021, 7
    %v1023 = vsub.s32 1, %v1022
    %v1024 = vrot.slane %v516, %v1023
    %v1025 = vlaneseq
    %v1026 = vshrl.u32 %v1025, 7
    %v1027 = vsub.s32 2, %v1026
    %v1028 = vrot.slane %v516, %v1027
    %v1029 = vlaneseq
    %v1030 = vshrl.u32 %v1029, 7
    %v1031 = vsub.s32 3, %v1030
    %v1032 = vrot.slane %v516, %v1031
    %v1033 = vlaneseq
    %v1034 = vshrl.u32 %v1033, 7
    %v1035 = vsub.s32 4, %v1034
    %v1036 = vrot.slane %v516, %v1035
    %v1037 = vlaneseq
    %v1038 = vshrl.u32 %v1037, 7
    %v1039 = vsub.s32 5, %v1038
    %v1040 = vrot.slane %v516, %v1039
    %v1041 = vlaneseq
    %v1042 = vshrl.u32 %v1041, 7
    %v1043 = vsub.s32 6, %v1042
    %v1044 = vrot.slane %v516, %v1043
    %v1045 = vlaneseq
    %v1046 = vshrl.u32 %v1045, 7
    %v1047 = vsub.s32 7, %v1046
    %v1048 = vrot.slane %v516, %v1047
    %v1049 = vlaneseq
    %v1050 = vshrl.u32 %v1049, 7
    %v1051 = vsub.s32 0, %v1050
    %v1052 = vrot.slane %v517, %v1051
    %v1053 = vlaneseq
    %v1054 = vshrl.u32 %v1053, 7
    %v1055 = vsub.s32 1, %v1054
    %v1056 = vrot.slane %v517, %v1055
    %v1057 = vlaneseq
    %v1058 = vshrl.u32 %v1057, 7
    %v1059 = vsub.s32 2, %v1058
    %v1060 = vrot.slane %v517, %v1059
    %v1061 = vlaneseq
    %v1062 = vshrl.u32 %v1061, 7
    %v1063 = vsub.s32 3, %v1062
    %v1064 = vrot.slane %v517, %v1063
    %v1065 = vlaneseq
    %v1066 = vshrl.u32 %v1065, 7
    %v1067 = vsub.s32 4, %v1066
    %v1068 = vrot.slane %v517, %v1067
    %v1069 = vlaneseq
    %v1070 = vshrl.u32 %v1069, 7
    %v1071 = vsub.s32 5, %v1070
    %v1072 = vrot.slane %v517, %v1071
    %v1073 = vlaneseq
    %v1074 = vshrl.u32 %v1073, 7
    %v1075 = vsub.s32 6, %v1074
    %v1076 = vrot.slane %v517, %v1075
    %v1077 = vlaneseq
    %v1078 = vshrl.u32 %v1077, 7
    %v1079 = vsub.s32 7, %v1078
    %v1080 = vrot.slane %v517, %v1079
    %v1081 = vlaneseq
    %v1082 = vshrl.u32 %v1081, 7
    %v1083 = vsub.s32 0, %v1082
    %v1084 = vrot.slane %v518, %v1083
    %v1085 = vlaneseq
    %v1086 = vshrl.u32 %v1085, 7
    %v1087 = vsub.s32 1, %v1086
    %v1088 = vrot.slane %v518, %v1087
    %v1503 = vunpack.c.l.b16 %v225
    %v1504 = vunpack.c.h.b16 %v225
    %v1505 = vunpack.c.l.b16 %v226
    %v1506 = vunpack.c.h.b16 %v226
    %v1507 = vunpack.c.l.b16 %v227
    %v1508 = vunpack.c.h.b16 %v227
    %v1509 = vunpack.c.l.b16 %v228
    %v1510 = vunpack.c.h.b16 %v228
    %v1511 = vunpack.c.l.b16 %v229
    %v1512 = vunpack.c.h.b16 %v229
    %v1513 = vunpack.c.l.b16 %v230
    %v1514 = vunpack.c.h.b16 %v230
    %v1515 = vunpack.c.l.b16 %v231
    %v1516 = vunpack.c.h.b16 %v231
    %v1517 = vunpack.c.l.b16 %v232
    %v1518 = vunpack.c.h.b16 %v232
    %v1519 = vunpack.c.l.b16 %v233
    %v1520 = vunpack.c.h.b16 %v233
    %v1521 = vunpack.c.l.b16 %v234
    %v1522 = vunpack.c.h.b16 %v234
    %v1523 = vunpack.c.l.b16 %v235
    %v1524 = vunpack.c.h.b16 %v235
    %v1525 = vunpack.c.l.b16 %v236
    %v1526 = vunpack.c.h.b16 %v236
    %v1527 = vunpack.c.l.b16 %v237
    %v1528 = vunpack.c.h.b16 %v237
    %v1529 = vunpack.c.l.b16 %v238
    %v1530 = vunpack.c.h.b16 %v238
    %v1531 = vunpack.c.l.b16 %v239
    %v1532 = vunpack.c.h.b16 %v239
    %v1533 = vunpack.c.l.b16 %v240
    %v1534 = vunpack.c.h.b16 %v240
    %v1535 = vunpack.c.l.b16 %v241
    %v1536 = vunpack.c.h.b16 %v241
    %v1537 = vunpack.c.l.b16 %v242
    %v1538 = vunpack.c.h.b16 %v242
    %v1539 = vunpack.c.l.b16 %v243
    %v1540 = vunpack.c.h.b16 %v243
    %v1541 = vunpack.c.l.b16 %v244
    %v1542 = vunpack.c.h.b16 %v244
    %v1543 = vunpack.c.l.b16 %v245
    %v1544 = vunpack.c.h.b16 %v245
    %v1545 = vunpack.c.l.b16 %v246
    %v1546 = vunpack.c.h.b16 %v246
    %v1547 = vunpack.c.l.b16 %v247
    %v1548 = vunpack.c.h.b16 %v247
    %v1549 = vunpack.c.l.b16 %v248
    %v1550 = vunpack.c.h.b16 %v248
    %v1551 = vunpack.c.l.b16 %v249
    %v1552 = vunpack.c.h.b16 %v249
    %v1553 = vunpack.c.l.b16 %v250
    %v1554 = vunpack.c.h.b16 %v250
    %v1555 = vunpack.c.l.b16 %v251
    %v1556 = vunpack.c.h.b16 %v251
    %v1557 = vunpack.c.l.b16 %v252
    %v1558 = vunpack.c.h.b16 %v252
    %v1559 = vunpack.c.l.b16 %v253
    %v1560 = vunpack.c.h.b16 %v253
    %v1561 = vunpack.c.l.b16 %v254
    %v1562 = vunpack.c.h.b16 %v254
    %v1563 = vunpack.c.l.b16 %v255
    %v1564 = vunpack.c.h.b16 %v255
    %v1565 = vunpack.c.l.b16 %v256
    %v1566 = vunpack.c.h.b16 %v256
    %v1567 = vunpack.c.l.b16 %v257
    %v1568 = vunpack.c.h.b16 %v257
    %v1569 = vunpack.c.l.b16 %v258
    %v1570 = vunpack.c.h.b16 %v258
    %v1571 = vunpack.c.l.b16 %v259
    %v1572 = vunpack.c.h.b16 %v259
    %v1573 = vunpack.c.l.b16 %v260
    %v1574 = vunpack.c.h.b16 %v260
    %v1575 = vunpack.c.l.b16 %v261
    %v1576 = vunpack.c.h.b16 %v261
    %v1577 = vunpack.c.l.b16 %v262
    %v1578 = vunpack.c.h.b16 %v262
    %v1579 = vunpack.c.l.b16 %v263
    %v1580 = vunpack.c.h.b16 %v263
    %v1581 = vunpack.c.l.b16 %v264
    %v1582 = vunpack.c.h.b16 %v264
    %v1583 = vunpack.c.l.b16 %v265
    %v1584 = vunpack.c.h.b16 %v265
    %v1585 = vunpack.c.l.b16 %v266
    %v1586 = vunpack.c.h.b16 %v266
    %v1587 = vunpack.c.l.b16 %v267
    %v1588 = vunpack.c.h.b16 %v267
    %v1589 = vunpack.c.l.b16 %v268
    %v1590 = vunpack.c.h.b16 %v268
    %v1591 = vunpack.c.l.b16 %v269
    %v1592 = vunpack.c.h.b16 %v269
    %v1593 = vunpack.c.l.b16 %v270
    %v1594 = vunpack.c.h.b16 %v270
    %v1595 = vunpack.c.l.b16 %v271
    %v1596 = vunpack.c.h.b16 %v271
    %v1597 = vunpack.c.l.b16 %v272
    %v1598 = vunpack.c.h.b16 %v272
    %v1599 = vunpack.c.l.b16 %v273
    %v1600 = vunpack.c.h.b16 %v273
    %v1601 = vunpack.c.l.b16 %v274
    %v1602 = vunpack.c.h.b16 %v274
    %v1603 = vunpack.c.l.b16 %v275
    %v1604 = vunpack.c.h.b16 %v275
    %v1605 = vunpack.c.l.b16 %v276
    %v1606 = vunpack.c.h.b16 %v276
    %v1607 = vunpack.c.l.b16 %v277
    %v1608 = vunpack.c.h.b16 %v277
    %v1609 = vunpack.c.l.b16 %v278
    %v1610 = vunpack.c.h.b16 %v278
    %v1611 = vunpack.c.l.b16 %v279
    %v1612 = vunpack.c.h.b16 %v279
    %v1613 = vunpack.c.l.b16 %v280
    %v1614 = vunpack.c.h.b16 %v280
    %v1615 = vunpack.c.l.b16 %v281
    %v1616 = vunpack.c.h.b16 %v281
    %v1617 = vunpack.c.l.b16 %v282
    %v1618 = vunpack.c.h.b16 %v282
    %v1619 = vunpack.c.l.b16 %v283
    %v1620 = vunpack.c.h.b16 %v283
    %v1621 = vunpack.c.l.b16 %v284
    %v1622 = vunpack.c.h.b16 %v284
    %v1623 = vunpack.c.l.b16 %v285
    %v1624 = vunpack.c.h.b16 %v285
    %v1625 = vunpack.c.l.b16 %v286
    %v1626 = vunpack.c.h.b16 %v286
    %v1627 = vunpack.c.l.b16 %v287
    %v1628 = vunpack.c.h.b16 %v287
    %v1629 = vunpack.c.l.b16 %v288
    %v1630 = vunpack.c.h.b16 %v288
    %v1631 = vunpack.c.l.b16 %v289
    %v1632 = vunpack.c.h.b16 %v289
    %v1633 = vunpack.c.l.b16 %v290
    %v1634 = vunpack.c.h.b16 %v290
    %v1635 = vunpack.c.l.b16 %v291
    %v1636 = vunpack.c.h.b16 %v291
    %v1637 = vunpack.c.l.b16 %v292
    %v1638 = vunpack.c.h.b16 %v292
    %v1639 = vunpack.c.l.b16 %v293
    %v1640 = vunpack.c.h.b16 %v293
    %v1641 = vunpack.c.l.b16 %v294
    %v1642 = vunpack.c.h.b16 %v294
    %v1643 = vunpack.c.l.b16 %v295
    %v1644 = vunpack.c.h.b16 %v295
    %v1645 = vunpack.c.l.b16 %v296
    %v1646 = vunpack.c.h.b16 %v296
    %v1647 = vunpack.c.l.b16 %v297
    %v1648 = vunpack.c.h.b16 %v297
    %v1649 = vunpack.c.l.b16 %v298
    %v1650 = vunpack.c.h.b16 %v298
    %v1651 = vunpack.c.l.b16 %v299
    %v1652 = vunpack.c.h.b16 %v299
    %v1653 = vunpack.c.l.b16 %v300
    %v1654 = vunpack.c.h.b16 %v300
    %v1655 = vunpack.c.l.b16 %v301
    %v1656 = vunpack.c.h.b16 %v301
    %v1657 = vunpack.c.l.b16 %v302
    %v1658 = vunpack.c.h.b16 %v302
    %v1659 = vunpack.c.l.b16 %v303
    %v1660 = vunpack.c.h.b16 %v303
    %v1661 = vunpack.c.l.b16 %v304
    %v1662 = vunpack.c.h.b16 %v304
    %v1663 = vunpack.c.l.b16 %v305
    %v1664 = vunpack.c.h.b16 %v305
    %v1665 = vunpack.c.l.b16 %v306
    %v1666 = vunpack.c.h.b16 %v306
    %v1667 = vunpack.c.l.b16 %v307
    %v1668 = vunpack.c.h.b16 %v307
    %v1669 = vunpack.c.l.b16 %v308
    %v1670 = vunpack.c.h.b16 %v308
    %v1671 = vunpack.c.l.b16 %v309
    %v1672 = vunpack.c.h.b16 %v309
    %v1673 = vunpack.c.l.b16 %v310
    %v1674 = vunpack.c.h.b16 %v310
    %v1675 = vunpack.c.l.b16 %v311
    %v1676 = vunpack.c.h.b16 %v311
    %v1677 = vunpack.c.l.b16 %v312
    %v1678 = vunpack.c.h.b16 %v312
    %v1679 = vunpack.c.l.b16 %v313
    %v1680 = vunpack.c.h.b16 %v313
    %v1681 = vunpack.c.l.b16 %v314
    %v1682 = vunpack.c.h.b16 %v314
    %v1683 = vunpack.c.l.b16 %v315
    %v1684 = vunpack.c.h.b16 %v315
    %v1685 = vunpack.c.l.b16 %v316
    %v1686 = vunpack.c.h.b16 %v316
    %v1687 = vunpack.c.l.b16 %v317
    %v1688 = vunpack.c.h.b16 %v317
    %v1689 = vunpack.c.l.b16 %v318
    %v1690 = vunpack.c.h.b16 %v318
    %v1691 = vunpack.c.l.b16 %v319
    %v1692 = vunpack.c.h.b16 %v319
    %v1693 = vunpack.c.l.b16 %v320
    %v1694 = vunpack.c.h.b16 %v320
    %v1695 = vunpack.c.l.b16 %v321
    %v1696 = vunpack.c.h.b16 %v321
    %v1697 = vunpack.c.l.b16 %v322
    %v1698 = vunpack.c.h.b16 %v322
    %v1699 = vunpack.c.l.b16 %v323
    %v1700 = vunpack.c.h.b16 %v323
    %v1701 = vunpack.c.l.b16 %v324
    %v1702 = vunpack.c.h.b16 %v324
    %v1703 = vunpack.c.l.b16 %v325
    %v1704 = vunpack.c.h.b16 %v325
    %v1705 = vunpack.c.l.b16 %v326
    %v1706 = vunpack.c.h.b16 %v326
    %v1707 = vunpack.c.l.b16 %v327
    %v1708 = vunpack.c.h.b16 %v327
    %v1709 = vunpack.c.l.b16 %v328
    %v1710 = vunpack.c.h.b16 %v328
    %v1711 = vunpack.c.l.b16 %v329
    %v1712 = vunpack.c.h.b16 %v329
    %v1713 = vunpack.c.l.b16 %v330
    %v1714 = vunpack.c.h.b16 %v330
    %v1715 = vunpack.c.l.b16 %v331
    %v1716 = vunpack.c.h.b16 %v331
    %v1717 = vunpack.c.l.b16 %v332
    %v1718 = vunpack.c.h.b16 %v332
    %v1719 = vunpack.c.l.b16 %v333
    %v1720 = vunpack.c.h.b16 %v333
    %v1721 = vunpack.c.l.b16 %v334
    %v1722 = vunpack.c.h.b16 %v334
    %v1723 = vunpack.c.l.b16 %v335
    %v1724 = vunpack.c.h.b16 %v335
    %v1725 = vunpack.c.l.b16 %v336
    %v1726 = vunpack.c.h.b16 %v336
    %v1727 = vunpack.c.l.b16 %v337
    %v1728 = vunpack.c.h.b16 %v337
    %v1729 = vunpack.c.l.b16 %v338
    %v1730 = vunpack.c.h.b16 %v338
    %v1731 = vunpack.c.l.b16 %v339
    %v1732 = vunpack.c.h.b16 %v339
    %v1733 = vunpack.c.l.b16 %v340
    %v1734 = vunpack.c.h.b16 %v340
    %v1735 = vunpack.c.l.b16 %v341
    %v1736 = vunpack.c.h.b16 %v341
    %v1737 = vunpack.c.l.b16 %v342
    %v1738 = vunpack.c.h.b16 %v342
    %v1739 = vunpack.c.l.b16 %v343
    %v1740 = vunpack.c.h.b16 %v343
    %v1741 = vunpack.c.l.b16 %v344
    %v1742 = vunpack.c.h.b16 %v344
    %v1743 = vunpack.c.l.b16 %v345
    %v1744 = vunpack.c.h.b16 %v345
    %v1745 = vunpack.c.l.b16 %v346
    %v1746 = vunpack.c.h.b16 %v346
    %v1747 = vunpack.c.l.b16 %v347
    %v1748 = vunpack.c.h.b16 %v347
    %v1749 = vunpack.c.l.b16 %v348
    %v1750 = vunpack.c.h.b16 %v348
    %v1751 = vunpack.c.l.b16 %v349
    %v1752 = vunpack.c.h.b16 %v349
    %v1753 = vunpack.c.l.b16 %v350
    %v1754 = vunpack.c.h.b16 %v350
    %v1755 = vunpack.c.l.b16 %v351
    %v1756 = vunpack.c.h.b16 %v351
    %v1757 = vunpack.c.l.b16 %v352
    %v1758 = vunpack.c.h.b16 %v352
    %v1759 = vunpack.c.l.b16 %v353
    %v1760 = vunpack.c.h.b16 %v353
    %v1761 = vunpack.c.l.b16 %v354
    %v1762 = vunpack.c.h.b16 %v354
    %v1763 = vunpack.c.l.b16 %v355
    %v1764 = vunpack.c.h.b16 %v355
    %v1765 = vunpack.c.l.b16 %v356
    %v1766 = vunpack.c.h.b16 %v356
    %v1767 = vunpack.c.l.b16 %v357
    %v1768 = vunpack.c.h.b16 %v357
    %v1769 = vunpack.c.l.b16 %v358
    %v1770 = vunpack.c.h.b16 %v358
    %v1771 = vunpack.c.l.b16 %v359
    %v1772 = vunpack.c.h.b16 %v359
    %v1773 = vunpack.c.l.b16 %v360
    %v1774 = vunpack.c.h.b16 %v360
    %v1775 = vunpack.c.l.b16 %v361
    %v1776 = vunpack.c.h.b16 %v361
    %v1777 = vunpack.c.l.b16 %v362
    %v1778 = vunpack.c.h.b16 %v362
    %v1779 = vunpack.c.l.b16 %v363
    %v1780 = vunpack.c.h.b16 %v363
    %v1781 = vunpack.c.l.b16 %v364
    %v1782 = vunpack.c.h.b16 %v364
    %v1783 = vunpack.c.l.b16 %v365
    %v1784 = vunpack.c.h.b16 %v365
    %v1785 = vunpack.c.l.b16 %v366
    %v1786 = vunpack.c.h.b16 %v366
    %v1787 = vunpack.c.l.b16 %v367
    %v1788 = vunpack.c.h.b16 %v367
    %v1789 = vunpack.c.l.b16 %v368
    %v1790 = vunpack.c.h.b16 %v368
    %v1791 = vunpack.c.l.b16 %v369
    %v1792 = vunpack.c.h.b16 %v369
    %v1793 = vunpack.c.l.b16 %v370
    %v1794 = vunpack.c.h.b16 %v370
    %v1795 = vunpack.c.l.b16 %v371
    %v1796 = vunpack.c.h.b16 %v371
    %v1797 = vunpack.c.l.b16 %v372
    %v1798 = vunpack.c.h.b16 %v372
    %v1799 = vunpack.c.l.b16 %v373
    %v1800 = vunpack.c.h.b16 %v373
    %v1801 = vunpack.c.l.b16 %v374
    %v1802 = vunpack.c.h.b16 %v374
    %v1803 = vunpack.c.l.b16 %v375
    %v1804 = vunpack.c.h.b16 %v375
    %v1805 = vunpack.c.l.b16 %v376
    %v1806 = vunpack.c.h.b16 %v376
    %v1807 = vunpack.c.l.b16 %v377
    %v1808 = vunpack.c.h.b16 %v377
    %v1809 = vunpack.c.l.b16 %v378
    %v1810 = vunpack.c.h.b16 %v378
    %v1811 = vunpack.c.l.b16 %v379
    %v1812 = vunpack.c.h.b16 %v379
    %v1813 = vunpack.c.l.b16 %v380
    %v1814 = vunpack.c.h.b16 %v380
    %v1815 = vunpack.c.l.b16 %v381
    %v1816 = vunpack.c.h.b16 %v381
    %v1817 = vunpack.c.l.b16 %v382
    %v1818 = vunpack.c.h.b16 %v382
    %v1819 = vunpack.c.l.b16 %v383
    %v1820 = vunpack.c.h.b16 %v383
    %v1821 = vunpack.c.l.b16 %v384
    %v1822 = vunpack.c.h.b16 %v384
    %v1823 = vunpack.c.l.b16 %v385
    %v1824 = vunpack.c.h.b16 %v385
    %v1825 = vunpack.c.l.b16 %v386
    %v1826 = vunpack.c.h.b16 %v386
    %v1827 = vunpack.c.l.b16 %v387
    %v1828 = vunpack.c.h.b16 %v387
    %v1829 = vunpack.c.l.b16 %v388
    %v1830 = vunpack.c.h.b16 %v388
    %v1831 = vunpack.c.l.b16 %v389
    %v1832 = vunpack.c.h.b16 %v389
    %v1833 = vunpack.c.l.b16 %v390
    %v1834 = vunpack.c.h.b16 %v390
    %v1835 = vunpack.c.l.b16 %v391
    %v1836 = vunpack.c.h.b16 %v391
    %v1837 = vunpack.c.l.b16 %v392
    %v1838 = vunpack.c.h.b16 %v392
    %v1839 = vunpack.c.l.b16 %v393
    %v1840 = vunpack.c.h.b16 %v393
    %v1841 = vunpack.c.l.b16 %v394
    %v1842 = vunpack.c.h.b16 %v394
    %v1843 = vunpack.c.l.b16 %v395
    %v1844 = vunpack.c.h.b16 %v395
    %v1845 = vunpack.c.l.b16 %v396
    %v1846 = vunpack.c.h.b16 %v396
    %v1847 = vunpack.c.l.b16 %v397
    %v1848 = vunpack.c.h.b16 %v397
    %v1849 = vunpack.c.l.b16 %v398
    %v1850 = vunpack.c.h.b16 %v398
    %v1851 = vunpack.c.l.b16 %v399
    %v1852 = vunpack.c.h.b16 %v399
    %v1853 = vunpack.c.l.b16 %v400
    %v1854 = vunpack.c.h.b16 %v400
    %v1855 = vunpack.c.l.b16 %v401
    %v1856 = vunpack.c.h.b16 %v401
    %v1857 = vunpack.c.l.b16 %v402
    %v1858 = vunpack.c.h.b16 %v402
    %v1859 = vunpack.c.l.b16 %v403
    %v1860 = vunpack.c.h.b16 %v403
    %v1861 = vunpack.c.l.b16 %v404
    %v1862 = vunpack.c.h.b16 %v404
    %v1863 = vunpack.c.l.b16 %v405
    %v1864 = vunpack.c.h.b16 %v405
    %v1865 = vunpack.c.l.b16 %v406
    %v1866 = vunpack.c.h.b16 %v406
    %v1867 = vunpack.c.l.b16 %v407
    %v1868 = vunpack.c.h.b16 %v407
    %v1869 = vunpack.c.l.b16 %v408
    %v1870 = vunpack.c.h.b16 %v408
    %v1871 = vunpack.c.l.b16 %v409
    %v1872 = vunpack.c.h.b16 %v409
    %v1873 = vunpack.c.l.b16 %v410
    %v1874 = vunpack.c.h.b16 %v410
    %v1875 = vunpack.c.l.b16 %v411
    %v1876 = vunpack.c.h.b16 %v411
    %v1877 = vunpack.c.l.b16 %v412
    %v1878 = vunpack.c.h.b16 %v412
    %v1879 = vunpack.c.l.b16 %v413
    %v1880 = vunpack.c.h.b16 %v413
    %v1881 = vunpack.c.l.b16 %v414
    %v1882 = vunpack.c.h.b16 %v414
    %v1883 = vunpack.c.l.b16 %v415
    %v1884 = vunpack.c.h.b16 %v415
    %v1885 = vunpack.c.l.b16 %v416
    %v1886 = vunpack.c.h.b16 %v416
    %v1887 = vunpack.c.l.b16 %v417
    %v1888 = vunpack.c.h.b16 %v417
    %v1889 = vunpack.c.l.b16 %v418
    %v1890 = vunpack.c.h.b16 %v418
    %v1891 = vunpack.c.l.b16 %v419
    %v1892 = vunpack.c.h.b16 %v419
    %v1893 = vunpack.c.l.b16 %v420
    %v1894 = vunpack.c.h.b16 %v420
    %v1895 = vunpack.c.l.b16 %v421
    %v1896 = vunpack.c.h.b16 %v421
    %v1897 = vunpack.c.l.b16 %v422
    %v1898 = vunpack.c.h.b16 %v422
    %v1899 = vunpack.c.l.b16 %v423
    %v1900 = vunpack.c.h.b16 %v423
    %v1901 = vunpack.c.l.b16 %v424
    %v1902 = vunpack.c.h.b16 %v424
    %v1903 = vunpack.c.l.b16 %v425
    %v1904 = vunpack.c.h.b16 %v425
    %v1905 = vunpack.c.l.b16 %v426
    %v1906 = vunpack.c.h.b16 %v426
    %v1907 = vunpack.c.l.b16 %v427
    %v1908 = vunpack.c.h.b16 %v427
    %v1909 = vunpack.c.l.b16 %v428
    %v1910 = vunpack.c.h.b16 %v428
    %v1911 = vunpack.c.l.b16 %v429
    %v1912 = vunpack.c.h.b16 %v429
    %v1913 = vunpack.c.l.b16 %v430
    %v1914 = vunpack.c.h.b16 %v430
    %v1915 = vunpack.c.l.b16 %v431
    %v1916 = vunpack.c.h.b16 %v431
    %v1917 = vunpack.c.l.b16 %v432
    %v1918 = vunpack.c.h.b16 %v432
    %v1919 = vunpack.c.l.b16 %v433
    %v1920 = vunpack.c.h.b16 %v433
    %v1921 = vunpack.c.l.b16 %v434
    %v1922 = vunpack.c.h.b16 %v434
    %v1923 = vunpack.c.l.b16 %v435
    %v1924 = vunpack.c.h.b16 %v435
    %v1925 = vunpack.c.l.b16 %v436
    %v1926 = vunpack.c.h.b16 %v436
    %v1927 = vunpack.c.l.b16 %v437
    %v1928 = vunpack.c.h.b16 %v437
    %v1929 = vunpack.c.l.b16 %v438
    %v1930 = vunpack.c.h.b16 %v438
    %v1931 = vunpack.c.l.b16 %v439
    %v1932 = vunpack.c.h.b16 %v439
    %v1933 = vunpack.c.l.b16 %v440
    %v1934 = vunpack.c.h.b16 %v440
    %v1935 = vunpack.c.l.b16 %v441
    %v1936 = vunpack.c.h.b16 %v441
    %v1937 = vunpack.c.l.b16 %v442
    %v1938 = vunpack.c.h.b16 %v442
    %v1939 = vunpack.c.l.b16 %v443
    %v1940 = vunpack.c.h.b16 %v443
    %v1941 = vunpack.c.l.b16 %v444
    %v1942 = vunpack.c.h.b16 %v444
    %v1943 = vunpack.c.l.b16 %v445
    %v1944 = vunpack.c.h.b16 %v445
    %v1945 = vunpack.c.l.b16 %v446
    %v1946 = vunpack.c.h.b16 %v446
    %v1947 = vunpack.c.l.b16 %v447
    %v1948 = vunpack.c.h.b16 %v447
    %v1949 = vunpack.c.l.b16 %v448
    %v1950 = vunpack.c.h.b16 %v448
    %v1951 = vunpack.c.l.b16 %v449
    %v1952 = vunpack.c.h.b16 %v449
    %v1953 = vunpack.c.l.b16 %v450
    %v1954 = vunpack.c.h.b16 %v450
    %v1955 = vunpack.c.l.b16 %v451
    %v1956 = vunpack.c.h.b16 %v451
    %v1957 = vunpack.c.l.b16 %v452
    %v1958 = vunpack.c.h.b16 %v452
    %v1959 = vunpack.c.l.b16 %v453
    %v1960 = vunpack.c.h.b16 %v453
    %v1961 = vunpack.c.l.b16 %v454
    %v1962 = vunpack.c.h.b16 %v454
    %v1963 = vunpack.c.l.b16 %v455
    %v1964 = vunpack.c.h.b16 %v455
    %v1965 = vunpack.c.l.b16 %v456
    %v1966 = vunpack.c.h.b16 %v456
    %v1967 = vunpack.c.l.b16 %v457
    %v1968 = vunpack.c.h.b16 %v457
    %v1969 = vunpack.c.l.b16 %v458
    %v1970 = vunpack.c.h.b16 %v458
    %v1971 = vunpack.c.l.b16 %v459
    %v1972 = vunpack.c.h.b16 %v459
    %v1973 = vunpack.c.l.b16 %v460
    %v1974 = vunpack.c.h.b16 %v460
    %v1975 = vunpack.c.l.b16 %v461
    %v1976 = vunpack.c.h.b16 %v461
    %v1977 = vunpack.c.l.b16 %v462
    %v1978 = vunpack.c.h.b16 %v462
    %v1979 = vunpack.c.l.b16 %v463
    %v1980 = vunpack.c.h.b16 %v463
    %v1981 = vunpack.c.l.b16 %v464
    %v1982 = vunpack.c.h.b16 %v464
    %v1983 = vunpack.c.l.b16 %v465
    %v1984 = vunpack.c.h.b16 %v465
    %v1985 = vunpack.c.l.b16 %v466
    %v1986 = vunpack.c.h.b16 %v466
    %v1987 = vunpack.c.l.b16 %v467
    %v1988 = vunpack.c.h.b16 %v467
    %v1989 = vunpack.c.l.b16 %v468
    %v1990 = vunpack.c.h.b16 %v468
    %v1991 = vunpack.c.l.b16 %v469
    %v1992 = vunpack.c.h.b16 %v469
    %v1993 = vunpack.c.l.b16 %v470
    %v1994 = vunpack.c.h.b16 %v470
    %v1995 = vunpack.c.l.b16 %v471
    %v1996 = vunpack.c.h.b16 %v471
    %v1997 = vunpack.c.l.b16 %v472
    %v1998 = vunpack.c.h.b16 %v472
    %v1999 = vunpack.c.l.b16 %v473
    %v2000 = vunpack.c.h.b16 %v473
    %v2001 = vunpack.c.l.b16 %v474
    %v2002 = vunpack.c.h.b16 %v474
    %v2003 = vunpack.c.l.b16 %v475
    %v2004 = vunpack.c.h.b16 %v475
    %v2005 = vunpack.c.l.b16 %v476
    %v2006 = vunpack.c.h.b16 %v476
    %v2007 = vunpack.c.l.b16 %v477
    %v2008 = vunpack.c.h.b16 %v477
    %v2009 = vunpack.c.l.b16 %v478
    %v2010 = vunpack.c.h.b16 %v478
    %v2011 = vunpack.c.l.b16 %v479
    %v2012 = vunpack.c.h.b16 %v479
    %v2013 = vunpack.c.l.b16 %v480
    %v2014 = vunpack.c.h.b16 %v480
    %v2015 = vunpack.c.l.b16 %v481
    %v2016 = vunpack.c.h.b16 %v481
    %v2017 = vunpack.c.l.b16 %v482
    %v2018 = vunpack.c.h.b16 %v482
    %v2019 = vunpack.c.l.b16 %v483
    %v2020 = vunpack.c.h.b16 %v483
    %v2021 = vunpack.c.l.b16 %v484
    %v2022 = vunpack.c.h.b16 %v484
    %v2023 = vunpack.c.l.b16 %v485
    %v2024 = vunpack.c.h.b16 %v485
    %v2025 = vunpack.c.l.b16 %v486
    %v2026 = vunpack.c.h.b16 %v486
    %v2027 = vunpack.c.l.b16 %v487
    %v2028 = vunpack.c.h.b16 %v487
    %v2029 = vunpack.c.l.b16 %v488
    %v2030 = vunpack.c.h.b16 %v488
    %v2031 = vunpack.c.l.b16 %v489
    %v2032 = vunpack.c.h.b16 %v489
    %v2033 = vunpack.c.l.b16 %v490
    %v2034 = vunpack.c.h.b16 %v490
    %v2035 = vunpack.c.l.b16 %v491
    %v2036 = vunpack.c.h.b16 %v491
    %v2037 = vunpack.c.l.b16 %v492
    %v2038 = vunpack.c.h.b16 %v492
    %v2039 = vunpack.c.l.b16 %v493
    %v2040 = vunpack.c.h.b16 %v493
    %v2041 = vunpack.c.l.b16 %v494
    %v2042 = vunpack.c.h.b16 %v494
    %v2043 = vunpack.c.l.b16 %v495
    %v2044 = vunpack.c.h.b16 %v495
    %v2045 = vunpack.c.l.b16 %v496
    %v2046 = vunpack.c.h.b16 %v496
    %v2047 = vunpack.c.l.b16 %v497
    %v2048 = vunpack.c.h.b16 %v497
    %v2049 = vunpack.c.l.b16 %v498
    %v2050 = vunpack.c.h.b16 %v498
    %v2051 = vunpack.c.l.b16 %v499
    %v2052 = vunpack.c.h.b16 %v499
    %v2053 = vunpack.c.l.b16 %v500
    %v2054 = vunpack.c.h.b16 %v500
    %v2055 = vpack.c.b16 %v1641, %v1503
    %v2056 = vpack.c.b16 %v1642, %v1504
    %v2057 = vpack.c.b16 %v1643, %v1505
    %v2058 = vpack.c.b16 %v1644, %v1506
    %v2059 = vpack.c.b16 %v1645, %v1507
    %v2060 = vpack.c.b16 %v1646, %v1508
    %v2061 = vpack.c.b16 %v1647, %v1509
    %v2062 = vpack.c.b16 %v1648, %v1510
    %v2063 = vpack.c.b16 %v1649, %v1511
    %v2064 = vpack.c.b16 %v1650, %v1512
    %v2065 = vpack.c.b16 %v1651, %v1513
    %v2066 = vpack.c.b16 %v1652, %v1514
    %v2067 = vpack.c.b16 %v1653, %v1515
    %v2068 = vpack.c.b16 %v1654, %v1516
    %v2069 = vpack.c.b16 %v1655, %v1517
    %v2070 = vpack.c.b16 %v1656, %v1518
    %v2071 = vpack.c.b16 %v1657, %v1519
    %v2072 = vpack.c.b16 %v1658, %v1520
    %v2073 = vpack.c.b16 %v1659, %v1521
    %v2074 = vpack.c.b16 %v1660, %v1522
    %v2075 = vpack.c.b16 %v1661, %v1523
    %v2076 = vpack.c.b16 %v1662, %v1524
    %v2077 = vpack.c.b16 %v1663, %v1525
    %v2078 = vpack.c.b16 %v1664, %v1526
    %v2079 = vpack.c.b16 %v1665, %v1527
    %v2080 = vpack.c.b16 %v1666, %v1528
    %v2081 = vpack.c.b16 %v1667, %v1529
    %v2082 = vpack.c.b16 %v1668, %v1530
    %v2083 = vpack.c.b16 %v1669, %v1531
    %v2084 = vpack.c.b16 %v1670, %v1532
    %v2085 = vpack.c.b16 %v1671, %v1533
    %v2086 = vpack.c.b16 %v1672, %v1534
    %v2087 = vpack.c.b16 %v1673, %v1535
    %v2088 = vpack.c.b16 %v1674, %v1536
    %v2089 = vpack.c.b16 %v1675, %v1537
    %v2090 = vpack.c.b16 %v1676, %v1538
    %v2091 = vpack.c.b16 %v1677, %v1539
    %v2092 = vpack.c.b16 %v1678, %v1540
    %v2093 = vpack.c.b16 %v1679, %v1541
    %v2094 = vpack.c.b16 %v1680, %v1542
    %v2095 = vpack.c.b16 %v1681, %v1543
    %v2096 = vpack.c.b16 %v1682, %v1544
    %v2097 = vpack.c.b16 %v1683, %v1545
    %v2098 = vpack.c.b16 %v1684, %v1546
    %v2099 = vpack.c.b16 %v1685, %v1547
    %v2100 = vpack.c.b16 %v1686, %v1548
    %v2101 = vpack.c.b16 %v1687, %v1549
    %v2102 = vpack.c.b16 %v1688, %v1550
    %v2103 = vpack.c.b16 %v1689, %v1551
    %v2104 = vpack.c.b16 %v1690, %v1552
    %v2105 = vpack.c.b16 %v1691, %v1553
    %v2106 = vpack.c.b16 %v1692, %v1554
    %v2107 = vpack.c.b16 %v1693, %v1555
    %v2108 = vpack.c.b16 %v1694, %v1556
    %v2109 = vpack.c.b16 %v1695, %v1557
    %v2110 = vpack.c.b16 %v1696, %v1558
    %v2111 = vpack.c.b16 %v1697, %v1559
    %v2112 = vpack.c.b16 %v1698, %v1560
    %v2113 = vpack.c.b16 %v1699, %v1561
    %v2114 = vpack.c.b16 %v1700, %v1562
    %v2115 = vpack.c.b16 %v1701, %v1563
    %v2116 = vpack.c.b16 %v1702, %v1564
    %v2117 = vpack.c.b16 %v1703, %v1565
    %v2118 = vpack.c.b16 %v1704, %v1566
    %v2119 = vpack.c.b16 %v1705, %v1567
    %v2120 = vpack.c.b16 %v1706, %v1568
    %v2121 = vpack.c.b16 %v1707, %v1569
    %v2122 = vpack.c.b16 %v1708, %v1570
    %v2123 = vpack.c.b16 %v1709, %v1571
    %v2124 = vpack.c.b16 %v1710, %v1572
    %v2125 = vpack.c.b16 %v1711, %v1573
    %v2126 = vpack.c.b16 %v1712, %v1574
    %v2127 = vpack.c.b16 %v1713, %v1575
    %v2128 = vpack.c.b16 %v1714, %v1576
    %v2129 = vpack.c.b16 %v1715, %v1577
    %v2130 = vpack.c.b16 %v1716, %v1578
    %v2131 = vpack.c.b16 %v1717, %v1579
    %v2132 = vpack.c.b16 %v1718, %v1580
    %v2133 = vpack.c.b16 %v1719, %v1581
    %v2134 = vpack.c.b16 %v1720, %v1582
    %v2135 = vpack.c.b16 %v1721, %v1583
    %v2136 = vpack.c.b16 %v1722, %v1584
    %v2137 = vpack.c.b16 %v1723, %v1585
    %v2138 = vpack.c.b16 %v1724, %v1586
    %v2139 = vpack.c.b16 %v1725, %v1587
    %v2140 = vpack.c.b16 %v1726, %v1588
    %v2141 = vpack.c.b16 %v1727, %v1589
    %v2142 = vpack.c.b16 %v1728, %v1590
    %v2143 = vpack.c.b16 %v1729, %v1591
    %v2144 = vpack.c.b16 %v1730, %v1592
    %v2145 = vpack.c.b16 %v1731, %v1593
    %v2146 = vpack.c.b16 %v1732, %v1594
    %v2147 = vpack.c.b16 %v1733, %v1595
    %v2148 = vpack.c.b16 %v1734, %v1596
    %v2149 = vpack.c.b16 %v1735, %v1597
    %v2150 = vpack.c.b16 %v1736, %v1598
    %v2151 = vpack.c.b16 %v1737, %v1599
    %v2152 = vpack.c.b16 %v1738, %v1600
    %v2153 = vpack.c.b16 %v1739, %v1601
    %v2154 = vpack.c.b16 %v1740, %v1602
    %v2155 = vpack.c.b16 %v1741, %v1603
    %v2156 = vpack.c.b16 %v1742, %v1604
    %v2157 = vpack.c.b16 %v1743, %v1605
    %v2158 = vpack.c.b16 %v1744, %v1606
    %v2159 = vpack.c.b16 %v1745, %v1607
    %v2160 = vpack.c.b16 %v1746, %v1608
    %v2161 = vpack.c.b16 %v1747, %v1609
    %v2162 = vpack.c.b16 %v1748, %v1610
    %v2163 = vpack.c.b16 %v1749, %v1611
    %v2164 = vpack.c.b16 %v1750, %v1612
    %v2165 = vpack.c.b16 %v1751, %v1613
    %v2166 = vpack.c.b16 %v1752, %v1614
    %v2167 = vpack.c.b16 %v1753, %v1615
    %v2168 = vpack.c.b16 %v1754, %v1616
    %v2169 = vpack.c.b16 %v1755, %v1617
    %v2170 = vpack.c.b16 %v1756, %v1618
    %v2171 = vpack.c.b16 %v1757, %v1619
    %v2172 = vpack.c.b16 %v1758, %v1620
    %v2173 = vpack.c.b16 %v1759, %v1621
    %v2174 = vpack.c.b16 %v1760, %v1622
    %v2175 = vpack.c.b16 %v1761, %v1623
    %v2176 = vpack.c.b16 %v1762, %v1624
    %v2177 = vpack.c.b16 %v1763, %v1625
    %v2178 = vpack.c.b16 %v1764, %v1626
    %v2179 = vpack.c.b16 %v1765, %v1627
    %v2180 = vpack.c.b16 %v1766, %v1628
    %v2181 = vpack.c.b16 %v1767, %v1629
    %v2182 = vpack.c.b16 %v1768, %v1630
    %v2183 = vpack.c.b16 %v1769, %v1631
    %v2184 = vpack.c.b16 %v1770, %v1632
    %v2185 = vpack.c.b16 %v1771, %v1633
    %v2186 = vpack.c.b16 %v1772, %v1634
    %v2187 = vpack.c.b16 %v1773, %v1635
    %v2188 = vpack.c.b16 %v1774, %v1636
    %v2189 = vpack.c.b16 %v1775, %v1637
    %v2190 = vpack.c.b16 %v1776, %v1638
    %v2191 = vpack.c.b16 %v1777, %v1639
    %v2192 = vpack.c.b16 %v1778, %v1640
    %v2193 = vpack.c.b16 %v1917, %v1779
    %v2194 = vpack.c.b16 %v1918, %v1780
    %v2195 = vpack.c.b16 %v1919, %v1781
    %v2196 = vpack.c.b16 %v1920, %v1782
    %v2197 = vpack.c.b16 %v1921, %v1783
    %v2198 = vpack.c.b16 %v1922, %v1784
    %v2199 = vpack.c.b16 %v1923, %v1785
    %v2200 = vpack.c.b16 %v1924, %v1786
    %v2201 = vpack.c.b16 %v1925, %v1787
    %v2202 = vpack.c.b16 %v1926, %v1788
    %v2203 = vpack.c.b16 %v1927, %v1789
    %v2204 = vpack.c.b16 %v1928, %v1790
    %v2205 = vpack.c.b16 %v1929, %v1791
    %v2206 = vpack.c.b16 %v1930, %v1792
    %v2207 = vpack.c.b16 %v1931, %v1793
    %v2208 = vpack.c.b16 %v1932, %v1794
    %v2209 = vpack.c.b16 %v1933, %v1795
    %v2210 = vpack.c.b16 %v1934, %v1796
    %v2211 = vpack.c.b16 %v1935, %v1797
    %v2212 = vpack.c.b16 %v1936, %v1798
    %v2213 = vpack.c.b16 %v1937, %v1799
    %v2214 = vpack.c.b16 %v1938, %v1800
    %v2215 = vpack.c.b16 %v1939, %v1801
    %v2216 = vpack.c.b16 %v1940, %v1802
    %v2217 = vpack.c.b16 %v1941, %v1803
    %v2218 = vpack.c.b16 %v1942, %v1804
    %v2219 = vpack.c.b16 %v1943, %v1805
    %v2220 = vpack.c.b16 %v1944, %v1806
    %v2221 = vpack.c.b16 %v1945, %v1807
    %v2222 = vpack.c.b16 %v1946, %v1808
    %v2223 = vpack.c.b16 %v1947, %v1809
    %v2224 = vpack.c.b16 %v1948, %v1810
    %v2225 = vpack.c.b16 %v1949, %v1811
    %v2226 = vpack.c.b16 %v1950, %v1812
    %v2227 = vpack.c.b16 %v1951, %v1813
    %v2228 = vpack.c.b16 %v1952, %v1814
    %v2229 = vpack.c.b16 %v1953, %v1815
    %v2230 = vpack.c.b16 %v1954, %v1816
    %v2231 = vpack.c.b16 %v1955, %v1817
    %v2232 = vpack.c.b16 %v1956, %v1818
    %v2233 = vpack.c.b16 %v1957, %v1819
    %v2234 = vpack.c.b16 %v1958, %v1820
    %v2235 = vpack.c.b16 %v1959, %v1821
    %v2236 = vpack.c.b16 %v1960, %v1822
    %v2237 = vpack.c.b16 %v1961, %v1823
    %v2238 = vpack.c.b16 %v1962, %v1824
    %v2239 = vpack.c.b16 %v1963, %v1825
    %v2240 = vpack.c.b16 %v1964, %v1826
    %v2241 = vpack.c.b16 %v1965, %v1827
    %v2242 = vpack.c.b16 %v1966, %v1828
    %v2243 = vpack.c.b16 %v1967, %v1829
    %v2244 = vpack.c.b16 %v1968, %v1830
    %v2245 = vpack.c.b16 %v1969, %v1831
    %v2246 = vpack.c.b16 %v1970, %v1832
    %v2247 = vpack.c.b16 %v1971, %v1833
    %v2248 = vpack.c.b16 %v1972, %v1834
    %v2249 = vpack.c.b16 %v1973, %v1835
    %v2250 = vpack.c.b16 %v1974, %v1836
    %v2251 = vpack.c.b16 %v1975, %v1837
    %v2252 = vpack.c.b16 %v1976, %v1838
    %v2253 = vpack.c.b16 %v1977, %v1839
    %v2254 = vpack.c.b16 %v1978, %v1840
    %v2255 = vpack.c.b16 %v1979, %v1841
    %v2256 = vpack.c.b16 %v1980, %v1842
    %v2257 = vpack.c.b16 %v1981, %v1843
    %v2258 = vpack.c.b16 %v1982, %v1844
    %v2259 = vpack.c.b16 %v1983, %v1845
    %v2260 = vpack.c.b16 %v1984, %v1846
    %v2261 = vpack.c.b16 %v1985, %v1847
    %v2262 = vpack.c.b16 %v1986, %v1848
    %v2263 = vpack.c.b16 %v1987, %v1849
    %v2264 = vpack.c.b16 %v1988, %v1850
    %v2265 = vpack.c.b16 %v1989, %v1851
    %v2266 = vpack.c.b16 %v1990, %v1852
    %v2267 = vpack.c.b16 %v1991, %v1853
    %v2268 = vpack.c.b16 %v1992, %v1854
    %v2269 = vpack.c.b16 %v1993, %v1855
    %v2270 = vpack.c.b16 %v1994, %v1856
    %v2271 = vpack.c.b16 %v1995, %v1857
    %v2272 = vpack.c.b16 %v1996, %v1858
    %v2273 = vpack.c.b16 %v1997, %v1859
    %v2274 = vpack.c.b16 %v1998, %v1860
    %v2275 = vpack.c.b16 %v1999, %v1861
    %v2276 = vpack.c.b16 %v2000, %v1862
    %v2277 = vpack.c.b16 %v2001, %v1863
    %v2278 = vpack.c.b16 %v2002, %v1864
    %v2279 = vpack.c.b16 %v2003, %v1865
    %v2280 = vpack.c.b16 %v2004, %v1866
    %v2281 = vpack.c.b16 %v2005, %v1867
    %v2282 = vpack.c.b16 %v2006, %v1868
    %v2283 = vpack.c.b16 %v2007, %v1869
    %v2284 = vpack.c.b16 %v2008, %v1870
    %v2285 = vpack.c.b16 %v2009, %v1871
    %v2286 = vpack.c.b16 %v2010, %v1872
    %v2287 = vpack.c.b16 %v2011, %v1873
    %v2288 = vpack.c.b16 %v2012, %v1874
    %v2289 = vpack.c.b16 %v2013, %v1875
    %v2290 = vpack.c.b16 %v2014, %v1876
    %v2291 = vpack.c.b16 %v2015, %v1877
    %v2292 = vpack.c.b16 %v2016, %v1878
    %v2293 = vpack.c.b16 %v2017, %v1879
    %v2294 = vpack.c.b16 %v2018, %v1880
    %v2295 = vpack.c.b16 %v2019, %v1881
    %v2296 = vpack.c.b16 %v2020, %v1882
    %v2297 = vpack.c.b16 %v2021, %v1883
    %v2298 = vpack.c.b16 %v2022, %v1884
    %v2299 = vpack.c.b16 %v2023, %v1885
    %v2300 = vpack.c.b16 %v2024, %v1886
    %v2301 = vpack.c.b16 %v2025, %v1887
    %v2302 = vpack.c.b16 %v2026, %v1888
    %v2303 = vpack.c.b16 %v2027, %v1889
    %v2304 = vpack.c.b16 %v2028, %v1890
    %v2305 = vpack.c.b16 %v2029, %v1891
    %v2306 = vpack.c.b16 %v2030, %v1892
    %v2307 = vpack.c.b16 %v2031, %v1893
    %v2308 = vpack.c.b16 %v2032, %v1894
    %v2309 = vpack.c.b16 %v2033, %v1895
    %v2310 = vpack.c.b16 %v2034, %v1896
    %v2311 = vpack.c.b16 %v2035, %v1897
    %v2312 = vpack.c.b16 %v2036, %v1898
    %v2313 = vpack.c.b16 %v2037, %v1899
    %v2314 = vpack.c.b16 %v2038, %v1900
    %v2315 = vpack.c.b16 %v2039, %v1901
    %v2316 = vpack.c.b16 %v2040, %v1902
    %v2317 = vpack.c.b16 %v2041, %v1903
    %v2318 = vpack.c.b16 %v2042, %v1904
    %v2319 = vpack.c.b16 %v2043, %v1905
    %v2320 = vpack.c.b16 %v2044, %v1906
    %v2321 = vpack.c.b16 %v2045, %v1907
    %v2322 = vpack.c.b16 %v2046, %v1908
    %v2323 = vpack.c.b16 %v2047, %v1909
    %v2324 = vpack.c.b16 %v2048, %v1910
    %v2325 = vpack.c.b16 %v2049, %v1911
    %v2326 = vpack.c.b16 %v2050, %v1912
    %v2327 = vpack.c.b16 %v2051, %v1913
    %v2328 = vpack.c.b16 %v2052, %v1914
    %v2329 = vpack.c.b16 %v2053, %v1915
    %v2330 = vpack.c.b16 %v2054, %v1916
    %v2608 = vsel %vm147, %v224, 0
    %2610 = vmatprep.subr.bf16.mxu0 %v2056
    %2611 = vmatpush1.bf16.msra.mxu0 %v2055
    %2612 = vmatprep.subr.bf16.mxu0 %v2194
    %2613 = vmatpush1.bf16.msra.mxu0 %v2193
    %2614 = vmatprep.subr.bf16.mxu0 0
    %2615 = vmatpush1.bf16.msra.mxu0 0
    %2616 = vmatprep.subr.bf16.mxu0 0
    %2617 = vmatpush1.bf16.msra.mxu0 0
    %2618 = vmatprep.subr.bf16.mxu0 0
    %2619 = vmatpush1.bf16.msra.mxu0 0
    %2620 = vmatprep.subr.bf16.mxu0 0
    %2621 = vmatpush1.bf16.msra.mxu0 0
    %2622 = vmatprep.subr.bf16.mxu0 0
    %2623 = vmatpush1.bf16.msra.mxu0 0
    %2624 = vmatprep.subr.bf16.mxu0 0
    %2625 = vmatpush1.bf16.msra.mxu0 0
    %2626 = vmatprep.subr.bf16.mxu0 0
    %2627 = vmatpush1.bf16.msra.mxu0 0
    %2628 = vmatprep.subr.bf16.mxu0 0
    %2629 = vmatpush1.bf16.msra.mxu0 0
    %2630 = vmatprep.subr.bf16.mxu0 0
    %2631 = vmatpush1.bf16.msra.mxu0 0
    %2632 = vmatprep.subr.bf16.mxu0 0
    %2633 = vmatpush1.bf16.msra.mxu0 0
    %2634 = vmatprep.subr.bf16.mxu0 0
    %2635 = vmatpush1.bf16.msra.mxu0 0
    %2636 = vmatprep.subr.bf16.mxu0 0
    %2637 = vmatpush1.bf16.msra.mxu0 0
    %2638 = vmatprep.subr.bf16.mxu0 0
    %2639 = vmatpush1.bf16.msra.mxu0 0
    %2640 = vmatprep.subr.bf16.mxu0 0
    %2641 = vmatpush1.bf16.msra.mxu0 0
    %2642 = vmatprep.mubr.bf16.mxu0 0
    %2643 = vmatmul.mubr.bf16.gmra.mrb[0].mxu0 %v2608
    %v2644 = vpop.f32.mrb[0].mxu0
    %v2645 = vadd.f32 %v540, %v2644
    %v2646 = vpop.f32.mrb[0].mxu0
    %v2647 = vadd.f32 %v544, %v2646
    %v2648 = vpop.f32.mrb[0].mxu0
    %v2649 = vpop.f32.mrb[0].mxu0
    %2650 = vdwg.mxu0
    %2651 = vmatprep.subr.bf16.mxu0 %v2058
    %2652 = vmatpush1.bf16.msra.mxu0 %v2057
    %2653 = vmatprep.subr.bf16.mxu0 %v2196
    %2654 = vmatpush1.bf16.msra.mxu0 %v2195
    %2655 = vmatprep.subr.bf16.mxu0 0
    %2656 = vmatpush1.bf16.msra.mxu0 0
    %2657 = vmatprep.subr.bf16.mxu0 0
    %2658 = vmatpush1.bf16.msra.mxu0 0
    %2659 = vmatprep.subr.bf16.mxu0 0
    %2660 = vmatpush1.bf16.msra.mxu0 0
    %2661 = vmatprep.subr.bf16.mxu0 0
    %2662 = vmatpush1.bf16.msra.mxu0 0
    %2663 = vmatprep.subr.bf16.mxu0 0
    %2664 = vmatpush1.bf16.msra.mxu0 0
    %2665 = vmatprep.subr.bf16.mxu0 0
    %2666 = vmatpush1.bf16.msra.mxu0 0
    %2667 = vmatprep.subr.bf16.mxu0 0
    %2668 = vmatpush1.bf16.msra.mxu0 0
    %2669 = vmatprep.subr.bf16.mxu0 0
    %2670 = vmatpush1.bf16.msra.mxu0 0
    %2671 = vmatprep.subr.bf16.mxu0 0
    %2672 = vmatpush1.bf16.msra.mxu0 0
    %2673 = vmatprep.subr.bf16.mxu0 0
    %2674 = vmatpush1.bf16.msra.mxu0 0
    %2675 = vmatprep.subr.bf16.mxu0 0
    %2676 = vmatpush1.bf16.msra.mxu0 0
    %2677 = vmatprep.subr.bf16.mxu0 0
    %2678 = vmatpush1.bf16.msra.mxu0 0
    %2679 = vmatprep.subr.bf16.mxu0 0
    %2680 = vmatpush1.bf16.msra.mxu0 0
    %2681 = vmatprep.subr.bf16.mxu0 0
    %2682 = vmatpush1.bf16.msra.mxu0 0
    %2683 = vmatprep.mubr.bf16.mxu0 0
    %2684 = vmatmul.mubr.bf16.gmra.mrb[0].mxu0 %v2608
    %v2685 = vpop.f32.mrb[0].mxu0
    %v2686 = vadd.f32 %v548, %v2685
    %v2687 = vpop.f32.mrb[0].mxu0
    %v2688 = vadd.f32 %v552, %v2687
    %v2689 = vpop.f32.mrb[0].mxu0
    %v2690 = vpop.f32.mrb[0].mxu0
    %2691 = vdwg.mxu0
    %2692 = vmatprep.subr.bf16.mxu0 %v2060
    %2693 = vmatpush1.bf16.msra.mxu0 %v2059
    %2694 = vmatprep.subr.bf16.mxu0 %v2198
    %2695 = vmatpush1.bf16.msra.mxu0 %v2197
    %2696 = vmatprep.subr.bf16.mxu0 0
    %2697 = vmatpush1.bf16.msra.mxu0 0
    %2698 = vmatprep.subr.bf16.mxu0 0
    %2699 = vmatpush1.bf16.msra.mxu0 0
    %2700 = vmatprep.subr.bf16.mxu0 0
    %2701 = vmatpush1.bf16.msra.mxu0 0
    %2702 = vmatprep.subr.bf16.mxu0 0
    %2703 = vmatpush1.bf16.msra.mxu0 0
    %2704 = vmatprep.subr.bf16.mxu0 0
    %2705 = vmatpush1.bf16.msra.mxu0 0
    %2706 = vmatprep.subr.bf16.mxu0 0
    %2707 = vmatpush1.bf16.msra.mxu0 0
    %2708 = vmatprep.subr.bf16.mxu0 0
    %2709 = vmatpush1.bf16.msra.mxu0 0
    %2710 = vmatprep.subr.bf16.mxu0 0
    %2711 = vmatpush1.bf16.msra.mxu0 0
    %2712 = vmatprep.subr.bf16.mxu0 0
    %2713 = vmatpush1.bf16.msra.mxu0 0
    %2714 = vmatprep.subr.bf16.mxu0 0
    %2715 = vmatpush1.bf16.msra.mxu0 0
    %2716 = vmatprep.subr.bf16.mxu0 0
    %2717 = vmatpush1.bf16.msra.mxu0 0
    %2718 = vmatprep.subr.bf16.mxu0 0
    %2719 = vmatpush1.bf16.msra.mxu0 0
    %2720 = vmatprep.subr.bf16.mxu0 0
    %2721 = vmatpush1.bf16.msra.mxu0 0
    %2722 = vmatprep.subr.bf16.mxu0 0
    %2723 = vmatpush1.bf16.msra.mxu0 0
    %2724 = vmatprep.mubr.bf16.mxu0 0
    %2725 = vmatmul.mubr.bf16.gmra.mrb[0].mxu0 %v2608
    %v2726 = vpop.f32.mrb[0].mxu0
    %v2727 = vadd.f32 %v556, %v2726
    %v2728 = vpop.f32.mrb[0].mxu0
    %v2729 = vadd.f32 %v560, %v2728
    %v2730 = vpop.f32.mrb[0].mxu0
    %v2731 = vpop.f32.mrb[0].mxu0
    %2732 = vdwg.mxu0
    %2733 = vmatprep.subr.bf16.mxu0 %v2062
    %2734 = vmatpush1.bf16.msra.mxu0 %v2061
    %2735 = vmatprep.subr.bf16.mxu0 %v2200
    %2736 = vmatpush1.bf16.msra.mxu0 %v2199
    %2737 = vmatprep.subr.bf16.mxu0 0
    %2738 = vmatpush1.bf16.msra.mxu0 0
    %2739 = vmatprep.subr.bf16.mxu0 0
    %2740 = vmatpush1.bf16.msra.mxu0 0
    %2741 = vmatprep.subr.bf16.mxu0 0
    %2742 = vmatpush1.bf16.msra.mxu0 0
    %2743 = vmatprep.subr.bf16.mxu0 0
    %2744 = vmatpush1.bf16.msra.mxu0 0
    %2745 = vmatprep.subr.bf16.mxu0 0
    %2746 = vmatpush1.bf16.msra.mxu0 0
    %2747 = vmatprep.subr.bf16.mxu0 0
    %2748 = vmatpush1.bf16.msra.mxu0 0
    %2749 = vmatprep.subr.bf16.mxu0 0
    %2750 = vmatpush1.bf16.msra.mxu0 0
    %2751 = vmatprep.subr.bf16.mxu0 0
    %2752 = vmatpush1.bf16.msra.mxu0 0
    %2753 = vmatprep.subr.bf16.mxu0 0
    %2754 = vmatpush1.bf16.msra.mxu0 0
    %2755 = vmatprep.subr.bf16.mxu0 0
    %2756 = vmatpush1.bf16.msra.mxu0 0
    %2757 = vmatprep.subr.bf16.mxu0 0
    %2758 = vmatpush1.bf16.msra.mxu0 0
    %2759 = vmatprep.subr.bf16.mxu0 0
    %2760 = vmatpush1.bf16.msra.mxu0 0
    %2761 = vmatprep.subr.bf16.mxu0 0
    %2762 = vmatpush1.bf16.msra.mxu0 0
    %2763 = vmatprep.subr.bf16.mxu0 0
    %2764 = vmatpush1.bf16.msra.mxu0 0
    %2765 = vmatprep.mubr.bf16.mxu0 0
    %2766 = vmatmul.mubr.bf16.gmra.mrb[0].mxu0 %v2608
    %v2767 = vpop.f32.mrb[0].mxu0
    %v2768 = vadd.f32 %v564, %v2767
    %v2769 = vpop.f32.mrb[0].mxu0
    %v2770 = vadd.f32 %v568, %v2769
    %v2771 = vpop.f32.mrb[0].mxu0
    %v2772 = vpop.f32.mrb[0].mxu0
    %2773 = vdwg.mxu0
    %2774 = vmatprep.subr.bf16.mxu0 %v2064
    %2775 = vmatpush1.bf16.msra.mxu0 %v2063
    %2776 = vmatprep.subr.bf16.mxu0 %v2202
    %2777 = vmatpush1.bf16.msra.mxu0 %v2201
    %2778 = vmatprep.subr.bf16.mxu0 0
    %2779 = vmatpush1.bf16.msra.mxu0 0
    %2780 = vmatprep.subr.bf16.mxu0 0
    %2781 = vmatpush1.bf16.msra.mxu0 0
    %2782 = vmatprep.subr.bf16.mxu0 0
    %2783 = vmatpush1.bf16.msra.mxu0 0
    %2784 = vmatprep.subr.bf16.mxu0 0
    %2785 = vmatpush1.bf16.msra.mxu0 0
    %2786 = vmatprep.subr.bf16.mxu0 0
    %2787 = vmatpush1.bf16.msra.mxu0 0
    %2788 = vmatprep.subr.bf16.mxu0 0
    %2789 = vmatpush1.bf16.msra.mxu0 0
    %2790 = vmatprep.subr.bf16.mxu0 0
    %2791 = vmatpush1.bf16.msra.mxu0 0
    %2792 = vmatprep.subr.bf16.mxu0 0
    %2793 = vmatpush1.bf16.msra.mxu0 0
    %2794 = vmatprep.subr.bf16.mxu0 0
    %2795 = vmatpush1.bf16.msra.mxu0 0
    %2796 = vmatprep.subr.bf16.mxu0 0
    %2797 = vmatpush1.bf16.msra.mxu0 0
    %2798 = vmatprep.subr.bf16.mxu0 0
    %2799 = vmatpush1.bf16.msra.mxu0 0
    %2800 = vmatprep.subr.bf16.mxu0 0
    %2801 = vmatpush1.bf16.msra.mxu0 0
    %2802 = vmatprep.subr.bf16.mxu0 0
    %2803 = vmatpush1.bf16.msra.mxu0 0
    %2804 = vmatprep.subr.bf16.mxu0 0
    %2805 = vmatpush1.bf16.msra.mxu0 0
    %2806 = vmatprep.mubr.bf16.mxu0 0
    %2807 = vmatmul.mubr.bf16.gmra.mrb[0].mxu0 %v2608
    %v2808 = vpop.f32.mrb[0].mxu0
    %v2809 = vadd.f32 %v572, %v2808
    %v2810 = vpop.f32.mrb[0].mxu0
    %v2811 = vadd.f32 %v576, %v2810
    %v2812 = vpop.f32.mrb[0].mxu0
    %v2813 = vpop.f32.mrb[0].mxu0
    %2814 = vdwg.mxu0
    %2815 = vmatprep.subr.bf16.mxu0 %v2066
    %2816 = vmatpush1.bf16.msra.mxu0 %v2065
    %2817 = vmatprep.subr.bf16.mxu0 %v2204
    %2818 = vmatpush1.bf16.msra.mxu0 %v2203
    %2819 = vmatprep.subr.bf16.mxu0 0
    %2820 = vmatpush1.bf16.msra.mxu0 0
    %2821 = vmatprep.subr.bf16.mxu0 0
    %2822 = vmatpush1.bf16.msra.mxu0 0
    %2823 = vmatprep.subr.bf16.mxu0 0
    %2824 = vmatpush1.bf16.msra.mxu0 0
    %2825 = vmatprep.subr.bf16.mxu0 0
    %2826 = vmatpush1.bf16.msra.mxu0 0
    %2827 = vmatprep.subr.bf16.mxu0 0
    %2828 = vmatpush1.bf16.msra.mxu0 0
    %2829 = vmatprep.subr.bf16.mxu0 0
    %2830 = vmatpush1.bf16.msra.mxu0 0
    %2831 = vmatprep.subr.bf16.mxu0 0
    %2832 = vmatpush1.bf16.msra.mxu0 0
    %2833 = vmatprep.subr.bf16.mxu0 0
    %2834 = vmatpush1.bf16.msra.mxu0 0
    %2835 = vmatprep.subr.bf16.mxu0 0
    %2836 = vmatpush1.bf16.msra.mxu0 0
    %2837 = vmatprep.subr.bf16.mxu0 0
    %2838 = vmatpush1.bf16.msra.mxu0 0
    %2839 = vmatprep.subr.bf16.mxu0 0
    %2840 = vmatpush1.bf16.msra.mxu0 0
    %2841 = vmatprep.subr.bf16.mxu0 0
    %2842 = vmatpush1.bf16.msra.mxu0 0
    %2843 = vmatprep.subr.bf16.mxu0 0
    %2844 = vmatpush1.bf16.msra.mxu0 0
    %2845 = vmatprep.subr.bf16.mxu0 0
    %2846 = vmatpush1.bf16.msra.mxu0 0
    %2847 = vmatprep.mubr.bf16.mxu0 0
    %2848 = vmatmul.mubr.bf16.gmra.mrb[0].mxu0 %v2608
    %v2849 = vpop.f32.mrb[0].mxu0
    %v2850 = vadd.f32 %v580, %v2849
    %v2851 = vpop.f32.mrb[0].mxu0
    %v2852 = vadd.f32 %v584, %v2851
    %v2853 = vpop.f32.mrb[0].mxu0
    %v2854 = vpop.f32.mrb[0].mxu0
    %2855 = vdwg.mxu0
    %2856 = vmatprep.subr.bf16.mxu0 %v2068
    %2857 = vmatpush1.bf16.msra.mxu0 %v2067
    %2858 = vmatprep.subr.bf16.mxu0 %v2206
    %2859 = vmatpush1.bf16.msra.mxu0 %v2205
    %2860 = vmatprep.subr.bf16.mxu0 0
    %2861 = vmatpush1.bf16.msra.mxu0 0
    %2862 = vmatprep.subr.bf16.mxu0 0
    %2863 = vmatpush1.bf16.msra.mxu0 0
    %2864 = vmatprep.subr.bf16.mxu0 0
    %2865 = vmatpush1.bf16.msra.mxu0 0
    %2866 = vmatprep.subr.bf16.mxu0 0
    %2867 = vmatpush1.bf16.msra.mxu0 0
    %2868 = vmatprep.subr.bf16.mxu0 0
    %2869 = vmatpush1.bf16.msra.mxu0 0
    %2870 = vmatprep.subr.bf16.mxu0 0
    %2871 = vmatpush1.bf16.msra.mxu0 0
    %2872 = vmatprep.subr.bf16.mxu0 0
    %2873 = vmatpush1.bf16.msra.mxu0 0
    %2874 = vmatprep.subr.bf16.mxu0 0
    %2875 = vmatpush1.bf16.msra.mxu0 0
    %2876 = vmatprep.subr.bf16.mxu0 0
    %2877 = vmatpush1.bf16.msra.mxu0 0
    %2878 = vmatprep.subr.bf16.mxu0 0
    %2879 = vmatpush1.bf16.msra.mxu0 0
    %2880 = vmatprep.subr.bf16.mxu0 0
    %2881 = vmatpush1.bf16.msra.mxu0 0
    %2882 = vmatprep.subr.bf16.mxu0 0
    %2883 = vmatpush1.bf16.msra.mxu0 0
    %2884 = vmatprep.subr.bf16.mxu0 0
    %2885 = vmatpush1.bf16.msra.mxu0 0
    %2886 = vmatprep.subr.bf16.mxu0 0
    %2887 = vmatpush1.bf16.msra.mxu0 0
    %2888 = vmatprep.mubr.bf16.mxu0 0
    %2889 = vmatmul.mubr.bf16.gmra.mrb[0].mxu0 %v2608
    %v2890 = vpop.f32.mrb[0].mxu0
    %v2891 = vadd.f32 %v588, %v2890
    %v2892 = vpop.f32.mrb[0].mxu0
    %v2893 = vadd.f32 %v592, %v2892
    %v2894 = vpop.f32.mrb[0].mxu0
    %v2895 = vpop.f32.mrb[0].mxu0
    %2896 = vdwg.mxu0
    %2897 = vmatprep.subr.bf16.mxu0 %v2070
    %2898 = vmatpush1.bf16.msra.mxu0 %v2069
    %2899 = vmatprep.subr.bf16.mxu0 %v2208
    %2900 = vmatpush1.bf16.msra.mxu0 %v2207
    %2901 = vmatprep.subr.bf16.mxu0 0
    %2902 = vmatpush1.bf16.msra.mxu0 0
    %2903 = vmatprep.subr.bf16.mxu0 0
    %2904 = vmatpush1.bf16.msra.mxu0 0
    %2905 = vmatprep.subr.bf16.mxu0 0
    %2906 = vmatpush1.bf16.msra.mxu0 0
    %2907 = vmatprep.subr.bf16.mxu0 0
    %2908 = vmatpush1.bf16.msra.mxu0 0
    %2909 = vmatprep.subr.bf16.mxu0 0
    %2910 = vmatpush1.bf16.msra.mxu0 0
    %2911 = vmatprep.subr.bf16.mxu0 0
    %2912 = vmatpush1.bf16.msra.mxu0 0
    %2913 = vmatprep.subr.bf16.mxu0 0
    %2914 = vmatpush1.bf16.msra.mxu0 0
    %2915 = vmatprep.subr.bf16.mxu0 0
    %2916 = vmatpush1.bf16.msra.mxu0 0
    %2917 = vmatprep.subr.bf16.mxu0 0
    %2918 = vmatpush1.bf16.msra.mxu0 0
    %2919 = vmatprep.subr.bf16.mxu0 0
    %2920 = vmatpush1.bf16.msra.mxu0 0
    %2921 = vmatprep.subr.bf16.mxu0 0
    %2922 = vmatpush1.bf16.msra.mxu0 0
    %2923 = vmatprep.subr.bf16.mxu0 0
    %2924 = vmatpush1.bf16.msra.mxu0 0
    %2925 = vmatprep.subr.bf16.mxu0 0
    %2926 = vmatpush1.bf16.msra.mxu0 0
    %2927 = vmatprep.subr.bf16.mxu0 0
    %2928 = vmatpush1.bf16.msra.mxu0 0
    %2929 = vmatprep.mubr.bf16.mxu0 0
    %2930 = vmatmul.mubr.bf16.gmra.mrb[0].mxu0 %v2608
    %v2931 = vpop.f32.mrb[0].mxu0
    %v2932 = vadd.f32 %v596, %v2931
    %v2933 = vpop.f32.mrb[0].mxu0
    %v2934 = vadd.f32 %v600, %v2933
    %v2935 = vpop.f32.mrb[0].mxu0
    %v2936 = vpop.f32.mrb[0].mxu0
    %2937 = vdwg.mxu0
    %2938 = vmatprep.subr.bf16.mxu0 %v2072
    %2939 = vmatpush1.bf16.msra.mxu0 %v2071
    %2940 = vmatprep.subr.bf16.mxu0 %v2210
    %2941 = vmatpush1.bf16.msra.mxu0 %v2209
    %2942 = vmatprep.subr.bf16.mxu0 0
    %2943 = vmatpush1.bf16.msra.mxu0 0
    %2944 = vmatprep.subr.bf16.mxu0 0
    %2945 = vmatpush1.bf16.msra.mxu0 0
    %2946 = vmatprep.subr.bf16.mxu0 0
    %2947 = vmatpush1.bf16.msra.mxu0 0
    %2948 = vmatprep.subr.bf16.mxu0 0
    %2949 = vmatpush1.bf16.msra.mxu0 0
    %2950 = vmatprep.subr.bf16.mxu0 0
    %2951 = vmatpush1.bf16.msra.mxu0 0
    %2952 = vmatprep.subr.bf16.mxu0 0
    %2953 = vmatpush1.bf16.msra.mxu0 0
    %2954 = vmatprep.subr.bf16.mxu0 0
    %2955 = vmatpush1.bf16.msra.mxu0 0
    %2956 = vmatprep.subr.bf16.mxu0 0
    %2957 = vmatpush1.bf16.msra.mxu0 0
    %2958 = vmatprep.subr.bf16.mxu0 0
    %2959 = vmatpush1.bf16.msra.mxu0 0
    %2960 = vmatprep.subr.bf16.mxu0 0
    %2961 = vmatpush1.bf16.msra.mxu0 0
    %2962 = vmatprep.subr.bf16.mxu0 0
    %2963 = vmatpush1.bf16.msra.mxu0 0
    %2964 = vmatprep.subr.bf16.mxu0 0
    %2965 = vmatpush1.bf16.msra.mxu0 0
    %2966 = vmatprep.subr.bf16.mxu0 0
    %2967 = vmatpush1.bf16.msra.mxu0 0
    %2968 = vmatprep.subr.bf16.mxu0 0
    %2969 = vmatpush1.bf16.msra.mxu0 0
    %2970 = vmatprep.mubr.bf16.mxu0 0
    %2971 = vmatmul.mubr.bf16.gmra.mrb[0].mxu0 %v2608
    %v2972 = vpop.f32.mrb[0].mxu0
    %v2973 = vadd.f32 %v604, %v2972
    %v2974 = vpop.f32.mrb[0].mxu0
    %v2975 = vadd.f32 %v608, %v2974
    %v2976 = vpop.f32.mrb[0].mxu0
    %v2977 = vpop.f32.mrb[0].mxu0
    %2978 = vdwg.mxu0
    %2979 = vmatprep.subr.bf16.mxu0 %v2074
    %2980 = vmatpush1.bf16.msra.mxu0 %v2073
    %2981 = vmatprep.subr.bf16.mxu0 %v2212
    %2982 = vmatpush1.bf16.msra.mxu0 %v2211
    %2983 = vmatprep.subr.bf16.mxu0 0
    %2984 = vmatpush1.bf16.msra.mxu0 0
    %2985 = vmatprep.subr.bf16.mxu0 0
    %2986 = vmatpush1.bf16.msra.mxu0 0
    %2987 = vmatprep.subr.bf16.mxu0 0
    %2988 = vmatpush1.bf16.msra.mxu0 0
    %2989 = vmatprep.subr.bf16.mxu0 0
    %2990 = vmatpush1.bf16.msra.mxu0 0
    %2991 = vmatprep.subr.bf16.mxu0 0
    %2992 = vmatpush1.bf16.msra.mxu0 0
    %2993 = vmatprep.subr.bf16.mxu0 0
    %2994 = vmatpush1.bf16.msra.mxu0 0
    %2995 = vmatprep.subr.bf16.mxu0 0
    %2996 = vmatpush1.bf16.msra.mxu0 0
    %2997 = vmatprep.subr.bf16.mxu0 0
    %2998 = vmatpush1.bf16.msra.mxu0 0
    %2999 = vmatprep.subr.bf16.mxu0 0
    %3000 = vmatpush1.bf16.msra.mxu0 0
    %3001 = vmatprep.subr.bf16.mxu0 0
    %3002 = vmatpush1.bf16.msra.mxu0 0
    %3003 = vmatprep.subr.bf16.mxu0 0
    %3004 = vmatpush1.bf16.msra.mxu0 0
    %3005 = vmatprep.subr.bf16.mxu0 0
    %3006 = vmatpush1.bf16.msra.mxu0 0
    %3007 = vmatprep.subr.bf16.mxu0 0
    %3008 = vmatpush1.bf16.msra.mxu0 0
    %3009 = vmatprep.subr.bf16.mxu0 0
    %3010 = vmatpush1.bf16.msra.mxu0 0
    %3011 = vmatprep.mubr.bf16.mxu0 0
    %3012 = vmatmul.mubr.bf16.gmra.mrb[0].mxu0 %v2608
    %v3013 = vpop.f32.mrb[0].mxu0
    %v3014 = vadd.f32 %v612, %v3013
    %v3015 = vpop.f32.mrb[0].mxu0
    %v3016 = vadd.f32 %v616, %v3015
    %v3017 = vpop.f32.mrb[0].mxu0
    %v3018 = vpop.f32.mrb[0].mxu0
    %3019 = vdwg.mxu0
    %3020 = vmatprep.subr.bf16.mxu0 %v2076
    %3021 = vmatpush1.bf16.msra.mxu0 %v2075
    %3022 = vmatprep.subr.bf16.mxu0 %v2214
    %3023 = vmatpush1.bf16.msra.mxu0 %v2213
    %3024 = vmatprep.subr.bf16.mxu0 0
    %3025 = vmatpush1.bf16.msra.mxu0 0
    %3026 = vmatprep.subr.bf16.mxu0 0
    %3027 = vmatpush1.bf16.msra.mxu0 0
    %3028 = vmatprep.subr.bf16.mxu0 0
    %3029 = vmatpush1.bf16.msra.mxu0 0
    %3030 = vmatprep.subr.bf16.mxu0 0
    %3031 = vmatpush1.bf16.msra.mxu0 0
    %3032 = vmatprep.subr.bf16.mxu0 0
    %3033 = vmatpush1.bf16.msra.mxu0 0
    %3034 = vmatprep.subr.bf16.mxu0 0
    %3035 = vmatpush1.bf16.msra.mxu0 0
    %3036 = vmatprep.subr.bf16.mxu0 0
    %3037 = vmatpush1.bf16.msra.mxu0 0
    %3038 = vmatprep.subr.bf16.mxu0 0
    %3039 = vmatpush1.bf16.msra.mxu0 0
    %3040 = vmatprep.subr.bf16.mxu0 0
    %3041 = vmatpush1.bf16.msra.mxu0 0
    %3042 = vmatprep.subr.bf16.mxu0 0
    %3043 = vmatpush1.bf16.msra.mxu0 0
    %3044 = vmatprep.subr.bf16.mxu0 0
    %3045 = vmatpush1.bf16.msra.mxu0 0
    %3046 = vmatprep.subr.bf16.mxu0 0
    %3047 = vmatpush1.bf16.msra.mxu0 0
    %3048 = vmatprep.subr.bf16.mxu0 0
    %3049 = vmatpush1.bf16.msra.mxu0 0
    %3050 = vmatprep.subr.bf16.mxu0 0
    %3051 = vmatpush1.bf16.msra.mxu0 0
    %3052 = vmatprep.mubr.bf16.mxu0 0
    %3053 = vmatmul.mubr.bf16.gmra.mrb[0].mxu0 %v2608
    %v3054 = vpop.f32.mrb[0].mxu0
    %v3055 = vadd.f32 %v620, %v3054
    %v3056 = vpop.f32.mrb[0].mxu0
    %v3057 = vadd.f32 %v624, %v3056
    %v3058 = vpop.f32.mrb[0].mxu0
    %v3059 = vpop.f32.mrb[0].mxu0
    %3060 = vdwg.mxu0
    %3061 = vmatprep.subr.bf16.mxu0 %v2078
    %3062 = vmatpush1.bf16.msra.mxu0 %v2077
    %3063 = vmatprep.subr.bf16.mxu0 %v2216
    %3064 = vmatpush1.bf16.msra.mxu0 %v2215
    %3065 = vmatprep.subr.bf16.mxu0 0
    %3066 = vmatpush1.bf16.msra.mxu0 0
    %3067 = vmatprep.subr.bf16.mxu0 0
    %3068 = vmatpush1.bf16.msra.mxu0 0
    %3069 = vmatprep.subr.bf16.mxu0 0
    %3070 = vmatpush1.bf16.msra.mxu0 0
    %3071 = vmatprep.subr.bf16.mxu0 0
    %3072 = vmatpush1.bf16.msra.mxu0 0
    %3073 = vmatprep.subr.bf16.mxu0 0
    %3074 = vmatpush1.bf16.msra.mxu0 0
    %3075 = vmatprep.subr.bf16.mxu0 0
    %3076 = vmatpush1.bf16.msra.mxu0 0
    %3077 = vmatprep.subr.bf16.mxu0 0
    %3078 = vmatpush1.bf16.msra.mxu0 0
    %3079 = vmatprep.subr.bf16.mxu0 0
    %3080 = vmatpush1.bf16.msra.mxu0 0
    %3081 = vmatprep.subr.bf16.mxu0 0
    %3082 = vmatpush1.bf16.msra.mxu0 0
    %3083 = vmatprep.subr.bf16.mxu0 0
    %3084 = vmatpush1.bf16.msra.mxu0 0
    %3085 = vmatprep.subr.bf16.mxu0 0
    %3086 = vmatpush1.bf16.msra.mxu0 0
    %3087 = vmatprep.subr.bf16.mxu0 0
    %3088 = vmatpush1.bf16.msra.mxu0 0
    %3089 = vmatprep.subr.bf16.mxu0 0
    %3090 = vmatpush1.bf16.msra.mxu0 0
    %3091 = vmatprep.subr.bf16.mxu0 0
    %3092 = vmatpush1.bf16.msra.mxu0 0
    %3093 = vmatprep.mubr.bf16.mxu0 0
    %3094 = vmatmul.mubr.bf16.gmra.mrb[0].mxu0 %v2608
    %v3095 = vpop.f32.mrb[0].mxu0
    %v3096 = vadd.f32 %v628, %v3095
    %v3097 = vpop.f32.mrb[0].mxu0
    %v3098 = vadd.f32 %v632, %v3097
    %v3099 = vpop.f32.mrb[0].mxu0
    %v3100 = vpop.f32.mrb[0].mxu0
    %3101 = vdwg.mxu0
    %3102 = vmatprep.subr.bf16.mxu0 %v2080
    %3103 = vmatpush1.bf16.msra.mxu0 %v2079
    %3104 = vmatprep.subr.bf16.mxu0 %v2218
    %3105 = vmatpush1.bf16.msra.mxu0 %v2217
    %3106 = vmatprep.subr.bf16.mxu0 0
    %3107 = vmatpush1.bf16.msra.mxu0 0
    %3108 = vmatprep.subr.bf16.mxu0 0
    %3109 = vmatpush1.bf16.msra.mxu0 0
    %3110 = vmatprep.subr.bf16.mxu0 0
    %3111 = vmatpush1.bf16.msra.mxu0 0
    %3112 = vmatprep.subr.bf16.mxu0 0
    %3113 = vmatpush1.bf16.msra.mxu0 0
    %3114 = vmatprep.subr.bf16.mxu0 0
    %3115 = vmatpush1.bf16.msra.mxu0 0
    %3116 = vmatprep.subr.bf16.mxu0 0
    %3117 = vmatpush1.bf16.msra.mxu0 0
    %3118 = vmatprep.subr.bf16.mxu0 0
    %3119 = vmatpush1.bf16.msra.mxu0 0
    %3120 = vmatprep.subr.bf16.mxu0 0
    %3121 = vmatpush1.bf16.msra.mxu0 0
    %3122 = vmatprep.subr.bf16.mxu0 0
    %3123 = vmatpush1.bf16.msra.mxu0 0
    %3124 = vmatprep.subr.bf16.mxu0 0
    %3125 = vmatpush1.bf16.msra.mxu0 0
    %3126 = vmatprep.subr.bf16.mxu0 0
    %3127 = vmatpush1.bf16.msra.mxu0 0
    %3128 = vmatprep.subr.bf16.mxu0 0
    %3129 = vmatpush1.bf16.msra.mxu0 0
    %3130 = vmatprep.subr.bf16.mxu0 0
    %3131 = vmatpush1.bf16.msra.mxu0 0
    %3132 = vmatprep.subr.bf16.mxu0 0
    %3133 = vmatpush1.bf16.msra.mxu0 0
    %3134 = vmatprep.mubr.bf16.mxu0 0
    %3135 = vmatmul.mubr.bf16.gmra.mrb[0].mxu0 %v2608
    %v3136 = vpop.f32.mrb[0].mxu0
    %v3137 = vadd.f32 %v636, %v3136
    %v3138 = vpop.f32.mrb[0].mxu0
    %v3139 = vadd.f32 %v640, %v3138
    %v3140 = vpop.f32.mrb[0].mxu0
    %v3141 = vpop.f32.mrb[0].mxu0
    %3142 = vdwg.mxu0
    %3143 = vmatprep.subr.bf16.mxu0 %v2082
    %3144 = vmatpush1.bf16.msra.mxu0 %v2081
    %3145 = vmatprep.subr.bf16.mxu0 %v2220
    %3146 = vmatpush1.bf16.msra.mxu0 %v2219
    %3147 = vmatprep.subr.bf16.mxu0 0
    %3148 = vmatpush1.bf16.msra.mxu0 0
    %3149 = vmatprep.subr.bf16.mxu0 0
    %3150 = vmatpush1.bf16.msra.mxu0 0
    %3151 = vmatprep.subr.bf16.mxu0 0
    %3152 = vmatpush1.bf16.msra.mxu0 0
    %3153 = vmatprep.subr.bf16.mxu0 0
    %3154 = vmatpush1.bf16.msra.mxu0 0
    %3155 = vmatprep.subr.bf16.mxu0 0
    %3156 = vmatpush1.bf16.msra.mxu0 0
    %3157 = vmatprep.subr.bf16.mxu0 0
    %3158 = vmatpush1.bf16.msra.mxu0 0
    %3159 = vmatprep.subr.bf16.mxu0 0
    %3160 = vmatpush1.bf16.msra.mxu0 0
    %3161 = vmatprep.subr.bf16.mxu0 0
    %3162 = vmatpush1.bf16.msra.mxu0 0
    %3163 = vmatprep.subr.bf16.mxu0 0
    %3164 = vmatpush1.bf16.msra.mxu0 0
    %3165 = vmatprep.subr.bf16.mxu0 0
    %3166 = vmatpush1.bf16.msra.mxu0 0
    %3167 = vmatprep.subr.bf16.mxu0 0
    %3168 = vmatpush1.bf16.msra.mxu0 0
    %3169 = vmatprep.subr.bf16.mxu0 0
    %3170 = vmatpush1.bf16.msra.mxu0 0
    %3171 = vmatprep.subr.bf16.mxu0 0
    %3172 = vmatpush1.bf16.msra.mxu0 0
    %3173 = vmatprep.subr.bf16.mxu0 0
    %3174 = vmatpush1.bf16.msra.mxu0 0
    %3175 = vmatprep.mubr.bf16.mxu0 0
    %3176 = vmatmul.mubr.bf16.gmra.mrb[0].mxu0 %v2608
    %v3177 = vpop.f32.mrb[0].mxu0
    %v3178 = vadd.f32 %v644, %v3177
    %v3179 = vpop.f32.mrb[0].mxu0
    %v3180 = vadd.f32 %v648, %v3179
    %v3181 = vpop.f32.mrb[0].mxu0
    %v3182 = vpop.f32.mrb[0].mxu0
    %3183 = vdwg.mxu0
    %3184 = vmatprep.subr.bf16.mxu0 %v2084
    %3185 = vmatpush1.bf16.msra.mxu0 %v2083
    %3186 = vmatprep.subr.bf16.mxu0 %v2222
    %3187 = vmatpush1.bf16.msra.mxu0 %v2221
    %3188 = vmatprep.subr.bf16.mxu0 0
    %3189 = vmatpush1.bf16.msra.mxu0 0
    %3190 = vmatprep.subr.bf16.mxu0 0
    %3191 = vmatpush1.bf16.msra.mxu0 0
    %3192 = vmatprep.subr.bf16.mxu0 0
    %3193 = vmatpush1.bf16.msra.mxu0 0
    %3194 = vmatprep.subr.bf16.mxu0 0
    %3195 = vmatpush1.bf16.msra.mxu0 0
    %3196 = vmatprep.subr.bf16.mxu0 0
    %3197 = vmatpush1.bf16.msra.mxu0 0
    %3198 = vmatprep.subr.bf16.mxu0 0
    %3199 = vmatpush1.bf16.msra.mxu0 0
    %3200 = vmatprep.subr.bf16.mxu0 0
    %3201 = vmatpush1.bf16.msra.mxu0 0
    %3202 = vmatprep.subr.bf16.mxu0 0
    %3203 = vmatpush1.bf16.msra.mxu0 0
    %3204 = vmatprep.subr.bf16.mxu0 0
    %3205 = vmatpush1.bf16.msra.mxu0 0
    %3206 = vmatprep.subr.bf16.mxu0 0
    %3207 = vmatpush1.bf16.msra.mxu0 0
    %3208 = vmatprep.subr.bf16.mxu0 0
    %3209 = vmatpush1.bf16.msra.mxu0 0
    %3210 = vmatprep.subr.bf16.mxu0 0
    %3211 = vmatpush1.bf16.msra.mxu0 0
    %3212 = vmatprep.subr.bf16.mxu0 0
    %3213 = vmatpush1.bf16.msra.mxu0 0
    %3214 = vmatprep.subr.bf16.mxu0 0
    %3215 = vmatpush1.bf16.msra.mxu0 0
    %3216 = vmatprep.mubr.bf16.mxu0 0
    %3217 = vmatmul.mubr.bf16.gmra.mrb[0].mxu0 %v2608
    %v3218 = vpop.f32.mrb[0].mxu0
    %v3219 = vadd.f32 %v652, %v3218
    %v3220 = vpop.f32.mrb[0].mxu0
    %v3221 = vadd.f32 %v656, %v3220
    %v3222 = vpop.f32.mrb[0].mxu0
    %v3223 = vpop.f32.mrb[0].mxu0
    %3224 = vdwg.mxu0
    %3225 = vmatprep.subr.bf16.mxu0 %v2086
    %3226 = vmatpush1.bf16.msra.mxu0 %v2085
    %3227 = vmatprep.subr.bf16.mxu0 %v2224
    %3228 = vmatpush1.bf16.msra.mxu0 %v2223
    %3229 = vmatprep.subr.bf16.mxu0 0
    %3230 = vmatpush1.bf16.msra.mxu0 0
    %3231 = vmatprep.subr.bf16.mxu0 0
    %3232 = vmatpush1.bf16.msra.mxu0 0
    %3233 = vmatprep.subr.bf16.mxu0 0
    %3234 = vmatpush1.bf16.msra.mxu0 0
    %3235 = vmatprep.subr.bf16.mxu0 0
    %3236 = vmatpush1.bf16.msra.mxu0 0
    %3237 = vmatprep.subr.bf16.mxu0 0
    %3238 = vmatpush1.bf16.msra.mxu0 0
    %3239 = vmatprep.subr.bf16.mxu0 0
    %3240 = vmatpush1.bf16.msra.mxu0 0
    %3241 = vmatprep.subr.bf16.mxu0 0
    %3242 = vmatpush1.bf16.msra.mxu0 0
    %3243 = vmatprep.subr.bf16.mxu0 0
    %3244 = vmatpush1.bf16.msra.mxu0 0
    %3245 = vmatprep.subr.bf16.mxu0 0
    %3246 = vmatpush1.bf16.msra.mxu0 0
    %3247 = vmatprep.subr.bf16.mxu0 0
    %3248 = vmatpush1.bf16.msra.mxu0 0
    %3249 = vmatprep.subr.bf16.mxu0 0
    %3250 = vmatpush1.bf16.msra.mxu0 0
    %3251 = vmatprep.subr.bf16.mxu0 0
    %3252 = vmatpush1.bf16.msra.mxu0 0
    %3253 = vmatprep.subr.bf16.mxu0 0
    %3254 = vmatpush1.bf16.msra.mxu0 0
    %3255 = vmatprep.subr.bf16.mxu0 0
    %3256 = vmatpush1.bf16.msra.mxu0 0
    %3257 = vmatprep.mubr.bf16.mxu0 0
    %3258 = vmatmul.mubr.bf16.gmra.mrb[0].mxu0 %v2608
    %v3259 = vpop.f32.mrb[0].mxu0
    %v3260 = vadd.f32 %v660, %v3259
    %v3261 = vpop.f32.mrb[0].mxu0
    %v3262 = vadd.f32 %v664, %v3261
    %v3263 = vpop.f32.mrb[0].mxu0
    %v3264 = vpop.f32.mrb[0].mxu0
    %3265 = vdwg.mxu0
    %3266 = vmatprep.subr.bf16.mxu0 %v2088
    %3267 = vmatpush1.bf16.msra.mxu0 %v2087
    %3268 = vmatprep.subr.bf16.mxu0 %v2226
    %3269 = vmatpush1.bf16.msra.mxu0 %v2225
    %3270 = vmatprep.subr.bf16.mxu0 0
    %3271 = vmatpush1.bf16.msra.mxu0 0
    %3272 = vmatprep.subr.bf16.mxu0 0
    %3273 = vmatpush1.bf16.msra.mxu0 0
    %3274 = vmatprep.subr.bf16.mxu0 0
    %3275 = vmatpush1.bf16.msra.mxu0 0
    %3276 = vmatprep.subr.bf16.mxu0 0
    %3277 = vmatpush1.bf16.msra.mxu0 0
    %3278 = vmatprep.subr.bf16.mxu0 0
    %3279 = vmatpush1.bf16.msra.mxu0 0
    %3280 = vmatprep.subr.bf16.mxu0 0
    %3281 = vmatpush1.bf16.msra.mxu0 0
    %3282 = vmatprep.subr.bf16.mxu0 0
    %3283 = vmatpush1.bf16.msra.mxu0 0
    %3284 = vmatprep.subr.bf16.mxu0 0
    %3285 = vmatpush1.bf16.msra.mxu0 0
    %3286 = vmatprep.subr.bf16.mxu0 0
    %3287 = vmatpush1.bf16.msra.mxu0 0
    %3288 = vmatprep.subr.bf16.mxu0 0
    %3289 = vmatpush1.bf16.msra.mxu0 0
    %3290 = vmatprep.subr.bf16.mxu0 0
    %3291 = vmatpush1.bf16.msra.mxu0 0
    %3292 = vmatprep.subr.bf16.mxu0 0
    %3293 = vmatpush1.bf16.msra.mxu0 0
    %3294 = vmatprep.subr.bf16.mxu0 0
    %3295 = vmatpush1.bf16.msra.mxu0 0
    %3296 = vmatprep.subr.bf16.mxu0 0
    %3297 = vmatpush1.bf16.msra.mxu0 0
    %3298 = vmatprep.mubr.bf16.mxu0 0
    %3299 = vmatmul.mubr.bf16.gmra.mrb[0].mxu0 %v2608
    %v3300 = vpop.f32.mrb[0].mxu0
    %v3301 = vadd.f32 %v668, %v3300
    %v3302 = vpop.f32.mrb[0].mxu0
    %v3303 = vadd.f32 %v672, %v3302
    %v3304 = vpop.f32.mrb[0].mxu0
    %v3305 = vpop.f32.mrb[0].mxu0
    %3306 = vdwg.mxu0
    %3307 = vmatprep.subr.bf16.mxu0 %v2090
    %3308 = vmatpush1.bf16.msra.mxu0 %v2089
    %3309 = vmatprep.subr.bf16.mxu0 %v2228
    %3310 = vmatpush1.bf16.msra.mxu0 %v2227
    %3311 = vmatprep.subr.bf16.mxu0 0
    %3312 = vmatpush1.bf16.msra.mxu0 0
    %3313 = vmatprep.subr.bf16.mxu0 0
    %3314 = vmatpush1.bf16.msra.mxu0 0
    %3315 = vmatprep.subr.bf16.mxu0 0
    %3316 = vmatpush1.bf16.msra.mxu0 0
    %3317 = vmatprep.subr.bf16.mxu0 0
    %3318 = vmatpush1.bf16.msra.mxu0 0
    %3319 = vmatprep.subr.bf16.mxu0 0
    %3320 = vmatpush1.bf16.msra.mxu0 0
    %3321 = vmatprep.subr.bf16.mxu0 0
    %3322 = vmatpush1.bf16.msra.mxu0 0
    %3323 = vmatprep.subr.bf16.mxu0 0
    %3324 = vmatpush1.bf16.msra.mxu0 0
    %3325 = vmatprep.subr.bf16.mxu0 0
    %3326 = vmatpush1.bf16.msra.mxu0 0
    %3327 = vmatprep.subr.bf16.mxu0 0
    %3328 = vmatpush1.bf16.msra.mxu0 0
    %3329 = vmatprep.subr.bf16.mxu0 0
    %3330 = vmatpush1.bf16.msra.mxu0 0
    %3331 = vmatprep.subr.bf16.mxu0 0
    %3332 = vmatpush1.bf16.msra.mxu0 0
    %3333 = vmatprep.subr.bf16.mxu0 0
    %3334 = vmatpush1.bf16.msra.mxu0 0
    %3335 = vmatprep.subr.bf16.mxu0 0
    %3336 = vmatpush1.bf16.msra.mxu0 0
    %3337 = vmatprep.subr.bf16.mxu0 0
    %3338 = vmatpush1.bf16.msra.mxu0 0
    %3339 = vmatprep.mubr.bf16.mxu0 0
    %3340 = vmatmul.mubr.bf16.gmra.mrb[0].mxu0 %v2608
    %v3341 = vpop.f32.mrb[0].mxu0
    %v3342 = vadd.f32 %v676, %v3341
    %v3343 = vpop.f32.mrb[0].mxu0
    %v3344 = vadd.f32 %v680, %v3343
    %v3345 = vpop.f32.mrb[0].mxu0
    %v3346 = vpop.f32.mrb[0].mxu0
    %3347 = vdwg.mxu0
    %3348 = vmatprep.subr.bf16.mxu0 %v2092
    %3349 = vmatpush1.bf16.msra.mxu0 %v2091
    %3350 = vmatprep.subr.bf16.mxu0 %v2230
    %3351 = vmatpush1.bf16.msra.mxu0 %v2229
    %3352 = vmatprep.subr.bf16.mxu0 0
    %3353 = vmatpush1.bf16.msra.mxu0 0
    %3354 = vmatprep.subr.bf16.mxu0 0
    %3355 = vmatpush1.bf16.msra.mxu0 0
    %3356 = vmatprep.subr.bf16.mxu0 0
    %3357 = vmatpush1.bf16.msra.mxu0 0
    %3358 = vmatprep.subr.bf16.mxu0 0
    %3359 = vmatpush1.bf16.msra.mxu0 0
    %3360 = vmatprep.subr.bf16.mxu0 0
    %3361 = vmatpush1.bf16.msra.mxu0 0
    %3362 = vmatprep.subr.bf16.mxu0 0
    %3363 = vmatpush1.bf16.msra.mxu0 0
    %3364 = vmatprep.subr.bf16.mxu0 0
    %3365 = vmatpush1.bf16.msra.mxu0 0
    %3366 = vmatprep.subr.bf16.mxu0 0
    %3367 = vmatpush1.bf16.msra.mxu0 0
    %3368 = vmatprep.subr.bf16.mxu0 0
    %3369 = vmatpush1.bf16.msra.mxu0 0
    %3370 = vmatprep.subr.bf16.mxu0 0
    %3371 = vmatpush1.bf16.msra.mxu0 0
    %3372 = vmatprep.subr.bf16.mxu0 0
    %3373 = vmatpush1.bf16.msra.mxu0 0
    %3374 = vmatprep.subr.bf16.mxu0 0
    %3375 = vmatpush1.bf16.msra.mxu0 0
    %3376 = vmatprep.subr.bf16.mxu0 0
    %3377 = vmatpush1.bf16.msra.mxu0 0
    %3378 = vmatprep.subr.bf16.mxu0 0
    %3379 = vmatpush1.bf16.msra.mxu0 0
    %3380 = vmatprep.mubr.bf16.mxu0 0
    %3381 = vmatmul.mubr.bf16.gmra.mrb[0].mxu0 %v2608
    %v3382 = vpop.f32.mrb[0].mxu0
    %v3383 = vadd.f32 %v684, %v3382
    %v3384 = vpop.f32.mrb[0].mxu0
    %v3385 = vadd.f32 %v688, %v3384
    %v3386 = vpop.f32.mrb[0].mxu0
    %v3387 = vpop.f32.mrb[0].mxu0
    %3388 = vdwg.mxu0
    %3389 = vmatprep.subr.bf16.mxu0 %v2094
    %3390 = vmatpush1.bf16.msra.mxu0 %v2093
    %3391 = vmatprep.subr.bf16.mxu0 %v2232
    %3392 = vmatpush1.bf16.msra.mxu0 %v2231
    %3393 = vmatprep.subr.bf16.mxu0 0
    %3394 = vmatpush1.bf16.msra.mxu0 0
    %3395 = vmatprep.subr.bf16.mxu0 0
    %3396 = vmatpush1.bf16.msra.mxu0 0
    %3397 = vmatprep.subr.bf16.mxu0 0
    %3398 = vmatpush1.bf16.msra.mxu0 0
    %3399 = vmatprep.subr.bf16.mxu0 0
    %3400 = vmatpush1.bf16.msra.mxu0 0
    %3401 = vmatprep.subr.bf16.mxu0 0
    %3402 = vmatpush1.bf16.msra.mxu0 0
    %3403 = vmatprep.subr.bf16.mxu0 0
    %3404 = vmatpush1.bf16.msra.mxu0 0
    %3405 = vmatprep.subr.bf16.mxu0 0
    %3406 = vmatpush1.bf16.msra.mxu0 0
    %3407 = vmatprep.subr.bf16.mxu0 0
    %3408 = vmatpush1.bf16.msra.mxu0 0
    %3409 = vmatprep.subr.bf16.mxu0 0
    %3410 = vmatpush1.bf16.msra.mxu0 0
    %3411 = vmatprep.subr.bf16.mxu0 0
    %3412 = vmatpush1.bf16.msra.mxu0 0
    %3413 = vmatprep.subr.bf16.mxu0 0
    %3414 = vmatpush1.bf16.msra.mxu0 0
    %3415 = vmatprep.subr.bf16.mxu0 0
    %3416 = vmatpush1.bf16.msra.mxu0 0
    %3417 = vmatprep.subr.bf16.mxu0 0
    %3418 = vmatpush1.bf16.msra.mxu0 0
    %3419 = vmatprep.subr.bf16.mxu0 0
    %3420 = vmatpush1.bf16.msra.mxu0 0
    %3421 = vmatprep.mubr.bf16.mxu0 0
    %3422 = vmatmul.mubr.bf16.gmra.mrb[0].mxu0 %v2608
    %v3423 = vpop.f32.mrb[0].mxu0
    %v3424 = vadd.f32 %v692, %v3423
    %v3425 = vpop.f32.mrb[0].mxu0
    %v3426 = vadd.f32 %v696, %v3425
    %v3427 = vpop.f32.mrb[0].mxu0
    %v3428 = vpop.f32.mrb[0].mxu0
    %3429 = vdwg.mxu0
    %3430 = vmatprep.subr.bf16.mxu0 %v2096
    %3431 = vmatpush1.bf16.msra.mxu0 %v2095
    %3432 = vmatprep.subr.bf16.mxu0 %v2234
    %3433 = vmatpush1.bf16.msra.mxu0 %v2233
    %3434 = vmatprep.subr.bf16.mxu0 0
    %3435 = vmatpush1.bf16.msra.mxu0 0
    %3436 = vmatprep.subr.bf16.mxu0 0
    %3437 = vmatpush1.bf16.msra.mxu0 0
    %3438 = vmatprep.subr.bf16.mxu0 0
    %3439 = vmatpush1.bf16.msra.mxu0 0
    %3440 = vmatprep.subr.bf16.mxu0 0
    %3441 = vmatpush1.bf16.msra.mxu0 0
    %3442 = vmatprep.subr.bf16.mxu0 0
    %3443 = vmatpush1.bf16.msra.mxu0 0
    %3444 = vmatprep.subr.bf16.mxu0 0
    %3445 = vmatpush1.bf16.msra.mxu0 0
    %3446 = vmatprep.subr.bf16.mxu0 0
    %3447 = vmatpush1.bf16.msra.mxu0 0
    %3448 = vmatprep.subr.bf16.mxu0 0
    %3449 = vmatpush1.bf16.msra.mxu0 0
    %3450 = vmatprep.subr.bf16.mxu0 0
    %3451 = vmatpush1.bf16.msra.mxu0 0
    %3452 = vmatprep.subr.bf16.mxu0 0
    %3453 = vmatpush1.bf16.msra.mxu0 0
    %3454 = vmatprep.subr.bf16.mxu0 0
    %3455 = vmatpush1.bf16.msra.mxu0 0
    %3456 = vmatprep.subr.bf16.mxu0 0
    %3457 = vmatpush1.bf16.msra.mxu0 0
    %3458 = vmatprep.subr.bf16.mxu0 0
    %3459 = vmatpush1.bf16.msra.mxu0 0
    %3460 = vmatprep.subr.bf16.mxu0 0
    %3461 = vmatpush1.bf16.msra.mxu0 0
    %3462 = vmatprep.mubr.bf16.mxu0 0
    %3463 = vmatmul.mubr.bf16.gmra.mrb[0].mxu0 %v2608
    %v3464 = vpop.f32.mrb[0].mxu0
    %v3465 = vadd.f32 %v700, %v3464
    %v3466 = vpop.f32.mrb[0].mxu0
    %v3467 = vadd.f32 %v704, %v3466
    %v3468 = vpop.f32.mrb[0].mxu0
    %v3469 = vpop.f32.mrb[0].mxu0
    %3470 = vdwg.mxu0
    %3471 = vmatprep.subr.bf16.mxu0 %v2098
    %3472 = vmatpush1.bf16.msra.mxu0 %v2097
    %3473 = vmatprep.subr.bf16.mxu0 %v2236
    %3474 = vmatpush1.bf16.msra.mxu0 %v2235
    %3475 = vmatprep.subr.bf16.mxu0 0
    %3476 = vmatpush1.bf16.msra.mxu0 0
    %3477 = vmatprep.subr.bf16.mxu0 0
    %3478 = vmatpush1.bf16.msra.mxu0 0
    %3479 = vmatprep.subr.bf16.mxu0 0
    %3480 = vmatpush1.bf16.msra.mxu0 0
    %3481 = vmatprep.subr.bf16.mxu0 0
    %3482 = vmatpush1.bf16.msra.mxu0 0
    %3483 = vmatprep.subr.bf16.mxu0 0
    %3484 = vmatpush1.bf16.msra.mxu0 0
    %3485 = vmatprep.subr.bf16.mxu0 0
    %3486 = vmatpush1.bf16.msra.mxu0 0
    %3487 = vmatprep.subr.bf16.mxu0 0
    %3488 = vmatpush1.bf16.msra.mxu0 0
    %3489 = vmatprep.subr.bf16.mxu0 0
    %3490 = vmatpush1.bf16.msra.mxu0 0
    %3491 = vmatprep.subr.bf16.mxu0 0
    %3492 = vmatpush1.bf16.msra.mxu0 0
    %3493 = vmatprep.subr.bf16.mxu0 0
    %3494 = vmatpush1.bf16.msra.mxu0 0
    %3495 = vmatprep.subr.bf16.mxu0 0
    %3496 = vmatpush1.bf16.msra.mxu0 0
    %3497 = vmatprep.subr.bf16.mxu0 0
    %3498 = vmatpush1.bf16.msra.mxu0 0
    %3499 = vmatprep.subr.bf16.mxu0 0
    %3500 = vmatpush1.bf16.msra.mxu0 0
    %3501 = vmatprep.subr.bf16.mxu0 0
    %3502 = vmatpush1.bf16.msra.mxu0 0
    %3503 = vmatprep.mubr.bf16.mxu0 0
    %3504 = vmatmul.mubr.bf16.gmra.mrb[0].mxu0 %v2608
    %v3505 = vpop.f32.mrb[0].mxu0
    %v3506 = vadd.f32 %v708, %v3505
    %v3507 = vpop.f32.mrb[0].mxu0
    %v3508 = vadd.f32 %v712, %v3507
    %v3509 = vpop.f32.mrb[0].mxu0
    %v3510 = vpop.f32.mrb[0].mxu0
    %3511 = vdwg.mxu0
    %3512 = vmatprep.subr.bf16.mxu0 %v2100
    %3513 = vmatpush1.bf16.msra.mxu0 %v2099
    %3514 = vmatprep.subr.bf16.mxu0 %v2238
    %3515 = vmatpush1.bf16.msra.mxu0 %v2237
    %3516 = vmatprep.subr.bf16.mxu0 0
    %3517 = vmatpush1.bf16.msra.mxu0 0
    %3518 = vmatprep.subr.bf16.mxu0 0
    %3519 = vmatpush1.bf16.msra.mxu0 0
    %3520 = vmatprep.subr.bf16.mxu0 0
    %3521 = vmatpush1.bf16.msra.mxu0 0
    %3522 = vmatprep.subr.bf16.mxu0 0
    %3523 = vmatpush1.bf16.msra.mxu0 0
    %3524 = vmatprep.subr.bf16.mxu0 0
    %3525 = vmatpush1.bf16.msra.mxu0 0
    %3526 = vmatprep.subr.bf16.mxu0 0
    %3527 = vmatpush1.bf16.msra.mxu0 0
    %3528 = vmatprep.subr.bf16.mxu0 0
    %3529 = vmatpush1.bf16.msra.mxu0 0
    %3530 = vmatprep.subr.bf16.mxu0 0
    %3531 = vmatpush1.bf16.msra.mxu0 0
    %3532 = vmatprep.subr.bf16.mxu0 0
    %3533 = vmatpush1.bf16.msra.mxu0 0
    %3534 = vmatprep.subr.bf16.mxu0 0
    %3535 = vmatpush1.bf16.msra.mxu0 0
    %3536 = vmatprep.subr.bf16.mxu0 0
    %3537 = vmatpush1.bf16.msra.mxu0 0
    %3538 = vmatprep.subr.bf16.mxu0 0
    %3539 = vmatpush1.bf16.msra.mxu0 0
    %3540 = vmatprep.subr.bf16.mxu0 0
    %3541 = vmatpush1.bf16.msra.mxu0 0
    %3542 = vmatprep.subr.bf16.mxu0 0
    %3543 = vmatpush1.bf16.msra.mxu0 0
    %3544 = vmatprep.mubr.bf16.mxu0 0
    %3545 = vmatmul.mubr.bf16.gmra.mrb[0].mxu0 %v2608
    %v3546 = vpop.f32.mrb[0].mxu0
    %v3547 = vadd.f32 %v716, %v3546
    %v3548 = vpop.f32.mrb[0].mxu0
    %v3549 = vadd.f32 %v720, %v3548
    %v3550 = vpop.f32.mrb[0].mxu0
    %v3551 = vpop.f32.mrb[0].mxu0
    %3552 = vdwg.mxu0
    %3553 = vmatprep.subr.bf16.mxu0 %v2102
    %3554 = vmatpush1.bf16.msra.mxu0 %v2101
    %3555 = vmatprep.subr.bf16.mxu0 %v2240
    %3556 = vmatpush1.bf16.msra.mxu0 %v2239
    %3557 = vmatprep.subr.bf16.mxu0 0
    %3558 = vmatpush1.bf16.msra.mxu0 0
    %3559 = vmatprep.subr.bf16.mxu0 0
    %3560 = vmatpush1.bf16.msra.mxu0 0
    %3561 = vmatprep.subr.bf16.mxu0 0
    %3562 = vmatpush1.bf16.msra.mxu0 0
    %3563 = vmatprep.subr.bf16.mxu0 0
    %3564 = vmatpush1.bf16.msra.mxu0 0
    %3565 = vmatprep.subr.bf16.mxu0 0
    %3566 = vmatpush1.bf16.msra.mxu0 0
    %3567 = vmatprep.subr.bf16.mxu0 0
    %3568 = vmatpush1.bf16.msra.mxu0 0
    %3569 = vmatprep.subr.bf16.mxu0 0
    %3570 = vmatpush1.bf16.msra.mxu0 0
    %3571 = vmatprep.subr.bf16.mxu0 0
    %3572 = vmatpush1.bf16.msra.mxu0 0
    %3573 = vmatprep.subr.bf16.mxu0 0
    %3574 = vmatpush1.bf16.msra.mxu0 0
    %3575 = vmatprep.subr.bf16.mxu0 0
    %3576 = vmatpush1.bf16.msra.mxu0 0
    %3577 = vmatprep.subr.bf16.mxu0 0
    %3578 = vmatpush1.bf16.msra.mxu0 0
    %3579 = vmatprep.subr.bf16.mxu0 0
    %3580 = vmatpush1.bf16.msra.mxu0 0
    %3581 = vmatprep.subr.bf16.mxu0 0
    %3582 = vmatpush1.bf16.msra.mxu0 0
    %3583 = vmatprep.subr.bf16.mxu0 0
    %3584 = vmatpush1.bf16.msra.mxu0 0
    %3585 = vmatprep.mubr.bf16.mxu0 0
    %3586 = vmatmul.mubr.bf16.gmra.mrb[0].mxu0 %v2608
    %v3587 = vpop.f32.mrb[0].mxu0
    %v3588 = vadd.f32 %v724, %v3587
    %v3589 = vpop.f32.mrb[0].mxu0
    %v3590 = vadd.f32 %v728, %v3589
    %v3591 = vpop.f32.mrb[0].mxu0
    %v3592 = vpop.f32.mrb[0].mxu0
    %3593 = vdwg.mxu0
    %3594 = vmatprep.subr.bf16.mxu0 %v2104
    %3595 = vmatpush1.bf16.msra.mxu0 %v2103
    %3596 = vmatprep.subr.bf16.mxu0 %v2242
    %3597 = vmatpush1.bf16.msra.mxu0 %v2241
    %3598 = vmatprep.subr.bf16.mxu0 0
    %3599 = vmatpush1.bf16.msra.mxu0 0
    %3600 = vmatprep.subr.bf16.mxu0 0
    %3601 = vmatpush1.bf16.msra.mxu0 0
    %3602 = vmatprep.subr.bf16.mxu0 0
    %3603 = vmatpush1.bf16.msra.mxu0 0
    %3604 = vmatprep.subr.bf16.mxu0 0
    %3605 = vmatpush1.bf16.msra.mxu0 0
    %3606 = vmatprep.subr.bf16.mxu0 0
    %3607 = vmatpush1.bf16.msra.mxu0 0
    %3608 = vmatprep.subr.bf16.mxu0 0
    %3609 = vmatpush1.bf16.msra.mxu0 0
    %3610 = vmatprep.subr.bf16.mxu0 0
    %3611 = vmatpush1.bf16.msra.mxu0 0
    %3612 = vmatprep.subr.bf16.mxu0 0
    %3613 = vmatpush1.bf16.msra.mxu0 0
    %3614 = vmatprep.subr.bf16.mxu0 0
    %3615 = vmatpush1.bf16.msra.mxu0 0
    %3616 = vmatprep.subr.bf16.mxu0 0
    %3617 = vmatpush1.bf16.msra.mxu0 0
    %3618 = vmatprep.subr.bf16.mxu0 0
    %3619 = vmatpush1.bf16.msra.mxu0 0
    %3620 = vmatprep.subr.bf16.mxu0 0
    %3621 = vmatpush1.bf16.msra.mxu0 0
    %3622 = vmatprep.subr.bf16.mxu0 0
    %3623 = vmatpush1.bf16.msra.mxu0 0
    %3624 = vmatprep.subr.bf16.mxu0 0
    %3625 = vmatpush1.bf16.msra.mxu0 0
    %3626 = vmatprep.mubr.bf16.mxu0 0
    %3627 = vmatmul.mubr.bf16.gmra.mrb[0].mxu0 %v2608
    %v3628 = vpop.f32.mrb[0].mxu0
    %v3629 = vadd.f32 %v732, %v3628
    %v3630 = vpop.f32.mrb[0].mxu0
    %v3631 = vadd.f32 %v736, %v3630
    %v3632 = vpop.f32.mrb[0].mxu0
    %v3633 = vpop.f32.mrb[0].mxu0
    %3634 = vdwg.mxu0
    %3635 = vmatprep.subr.bf16.mxu0 %v2106
    %3636 = vmatpush1.bf16.msra.mxu0 %v2105
    %3637 = vmatprep.subr.bf16.mxu0 %v2244
    %3638 = vmatpush1.bf16.msra.mxu0 %v2243
    %3639 = vmatprep.subr.bf16.mxu0 0
    %3640 = vmatpush1.bf16.msra.mxu0 0
    %3641 = vmatprep.subr.bf16.mxu0 0
    %3642 = vmatpush1.bf16.msra.mxu0 0
    %3643 = vmatprep.subr.bf16.mxu0 0
    %3644 = vmatpush1.bf16.msra.mxu0 0
    %3645 = vmatprep.subr.bf16.mxu0 0
    %3646 = vmatpush1.bf16.msra.mxu0 0
    %3647 = vmatprep.subr.bf16.mxu0 0
    %3648 = vmatpush1.bf16.msra.mxu0 0
    %3649 = vmatprep.subr.bf16.mxu0 0
    %3650 = vmatpush1.bf16.msra.mxu0 0
    %3651 = vmatprep.subr.bf16.mxu0 0
    %3652 = vmatpush1.bf16.msra.mxu0 0
    %3653 = vmatprep.subr.bf16.mxu0 0
    %3654 = vmatpush1.bf16.msra.mxu0 0
    %3655 = vmatprep.subr.bf16.mxu0 0
    %3656 = vmatpush1.bf16.msra.mxu0 0
    %3657 = vmatprep.subr.bf16.mxu0 0
    %3658 = vmatpush1.bf16.msra.mxu0 0
    %3659 = vmatprep.subr.bf16.mxu0 0
    %3660 = vmatpush1.bf16.msra.mxu0 0
    %3661 = vmatprep.subr.bf16.mxu0 0
    %3662 = vmatpush1.bf16.msra.mxu0 0
    %3663 = vmatprep.subr.bf16.mxu0 0
    %3664 = vmatpush1.bf16.msra.mxu0 0
    %3665 = vmatprep.subr.bf16.mxu0 0
    %3666 = vmatpush1.bf16.msra.mxu0 0
    %3667 = vmatprep.mubr.bf16.mxu0 0
    %3668 = vmatmul.mubr.bf16.gmra.mrb[0].mxu0 %v2608
    %v3669 = vpop.f32.mrb[0].mxu0
    %v3670 = vadd.f32 %v740, %v3669
    %v3671 = vpop.f32.mrb[0].mxu0
    %v3672 = vadd.f32 %v744, %v3671
    %v3673 = vpop.f32.mrb[0].mxu0
    %v3674 = vpop.f32.mrb[0].mxu0
    %3675 = vdwg.mxu0
    %3676 = vmatprep.subr.bf16.mxu0 %v2108
    %3677 = vmatpush1.bf16.msra.mxu0 %v2107
    %3678 = vmatprep.subr.bf16.mxu0 %v2246
    %3679 = vmatpush1.bf16.msra.mxu0 %v2245
    %3680 = vmatprep.subr.bf16.mxu0 0
    %3681 = vmatpush1.bf16.msra.mxu0 0
    %3682 = vmatprep.subr.bf16.mxu0 0
    %3683 = vmatpush1.bf16.msra.mxu0 0
    %3684 = vmatprep.subr.bf16.mxu0 0
    %3685 = vmatpush1.bf16.msra.mxu0 0
    %3686 = vmatprep.subr.bf16.mxu0 0
    %3687 = vmatpush1.bf16.msra.mxu0 0
    %3688 = vmatprep.subr.bf16.mxu0 0
    %3689 = vmatpush1.bf16.msra.mxu0 0
    %3690 = vmatprep.subr.bf16.mxu0 0
    %3691 = vmatpush1.bf16.msra.mxu0 0
    %3692 = vmatprep.subr.bf16.mxu0 0
    %3693 = vmatpush1.bf16.msra.mxu0 0
    %3694 = vmatprep.subr.bf16.mxu0 0
    %3695 = vmatpush1.bf16.msra.mxu0 0
    %3696 = vmatprep.subr.bf16.mxu0 0
    %3697 = vmatpush1.bf16.msra.mxu0 0
    %3698 = vmatprep.subr.bf16.mxu0 0
    %3699 = vmatpush1.bf16.msra.mxu0 0
    %3700 = vmatprep.subr.bf16.mxu0 0
    %3701 = vmatpush1.bf16.msra.mxu0 0
    %3702 = vmatprep.subr.bf16.mxu0 0
    %3703 = vmatpush1.bf16.msra.mxu0 0
    %3704 = vmatprep.subr.bf16.mxu0 0
    %3705 = vmatpush1.bf16.msra.mxu0 0
    %3706 = vmatprep.subr.bf16.mxu0 0
    %3707 = vmatpush1.bf16.msra.mxu0 0
    %3708 = vmatprep.mubr.bf16.mxu0 0
    %3709 = vmatmul.mubr.bf16.gmra.mrb[0].mxu0 %v2608
    %v3710 = vpop.f32.mrb[0].mxu0
    %v3711 = vadd.f32 %v748, %v3710
    %v3712 = vpop.f32.mrb[0].mxu0
    %v3713 = vadd.f32 %v752, %v3712
    %v3714 = vpop.f32.mrb[0].mxu0
    %v3715 = vpop.f32.mrb[0].mxu0
    %3716 = vdwg.mxu0
    %3717 = vmatprep.subr.bf16.mxu0 %v2110
    %3718 = vmatpush1.bf16.msra.mxu0 %v2109
    %3719 = vmatprep.subr.bf16.mxu0 %v2248
    %3720 = vmatpush1.bf16.msra.mxu0 %v2247
    %3721 = vmatprep.subr.bf16.mxu0 0
    %3722 = vmatpush1.bf16.msra.mxu0 0
    %3723 = vmatprep.subr.bf16.mxu0 0
    %3724 = vmatpush1.bf16.msra.mxu0 0
    %3725 = vmatprep.subr.bf16.mxu0 0
    %3726 = vmatpush1.bf16.msra.mxu0 0
    %3727 = vmatprep.subr.bf16.mxu0 0
    %3728 = vmatpush1.bf16.msra.mxu0 0
    %3729 = vmatprep.subr.bf16.mxu0 0
    %3730 = vmatpush1.bf16.msra.mxu0 0
    %3731 = vmatprep.subr.bf16.mxu0 0
    %3732 = vmatpush1.bf16.msra.mxu0 0
    %3733 = vmatprep.subr.bf16.mxu0 0
    %3734 = vmatpush1.bf16.msra.mxu0 0
    %3735 = vmatprep.subr.bf16.mxu0 0
    %3736 = vmatpush1.bf16.msra.mxu0 0
    %3737 = vmatprep.subr.bf16.mxu0 0
    %3738 = vmatpush1.bf16.msra.mxu0 0
    %3739 = vmatprep.subr.bf16.mxu0 0
    %3740 = vmatpush1.bf16.msra.mxu0 0
    %3741 = vmatprep.subr.bf16.mxu0 0
    %3742 = vmatpush1.bf16.msra.mxu0 0
    %3743 = vmatprep.subr.bf16.mxu0 0
    %3744 = vmatpush1.bf16.msra.mxu0 0
    %3745 = vmatprep.subr.bf16.mxu0 0
    %3746 = vmatpush1.bf16.msra.mxu0 0
    %3747 = vmatprep.subr.bf16.mxu0 0
    %3748 = vmatpush1.bf16.msra.mxu0 0
    %3749 = vmatprep.mubr.bf16.mxu0 0
    %3750 = vmatmul.mubr.bf16.gmra.mrb[0].mxu0 %v2608
    %v3751 = vpop.f32.mrb[0].mxu0
    %v3752 = vadd.f32 %v756, %v3751
    %v3753 = vpop.f32.mrb[0].mxu0
    %v3754 = vadd.f32 %v760, %v3753
    %v3755 = vpop.f32.mrb[0].mxu0
    %v3756 = vpop.f32.mrb[0].mxu0
    %3757 = vdwg.mxu0
    %3758 = vmatprep.subr.bf16.mxu0 %v2112
    %3759 = vmatpush1.bf16.msra.mxu0 %v2111
    %3760 = vmatprep.subr.bf16.mxu0 %v2250
    %3761 = vmatpush1.bf16.msra.mxu0 %v2249
    %3762 = vmatprep.subr.bf16.mxu0 0
    %3763 = vmatpush1.bf16.msra.mxu0 0
    %3764 = vmatprep.subr.bf16.mxu0 0
    %3765 = vmatpush1.bf16.msra.mxu0 0
    %3766 = vmatprep.subr.bf16.mxu0 0
    %3767 = vmatpush1.bf16.msra.mxu0 0
    %3768 = vmatprep.subr.bf16.mxu0 0
    %3769 = vmatpush1.bf16.msra.mxu0 0
    %3770 = vmatprep.subr.bf16.mxu0 0
    %3771 = vmatpush1.bf16.msra.mxu0 0
    %3772 = vmatprep.subr.bf16.mxu0 0
    %3773 = vmatpush1.bf16.msra.mxu0 0
    %3774 = vmatprep.subr.bf16.mxu0 0
    %3775 = vmatpush1.bf16.msra.mxu0 0
    %3776 = vmatprep.subr.bf16.mxu0 0
    %3777 = vmatpush1.bf16.msra.mxu0 0
    %3778 = vmatprep.subr.bf16.mxu0 0
    %3779 = vmatpush1.bf16.msra.mxu0 0
    %3780 = vmatprep.subr.bf16.mxu0 0
    %3781 = vmatpush1.bf16.msra.mxu0 0
    %3782 = vmatprep.subr.bf16.mxu0 0
    %3783 = vmatpush1.bf16.msra.mxu0 0
    %3784 = vmatprep.subr.bf16.mxu0 0
    %3785 = vmatpush1.bf16.msra.mxu0 0
    %3786 = vmatprep.subr.bf16.mxu0 0
    %3787 = vmatpush1.bf16.msra.mxu0 0
    %3788 = vmatprep.subr.bf16.mxu0 0
    %3789 = vmatpush1.bf16.msra.mxu0 0
    %3790 = vmatprep.mubr.bf16.mxu0 0
    %3791 = vmatmul.mubr.bf16.gmra.mrb[0].mxu0 %v2608
    %v3792 = vpop.f32.mrb[0].mxu0
    %v3793 = vadd.f32 %v764, %v3792
    %v3794 = vpop.f32.mrb[0].mxu0
    %v3795 = vadd.f32 %v768, %v3794
    %v3796 = vpop.f32.mrb[0].mxu0
    %v3797 = vpop.f32.mrb[0].mxu0
    %3798 = vdwg.mxu0
    %3799 = vmatprep.subr.bf16.mxu0 %v2114
    %3800 = vmatpush1.bf16.msra.mxu0 %v2113
    %3801 = vmatprep.subr.bf16.mxu0 %v2252
    %3802 = vmatpush1.bf16.msra.mxu0 %v2251
    %3803 = vmatprep.subr.bf16.mxu0 0
    %3804 = vmatpush1.bf16.msra.mxu0 0
    %3805 = vmatprep.subr.bf16.mxu0 0
    %3806 = vmatpush1.bf16.msra.mxu0 0
    %3807 = vmatprep.subr.bf16.mxu0 0
    %3808 = vmatpush1.bf16.msra.mxu0 0
    %3809 = vmatprep.subr.bf16.mxu0 0
    %3810 = vmatpush1.bf16.msra.mxu0 0
    %3811 = vmatprep.subr.bf16.mxu0 0
    %3812 = vmatpush1.bf16.msra.mxu0 0
    %3813 = vmatprep.subr.bf16.mxu0 0
    %3814 = vmatpush1.bf16.msra.mxu0 0
    %3815 = vmatprep.subr.bf16.mxu0 0
    %3816 = vmatpush1.bf16.msra.mxu0 0
    %3817 = vmatprep.subr.bf16.mxu0 0
    %3818 = vmatpush1.bf16.msra.mxu0 0
    %3819 = vmatprep.subr.bf16.mxu0 0
    %3820 = vmatpush1.bf16.msra.mxu0 0
    %3821 = vmatprep.subr.bf16.mxu0 0
    %3822 = vmatpush1.bf16.msra.mxu0 0
    %3823 = vmatprep.subr.bf16.mxu0 0
    %3824 = vmatpush1.bf16.msra.mxu0 0
    %3825 = vmatprep.subr.bf16.mxu0 0
    %3826 = vmatpush1.bf16.msra.mxu0 0
    %3827 = vmatprep.subr.bf16.mxu0 0
    %3828 = vmatpush1.bf16.msra.mxu0 0
    %3829 = vmatprep.subr.bf16.mxu0 0
    %3830 = vmatpush1.bf16.msra.mxu0 0
    %3831 = vmatprep.mubr.bf16.mxu0 0
    %3832 = vmatmul.mubr.bf16.gmra.mrb[0].mxu0 %v2608
    %v3833 = vpop.f32.mrb[0].mxu0
    %v3834 = vadd.f32 %v772, %v3833
    %v3835 = vpop.f32.mrb[0].mxu0
    %v3836 = vadd.f32 %v776, %v3835
    %v3837 = vpop.f32.mrb[0].mxu0
    %v3838 = vpop.f32.mrb[0].mxu0
    %3839 = vdwg.mxu0
    %3840 = vmatprep.subr.bf16.mxu0 %v2116
    %3841 = vmatpush1.bf16.msra.mxu0 %v2115
    %3842 = vmatprep.subr.bf16.mxu0 %v2254
    %3843 = vmatpush1.bf16.msra.mxu0 %v2253
    %3844 = vmatprep.subr.bf16.mxu0 0
    %3845 = vmatpush1.bf16.msra.mxu0 0
    %3846 = vmatprep.subr.bf16.mxu0 0
    %3847 = vmatpush1.bf16.msra.mxu0 0
    %3848 = vmatprep.subr.bf16.mxu0 0
    %3849 = vmatpush1.bf16.msra.mxu0 0
    %3850 = vmatprep.subr.bf16.mxu0 0
    %3851 = vmatpush1.bf16.msra.mxu0 0
    %3852 = vmatprep.subr.bf16.mxu0 0
    %3853 = vmatpush1.bf16.msra.mxu0 0
    %3854 = vmatprep.subr.bf16.mxu0 0
    %3855 = vmatpush1.bf16.msra.mxu0 0
    %3856 = vmatprep.subr.bf16.mxu0 0
    %3857 = vmatpush1.bf16.msra.mxu0 0
    %3858 = vmatprep.subr.bf16.mxu0 0
    %3859 = vmatpush1.bf16.msra.mxu0 0
    %3860 = vmatprep.subr.bf16.mxu0 0
    %3861 = vmatpush1.bf16.msra.mxu0 0
    %3862 = vmatprep.subr.bf16.mxu0 0
    %3863 = vmatpush1.bf16.msra.mxu0 0
    %3864 = vmatprep.subr.bf16.mxu0 0
    %3865 = vmatpush1.bf16.msra.mxu0 0
    %3866 = vmatprep.subr.bf16.mxu0 0
    %3867 = vmatpush1.bf16.msra.mxu0 0
    %3868 = vmatprep.subr.bf16.mxu0 0
    %3869 = vmatpush1.bf16.msra.mxu0 0
    %3870 = vmatprep.subr.bf16.mxu0 0
    %3871 = vmatpush1.bf16.msra.mxu0 0
    %3872 = vmatprep.mubr.bf16.mxu0 0
    %3873 = vmatmul.mubr.bf16.gmra.mrb[0].mxu0 %v2608
    %v3874 = vpop.f32.mrb[0].mxu0
    %v3875 = vadd.f32 %v780, %v3874
    %v3876 = vpop.f32.mrb[0].mxu0
    %v3877 = vadd.f32 %v784, %v3876
    %v3878 = vpop.f32.mrb[0].mxu0
    %v3879 = vpop.f32.mrb[0].mxu0
    %3880 = vdwg.mxu0
    %3881 = vmatprep.subr.bf16.mxu0 %v2118
    %3882 = vmatpush1.bf16.msra.mxu0 %v2117
    %3883 = vmatprep.subr.bf16.mxu0 %v2256
    %3884 = vmatpush1.bf16.msra.mxu0 %v2255
    %3885 = vmatprep.subr.bf16.mxu0 0
    %3886 = vmatpush1.bf16.msra.mxu0 0
    %3887 = vmatprep.subr.bf16.mxu0 0
    %3888 = vmatpush1.bf16.msra.mxu0 0
    %3889 = vmatprep.subr.bf16.mxu0 0
    %3890 = vmatpush1.bf16.msra.mxu0 0
    %3891 = vmatprep.subr.bf16.mxu0 0
    %3892 = vmatpush1.bf16.msra.mxu0 0
    %3893 = vmatprep.subr.bf16.mxu0 0
    %3894 = vmatpush1.bf16.msra.mxu0 0
    %3895 = vmatprep.subr.bf16.mxu0 0
    %3896 = vmatpush1.bf16.msra.mxu0 0
    %3897 = vmatprep.subr.bf16.mxu0 0
    %3898 = vmatpush1.bf16.msra.mxu0 0
    %3899 = vmatprep.subr.bf16.mxu0 0
    %3900 = vmatpush1.bf16.msra.mxu0 0
    %3901 = vmatprep.subr.bf16.mxu0 0
    %3902 = vmatpush1.bf16.msra.mxu0 0
    %3903 = vmatprep.subr.bf16.mxu0 0
    %3904 = vmatpush1.bf16.msra.mxu0 0
    %3905 = vmatprep.subr.bf16.mxu0 0
    %3906 = vmatpush1.bf16.msra.mxu0 0
    %3907 = vmatprep.subr.bf16.mxu0 0
    %3908 = vmatpush1.bf16.msra.mxu0 0
    %3909 = vmatprep.subr.bf16.mxu0 0
    %3910 = vmatpush1.bf16.msra.mxu0 0
    %3911 = vmatprep.subr.bf16.mxu0 0
    %3912 = vmatpush1.bf16.msra.mxu0 0
    %3913 = vmatprep.mubr.bf16.mxu0 0
    %3914 = vmatmul.mubr.bf16.gmra.mrb[0].mxu0 %v2608
    %v3915 = vpop.f32.mrb[0].mxu0
    %v3916 = vadd.f32 %v788, %v3915
    %v3917 = vpop.f32.mrb[0].mxu0
    %v3918 = vadd.f32 %v792, %v3917
    %v3919 = vpop.f32.mrb[0].mxu0
    %v3920 = vpop.f32.mrb[0].mxu0
    %3921 = vdwg.mxu0
    %3922 = vmatprep.subr.bf16.mxu0 %v2120
    %3923 = vmatpush1.bf16.msra.mxu0 %v2119
    %3924 = vmatprep.subr.bf16.mxu0 %v2258
    %3925 = vmatpush1.bf16.msra.mxu0 %v2257
    %3926 = vmatprep.subr.bf16.mxu0 0
    %3927 = vmatpush1.bf16.msra.mxu0 0
    %3928 = vmatprep.subr.bf16.mxu0 0
    %3929 = vmatpush1.bf16.msra.mxu0 0
    %3930 = vmatprep.subr.bf16.mxu0 0
    %3931 = vmatpush1.bf16.msra.mxu0 0
    %3932 = vmatprep.subr.bf16.mxu0 0
    %3933 = vmatpush1.bf16.msra.mxu0 0
    %3934 = vmatprep.subr.bf16.mxu0 0
    %3935 = vmatpush1.bf16.msra.mxu0 0
    %3936 = vmatprep.subr.bf16.mxu0 0
    %3937 = vmatpush1.bf16.msra.mxu0 0
    %3938 = vmatprep.subr.bf16.mxu0 0
    %3939 = vmatpush1.bf16.msra.mxu0 0
    %3940 = vmatprep.subr.bf16.mxu0 0
    %3941 = vmatpush1.bf16.msra.mxu0 0
    %3942 = vmatprep.subr.bf16.mxu0 0
    %3943 = vmatpush1.bf16.msra.mxu0 0
    %3944 = vmatprep.subr.bf16.mxu0 0
    %3945 = vmatpush1.bf16.msra.mxu0 0
    %3946 = vmatprep.subr.bf16.mxu0 0
    %3947 = vmatpush1.bf16.msra.mxu0 0
    %3948 = vmatprep.subr.bf16.mxu0 0
    %3949 = vmatpush1.bf16.msra.mxu0 0
    %3950 = vmatprep.subr.bf16.mxu0 0
    %3951 = vmatpush1.bf16.msra.mxu0 0
    %3952 = vmatprep.subr.bf16.mxu0 0
    %3953 = vmatpush1.bf16.msra.mxu0 0
    %3954 = vmatprep.mubr.bf16.mxu0 0
    %3955 = vmatmul.mubr.bf16.gmra.mrb[0].mxu0 %v2608
    %v3956 = vpop.f32.mrb[0].mxu0
    %v3957 = vadd.f32 %v796, %v3956
    %v3958 = vpop.f32.mrb[0].mxu0
    %v3959 = vadd.f32 %v800, %v3958
    %v3960 = vpop.f32.mrb[0].mxu0
    %v3961 = vpop.f32.mrb[0].mxu0
    %3962 = vdwg.mxu0
    %3963 = vmatprep.subr.bf16.mxu0 %v2122
    %3964 = vmatpush1.bf16.msra.mxu0 %v2121
    %3965 = vmatprep.subr.bf16.mxu0 %v2260
    %3966 = vmatpush1.bf16.msra.mxu0 %v2259
    %3967 = vmatprep.subr.bf16.mxu0 0
    %3968 = vmatpush1.bf16.msra.mxu0 0
    %3969 = vmatprep.subr.bf16.mxu0 0
    %3970 = vmatpush1.bf16.msra.mxu0 0
    %3971 = vmatprep.subr.bf16.mxu0 0
    %3972 = vmatpush1.bf16.msra.mxu0 0
    %3973 = vmatprep.subr.bf16.mxu0 0
    %3974 = vmatpush1.bf16.msra.mxu0 0
    %3975 = vmatprep.subr.bf16.mxu0 0
    %3976 = vmatpush1.bf16.msra.mxu0 0
    %3977 = vmatprep.subr.bf16.mxu0 0
    %3978 = vmatpush1.bf16.msra.mxu0 0
    %3979 = vmatprep.subr.bf16.mxu0 0
    %3980 = vmatpush1.bf16.msra.mxu0 0
    %3981 = vmatprep.subr.bf16.mxu0 0
    %3982 = vmatpush1.bf16.msra.mxu0 0
    %3983 = vmatprep.subr.bf16.mxu0 0
    %3984 = vmatpush1.bf16.msra.mxu0 0
    %3985 = vmatprep.subr.bf16.mxu0 0
    %3986 = vmatpush1.bf16.msra.mxu0 0
    %3987 = vmatprep.subr.bf16.mxu0 0
    %3988 = vmatpush1.bf16.msra.mxu0 0
    %3989 = vmatprep.subr.bf16.mxu0 0
    %3990 = vmatpush1.bf16.msra.mxu0 0
    %3991 = vmatprep.subr.bf16.mxu0 0
    %3992 = vmatpush1.bf16.msra.mxu0 0
    %3993 = vmatprep.subr.bf16.mxu0 0
    %3994 = vmatpush1.bf16.msra.mxu0 0
    %3995 = vmatprep.mubr.bf16.mxu0 0
    %3996 = vmatmul.mubr.bf16.gmra.mrb[0].mxu0 %v2608
    %v3997 = vpop.f32.mrb[0].mxu0
    %v3998 = vadd.f32 %v804, %v3997
    %v3999 = vpop.f32.mrb[0].mxu0
    %v4000 = vadd.f32 %v808, %v3999
    %v4001 = vpop.f32.mrb[0].mxu0
    %v4002 = vpop.f32.mrb[0].mxu0
    %4003 = vdwg.mxu0
    %4004 = vmatprep.subr.bf16.mxu0 %v2124
    %4005 = vmatpush1.bf16.msra.mxu0 %v2123
    %4006 = vmatprep.subr.bf16.mxu0 %v2262
    %4007 = vmatpush1.bf16.msra.mxu0 %v2261
    %4008 = vmatprep.subr.bf16.mxu0 0
    %4009 = vmatpush1.bf16.msra.mxu0 0
    %4010 = vmatprep.subr.bf16.mxu0 0
    %4011 = vmatpush1.bf16.msra.mxu0 0
    %4012 = vmatprep.subr.bf16.mxu0 0
    %4013 = vmatpush1.bf16.msra.mxu0 0
    %4014 = vmatprep.subr.bf16.mxu0 0
    %4015 = vmatpush1.bf16.msra.mxu0 0
    %4016 = vmatprep.subr.bf16.mxu0 0
    %4017 = vmatpush1.bf16.msra.mxu0 0
    %4018 = vmatprep.subr.bf16.mxu0 0
    %4019 = vmatpush1.bf16.msra.mxu0 0
    %4020 = vmatprep.subr.bf16.mxu0 0
    %4021 = vmatpush1.bf16.msra.mxu0 0
    %4022 = vmatprep.subr.bf16.mxu0 0
    %4023 = vmatpush1.bf16.msra.mxu0 0
    %4024 = vmatprep.subr.bf16.mxu0 0
    %4025 = vmatpush1.bf16.msra.mxu0 0
    %4026 = vmatprep.subr.bf16.mxu0 0
    %4027 = vmatpush1.bf16.msra.mxu0 0
    %4028 = vmatprep.subr.bf16.mxu0 0
    %4029 = vmatpush1.bf16.msra.mxu0 0
    %4030 = vmatprep.subr.bf16.mxu0 0
    %4031 = vmatpush1.bf16.msra.mxu0 0
    %4032 = vmatprep.subr.bf16.mxu0 0
    %4033 = vmatpush1.bf16.msra.mxu0 0
    %4034 = vmatprep.subr.bf16.mxu0 0
    %4035 = vmatpush1.bf16.msra.mxu0 0
    %4036 = vmatprep.mubr.bf16.mxu0 0
    %4037 = vmatmul.mubr.bf16.gmra.mrb[0].mxu0 %v2608
    %v4038 = vpop.f32.mrb[0].mxu0
    %v4039 = vadd.f32 %v812, %v4038
    %v4040 = vpop.f32.mrb[0].mxu0
    %v4041 = vadd.f32 %v816, %v4040
    %v4042 = vpop.f32.mrb[0].mxu0
    %v4043 = vpop.f32.mrb[0].mxu0
    %4044 = vdwg.mxu0
    %4045 = vmatprep.subr.bf16.mxu0 %v2126
    %4046 = vmatpush1.bf16.msra.mxu0 %v2125
    %4047 = vmatprep.subr.bf16.mxu0 %v2264
    %4048 = vmatpush1.bf16.msra.mxu0 %v2263
    %4049 = vmatprep.subr.bf16.mxu0 0
    %4050 = vmatpush1.bf16.msra.mxu0 0
    %4051 = vmatprep.subr.bf16.mxu0 0
    %4052 = vmatpush1.bf16.msra.mxu0 0
    %4053 = vmatprep.subr.bf16.mxu0 0
    %4054 = vmatpush1.bf16.msra.mxu0 0
    %4055 = vmatprep.subr.bf16.mxu0 0
    %4056 = vmatpush1.bf16.msra.mxu0 0
    %4057 = vmatprep.subr.bf16.mxu0 0
    %4058 = vmatpush1.bf16.msra.mxu0 0
    %4059 = vmatprep.subr.bf16.mxu0 0
    %4060 = vmatpush1.bf16.msra.mxu0 0
    %4061 = vmatprep.subr.bf16.mxu0 0
    %4062 = vmatpush1.bf16.msra.mxu0 0
    %4063 = vmatprep.subr.bf16.mxu0 0
    %4064 = vmatpush1.bf16.msra.mxu0 0
    %4065 = vmatprep.subr.bf16.mxu0 0
    %4066 = vmatpush1.bf16.msra.mxu0 0
    %4067 = vmatprep.subr.bf16.mxu0 0
    %4068 = vmatpush1.bf16.msra.mxu0 0
    %4069 = vmatprep.subr.bf16.mxu0 0
    %4070 = vmatpush1.bf16.msra.mxu0 0
    %4071 = vmatprep.subr.bf16.mxu0 0
    %4072 = vmatpush1.bf16.msra.mxu0 0
    %4073 = vmatprep.subr.bf16.mxu0 0
    %4074 = vmatpush1.bf16.msra.mxu0 0
    %4075 = vmatprep.subr.bf16.mxu0 0
    %4076 = vmatpush1.bf16.msra.mxu0 0
    %4077 = vmatprep.mubr.bf16.mxu0 0
    %4078 = vmatmul.mubr.bf16.gmra.mrb[0].mxu0 %v2608
    %v4079 = vpop.f32.mrb[0].mxu0
    %v4080 = vadd.f32 %v820, %v4079
    %v4081 = vpop.f32.mrb[0].mxu0
    %v4082 = vadd.f32 %v824, %v4081
    %v4083 = vpop.f32.mrb[0].mxu0
    %v4084 = vpop.f32.mrb[0].mxu0
    %4085 = vdwg.mxu0
    %4086 = vmatprep.subr.bf16.mxu0 %v2128
    %4087 = vmatpush1.bf16.msra.mxu0 %v2127
    %4088 = vmatprep.subr.bf16.mxu0 %v2266
    %4089 = vmatpush1.bf16.msra.mxu0 %v2265
    %4090 = vmatprep.subr.bf16.mxu0 0
    %4091 = vmatpush1.bf16.msra.mxu0 0
    %4092 = vmatprep.subr.bf16.mxu0 0
    %4093 = vmatpush1.bf16.msra.mxu0 0
    %4094 = vmatprep.subr.bf16.mxu0 0
    %4095 = vmatpush1.bf16.msra.mxu0 0
    %4096 = vmatprep.subr.bf16.mxu0 0
    %4097 = vmatpush1.bf16.msra.mxu0 0
    %4098 = vmatprep.subr.bf16.mxu0 0
    %4099 = vmatpush1.bf16.msra.mxu0 0
    %4100 = vmatprep.subr.bf16.mxu0 0
    %4101 = vmatpush1.bf16.msra.mxu0 0
    %4102 = vmatprep.subr.bf16.mxu0 0
    %4103 = vmatpush1.bf16.msra.mxu0 0
    %4104 = vmatprep.subr.bf16.mxu0 0
    %4105 = vmatpush1.bf16.msra.mxu0 0
    %4106 = vmatprep.subr.bf16.mxu0 0
    %4107 = vmatpush1.bf16.msra.mxu0 0
    %4108 = vmatprep.subr.bf16.mxu0 0
    %4109 = vmatpush1.bf16.msra.mxu0 0
    %4110 = vmatprep.subr.bf16.mxu0 0
    %4111 = vmatpush1.bf16.msra.mxu0 0
    %4112 = vmatprep.subr.bf16.mxu0 0
    %4113 = vmatpush1.bf16.msra.mxu0 0
    %4114 = vmatprep.subr.bf16.mxu0 0
    %4115 = vmatpush1.bf16.msra.mxu0 0
    %4116 = vmatprep.subr.bf16.mxu0 0
    %4117 = vmatpush1.bf16.msra.mxu0 0
    %4118 = vmatprep.mubr.bf16.mxu0 0
    %4119 = vmatmul.mubr.bf16.gmra.mrb[0].mxu0 %v2608
    %v4120 = vpop.f32.mrb[0].mxu0
    %v4121 = vadd.f32 %v828, %v4120
    %v4122 = vpop.f32.mrb[0].mxu0
    %v4123 = vadd.f32 %v832, %v4122
    %v4124 = vpop.f32.mrb[0].mxu0
    %v4125 = vpop.f32.mrb[0].mxu0
    %4126 = vdwg.mxu0
    %4127 = vmatprep.subr.bf16.mxu0 %v2130
    %4128 = vmatpush1.bf16.msra.mxu0 %v2129
    %4129 = vmatprep.subr.bf16.mxu0 %v2268
    %4130 = vmatpush1.bf16.msra.mxu0 %v2267
    %4131 = vmatprep.subr.bf16.mxu0 0
    %4132 = vmatpush1.bf16.msra.mxu0 0
    %4133 = vmatprep.subr.bf16.mxu0 0
    %4134 = vmatpush1.bf16.msra.mxu0 0
    %4135 = vmatprep.subr.bf16.mxu0 0
    %4136 = vmatpush1.bf16.msra.mxu0 0
    %4137 = vmatprep.subr.bf16.mxu0 0
    %4138 = vmatpush1.bf16.msra.mxu0 0
    %4139 = vmatprep.subr.bf16.mxu0 0
    %4140 = vmatpush1.bf16.msra.mxu0 0
    %4141 = vmatprep.subr.bf16.mxu0 0
    %4142 = vmatpush1.bf16.msra.mxu0 0
    %4143 = vmatprep.subr.bf16.mxu0 0
    %4144 = vmatpush1.bf16.msra.mxu0 0
    %4145 = vmatprep.subr.bf16.mxu0 0
    %4146 = vmatpush1.bf16.msra.mxu0 0
    %4147 = vmatprep.subr.bf16.mxu0 0
    %4148 = vmatpush1.bf16.msra.mxu0 0
    %4149 = vmatprep.subr.bf16.mxu0 0
    %4150 = vmatpush1.bf16.msra.mxu0 0
    %4151 = vmatprep.subr.bf16.mxu0 0
    %4152 = vmatpush1.bf16.msra.mxu0 0
    %4153 = vmatprep.subr.bf16.mxu0 0
    %4154 = vmatpush1.bf16.msra.mxu0 0
    %4155 = vmatprep.subr.bf16.mxu0 0
    %4156 = vmatpush1.bf16.msra.mxu0 0
    %4157 = vmatprep.subr.bf16.mxu0 0
    %4158 = vmatpush1.bf16.msra.mxu0 0
    %4159 = vmatprep.mubr.bf16.mxu0 0
    %4160 = vmatmul.mubr.bf16.gmra.mrb[0].mxu0 %v2608
    %v4161 = vpop.f32.mrb[0].mxu0
    %v4162 = vadd.f32 %v836, %v4161
    %v4163 = vpop.f32.mrb[0].mxu0
    %v4164 = vadd.f32 %v840, %v4163
    %v4165 = vpop.f32.mrb[0].mxu0
    %v4166 = vpop.f32.mrb[0].mxu0
    %4167 = vdwg.mxu0
    %4168 = vmatprep.subr.bf16.mxu0 %v2132
    %4169 = vmatpush1.bf16.msra.mxu0 %v2131
    %4170 = vmatprep.subr.bf16.mxu0 %v2270
    %4171 = vmatpush1.bf16.msra.mxu0 %v2269
    %4172 = vmatprep.subr.bf16.mxu0 0
    %4173 = vmatpush1.bf16.msra.mxu0 0
    %4174 = vmatprep.subr.bf16.mxu0 0
    %4175 = vmatpush1.bf16.msra.mxu0 0
    %4176 = vmatprep.subr.bf16.mxu0 0
    %4177 = vmatpush1.bf16.msra.mxu0 0
    %4178 = vmatprep.subr.bf16.mxu0 0
    %4179 = vmatpush1.bf16.msra.mxu0 0
    %4180 = vmatprep.subr.bf16.mxu0 0
    %4181 = vmatpush1.bf16.msra.mxu0 0
    %4182 = vmatprep.subr.bf16.mxu0 0
    %4183 = vmatpush1.bf16.msra.mxu0 0
    %4184 = vmatprep.subr.bf16.mxu0 0
    %4185 = vmatpush1.bf16.msra.mxu0 0
    %4186 = vmatprep.subr.bf16.mxu0 0
    %4187 = vmatpush1.bf16.msra.mxu0 0
    %4188 = vmatprep.subr.bf16.mxu0 0
    %4189 = vmatpush1.bf16.msra.mxu0 0
    %4190 = vmatprep.subr.bf16.mxu0 0
    %4191 = vmatpush1.bf16.msra.mxu0 0
    %4192 = vmatprep.subr.bf16.mxu0 0
    %4193 = vmatpush1.bf16.msra.mxu0 0
    %4194 = vmatprep.subr.bf16.mxu0 0
    %4195 = vmatpush1.bf16.msra.mxu0 0
    %4196 = vmatprep.subr.bf16.mxu0 0
    %4197 = vmatpush1.bf16.msra.mxu0 0
    %4198 = vmatprep.subr.bf16.mxu0 0
    %4199 = vmatpush1.bf16.msra.mxu0 0
    %4200 = vmatprep.mubr.bf16.mxu0 0
    %4201 = vmatmul.mubr.bf16.gmra.mrb[0].mxu0 %v2608
    %v4202 = vpop.f32.mrb[0].mxu0
    %v4203 = vadd.f32 %v844, %v4202
    %v4204 = vpop.f32.mrb[0].mxu0
    %v4205 = vadd.f32 %v848, %v4204
    %v4206 = vpop.f32.mrb[0].mxu0
    %v4207 = vpop.f32.mrb[0].mxu0
    %4208 = vdwg.mxu0
    %4209 = vmatprep.subr.bf16.mxu0 %v2134
    %4210 = vmatpush1.bf16.msra.mxu0 %v2133
    %4211 = vmatprep.subr.bf16.mxu0 %v2272
    %4212 = vmatpush1.bf16.msra.mxu0 %v2271
    %4213 = vmatprep.subr.bf16.mxu0 0
    %4214 = vmatpush1.bf16.msra.mxu0 0
    %4215 = vmatprep.subr.bf16.mxu0 0
    %4216 = vmatpush1.bf16.msra.mxu0 0
    %4217 = vmatprep.subr.bf16.mxu0 0
    %4218 = vmatpush1.bf16.msra.mxu0 0
    %4219 = vmatprep.subr.bf16.mxu0 0
    %4220 = vmatpush1.bf16.msra.mxu0 0
    %4221 = vmatprep.subr.bf16.mxu0 0
    %4222 = vmatpush1.bf16.msra.mxu0 0
    %4223 = vmatprep.subr.bf16.mxu0 0
    %4224 = vmatpush1.bf16.msra.mxu0 0
    %4225 = vmatprep.subr.bf16.mxu0 0
    %4226 = vmatpush1.bf16.msra.mxu0 0
    %4227 = vmatprep.subr.bf16.mxu0 0
    %4228 = vmatpush1.bf16.msra.mxu0 0
    %4229 = vmatprep.subr.bf16.mxu0 0
    %4230 = vmatpush1.bf16.msra.mxu0 0
    %4231 = vmatprep.subr.bf16.mxu0 0
    %4232 = vmatpush1.bf16.msra.mxu0 0
    %4233 = vmatprep.subr.bf16.mxu0 0
    %4234 = vmatpush1.bf16.msra.mxu0 0
    %4235 = vmatprep.subr.bf16.mxu0 0
    %4236 = vmatpush1.bf16.msra.mxu0 0
    %4237 = vmatprep.subr.bf16.mxu0 0
    %4238 = vmatpush1.bf16.msra.mxu0 0
    %4239 = vmatprep.subr.bf16.mxu0 0
    %4240 = vmatpush1.bf16.msra.mxu0 0
    %4241 = vmatprep.mubr.bf16.mxu0 0
    %4242 = vmatmul.mubr.bf16.gmra.mrb[0].mxu0 %v2608
    %v4243 = vpop.f32.mrb[0].mxu0
    %v4244 = vadd.f32 %v852, %v4243
    %v4245 = vpop.f32.mrb[0].mxu0
    %v4246 = vadd.f32 %v856, %v4245
    %v4247 = vpop.f32.mrb[0].mxu0
    %v4248 = vpop.f32.mrb[0].mxu0
    %4249 = vdwg.mxu0
    %4250 = vmatprep.subr.bf16.mxu0 %v2136
    %4251 = vmatpush1.bf16.msra.mxu0 %v2135
    %4252 = vmatprep.subr.bf16.mxu0 %v2274
    %4253 = vmatpush1.bf16.msra.mxu0 %v2273
    %4254 = vmatprep.subr.bf16.mxu0 0
    %4255 = vmatpush1.bf16.msra.mxu0 0
    %4256 = vmatprep.subr.bf16.mxu0 0
    %4257 = vmatpush1.bf16.msra.mxu0 0
    %4258 = vmatprep.subr.bf16.mxu0 0
    %4259 = vmatpush1.bf16.msra.mxu0 0
    %4260 = vmatprep.subr.bf16.mxu0 0
    %4261 = vmatpush1.bf16.msra.mxu0 0
    %4262 = vmatprep.subr.bf16.mxu0 0
    %4263 = vmatpush1.bf16.msra.mxu0 0
    %4264 = vmatprep.subr.bf16.mxu0 0
    %4265 = vmatpush1.bf16.msra.mxu0 0
    %4266 = vmatprep.subr.bf16.mxu0 0
    %4267 = vmatpush1.bf16.msra.mxu0 0
    %4268 = vmatprep.subr.bf16.mxu0 0
    %4269 = vmatpush1.bf16.msra.mxu0 0
    %4270 = vmatprep.subr.bf16.mxu0 0
    %4271 = vmatpush1.bf16.msra.mxu0 0
    %4272 = vmatprep.subr.bf16.mxu0 0
    %4273 = vmatpush1.bf16.msra.mxu0 0
    %4274 = vmatprep.subr.bf16.mxu0 0
    %4275 = vmatpush1.bf16.msra.mxu0 0
    %4276 = vmatprep.subr.bf16.mxu0 0
    %4277 = vmatpush1.bf16.msra.mxu0 0
    %4278 = vmatprep.subr.bf16.mxu0 0
    %4279 = vmatpush1.bf16.msra.mxu0 0
    %4280 = vmatprep.subr.bf16.mxu0 0
    %4281 = vmatpush1.bf16.msra.mxu0 0
    %4282 = vmatprep.mubr.bf16.mxu0 0
    %4283 = vmatmul.mubr.bf16.gmra.mrb[0].mxu0 %v2608
    %v4284 = vpop.f32.mrb[0].mxu0
    %v4285 = vadd.f32 %v860, %v4284
    %v4286 = vpop.f32.mrb[0].mxu0
    %v4287 = vadd.f32 %v864, %v4286
    %v4288 = vpop.f32.mrb[0].mxu0
    %v4289 = vpop.f32.mrb[0].mxu0
    %4290 = vdwg.mxu0
    %4291 = vmatprep.subr.bf16.mxu0 %v2138
    %4292 = vmatpush1.bf16.msra.mxu0 %v2137
    %4293 = vmatprep.subr.bf16.mxu0 %v2276
    %4294 = vmatpush1.bf16.msra.mxu0 %v2275
    %4295 = vmatprep.subr.bf16.mxu0 0
    %4296 = vmatpush1.bf16.msra.mxu0 0
    %4297 = vmatprep.subr.bf16.mxu0 0
    %4298 = vmatpush1.bf16.msra.mxu0 0
    %4299 = vmatprep.subr.bf16.mxu0 0
    %4300 = vmatpush1.bf16.msra.mxu0 0
    %4301 = vmatprep.subr.bf16.mxu0 0
    %4302 = vmatpush1.bf16.msra.mxu0 0
    %4303 = vmatprep.subr.bf16.mxu0 0
    %4304 = vmatpush1.bf16.msra.mxu0 0
    %4305 = vmatprep.subr.bf16.mxu0 0
    %4306 = vmatpush1.bf16.msra.mxu0 0
    %4307 = vmatprep.subr.bf16.mxu0 0
    %4308 = vmatpush1.bf16.msra.mxu0 0
    %4309 = vmatprep.subr.bf16.mxu0 0
    %4310 = vmatpush1.bf16.msra.mxu0 0
    %4311 = vmatprep.subr.bf16.mxu0 0
    %4312 = vmatpush1.bf16.msra.mxu0 0
    %4313 = vmatprep.subr.bf16.mxu0 0
    %4314 = vmatpush1.bf16.msra.mxu0 0
    %4315 = vmatprep.subr.bf16.mxu0 0
    %4316 = vmatpush1.bf16.msra.mxu0 0
    %4317 = vmatprep.subr.bf16.mxu0 0
    %4318 = vmatpush1.bf16.msra.mxu0 0
    %4319 = vmatprep.subr.bf16.mxu0 0
    %4320 = vmatpush1.bf16.msra.mxu0 0
    %4321 = vmatprep.subr.bf16.mxu0 0
    %4322 = vmatpush1.bf16.msra.mxu0 0
    %4323 = vmatprep.mubr.bf16.mxu0 0
    %4324 = vmatmul.mubr.bf16.gmra.mrb[0].mxu0 %v2608
    %v4325 = vpop.f32.mrb[0].mxu0
    %v4326 = vadd.f32 %v868, %v4325
    %v4327 = vpop.f32.mrb[0].mxu0
    %v4328 = vadd.f32 %v872, %v4327
    %v4329 = vpop.f32.mrb[0].mxu0
    %v4330 = vpop.f32.mrb[0].mxu0
    %4331 = vdwg.mxu0
    %4332 = vmatprep.subr.bf16.mxu0 %v2140
    %4333 = vmatpush1.bf16.msra.mxu0 %v2139
    %4334 = vmatprep.subr.bf16.mxu0 %v2278
    %4335 = vmatpush1.bf16.msra.mxu0 %v2277
    %4336 = vmatprep.subr.bf16.mxu0 0
    %4337 = vmatpush1.bf16.msra.mxu0 0
    %4338 = vmatprep.subr.bf16.mxu0 0
    %4339 = vmatpush1.bf16.msra.mxu0 0
    %4340 = vmatprep.subr.bf16.mxu0 0
    %4341 = vmatpush1.bf16.msra.mxu0 0
    %4342 = vmatprep.subr.bf16.mxu0 0
    %4343 = vmatpush1.bf16.msra.mxu0 0
    %4344 = vmatprep.subr.bf16.mxu0 0
    %4345 = vmatpush1.bf16.msra.mxu0 0
    %4346 = vmatprep.subr.bf16.mxu0 0
    %4347 = vmatpush1.bf16.msra.mxu0 0
    %4348 = vmatprep.subr.bf16.mxu0 0
    %4349 = vmatpush1.bf16.msra.mxu0 0
    %4350 = vmatprep.subr.bf16.mxu0 0
    %4351 = vmatpush1.bf16.msra.mxu0 0
    %4352 = vmatprep.subr.bf16.mxu0 0
    %4353 = vmatpush1.bf16.msra.mxu0 0
    %4354 = vmatprep.subr.bf16.mxu0 0
    %4355 = vmatpush1.bf16.msra.mxu0 0
    %4356 = vmatprep.subr.bf16.mxu0 0
    %4357 = vmatpush1.bf16.msra.mxu0 0
    %4358 = vmatprep.subr.bf16.mxu0 0
    %4359 = vmatpush1.bf16.msra.mxu0 0
    %4360 = vmatprep.subr.bf16.mxu0 0
    %4361 = vmatpush1.bf16.msra.mxu0 0
    %4362 = vmatprep.subr.bf16.mxu0 0
    %4363 = vmatpush1.bf16.msra.mxu0 0
    %4364 = vmatprep.mubr.bf16.mxu0 0
    %4365 = vmatmul.mubr.bf16.gmra.mrb[0].mxu0 %v2608
    %v4366 = vpop.f32.mrb[0].mxu0
    %v4367 = vadd.f32 %v876, %v4366
    %v4368 = vpop.f32.mrb[0].mxu0
    %v4369 = vadd.f32 %v880, %v4368
    %v4370 = vpop.f32.mrb[0].mxu0
    %v4371 = vpop.f32.mrb[0].mxu0
    %4372 = vdwg.mxu0
    %4373 = vmatprep.subr.bf16.mxu0 %v2142
    %4374 = vmatpush1.bf16.msra.mxu0 %v2141
    %4375 = vmatprep.subr.bf16.mxu0 %v2280
    %4376 = vmatpush1.bf16.msra.mxu0 %v2279
    %4377 = vmatprep.subr.bf16.mxu0 0
    %4378 = vmatpush1.bf16.msra.mxu0 0
    %4379 = vmatprep.subr.bf16.mxu0 0
    %4380 = vmatpush1.bf16.msra.mxu0 0
    %4381 = vmatprep.subr.bf16.mxu0 0
    %4382 = vmatpush1.bf16.msra.mxu0 0
    %4383 = vmatprep.subr.bf16.mxu0 0
    %4384 = vmatpush1.bf16.msra.mxu0 0
    %4385 = vmatprep.subr.bf16.mxu0 0
    %4386 = vmatpush1.bf16.msra.mxu0 0
    %4387 = vmatprep.subr.bf16.mxu0 0
    %4388 = vmatpush1.bf16.msra.mxu0 0
    %4389 = vmatprep.subr.bf16.mxu0 0
    %4390 = vmatpush1.bf16.msra.mxu0 0
    %4391 = vmatprep.subr.bf16.mxu0 0
    %4392 = vmatpush1.bf16.msra.mxu0 0
    %4393 = vmatprep.subr.bf16.mxu0 0
    %4394 = vmatpush1.bf16.msra.mxu0 0
    %4395 = vmatprep.subr.bf16.mxu0 0
    %4396 = vmatpush1.bf16.msra.mxu0 0
    %4397 = vmatprep.subr.bf16.mxu0 0
    %4398 = vmatpush1.bf16.msra.mxu0 0
    %4399 = vmatprep.subr.bf16.mxu0 0
    %4400 = vmatpush1.bf16.msra.mxu0 0
    %4401 = vmatprep.subr.bf16.mxu0 0
    %4402 = vmatpush1.bf16.msra.mxu0 0
    %4403 = vmatprep.subr.bf16.mxu0 0
    %4404 = vmatpush1.bf16.msra.mxu0 0
    %4405 = vmatprep.mubr.bf16.mxu0 0
    %4406 = vmatmul.mubr.bf16.gmra.mrb[0].mxu0 %v2608
    %v4407 = vpop.f32.mrb[0].mxu0
    %v4408 = vadd.f32 %v884, %v4407
    %v4409 = vpop.f32.mrb[0].mxu0
    %v4410 = vadd.f32 %v888, %v4409
    %v4411 = vpop.f32.mrb[0].mxu0
    %v4412 = vpop.f32.mrb[0].mxu0
    %4413 = vdwg.mxu0
    %4414 = vmatprep.subr.bf16.mxu0 %v2144
    %4415 = vmatpush1.bf16.msra.mxu0 %v2143
    %4416 = vmatprep.subr.bf16.mxu0 %v2282
    %4417 = vmatpush1.bf16.msra.mxu0 %v2281
    %4418 = vmatprep.subr.bf16.mxu0 0
    %4419 = vmatpush1.bf16.msra.mxu0 0
    %4420 = vmatprep.subr.bf16.mxu0 0
    %4421 = vmatpush1.bf16.msra.mxu0 0
    %4422 = vmatprep.subr.bf16.mxu0 0
    %4423 = vmatpush1.bf16.msra.mxu0 0
    %4424 = vmatprep.subr.bf16.mxu0 0
    %4425 = vmatpush1.bf16.msra.mxu0 0
    %4426 = vmatprep.subr.bf16.mxu0 0
    %4427 = vmatpush1.bf16.msra.mxu0 0
    %4428 = vmatprep.subr.bf16.mxu0 0
    %4429 = vmatpush1.bf16.msra.mxu0 0
    %4430 = vmatprep.subr.bf16.mxu0 0
    %4431 = vmatpush1.bf16.msra.mxu0 0
    %4432 = vmatprep.subr.bf16.mxu0 0
    %4433 = vmatpush1.bf16.msra.mxu0 0
    %4434 = vmatprep.subr.bf16.mxu0 0
    %4435 = vmatpush1.bf16.msra.mxu0 0
    %4436 = vmatprep.subr.bf16.mxu0 0
    %4437 = vmatpush1.bf16.msra.mxu0 0
    %4438 = vmatprep.subr.bf16.mxu0 0
    %4439 = vmatpush1.bf16.msra.mxu0 0
    %4440 = vmatprep.subr.bf16.mxu0 0
    %4441 = vmatpush1.bf16.msra.mxu0 0
    %4442 = vmatprep.subr.bf16.mxu0 0
    %4443 = vmatpush1.bf16.msra.mxu0 0
    %4444 = vmatprep.subr.bf16.mxu0 0
    %4445 = vmatpush1.bf16.msra.mxu0 0
    %4446 = vmatprep.mubr.bf16.mxu0 0
    %4447 = vmatmul.mubr.bf16.gmra.mrb[0].mxu0 %v2608
    %v4448 = vpop.f32.mrb[0].mxu0
    %v4449 = vadd.f32 %v892, %v4448
    %v4450 = vpop.f32.mrb[0].mxu0
    %v4451 = vadd.f32 %v896, %v4450
    %v4452 = vpop.f32.mrb[0].mxu0
    %v4453 = vpop.f32.mrb[0].mxu0
    %4454 = vdwg.mxu0
    %4455 = vmatprep.subr.bf16.mxu0 %v2146
    %4456 = vmatpush1.bf16.msra.mxu0 %v2145
    %4457 = vmatprep.subr.bf16.mxu0 %v2284
    %4458 = vmatpush1.bf16.msra.mxu0 %v2283
    %4459 = vmatprep.subr.bf16.mxu0 0
    %4460 = vmatpush1.bf16.msra.mxu0 0
    %4461 = vmatprep.subr.bf16.mxu0 0
    %4462 = vmatpush1.bf16.msra.mxu0 0
    %4463 = vmatprep.subr.bf16.mxu0 0
    %4464 = vmatpush1.bf16.msra.mxu0 0
    %4465 = vmatprep.subr.bf16.mxu0 0
    %4466 = vmatpush1.bf16.msra.mxu0 0
    %4467 = vmatprep.subr.bf16.mxu0 0
    %4468 = vmatpush1.bf16.msra.mxu0 0
    %4469 = vmatprep.subr.bf16.mxu0 0
    %4470 = vmatpush1.bf16.msra.mxu0 0
    %4471 = vmatprep.subr.bf16.mxu0 0
    %4472 = vmatpush1.bf16.msra.mxu0 0
    %4473 = vmatprep.subr.bf16.mxu0 0
    %4474 = vmatpush1.bf16.msra.mxu0 0
    %4475 = vmatprep.subr.bf16.mxu0 0
    %4476 = vmatpush1.bf16.msra.mxu0 0
    %4477 = vmatprep.subr.bf16.mxu0 0
    %4478 = vmatpush1.bf16.msra.mxu0 0
    %4479 = vmatprep.subr.bf16.mxu0 0
    %4480 = vmatpush1.bf16.msra.mxu0 0
    %4481 = vmatprep.subr.bf16.mxu0 0
    %4482 = vmatpush1.bf16.msra.mxu0 0
    %4483 = vmatprep.subr.bf16.mxu0 0
    %4484 = vmatpush1.bf16.msra.mxu0 0
    %4485 = vmatprep.subr.bf16.mxu0 0
    %4486 = vmatpush1.bf16.msra.mxu0 0
    %4487 = vmatprep.mubr.bf16.mxu0 0
    %4488 = vmatmul.mubr.bf16.gmra.mrb[0].mxu0 %v2608
    %v4489 = vpop.f32.mrb[0].mxu0
    %v4490 = vadd.f32 %v900, %v4489
    %v4491 = vpop.f32.mrb[0].mxu0
    %v4492 = vadd.f32 %v904, %v4491
    %v4493 = vpop.f32.mrb[0].mxu0
    %v4494 = vpop.f32.mrb[0].mxu0
    %4495 = vdwg.mxu0
    %4496 = vmatprep.subr.bf16.mxu0 %v2148
    %4497 = vmatpush1.bf16.msra.mxu0 %v2147
    %4498 = vmatprep.subr.bf16.mxu0 %v2286
    %4499 = vmatpush1.bf16.msra.mxu0 %v2285
    %4500 = vmatprep.subr.bf16.mxu0 0
    %4501 = vmatpush1.bf16.msra.mxu0 0
    %4502 = vmatprep.subr.bf16.mxu0 0
    %4503 = vmatpush1.bf16.msra.mxu0 0
    %4504 = vmatprep.subr.bf16.mxu0 0
    %4505 = vmatpush1.bf16.msra.mxu0 0
    %4506 = vmatprep.subr.bf16.mxu0 0
    %4507 = vmatpush1.bf16.msra.mxu0 0
    %4508 = vmatprep.subr.bf16.mxu0 0
    %4509 = vmatpush1.bf16.msra.mxu0 0
    %4510 = vmatprep.subr.bf16.mxu0 0
    %4511 = vmatpush1.bf16.msra.mxu0 0
    %4512 = vmatprep.subr.bf16.mxu0 0
    %4513 = vmatpush1.bf16.msra.mxu0 0
    %4514 = vmatprep.subr.bf16.mxu0 0
    %4515 = vmatpush1.bf16.msra.mxu0 0
    %4516 = vmatprep.subr.bf16.mxu0 0
    %4517 = vmatpush1.bf16.msra.mxu0 0
    %4518 = vmatprep.subr.bf16.mxu0 0
    %4519 = vmatpush1.bf16.msra.mxu0 0
    %4520 = vmatprep.subr.bf16.mxu0 0
    %4521 = vmatpush1.bf16.msra.mxu0 0
    %4522 = vmatprep.subr.bf16.mxu0 0
    %4523 = vmatpush1.bf16.msra.mxu0 0
    %4524 = vmatprep.subr.bf16.mxu0 0
    %4525 = vmatpush1.bf16.msra.mxu0 0
    %4526 = vmatprep.subr.bf16.mxu0 0
    %4527 = vmatpush1.bf16.msra.mxu0 0
    %4528 = vmatprep.mubr.bf16.mxu0 0
    %4529 = vmatmul.mubr.bf16.gmra.mrb[0].mxu0 %v2608
    %v4530 = vpop.f32.mrb[0].mxu0
    %v4531 = vadd.f32 %v908, %v4530
    %v4532 = vpop.f32.mrb[0].mxu0
    %v4533 = vadd.f32 %v912, %v4532
    %v4534 = vpop.f32.mrb[0].mxu0
    %v4535 = vpop.f32.mrb[0].mxu0
    %4536 = vdwg.mxu0
    %4537 = vmatprep.subr.bf16.mxu0 %v2150
    %4538 = vmatpush1.bf16.msra.mxu0 %v2149
    %4539 = vmatprep.subr.bf16.mxu0 %v2288
    %4540 = vmatpush1.bf16.msra.mxu0 %v2287
    %4541 = vmatprep.subr.bf16.mxu0 0
    %4542 = vmatpush1.bf16.msra.mxu0 0
    %4543 = vmatprep.subr.bf16.mxu0 0
    %4544 = vmatpush1.bf16.msra.mxu0 0
    %4545 = vmatprep.subr.bf16.mxu0 0
    %4546 = vmatpush1.bf16.msra.mxu0 0
    %4547 = vmatprep.subr.bf16.mxu0 0
    %4548 = vmatpush1.bf16.msra.mxu0 0
    %4549 = vmatprep.subr.bf16.mxu0 0
    %4550 = vmatpush1.bf16.msra.mxu0 0
    %4551 = vmatprep.subr.bf16.mxu0 0
    %4552 = vmatpush1.bf16.msra.mxu0 0
    %4553 = vmatprep.subr.bf16.mxu0 0
    %4554 = vmatpush1.bf16.msra.mxu0 0
    %4555 = vmatprep.subr.bf16.mxu0 0
    %4556 = vmatpush1.bf16.msra.mxu0 0
    %4557 = vmatprep.subr.bf16.mxu0 0
    %4558 = vmatpush1.bf16.msra.mxu0 0
    %4559 = vmatprep.subr.bf16.mxu0 0
    %4560 = vmatpush1.bf16.msra.mxu0 0
    %4561 = vmatprep.subr.bf16.mxu0 0
    %4562 = vmatpush1.bf16.msra.mxu0 0
    %4563 = vmatprep.subr.bf16.mxu0 0
    %4564 = vmatpush1.bf16.msra.mxu0 0
    %4565 = vmatprep.subr.bf16.mxu0 0
    %4566 = vmatpush1.bf16.msra.mxu0 0
    %4567 = vmatprep.subr.bf16.mxu0 0
    %4568 = vmatpush1.bf16.msra.mxu0 0
    %4569 = vmatprep.mubr.bf16.mxu0 0
    %4570 = vmatmul.mubr.bf16.gmra.mrb[0].mxu0 %v2608
    %v4571 = vpop.f32.mrb[0].mxu0
    %v4572 = vadd.f32 %v916, %v4571
    %v4573 = vpop.f32.mrb[0].mxu0
    %v4574 = vadd.f32 %v920, %v4573
    %v4575 = vpop.f32.mrb[0].mxu0
    %v4576 = vpop.f32.mrb[0].mxu0
    %4577 = vdwg.mxu0
    %4578 = vmatprep.subr.bf16.mxu0 %v2152
    %4579 = vmatpush1.bf16.msra.mxu0 %v2151
    %4580 = vmatprep.subr.bf16.mxu0 %v2290
    %4581 = vmatpush1.bf16.msra.mxu0 %v2289
    %4582 = vmatprep.subr.bf16.mxu0 0
    %4583 = vmatpush1.bf16.msra.mxu0 0
    %4584 = vmatprep.subr.bf16.mxu0 0
    %4585 = vmatpush1.bf16.msra.mxu0 0
    %4586 = vmatprep.subr.bf16.mxu0 0
    %4587 = vmatpush1.bf16.msra.mxu0 0
    %4588 = vmatprep.subr.bf16.mxu0 0
    %4589 = vmatpush1.bf16.msra.mxu0 0
    %4590 = vmatprep.subr.bf16.mxu0 0
    %4591 = vmatpush1.bf16.msra.mxu0 0
    %4592 = vmatprep.subr.bf16.mxu0 0
    %4593 = vmatpush1.bf16.msra.mxu0 0
    %4594 = vmatprep.subr.bf16.mxu0 0
    %4595 = vmatpush1.bf16.msra.mxu0 0
    %4596 = vmatprep.subr.bf16.mxu0 0
    %4597 = vmatpush1.bf16.msra.mxu0 0
    %4598 = vmatprep.subr.bf16.mxu0 0
    %4599 = vmatpush1.bf16.msra.mxu0 0
    %4600 = vmatprep.subr.bf16.mxu0 0
    %4601 = vmatpush1.bf16.msra.mxu0 0
    %4602 = vmatprep.subr.bf16.mxu0 0
    %4603 = vmatpush1.bf16.msra.mxu0 0
    %4604 = vmatprep.subr.bf16.mxu0 0
    %4605 = vmatpush1.bf16.msra.mxu0 0
    %4606 = vmatprep.subr.bf16.mxu0 0
    %4607 = vmatpush1.bf16.msra.mxu0 0
    %4608 = vmatprep.subr.bf16.mxu0 0
    %4609 = vmatpush1.bf16.msra.mxu0 0
    %4610 = vmatprep.mubr.bf16.mxu0 0
    %4611 = vmatmul.mubr.bf16.gmra.mrb[0].mxu0 %v2608
    %v4612 = vpop.f32.mrb[0].mxu0
    %v4613 = vadd.f32 %v924, %v4612
    %v4614 = vpop.f32.mrb[0].mxu0
    %v4615 = vadd.f32 %v928, %v4614
    %v4616 = vpop.f32.mrb[0].mxu0
    %v4617 = vpop.f32.mrb[0].mxu0
    %4618 = vdwg.mxu0
    %4619 = vmatprep.subr.bf16.mxu0 %v2154
    %4620 = vmatpush1.bf16.msra.mxu0 %v2153
    %4621 = vmatprep.subr.bf16.mxu0 %v2292
    %4622 = vmatpush1.bf16.msra.mxu0 %v2291
    %4623 = vmatprep.subr.bf16.mxu0 0
    %4624 = vmatpush1.bf16.msra.mxu0 0
    %4625 = vmatprep.subr.bf16.mxu0 0
    %4626 = vmatpush1.bf16.msra.mxu0 0
    %4627 = vmatprep.subr.bf16.mxu0 0
    %4628 = vmatpush1.bf16.msra.mxu0 0
    %4629 = vmatprep.subr.bf16.mxu0 0
    %4630 = vmatpush1.bf16.msra.mxu0 0
    %4631 = vmatprep.subr.bf16.mxu0 0
    %4632 = vmatpush1.bf16.msra.mxu0 0
    %4633 = vmatprep.subr.bf16.mxu0 0
    %4634 = vmatpush1.bf16.msra.mxu0 0
    %4635 = vmatprep.subr.bf16.mxu0 0
    %4636 = vmatpush1.bf16.msra.mxu0 0
    %4637 = vmatprep.subr.bf16.mxu0 0
    %4638 = vmatpush1.bf16.msra.mxu0 0
    %4639 = vmatprep.subr.bf16.mxu0 0
    %4640 = vmatpush1.bf16.msra.mxu0 0
    %4641 = vmatprep.subr.bf16.mxu0 0
    %4642 = vmatpush1.bf16.msra.mxu0 0
    %4643 = vmatprep.subr.bf16.mxu0 0
    %4644 = vmatpush1.bf16.msra.mxu0 0
    %4645 = vmatprep.subr.bf16.mxu0 0
    %4646 = vmatpush1.bf16.msra.mxu0 0
    %4647 = vmatprep.subr.bf16.mxu0 0
    %4648 = vmatpush1.bf16.msra.mxu0 0
    %4649 = vmatprep.subr.bf16.mxu0 0
    %4650 = vmatpush1.bf16.msra.mxu0 0
    %4651 = vmatprep.mubr.bf16.mxu0 0
    %4652 = vmatmul.mubr.bf16.gmra.mrb[0].mxu0 %v2608
    %v4653 = vpop.f32.mrb[0].mxu0
    %v4654 = vadd.f32 %v932, %v4653
    %v4655 = vpop.f32.mrb[0].mxu0
    %v4656 = vadd.f32 %v936, %v4655
    %v4657 = vpop.f32.mrb[0].mxu0
    %v4658 = vpop.f32.mrb[0].mxu0
    %4659 = vdwg.mxu0
    %4660 = vmatprep.subr.bf16.mxu0 %v2156
    %4661 = vmatpush1.bf16.msra.mxu0 %v2155
    %4662 = vmatprep.subr.bf16.mxu0 %v2294
    %4663 = vmatpush1.bf16.msra.mxu0 %v2293
    %4664 = vmatprep.subr.bf16.mxu0 0
    %4665 = vmatpush1.bf16.msra.mxu0 0
    %4666 = vmatprep.subr.bf16.mxu0 0
    %4667 = vmatpush1.bf16.msra.mxu0 0
    %4668 = vmatprep.subr.bf16.mxu0 0
    %4669 = vmatpush1.bf16.msra.mxu0 0
    %4670 = vmatprep.subr.bf16.mxu0 0
    %4671 = vmatpush1.bf16.msra.mxu0 0
    %4672 = vmatprep.subr.bf16.mxu0 0
    %4673 = vmatpush1.bf16.msra.mxu0 0
    %4674 = vmatprep.subr.bf16.mxu0 0
    %4675 = vmatpush1.bf16.msra.mxu0 0
    %4676 = vmatprep.subr.bf16.mxu0 0
    %4677 = vmatpush1.bf16.msra.mxu0 0
    %4678 = vmatprep.subr.bf16.mxu0 0
    %4679 = vmatpush1.bf16.msra.mxu0 0
    %4680 = vmatprep.subr.bf16.mxu0 0
    %4681 = vmatpush1.bf16.msra.mxu0 0
    %4682 = vmatprep.subr.bf16.mxu0 0
    %4683 = vmatpush1.bf16.msra.mxu0 0
    %4684 = vmatprep.subr.bf16.mxu0 0
    %4685 = vmatpush1.bf16.msra.mxu0 0
    %4686 = vmatprep.subr.bf16.mxu0 0
    %4687 = vmatpush1.bf16.msra.mxu0 0
    %4688 = vmatprep.subr.bf16.mxu0 0
    %4689 = vmatpush1.bf16.msra.mxu0 0
    %4690 = vmatprep.subr.bf16.mxu0 0
    %4691 = vmatpush1.bf16.msra.mxu0 0
    %4692 = vmatprep.mubr.bf16.mxu0 0
    %4693 = vmatmul.mubr.bf16.gmra.mrb[0].mxu0 %v2608
    %v4694 = vpop.f32.mrb[0].mxu0
    %v4695 = vadd.f32 %v940, %v4694
    %v4696 = vpop.f32.mrb[0].mxu0
    %v4697 = vadd.f32 %v944, %v4696
    %v4698 = vpop.f32.mrb[0].mxu0
    %v4699 = vpop.f32.mrb[0].mxu0
    %4700 = vdwg.mxu0
    %4701 = vmatprep.subr.bf16.mxu0 %v2158
    %4702 = vmatpush1.bf16.msra.mxu0 %v2157
    %4703 = vmatprep.subr.bf16.mxu0 %v2296
    %4704 = vmatpush1.bf16.msra.mxu0 %v2295
    %4705 = vmatprep.subr.bf16.mxu0 0
    %4706 = vmatpush1.bf16.msra.mxu0 0
    %4707 = vmatprep.subr.bf16.mxu0 0
    %4708 = vmatpush1.bf16.msra.mxu0 0
    %4709 = vmatprep.subr.bf16.mxu0 0
    %4710 = vmatpush1.bf16.msra.mxu0 0
    %4711 = vmatprep.subr.bf16.mxu0 0
    %4712 = vmatpush1.bf16.msra.mxu0 0
    %4713 = vmatprep.subr.bf16.mxu0 0
    %4714 = vmatpush1.bf16.msra.mxu0 0
    %4715 = vmatprep.subr.bf16.mxu0 0
    %4716 = vmatpush1.bf16.msra.mxu0 0
    %4717 = vmatprep.subr.bf16.mxu0 0
    %4718 = vmatpush1.bf16.msra.mxu0 0
    %4719 = vmatprep.subr.bf16.mxu0 0
    %4720 = vmatpush1.bf16.msra.mxu0 0
    %4721 = vmatprep.subr.bf16.mxu0 0
    %4722 = vmatpush1.bf16.msra.mxu0 0
    %4723 = vmatprep.subr.bf16.mxu0 0
    %4724 = vmatpush1.bf16.msra.mxu0 0
    %4725 = vmatprep.subr.bf16.mxu0 0
    %4726 = vmatpush1.bf16.msra.mxu0 0
    %4727 = vmatprep.subr.bf16.mxu0 0
    %4728 = vmatpush1.bf16.msra.mxu0 0
    %4729 = vmatprep.subr.bf16.mxu0 0
    %4730 = vmatpush1.bf16.msra.mxu0 0
    %4731 = vmatprep.subr.bf16.mxu0 0
    %4732 = vmatpush1.bf16.msra.mxu0 0
    %4733 = vmatprep.mubr.bf16.mxu0 0
    %4734 = vmatmul.mubr.bf16.gmra.mrb[0].mxu0 %v2608
    %v4735 = vpop.f32.mrb[0].mxu0
    %v4736 = vadd.f32 %v948, %v4735
    %v4737 = vpop.f32.mrb[0].mxu0
    %v4738 = vadd.f32 %v952, %v4737
    %v4739 = vpop.f32.mrb[0].mxu0
    %v4740 = vpop.f32.mrb[0].mxu0
    %4741 = vdwg.mxu0
    %4742 = vmatprep.subr.bf16.mxu0 %v2160
    %4743 = vmatpush1.bf16.msra.mxu0 %v2159
    %4744 = vmatprep.subr.bf16.mxu0 %v2298
    %4745 = vmatpush1.bf16.msra.mxu0 %v2297
    %4746 = vmatprep.subr.bf16.mxu0 0
    %4747 = vmatpush1.bf16.msra.mxu0 0
    %4748 = vmatprep.subr.bf16.mxu0 0
    %4749 = vmatpush1.bf16.msra.mxu0 0
    %4750 = vmatprep.subr.bf16.mxu0 0
    %4751 = vmatpush1.bf16.msra.mxu0 0
    %4752 = vmatprep.subr.bf16.mxu0 0
    %4753 = vmatpush1.bf16.msra.mxu0 0
    %4754 = vmatprep.subr.bf16.mxu0 0
    %4755 = vmatpush1.bf16.msra.mxu0 0
    %4756 = vmatprep.subr.bf16.mxu0 0
    %4757 = vmatpush1.bf16.msra.mxu0 0
    %4758 = vmatprep.subr.bf16.mxu0 0
    %4759 = vmatpush1.bf16.msra.mxu0 0
    %4760 = vmatprep.subr.bf16.mxu0 0
    %4761 = vmatpush1.bf16.msra.mxu0 0
    %4762 = vmatprep.subr.bf16.mxu0 0
    %4763 = vmatpush1.bf16.msra.mxu0 0
    %4764 = vmatprep.subr.bf16.mxu0 0
    %4765 = vmatpush1.bf16.msra.mxu0 0
    %4766 = vmatprep.subr.bf16.mxu0 0
    %4767 = vmatpush1.bf16.msra.mxu0 0
    %4768 = vmatprep.subr.bf16.mxu0 0
    %4769 = vmatpush1.bf16.msra.mxu0 0
    %4770 = vmatprep.subr.bf16.mxu0 0
    %4771 = vmatpush1.bf16.msra.mxu0 0
    %4772 = vmatprep.subr.bf16.mxu0 0
    %4773 = vmatpush1.bf16.msra.mxu0 0
    %4774 = vmatprep.mubr.bf16.mxu0 0
    %4775 = vmatmul.mubr.bf16.gmra.mrb[0].mxu0 %v2608
    %v4776 = vpop.f32.mrb[0].mxu0
    %v4777 = vadd.f32 %v956, %v4776
    %v4778 = vpop.f32.mrb[0].mxu0
    %v4779 = vadd.f32 %v960, %v4778
    %v4780 = vpop.f32.mrb[0].mxu0
    %v4781 = vpop.f32.mrb[0].mxu0
    %4782 = vdwg.mxu0
    %4783 = vmatprep.subr.bf16.mxu0 %v2162
    %4784 = vmatpush1.bf16.msra.mxu0 %v2161
    %4785 = vmatprep.subr.bf16.mxu0 %v2300
    %4786 = vmatpush1.bf16.msra.mxu0 %v2299
    %4787 = vmatprep.subr.bf16.mxu0 0
    %4788 = vmatpush1.bf16.msra.mxu0 0
    %4789 = vmatprep.subr.bf16.mxu0 0
    %4790 = vmatpush1.bf16.msra.mxu0 0
    %4791 = vmatprep.subr.bf16.mxu0 0
    %4792 = vmatpush1.bf16.msra.mxu0 0
    %4793 = vmatprep.subr.bf16.mxu0 0
    %4794 = vmatpush1.bf16.msra.mxu0 0
    %4795 = vmatprep.subr.bf16.mxu0 0
    %4796 = vmatpush1.bf16.msra.mxu0 0
    %4797 = vmatprep.subr.bf16.mxu0 0
    %4798 = vmatpush1.bf16.msra.mxu0 0
    %4799 = vmatprep.subr.bf16.mxu0 0
    %4800 = vmatpush1.bf16.msra.mxu0 0
    %4801 = vmatprep.subr.bf16.mxu0 0
    %4802 = vmatpush1.bf16.msra.mxu0 0
    %4803 = vmatprep.subr.bf16.mxu0 0
    %4804 = vmatpush1.bf16.msra.mxu0 0
    %4805 = vmatprep.subr.bf16.mxu0 0
    %4806 = vmatpush1.bf16.msra.mxu0 0
    %4807 = vmatprep.subr.bf16.mxu0 0
    %4808 = vmatpush1.bf16.msra.mxu0 0
    %4809 = vmatprep.subr.bf16.mxu0 0
    %4810 = vmatpush1.bf16.msra.mxu0 0
    %4811 = vmatprep.subr.bf16.mxu0 0
    %4812 = vmatpush1.bf16.msra.mxu0 0
    %4813 = vmatprep.subr.bf16.mxu0 0
    %4814 = vmatpush1.bf16.msra.mxu0 0
    %4815 = vmatprep.mubr.bf16.mxu0 0
    %4816 = vmatmul.mubr.bf16.gmra.mrb[0].mxu0 %v2608
    %v4817 = vpop.f32.mrb[0].mxu0
    %v4818 = vadd.f32 %v964, %v4817
    %v4819 = vpop.f32.mrb[0].mxu0
    %v4820 = vadd.f32 %v968, %v4819
    %v4821 = vpop.f32.mrb[0].mxu0
    %v4822 = vpop.f32.mrb[0].mxu0
    %4823 = vdwg.mxu0
    %4824 = vmatprep.subr.bf16.mxu0 %v2164
    %4825 = vmatpush1.bf16.msra.mxu0 %v2163
    %4826 = vmatprep.subr.bf16.mxu0 %v2302
    %4827 = vmatpush1.bf16.msra.mxu0 %v2301
    %4828 = vmatprep.subr.bf16.mxu0 0
    %4829 = vmatpush1.bf16.msra.mxu0 0
    %4830 = vmatprep.subr.bf16.mxu0 0
    %4831 = vmatpush1.bf16.msra.mxu0 0
    %4832 = vmatprep.subr.bf16.mxu0 0
    %4833 = vmatpush1.bf16.msra.mxu0 0
    %4834 = vmatprep.subr.bf16.mxu0 0
    %4835 = vmatpush1.bf16.msra.mxu0 0
    %4836 = vmatprep.subr.bf16.mxu0 0
    %4837 = vmatpush1.bf16.msra.mxu0 0
    %4838 = vmatprep.subr.bf16.mxu0 0
    %4839 = vmatpush1.bf16.msra.mxu0 0
    %4840 = vmatprep.subr.bf16.mxu0 0
    %4841 = vmatpush1.bf16.msra.mxu0 0
    %4842 = vmatprep.subr.bf16.mxu0 0
    %4843 = vmatpush1.bf16.msra.mxu0 0
    %4844 = vmatprep.subr.bf16.mxu0 0
    %4845 = vmatpush1.bf16.msra.mxu0 0
    %4846 = vmatprep.subr.bf16.mxu0 0
    %4847 = vmatpush1.bf16.msra.mxu0 0
    %4848 = vmatprep.subr.bf16.mxu0 0
    %4849 = vmatpush1.bf16.msra.mxu0 0
    %4850 = vmatprep.subr.bf16.mxu0 0
    %4851 = vmatpush1.bf16.msra.mxu0 0
    %4852 = vmatprep.subr.bf16.mxu0 0
    %4853 = vmatpush1.bf16.msra.mxu0 0
    %4854 = vmatprep.subr.bf16.mxu0 0
    %4855 = vmatpush1.bf16.msra.mxu0 0
    %4856 = vmatprep.mubr.bf16.mxu0 0
    %4857 = vmatmul.mubr.bf16.gmra.mrb[0].mxu0 %v2608
    %v4858 = vpop.f32.mrb[0].mxu0
    %v4859 = vadd.f32 %v972, %v4858
    %v4860 = vpop.f32.mrb[0].mxu0
    %v4861 = vadd.f32 %v976, %v4860
    %v4862 = vpop.f32.mrb[0].mxu0
    %v4863 = vpop.f32.mrb[0].mxu0
    %4864 = vdwg.mxu0
    %4865 = vmatprep.subr.bf16.mxu0 %v2166
    %4866 = vmatpush1.bf16.msra.mxu0 %v2165
    %4867 = vmatprep.subr.bf16.mxu0 %v2304
    %4868 = vmatpush1.bf16.msra.mxu0 %v2303
    %4869 = vmatprep.subr.bf16.mxu0 0
    %4870 = vmatpush1.bf16.msra.mxu0 0
    %4871 = vmatprep.subr.bf16.mxu0 0
    %4872 = vmatpush1.bf16.msra.mxu0 0
    %4873 = vmatprep.subr.bf16.mxu0 0
    %4874 = vmatpush1.bf16.msra.mxu0 0
    %4875 = vmatprep.subr.bf16.mxu0 0
    %4876 = vmatpush1.bf16.msra.mxu0 0
    %4877 = vmatprep.subr.bf16.mxu0 0
    %4878 = vmatpush1.bf16.msra.mxu0 0
    %4879 = vmatprep.subr.bf16.mxu0 0
    %4880 = vmatpush1.bf16.msra.mxu0 0
    %4881 = vmatprep.subr.bf16.mxu0 0
    %4882 = vmatpush1.bf16.msra.mxu0 0
    %4883 = vmatprep.subr.bf16.mxu0 0
    %4884 = vmatpush1.bf16.msra.mxu0 0
    %4885 = vmatprep.subr.bf16.mxu0 0
    %4886 = vmatpush1.bf16.msra.mxu0 0
    %4887 = vmatprep.subr.bf16.mxu0 0
    %4888 = vmatpush1.bf16.msra.mxu0 0
    %4889 = vmatprep.subr.bf16.mxu0 0
    %4890 = vmatpush1.bf16.msra.mxu0 0
    %4891 = vmatprep.subr.bf16.mxu0 0
    %4892 = vmatpush1.bf16.msra.mxu0 0
    %4893 = vmatprep.subr.bf16.mxu0 0
    %4894 = vmatpush1.bf16.msra.mxu0 0
    %4895 = vmatprep.subr.bf16.mxu0 0
    %4896 = vmatpush1.bf16.msra.mxu0 0
    %4897 = vmatprep.mubr.bf16.mxu0 0
    %4898 = vmatmul.mubr.bf16.gmra.mrb[0].mxu0 %v2608
    %v4899 = vpop.f32.mrb[0].mxu0
    %v4900 = vadd.f32 %v980, %v4899
    %v4901 = vpop.f32.mrb[0].mxu0
    %v4902 = vadd.f32 %v984, %v4901
    %v4903 = vpop.f32.mrb[0].mxu0
    %v4904 = vpop.f32.mrb[0].mxu0
    %4905 = vdwg.mxu0
    %4906 = vmatprep.subr.bf16.mxu0 %v2168
    %4907 = vmatpush1.bf16.msra.mxu0 %v2167
    %4908 = vmatprep.subr.bf16.mxu0 %v2306
    %4909 = vmatpush1.bf16.msra.mxu0 %v2305
    %4910 = vmatprep.subr.bf16.mxu0 0
    %4911 = vmatpush1.bf16.msra.mxu0 0
    %4912 = vmatprep.subr.bf16.mxu0 0
    %4913 = vmatpush1.bf16.msra.mxu0 0
    %4914 = vmatprep.subr.bf16.mxu0 0
    %4915 = vmatpush1.bf16.msra.mxu0 0
    %4916 = vmatprep.subr.bf16.mxu0 0
    %4917 = vmatpush1.bf16.msra.mxu0 0
    %4918 = vmatprep.subr.bf16.mxu0 0
    %4919 = vmatpush1.bf16.msra.mxu0 0
    %4920 = vmatprep.subr.bf16.mxu0 0
    %4921 = vmatpush1.bf16.msra.mxu0 0
    %4922 = vmatprep.subr.bf16.mxu0 0
    %4923 = vmatpush1.bf16.msra.mxu0 0
    %4924 = vmatprep.subr.bf16.mxu0 0
    %4925 = vmatpush1.bf16.msra.mxu0 0
    %4926 = vmatprep.subr.bf16.mxu0 0
    %4927 = vmatpush1.bf16.msra.mxu0 0
    %4928 = vmatprep.subr.bf16.mxu0 0
    %4929 = vmatpush1.bf16.msra.mxu0 0
    %4930 = vmatprep.subr.bf16.mxu0 0
    %4931 = vmatpush1.bf16.msra.mxu0 0
    %4932 = vmatprep.subr.bf16.mxu0 0
    %4933 = vmatpush1.bf16.msra.mxu0 0
    %4934 = vmatprep.subr.bf16.mxu0 0
    %4935 = vmatpush1.bf16.msra.mxu0 0
    %4936 = vmatprep.subr.bf16.mxu0 0
    %4937 = vmatpush1.bf16.msra.mxu0 0
    %4938 = vmatprep.mubr.bf16.mxu0 0
    %4939 = vmatmul.mubr.bf16.gmra.mrb[0].mxu0 %v2608
    %v4940 = vpop.f32.mrb[0].mxu0
    %v4941 = vadd.f32 %v988, %v4940
    %v4942 = vpop.f32.mrb[0].mxu0
    %v4943 = vadd.f32 %v992, %v4942
    %v4944 = vpop.f32.mrb[0].mxu0
    %v4945 = vpop.f32.mrb[0].mxu0
    %4946 = vdwg.mxu0
    %4947 = vmatprep.subr.bf16.mxu0 %v2170
    %4948 = vmatpush1.bf16.msra.mxu0 %v2169
    %4949 = vmatprep.subr.bf16.mxu0 %v2308
    %4950 = vmatpush1.bf16.msra.mxu0 %v2307
    %4951 = vmatprep.subr.bf16.mxu0 0
    %4952 = vmatpush1.bf16.msra.mxu0 0
    %4953 = vmatprep.subr.bf16.mxu0 0
    %4954 = vmatpush1.bf16.msra.mxu0 0
    %4955 = vmatprep.subr.bf16.mxu0 0
    %4956 = vmatpush1.bf16.msra.mxu0 0
    %4957 = vmatprep.subr.bf16.mxu0 0
    %4958 = vmatpush1.bf16.msra.mxu0 0
    %4959 = vmatprep.subr.bf16.mxu0 0
    %4960 = vmatpush1.bf16.msra.mxu0 0
    %4961 = vmatprep.subr.bf16.mxu0 0
    %4962 = vmatpush1.bf16.msra.mxu0 0
    %4963 = vmatprep.subr.bf16.mxu0 0
    %4964 = vmatpush1.bf16.msra.mxu0 0
    %4965 = vmatprep.subr.bf16.mxu0 0
    %4966 = vmatpush1.bf16.msra.mxu0 0
    %4967 = vmatprep.subr.bf16.mxu0 0
    %4968 = vmatpush1.bf16.msra.mxu0 0
    %4969 = vmatprep.subr.bf16.mxu0 0
    %4970 = vmatpush1.bf16.msra.mxu0 0
    %4971 = vmatprep.subr.bf16.mxu0 0
    %4972 = vmatpush1.bf16.msra.mxu0 0
    %4973 = vmatprep.subr.bf16.mxu0 0
    %4974 = vmatpush1.bf16.msra.mxu0 0
    %4975 = vmatprep.subr.bf16.mxu0 0
    %4976 = vmatpush1.bf16.msra.mxu0 0
    %4977 = vmatprep.subr.bf16.mxu0 0
    %4978 = vmatpush1.bf16.msra.mxu0 0
    %4979 = vmatprep.mubr.bf16.mxu0 0
    %4980 = vmatmul.mubr.bf16.gmra.mrb[0].mxu0 %v2608
    %v4981 = vpop.f32.mrb[0].mxu0
    %v4982 = vadd.f32 %v996, %v4981
    %v4983 = vpop.f32.mrb[0].mxu0
    %v4984 = vadd.f32 %v1000, %v4983
    %v4985 = vpop.f32.mrb[0].mxu0
    %v4986 = vpop.f32.mrb[0].mxu0
    %4987 = vdwg.mxu0
    %4988 = vmatprep.subr.bf16.mxu0 %v2172
    %4989 = vmatpush1.bf16.msra.mxu0 %v2171
    %4990 = vmatprep.subr.bf16.mxu0 %v2310
    %4991 = vmatpush1.bf16.msra.mxu0 %v2309
    %4992 = vmatprep.subr.bf16.mxu0 0
    %4993 = vmatpush1.bf16.msra.mxu0 0
    %4994 = vmatprep.subr.bf16.mxu0 0
    %4995 = vmatpush1.bf16.msra.mxu0 0
    %4996 = vmatprep.subr.bf16.mxu0 0
    %4997 = vmatpush1.bf16.msra.mxu0 0
    %4998 = vmatprep.subr.bf16.mxu0 0
    %4999 = vmatpush1.bf16.msra.mxu0 0
    %5000 = vmatprep.subr.bf16.mxu0 0
    %5001 = vmatpush1.bf16.msra.mxu0 0
    %5002 = vmatprep.subr.bf16.mxu0 0
    %5003 = vmatpush1.bf16.msra.mxu0 0
    %5004 = vmatprep.subr.bf16.mxu0 0
    %5005 = vmatpush1.bf16.msra.mxu0 0
    %5006 = vmatprep.subr.bf16.mxu0 0
    %5007 = vmatpush1.bf16.msra.mxu0 0
    %5008 = vmatprep.subr.bf16.mxu0 0
    %5009 = vmatpush1.bf16.msra.mxu0 0
    %5010 = vmatprep.subr.bf16.mxu0 0
    %5011 = vmatpush1.bf16.msra.mxu0 0
    %5012 = vmatprep.subr.bf16.mxu0 0
    %5013 = vmatpush1.bf16.msra.mxu0 0
    %5014 = vmatprep.subr.bf16.mxu0 0
    %5015 = vmatpush1.bf16.msra.mxu0 0
    %5016 = vmatprep.subr.bf16.mxu0 0
    %5017 = vmatpush1.bf16.msra.mxu0 0
    %5018 = vmatprep.subr.bf16.mxu0 0
    %5019 = vmatpush1.bf16.msra.mxu0 0
    %5020 = vmatprep.mubr.bf16.mxu0 0
    %5021 = vmatmul.mubr.bf16.gmra.mrb[0].mxu0 %v2608
    %v5022 = vpop.f32.mrb[0].mxu0
    %v5023 = vadd.f32 %v1004, %v5022
    %v5024 = vpop.f32.mrb[0].mxu0
    %v5025 = vadd.f32 %v1008, %v5024
    %v5026 = vpop.f32.mrb[0].mxu0
    %v5027 = vpop.f32.mrb[0].mxu0
    %5028 = vdwg.mxu0
    %5029 = vmatprep.subr.bf16.mxu0 %v2174
    %5030 = vmatpush1.bf16.msra.mxu0 %v2173
    %5031 = vmatprep.subr.bf16.mxu0 %v2312
    %5032 = vmatpush1.bf16.msra.mxu0 %v2311
    %5033 = vmatprep.subr.bf16.mxu0 0
    %5034 = vmatpush1.bf16.msra.mxu0 0
    %5035 = vmatprep.subr.bf16.mxu0 0
    %5036 = vmatpush1.bf16.msra.mxu0 0
    %5037 = vmatprep.subr.bf16.mxu0 0
    %5038 = vmatpush1.bf16.msra.mxu0 0
    %5039 = vmatprep.subr.bf16.mxu0 0
    %5040 = vmatpush1.bf16.msra.mxu0 0
    %5041 = vmatprep.subr.bf16.mxu0 0
    %5042 = vmatpush1.bf16.msra.mxu0 0
    %5043 = vmatprep.subr.bf16.mxu0 0
    %5044 = vmatpush1.bf16.msra.mxu0 0
    %5045 = vmatprep.subr.bf16.mxu0 0
    %5046 = vmatpush1.bf16.msra.mxu0 0
    %5047 = vmatprep.subr.bf16.mxu0 0
    %5048 = vmatpush1.bf16.msra.mxu0 0
    %5049 = vmatprep.subr.bf16.mxu0 0
    %5050 = vmatpush1.bf16.msra.mxu0 0
    %5051 = vmatprep.subr.bf16.mxu0 0
    %5052 = vmatpush1.bf16.msra.mxu0 0
    %5053 = vmatprep.subr.bf16.mxu0 0
    %5054 = vmatpush1.bf16.msra.mxu0 0
    %5055 = vmatprep.subr.bf16.mxu0 0
    %5056 = vmatpush1.bf16.msra.mxu0 0
    %5057 = vmatprep.subr.bf16.mxu0 0
    %5058 = vmatpush1.bf16.msra.mxu0 0
    %5059 = vmatprep.subr.bf16.mxu0 0
    %5060 = vmatpush1.bf16.msra.mxu0 0
    %5061 = vmatprep.mubr.bf16.mxu0 0
    %5062 = vmatmul.mubr.bf16.gmra.mrb[0].mxu0 %v2608
    %v5063 = vpop.f32.mrb[0].mxu0
    %v5064 = vadd.f32 %v1012, %v5063
    %v5065 = vpop.f32.mrb[0].mxu0
    %v5066 = vadd.f32 %v1016, %v5065
    %v5067 = vpop.f32.mrb[0].mxu0
    %v5068 = vpop.f32.mrb[0].mxu0
    %5069 = vdwg.mxu0
    %5070 = vmatprep.subr.bf16.mxu0 %v2176
    %5071 = vmatpush1.bf16.msra.mxu0 %v2175
    %5072 = vmatprep.subr.bf16.mxu0 %v2314
    %5073 = vmatpush1.bf16.msra.mxu0 %v2313
    %5074 = vmatprep.subr.bf16.mxu0 0
    %5075 = vmatpush1.bf16.msra.mxu0 0
    %5076 = vmatprep.subr.bf16.mxu0 0
    %5077 = vmatpush1.bf16.msra.mxu0 0
    %5078 = vmatprep.subr.bf16.mxu0 0
    %5079 = vmatpush1.bf16.msra.mxu0 0
    %5080 = vmatprep.subr.bf16.mxu0 0
    %5081 = vmatpush1.bf16.msra.mxu0 0
    %5082 = vmatprep.subr.bf16.mxu0 0
    %5083 = vmatpush1.bf16.msra.mxu0 0
    %5084 = vmatprep.subr.bf16.mxu0 0
    %5085 = vmatpush1.bf16.msra.mxu0 0
    %5086 = vmatprep.subr.bf16.mxu0 0
    %5087 = vmatpush1.bf16.msra.mxu0 0
    %5088 = vmatprep.subr.bf16.mxu0 0
    %5089 = vmatpush1.bf16.msra.mxu0 0
    %5090 = vmatprep.subr.bf16.mxu0 0
    %5091 = vmatpush1.bf16.msra.mxu0 0
    %5092 = vmatprep.subr.bf16.mxu0 0
    %5093 = vmatpush1.bf16.msra.mxu0 0
    %5094 = vmatprep.subr.bf16.mxu0 0
    %5095 = vmatpush1.bf16.msra.mxu0 0
    %5096 = vmatprep.subr.bf16.mxu0 0
    %5097 = vmatpush1.bf16.msra.mxu0 0
    %5098 = vmatprep.subr.bf16.mxu0 0
    %5099 = vmatpush1.bf16.msra.mxu0 0
    %5100 = vmatprep.subr.bf16.mxu0 0
    %5101 = vmatpush1.bf16.msra.mxu0 0
    %5102 = vmatprep.mubr.bf16.mxu0 0
    %5103 = vmatmul.mubr.bf16.gmra.mrb[0].mxu0 %v2608
    %v5104 = vpop.f32.mrb[0].mxu0
    %v5105 = vadd.f32 %v1020, %v5104
    %v5106 = vpop.f32.mrb[0].mxu0
    %v5107 = vadd.f32 %v1024, %v5106
    %v5108 = vpop.f32.mrb[0].mxu0
    %v5109 = vpop.f32.mrb[0].mxu0
    %5110 = vdwg.mxu0
    %5111 = vmatprep.subr.bf16.mxu0 %v2178
    %5112 = vmatpush1.bf16.msra.mxu0 %v2177
    %5113 = vmatprep.subr.bf16.mxu0 %v2316
    %5114 = vmatpush1.bf16.msra.mxu0 %v2315
    %5115 = vmatprep.subr.bf16.mxu0 0
    %5116 = vmatpush1.bf16.msra.mxu0 0
    %5117 = vmatprep.subr.bf16.mxu0 0
    %5118 = vmatpush1.bf16.msra.mxu0 0
    %5119 = vmatprep.subr.bf16.mxu0 0
    %5120 = vmatpush1.bf16.msra.mxu0 0
    %5121 = vmatprep.subr.bf16.mxu0 0
    %5122 = vmatpush1.bf16.msra.mxu0 0
    %5123 = vmatprep.subr.bf16.mxu0 0
    %5124 = vmatpush1.bf16.msra.mxu0 0
    %5125 = vmatprep.subr.bf16.mxu0 0
    %5126 = vmatpush1.bf16.msra.mxu0 0
    %5127 = vmatprep.subr.bf16.mxu0 0
    %5128 = vmatpush1.bf16.msra.mxu0 0
    %5129 = vmatprep.subr.bf16.mxu0 0
    %5130 = vmatpush1.bf16.msra.mxu0 0
    %5131 = vmatprep.subr.bf16.mxu0 0
    %5132 = vmatpush1.bf16.msra.mxu0 0
    %5133 = vmatprep.subr.bf16.mxu0 0
    %5134 = vmatpush1.bf16.msra.mxu0 0
    %5135 = vmatprep.subr.bf16.mxu0 0
    %5136 = vmatpush1.bf16.msra.mxu0 0
    %5137 = vmatprep.subr.bf16.mxu0 0
    %5138 = vmatpush1.bf16.msra.mxu0 0
    %5139 = vmatprep.subr.bf16.mxu0 0
    %5140 = vmatpush1.bf16.msra.mxu0 0
    %5141 = vmatprep.subr.bf16.mxu0 0
    %5142 = vmatpush1.bf16.msra.mxu0 0
    %5143 = vmatprep.mubr.bf16.mxu0 0
    %5144 = vmatmul.mubr.bf16.gmra.mrb[0].mxu0 %v2608
    %v5145 = vpop.f32.mrb[0].mxu0
    %v5146 = vadd.f32 %v1028, %v5145
    %v5147 = vpop.f32.mrb[0].mxu0
    %v5148 = vadd.f32 %v1032, %v5147
    %v5149 = vpop.f32.mrb[0].mxu0
    %v5150 = vpop.f32.mrb[0].mxu0
    %5151 = vdwg.mxu0
    %5152 = vmatprep.subr.bf16.mxu0 %v2180
    %5153 = vmatpush1.bf16.msra.mxu0 %v2179
    %5154 = vmatprep.subr.bf16.mxu0 %v2318
    %5155 = vmatpush1.bf16.msra.mxu0 %v2317
    %5156 = vmatprep.subr.bf16.mxu0 0
    %5157 = vmatpush1.bf16.msra.mxu0 0
    %5158 = vmatprep.subr.bf16.mxu0 0
    %5159 = vmatpush1.bf16.msra.mxu0 0
    %5160 = vmatprep.subr.bf16.mxu0 0
    %5161 = vmatpush1.bf16.msra.mxu0 0
    %5162 = vmatprep.subr.bf16.mxu0 0
    %5163 = vmatpush1.bf16.msra.mxu0 0
    %5164 = vmatprep.subr.bf16.mxu0 0
    %5165 = vmatpush1.bf16.msra.mxu0 0
    %5166 = vmatprep.subr.bf16.mxu0 0
    %5167 = vmatpush1.bf16.msra.mxu0 0
    %5168 = vmatprep.subr.bf16.mxu0 0
    %5169 = vmatpush1.bf16.msra.mxu0 0
    %5170 = vmatprep.subr.bf16.mxu0 0
    %5171 = vmatpush1.bf16.msra.mxu0 0
    %5172 = vmatprep.subr.bf16.mxu0 0
    %5173 = vmatpush1.bf16.msra.mxu0 0
    %5174 = vmatprep.subr.bf16.mxu0 0
    %5175 = vmatpush1.bf16.msra.mxu0 0
    %5176 = vmatprep.subr.bf16.mxu0 0
    %5177 = vmatpush1.bf16.msra.mxu0 0
    %5178 = vmatprep.subr.bf16.mxu0 0
    %5179 = vmatpush1.bf16.msra.mxu0 0
    %5180 = vmatprep.subr.bf16.mxu0 0
    %5181 = vmatpush1.bf16.msra.mxu0 0
    %5182 = vmatprep.subr.bf16.mxu0 0
    %5183 = vmatpush1.bf16.msra.mxu0 0
    %5184 = vmatprep.mubr.bf16.mxu0 0
    %5185 = vmatmul.mubr.bf16.gmra.mrb[0].mxu0 %v2608
    %v5186 = vpop.f32.mrb[0].mxu0
    %v5187 = vadd.f32 %v1036, %v5186
    %v5188 = vpop.f32.mrb[0].mxu0
    %v5189 = vadd.f32 %v1040, %v5188
    %v5190 = vpop.f32.mrb[0].mxu0
    %v5191 = vpop.f32.mrb[0].mxu0
    %5192 = vdwg.mxu0
    %5193 = vmatprep.subr.bf16.mxu0 %v2182
    %5194 = vmatpush1.bf16.msra.mxu0 %v2181
    %5195 = vmatprep.subr.bf16.mxu0 %v2320
    %5196 = vmatpush1.bf16.msra.mxu0 %v2319
    %5197 = vmatprep.subr.bf16.mxu0 0
    %5198 = vmatpush1.bf16.msra.mxu0 0
    %5199 = vmatprep.subr.bf16.mxu0 0
    %5200 = vmatpush1.bf16.msra.mxu0 0
    %5201 = vmatprep.subr.bf16.mxu0 0
    %5202 = vmatpush1.bf16.msra.mxu0 0
    %5203 = vmatprep.subr.bf16.mxu0 0
    %5204 = vmatpush1.bf16.msra.mxu0 0
    %5205 = vmatprep.subr.bf16.mxu0 0
    %5206 = vmatpush1.bf16.msra.mxu0 0
    %5207 = vmatprep.subr.bf16.mxu0 0
    %5208 = vmatpush1.bf16.msra.mxu0 0
    %5209 = vmatprep.subr.bf16.mxu0 0
    %5210 = vmatpush1.bf16.msra.mxu0 0
    %5211 = vmatprep.subr.bf16.mxu0 0
    %5212 = vmatpush1.bf16.msra.mxu0 0
    %5213 = vmatprep.subr.bf16.mxu0 0
    %5214 = vmatpush1.bf16.msra.mxu0 0
    %5215 = vmatprep.subr.bf16.mxu0 0
    %5216 = vmatpush1.bf16.msra.mxu0 0
    %5217 = vmatprep.subr.bf16.mxu0 0
    %5218 = vmatpush1.bf16.msra.mxu0 0
    %5219 = vmatprep.subr.bf16.mxu0 0
    %5220 = vmatpush1.bf16.msra.mxu0 0
    %5221 = vmatprep.subr.bf16.mxu0 0
    %5222 = vmatpush1.bf16.msra.mxu0 0
    %5223 = vmatprep.subr.bf16.mxu0 0
    %5224 = vmatpush1.bf16.msra.mxu0 0
    %5225 = vmatprep.mubr.bf16.mxu0 0
    %5226 = vmatmul.mubr.bf16.gmra.mrb[0].mxu0 %v2608
    %v5227 = vpop.f32.mrb[0].mxu0
    %v5228 = vadd.f32 %v1044, %v5227
    %v5229 = vpop.f32.mrb[0].mxu0
    %v5230 = vadd.f32 %v1048, %v5229
    %v5231 = vpop.f32.mrb[0].mxu0
    %v5232 = vpop.f32.mrb[0].mxu0
    %5233 = vdwg.mxu0
    %5234 = vmatprep.subr.bf16.mxu0 %v2184
    %5235 = vmatpush1.bf16.msra.mxu0 %v2183
    %5236 = vmatprep.subr.bf16.mxu0 %v2322
    %5237 = vmatpush1.bf16.msra.mxu0 %v2321
    %5238 = vmatprep.subr.bf16.mxu0 0
    %5239 = vmatpush1.bf16.msra.mxu0 0
    %5240 = vmatprep.subr.bf16.mxu0 0
    %5241 = vmatpush1.bf16.msra.mxu0 0
    %5242 = vmatprep.subr.bf16.mxu0 0
    %5243 = vmatpush1.bf16.msra.mxu0 0
    %5244 = vmatprep.subr.bf16.mxu0 0
    %5245 = vmatpush1.bf16.msra.mxu0 0
    %5246 = vmatprep.subr.bf16.mxu0 0
    %5247 = vmatpush1.bf16.msra.mxu0 0
    %5248 = vmatprep.subr.bf16.mxu0 0
    %5249 = vmatpush1.bf16.msra.mxu0 0
    %5250 = vmatprep.subr.bf16.mxu0 0
    %5251 = vmatpush1.bf16.msra.mxu0 0
    %5252 = vmatprep.subr.bf16.mxu0 0
    %5253 = vmatpush1.bf16.msra.mxu0 0
    %5254 = vmatprep.subr.bf16.mxu0 0
    %5255 = vmatpush1.bf16.msra.mxu0 0
    %5256 = vmatprep.subr.bf16.mxu0 0
    %5257 = vmatpush1.bf16.msra.mxu0 0
    %5258 = vmatprep.subr.bf16.mxu0 0
    %5259 = vmatpush1.bf16.msra.mxu0 0
    %5260 = vmatprep.subr.bf16.mxu0 0
    %5261 = vmatpush1.bf16.msra.mxu0 0
    %5262 = vmatprep.subr.bf16.mxu0 0
    %5263 = vmatpush1.bf16.msra.mxu0 0
    %5264 = vmatprep.subr.bf16.mxu0 0
    %5265 = vmatpush1.bf16.msra.mxu0 0
    %5266 = vmatprep.mubr.bf16.mxu0 0
    %5267 = vmatmul.mubr.bf16.gmra.mrb[0].mxu0 %v2608
    %v5268 = vpop.f32.mrb[0].mxu0
    %v5269 = vadd.f32 %v1052, %v5268
    %v5270 = vpop.f32.mrb[0].mxu0
    %v5271 = vadd.f32 %v1056, %v5270
    %v5272 = vpop.f32.mrb[0].mxu0
    %v5273 = vpop.f32.mrb[0].mxu0
    %5274 = vdwg.mxu0
    %5275 = vmatprep.subr.bf16.mxu0 %v2186
    %5276 = vmatpush1.bf16.msra.mxu0 %v2185
    %5277 = vmatprep.subr.bf16.mxu0 %v2324
    %5278 = vmatpush1.bf16.msra.mxu0 %v2323
    %5279 = vmatprep.subr.bf16.mxu0 0
    %5280 = vmatpush1.bf16.msra.mxu0 0
    %5281 = vmatprep.subr.bf16.mxu0 0
    %5282 = vmatpush1.bf16.msra.mxu0 0
    %5283 = vmatprep.subr.bf16.mxu0 0
    %5284 = vmatpush1.bf16.msra.mxu0 0
    %5285 = vmatprep.subr.bf16.mxu0 0
    %5286 = vmatpush1.bf16.msra.mxu0 0
    %5287 = vmatprep.subr.bf16.mxu0 0
    %5288 = vmatpush1.bf16.msra.mxu0 0
    %5289 = vmatprep.subr.bf16.mxu0 0
    %5290 = vmatpush1.bf16.msra.mxu0 0
    %5291 = vmatprep.subr.bf16.mxu0 0
    %5292 = vmatpush1.bf16.msra.mxu0 0
    %5293 = vmatprep.subr.bf16.mxu0 0
    %5294 = vmatpush1.bf16.msra.mxu0 0
    %5295 = vmatprep.subr.bf16.mxu0 0
    %5296 = vmatpush1.bf16.msra.mxu0 0
    %5297 = vmatprep.subr.bf16.mxu0 0
    %5298 = vmatpush1.bf16.msra.mxu0 0
    %5299 = vmatprep.subr.bf16.mxu0 0
    %5300 = vmatpush1.bf16.msra.mxu0 0
    %5301 = vmatprep.subr.bf16.mxu0 0
    %5302 = vmatpush1.bf16.msra.mxu0 0
    %5303 = vmatprep.subr.bf16.mxu0 0
    %5304 = vmatpush1.bf16.msra.mxu0 0
    %5305 = vmatprep.subr.bf16.mxu0 0
    %5306 = vmatpush1.bf16.msra.mxu0 0
    %5307 = vmatprep.mubr.bf16.mxu0 0
    %5308 = vmatmul.mubr.bf16.gmra.mrb[0].mxu0 %v2608
    %v5309 = vpop.f32.mrb[0].mxu0
    %v5310 = vadd.f32 %v1060, %v5309
    %v5311 = vpop.f32.mrb[0].mxu0
    %v5312 = vadd.f32 %v1064, %v5311
    %v5313 = vpop.f32.mrb[0].mxu0
    %v5314 = vpop.f32.mrb[0].mxu0
    %5315 = vdwg.mxu0
    %5316 = vmatprep.subr.bf16.mxu0 %v2188
    %5317 = vmatpush1.bf16.msra.mxu0 %v2187
    %5318 = vmatprep.subr.bf16.mxu0 %v2326
    %5319 = vmatpush1.bf16.msra.mxu0 %v2325
    %5320 = vmatprep.subr.bf16.mxu0 0
    %5321 = vmatpush1.bf16.msra.mxu0 0
    %5322 = vmatprep.subr.bf16.mxu0 0
    %5323 = vmatpush1.bf16.msra.mxu0 0
    %5324 = vmatprep.subr.bf16.mxu0 0
    %5325 = vmatpush1.bf16.msra.mxu0 0
    %5326 = vmatprep.subr.bf16.mxu0 0
    %5327 = vmatpush1.bf16.msra.mxu0 0
    %5328 = vmatprep.subr.bf16.mxu0 0
    %5329 = vmatpush1.bf16.msra.mxu0 0
    %5330 = vmatprep.subr.bf16.mxu0 0
    %5331 = vmatpush1.bf16.msra.mxu0 0
    %5332 = vmatprep.subr.bf16.mxu0 0
    %5333 = vmatpush1.bf16.msra.mxu0 0
    %5334 = vmatprep.subr.bf16.mxu0 0
    %5335 = vmatpush1.bf16.msra.mxu0 0
    %5336 = vmatprep.subr.bf16.mxu0 0
    %5337 = vmatpush1.bf16.msra.mxu0 0
    %5338 = vmatprep.subr.bf16.mxu0 0
    %5339 = vmatpush1.bf16.msra.mxu0 0
    %5340 = vmatprep.subr.bf16.mxu0 0
    %5341 = vmatpush1.bf16.msra.mxu0 0
    %5342 = vmatprep.subr.bf16.mxu0 0
    %5343 = vmatpush1.bf16.msra.mxu0 0
    %5344 = vmatprep.subr.bf16.mxu0 0
    %5345 = vmatpush1.bf16.msra.mxu0 0
    %5346 = vmatprep.subr.bf16.mxu0 0
    %5347 = vmatpush1.bf16.msra.mxu0 0
    %5348 = vmatprep.mubr.bf16.mxu0 0
    %5349 = vmatmul.mubr.bf16.gmra.mrb[0].mxu0 %v2608
    %v5350 = vpop.f32.mrb[0].mxu0
    %v5351 = vadd.f32 %v1068, %v5350
    %v5352 = vpop.f32.mrb[0].mxu0
    %v5353 = vadd.f32 %v1072, %v5352
    %v5354 = vpop.f32.mrb[0].mxu0
    %v5355 = vpop.f32.mrb[0].mxu0
    %5356 = vdwg.mxu0
    %5357 = vmatprep.subr.bf16.mxu0 %v2190
    %5358 = vmatpush1.bf16.msra.mxu0 %v2189
    %5359 = vmatprep.subr.bf16.mxu0 %v2328
    %5360 = vmatpush1.bf16.msra.mxu0 %v2327
    %5361 = vmatprep.subr.bf16.mxu0 0
    %5362 = vmatpush1.bf16.msra.mxu0 0
    %5363 = vmatprep.subr.bf16.mxu0 0
    %5364 = vmatpush1.bf16.msra.mxu0 0
    %5365 = vmatprep.subr.bf16.mxu0 0
    %5366 = vmatpush1.bf16.msra.mxu0 0
    %5367 = vmatprep.subr.bf16.mxu0 0
    %5368 = vmatpush1.bf16.msra.mxu0 0
    %5369 = vmatprep.subr.bf16.mxu0 0
    %5370 = vmatpush1.bf16.msra.mxu0 0
    %5371 = vmatprep.subr.bf16.mxu0 0
    %5372 = vmatpush1.bf16.msra.mxu0 0
    %5373 = vmatprep.subr.bf16.mxu0 0
    %5374 = vmatpush1.bf16.msra.mxu0 0
    %5375 = vmatprep.subr.bf16.mxu0 0
    %5376 = vmatpush1.bf16.msra.mxu0 0
    %5377 = vmatprep.subr.bf16.mxu0 0
    %5378 = vmatpush1.bf16.msra.mxu0 0
    %5379 = vmatprep.subr.bf16.mxu0 0
    %5380 = vmatpush1.bf16.msra.mxu0 0
    %5381 = vmatprep.subr.bf16.mxu0 0
    %5382 = vmatpush1.bf16.msra.mxu0 0
    %5383 = vmatprep.subr.bf16.mxu0 0
    %5384 = vmatpush1.bf16.msra.mxu0 0
    %5385 = vmatprep.subr.bf16.mxu0 0
    %5386 = vmatpush1.bf16.msra.mxu0 0
    %5387 = vmatprep.subr.bf16.mxu0 0
    %5388 = vmatpush1.bf16.msra.mxu0 0
    %5389 = vmatprep.mubr.bf16.mxu0 0
    %5390 = vmatmul.mubr.bf16.gmra.mrb[0].mxu0 %v2608
    %v5391 = vpop.f32.mrb[0].mxu0
    %v5392 = vadd.f32 %v1076, %v5391
    %v5393 = vpop.f32.mrb[0].mxu0
    %v5394 = vadd.f32 %v1080, %v5393
    %v5395 = vpop.f32.mrb[0].mxu0
    %v5396 = vpop.f32.mrb[0].mxu0
    %5397 = vdwg.mxu0
    %5398 = vmatprep.subr.bf16.mxu0 %v2192
    %5399 = vmatpush1.bf16.msra.mxu0 %v2191
    %5400 = vmatprep.subr.bf16.mxu0 %v2330
    %5401 = vmatpush1.bf16.msra.mxu0 %v2329
    %5402 = vmatprep.subr.bf16.mxu0 0
    %5403 = vmatpush1.bf16.msra.mxu0 0
    %5404 = vmatprep.subr.bf16.mxu0 0
    %5405 = vmatpush1.bf16.msra.mxu0 0
    %5406 = vmatprep.subr.bf16.mxu0 0
    %5407 = vmatpush1.bf16.msra.mxu0 0
    %5408 = vmatprep.subr.bf16.mxu0 0
    %5409 = vmatpush1.bf16.msra.mxu0 0
    %5410 = vmatprep.subr.bf16.mxu0 0
    %5411 = vmatpush1.bf16.msra.mxu0 0
    %5412 = vmatprep.subr.bf16.mxu0 0
    %5413 = vmatpush1.bf16.msra.mxu0 0
    %5414 = vmatprep.subr.bf16.mxu0 0
    %5415 = vmatpush1.bf16.msra.mxu0 0
    %5416 = vmatprep.subr.bf16.mxu0 0
    %5417 = vmatpush1.bf16.msra.mxu0 0
    %5418 = vmatprep.subr.bf16.mxu0 0
    %5419 = vmatpush1.bf16.msra.mxu0 0
    %5420 = vmatprep.subr.bf16.mxu0 0
    %5421 = vmatpush1.bf16.msra.mxu0 0
    %5422 = vmatprep.subr.bf16.mxu0 0
    %5423 = vmatpush1.bf16.msra.mxu0 0
    %5424 = vmatprep.subr.bf16.mxu0 0
    %5425 = vmatpush1.bf16.msra.mxu0 0
    %5426 = vmatprep.subr.bf16.mxu0 0
    %5427 = vmatpush1.bf16.msra.mxu0 0
    %5428 = vmatprep.subr.bf16.mxu0 0
    %5429 = vmatpush1.bf16.msra.mxu0 0
    %5430 = vmatprep.mubr.bf16.mxu0 0
    %5431 = vmatmul.mubr.bf16.gmra.mrb[0].mxu0 %v2608
    %v5432 = vpop.f32.mrb[0].mxu0
    %v5433 = vadd.f32 %v1084, %v5432
    %v5434 = vpop.f32.mrb[0].mxu0
    %v5435 = vadd.f32 %v1088, %v5434
    %v5436 = vpop.f32.mrb[0].mxu0
    %v5437 = vpop.f32.mrb[0].mxu0
    %5438 = vdwg.mxu0
    %v5439 = vld [vmem:[#allocation11] sm:$0xff]
    %v5440 = vld [vmem:[#allocation11 + $0x8] sm:$0xff]
    %v5441 = vld [vmem:[#allocation11 + $0x10] sm:$0xff]
    %v5442 = vld [vmem:[#allocation11 + $0x18] sm:$0xff]
    %v5443 = vld [vmem:[#allocation11 + $0x20] sm:$0xff]
    %v5444 = vld [vmem:[#allocation11 + $0x28] sm:$0xff]
    %v5445 = vld [vmem:[#allocation11 + $0x30] sm:$0xff]
    %v5446 = vld [vmem:[#allocation11 + $0x38] sm:$0xff]
    %v5447 = vld [vmem:[#allocation11 + $0x40] sm:$0xff]
    %v5448 = vld [vmem:[#allocation11 + $0x48] sm:$0xff]
    %v5449 = vld [vmem:[#allocation11 + $0x50] sm:$0xff]
    %v5450 = vld [vmem:[#allocation11 + $0x58] sm:$0xff]
    %v5451 = vld [vmem:[#allocation13] sm:$0x7]
    %v5453 = vlaneseq
    %v5454 = vshrl.u32 %v5453, 7
    %v5455 = vsub.s32 0, %v5454
    %v5456 = vrot.slane %v5451, %v5455
    %v5457 = vlaneseq
    %v5458 = vshrl.u32 %v5457, 7
    %v5459 = vsub.s32 1, %v5458
    %v5460 = vrot.slane %v5451, %v5459
    %v5461 = vlaneseq
    %v5462 = vshrl.u32 %v5461, 7
    %v5463 = vsub.s32 2, %v5462
    %v5464 = vrot.slane %v5451, %v5463
    %v5469 = vsel %vm147, %v223, 0
    %5471 = vmatprep.subr.mxu0 %v5440
    %5472 = vmatpush1.msra.mxu0 %v5439
    %5473 = vmatprep.subr.mxu0 %v5443
    %5474 = vmatpush1.msra.mxu0 %v5442
    %5475 = vmatprep.subr.mxu0 %v5446
    %5476 = vmatpush1.msra.mxu0 %v5445
    %5477 = vmatprep.subr.mxu0 %v5449
    %5478 = vmatpush1.msra.mxu0 %v5448
    %5479 = vmatprep.subr.mxu0 0.0
    %5480 = vmatpush1.msra.mxu0 0.0
    %5481 = vmatprep.subr.mxu0 0.0
    %5482 = vmatpush1.msra.mxu0 0.0
    %5483 = vmatprep.subr.mxu0 0.0
    %5484 = vmatpush1.msra.mxu0 0.0
    %5485 = vmatprep.subr.mxu0 0.0
    %5486 = vmatpush1.msra.mxu0 0.0
    %5487 = vmatprep.subr.mxu0 0.0
    %5488 = vmatpush1.msra.mxu0 0.0
    %5489 = vmatprep.subr.mxu0 0.0
    %5490 = vmatpush1.msra.mxu0 0.0
    %5491 = vmatprep.subr.mxu0 0.0
    %5492 = vmatpush1.msra.mxu0 0.0
    %5493 = vmatprep.subr.mxu0 0.0
    %5494 = vmatpush1.msra.mxu0 0.0
    %5495 = vmatprep.subr.mxu0 0.0
    %5496 = vmatpush1.msra.mxu0 0.0
    %5497 = vmatprep.subr.mxu0 0.0
    %5498 = vmatpush1.msra.mxu0 0.0
    %5499 = vmatprep.subr.mxu0 0.0
    %5500 = vmatpush1.msra.mxu0 0.0
    %5501 = vmatprep.subr.mxu0 0.0
    %5502 = vmatpush1.msra.mxu0 0.0
    %5503 = vmatprep.subr.mxu0 0.0
    %5504 = vmatpush1.msra.mxu0 0.0
    %5505 = vmatprep.subr.mxu0 0.0
    %5506 = vmatpush1.msra.mxu0 0.0
    %5507 = vmatprep.subr.mxu0 0.0
    %5508 = vmatpush1.msra.mxu0 0.0
    %5509 = vmatprep.subr.mxu0 0.0
    %5510 = vmatpush1.msra.mxu0 0.0
    %5511 = vmatprep.subr.mxu0 0.0
    %5512 = vmatpush1.msra.mxu0 0.0
    %5513 = vmatprep.subr.mxu0 0.0
    %5514 = vmatpush1.msra.mxu0 0.0
    %5515 = vmatprep.subr.mxu0 0.0
    %5516 = vmatpush1.msra.mxu0 0.0
    %5517 = vmatprep.subr.mxu0 0.0
    %5518 = vmatpush1.msra.mxu0 0.0
    %5519 = vmatprep.subr.mxu0 0.0
    %5520 = vmatpush1.msra.mxu0 0.0
    %5521 = vmatprep.subr.mxu0 0.0
    %5522 = vmatpush1.msra.mxu0 0.0
    %5523 = vmatprep.subr.mxu0 0.0
    %5524 = vmatpush1.msra.mxu0 0.0
    %5525 = vmatprep.subr.mxu0 0.0
    %5526 = vmatpush1.msra.mxu0 0.0
    %5527 = vmatprep.subr.mxu0 0.0
    %5528 = vmatpush1.msra.mxu0 0.0
    %5529 = vmatprep.subr.mxu0 0.0
    %5530 = vmatpush1.msra.mxu0 0.0
    %5531 = vmatprep.subr.mxu0 0.0
    %5532 = vmatpush1.msra.mxu0 0.0
    %5533 = vmatprep.subr.mxu0 0.0
    %5534 = vmatpush1.msra.mxu0 0.0
    %5535 = vmatprep.mubr.f32.mxu0 0.0
    %5536 = vmatmul.mubr.f32.gmra.mrb[0].mxu0 %v5469
    %v5537 = vpop.f32.mrb[0].mxu0
    %v5538 = vadd.f32 %v5456, %v5537
    %v5539 = vpop.f32.mrb[0].mxu0
    %v5540 = vadd.f32 %v5460, %v5539
    %5541 = vdwg.mxu0
    %5542 = vmatprep.subr.mxu0 0.0
    %5543 = vmatpush1.msra.mxu0 %v5441
    %5544 = vmatprep.subr.mxu0 0.0
    %5545 = vmatpush1.msra.mxu0 %v5444
    %5546 = vmatprep.subr.mxu0 0.0
    %5547 = vmatpush1.msra.mxu0 %v5447
    %5548 = vmatprep.subr.mxu0 0.0
    %5549 = vmatpush1.msra.mxu0 %v5450
    %5550 = vmatprep.subr.mxu0 0.0
    %5551 = vmatpush1.msra.mxu0 0.0
    %5552 = vmatprep.subr.mxu0 0.0
    %5553 = vmatpush1.msra.mxu0 0.0
    %5554 = vmatprep.subr.mxu0 0.0
    %5555 = vmatpush1.msra.mxu0 0.0
    %5556 = vmatprep.subr.mxu0 0.0
    %5557 = vmatpush1.msra.mxu0 0.0
    %5558 = vmatprep.subr.mxu0 0.0
    %5559 = vmatpush1.msra.mxu0 0.0
    %5560 = vmatprep.subr.mxu0 0.0
    %5561 = vmatpush1.msra.mxu0 0.0
    %5562 = vmatprep.subr.mxu0 0.0
    %5563 = vmatpush1.msra.mxu0 0.0
    %5564 = vmatprep.subr.mxu0 0.0
    %5565 = vmatpush1.msra.mxu0 0.0
    %5566 = vmatprep.subr.mxu0 0.0
    %5567 = vmatpush1.msra.mxu0 0.0
    %5568 = vmatprep.subr.mxu0 0.0
    %5569 = vmatpush1.msra.mxu0 0.0
    %5570 = vmatprep.subr.mxu0 0.0
    %5571 = vmatpush1.msra.mxu0 0.0
    %5572 = vmatprep.subr.mxu0 0.0
    %5573 = vmatpush1.msra.mxu0 0.0
    %5574 = vmatprep.subr.mxu0 0.0
    %5575 = vmatpush1.msra.mxu0 0.0
    %5576 = vmatprep.subr.mxu0 0.0
    %5577 = vmatpush1.msra.mxu0 0.0
    %5578 = vmatprep.subr.mxu0 0.0
    %5579 = vmatpush1.msra.mxu0 0.0
    %5580 = vmatprep.subr.mxu0 0.0
    %5581 = vmatpush1.msra.mxu0 0.0
    %5582 = vmatprep.subr.mxu0 0.0
    %5583 = vmatpush1.msra.mxu0 0.0
    %5584 = vmatprep.subr.mxu0 0.0
    %5585 = vmatpush1.msra.mxu0 0.0
    %5586 = vmatprep.subr.mxu0 0.0
    %5587 = vmatpush1.msra.mxu0 0.0
    %5588 = vmatprep.subr.mxu0 0.0
    %5589 = vmatpush1.msra.mxu0 0.0
    %5590 = vmatprep.subr.mxu0 0.0
    %5591 = vmatpush1.msra.mxu0 0.0
    %5592 = vmatprep.subr.mxu0 0.0
    %5593 = vmatpush1.msra.mxu0 0.0
    %5594 = vmatprep.subr.mxu0 0.0
    %5595 = vmatpush1.msra.mxu0 0.0
    %5596 = vmatprep.subr.mxu0 0.0
    %5597 = vmatpush1.msra.mxu0 0.0
    %5598 = vmatprep.subr.mxu0 0.0
    %5599 = vmatpush1.msra.mxu0 0.0
    %5600 = vmatprep.subr.mxu0 0.0
    %5601 = vmatpush1.msra.mxu0 0.0
    %5602 = vmatprep.subr.mxu0 0.0
    %5603 = vmatpush1.msra.mxu0 0.0
    %5604 = vmatprep.subr.mxu0 0.0
    %5605 = vmatpush1.msra.mxu0 0.0
    %5606 = vmatprep.mubr.f32.mxu0 0.0
    %5607 = vmatmul.mubr.f32.gmra.mrb[0].mxu0 %v5469
    %v5608 = vpop.f32.mrb[0].mxu0
    %v5609 = vadd.f32 %v5464, %v5608
    %v5610 = vpop.f32.mrb[0].mxu0
    %5611 = vdwg.mxu0
    %v5612 = vld [vmem:[%s7] sm:$0xff]
    %v5613 = vld [vmem:[%s7 + $0x8] sm:$0xff]
    %v5614 = vld [vmem:[%s7 + $0x10] sm:$0xff]
    %v5615 = vld [vmem:[%s7 + $0x18] sm:$0xff]
    %v5616 = vld [vmem:[%s7 + $0x20] sm:$0xff]
    %v5617 = vld [vmem:[%s7 + $0x28] sm:$0xff]
    %v5618 = vld [vmem:[%s7 + $0x30] sm:$0xff]
    %v5619 = vld [vmem:[%s7 + $0x38] sm:$0xff]
    %v5620 = vld [vmem:[%s7 + $0x40] sm:$0xff]
    %v5621 = vld [vmem:[%s7 + $0x48] sm:$0xff]
    %v5622 = vld [vmem:[%s7 + $0x50] sm:$0xff]
    %v5623 = vld [vmem:[%s7 + $0x58] sm:$0xff]
    %v5624 = vld [vmem:[%s7 + $0x60] sm:$0xff]
    %v5625 = vld [vmem:[%s7 + $0x68] sm:$0xff]
    %v5626 = vld [vmem:[%s7 + $0x70] sm:$0xff]
    %v5627 = vld [vmem:[%s7 + $0x78] sm:$0xff]
    %v5628 = vld [vmem:[%s7 + $0x80] sm:$0xff]
    %v5629 = vld [vmem:[%s7 + $0x88] sm:$0xff]
    %v5630 = vld [vmem:[%s7 + $0x90] sm:$0xff]
    %v5631 = vld [vmem:[%s7 + $0x98] sm:$0xff]
    %v5632 = vld [vmem:[%s7 + $0xa0] sm:$0xff]
    %v5633 = vld [vmem:[%s7 + $0xa8] sm:$0xff]
    %v5634 = vld [vmem:[%s7 + $0xb0] sm:$0xff]
    %v5635 = vld [vmem:[%s7 + $0xb8] sm:$0xff]
    %v5636 = vld [vmem:[%s7 + $0xc0] sm:$0xff]
    %v5637 = vld [vmem:[%s7 + $0xc8] sm:$0xff]
    %v5638 = vld [vmem:[%s7 + $0xd0] sm:$0xff]
    %v5639 = vld [vmem:[%s7 + $0xd8] sm:$0xff]
    %v5640 = vld [vmem:[%s7 + $0xe0] sm:$0xff]
    %v5641 = vld [vmem:[%s7 + $0xe8] sm:$0xff]
    %v5642 = vld [vmem:[%s7 + $0xf0] sm:$0xff]
    %v5643 = vld [vmem:[%s7 + $0xf8] sm:$0xff]
    %v5644 = vld [vmem:[%s7 + $0x100] sm:$0xff]
    %v5645 = vld [vmem:[%s7 + $0x108] sm:$0xff]
    %v5646 = vld [vmem:[%s7 + $0x110] sm:$0x7]
    %vm5647 = vcmask 154624
    %v5649 = vsel %vm5647, %v5609, 0
    %vm5651 = vcmask 1042432
    %v5653 = vsel %vm5651, %v5646, 0
    %5655 = vmatprep.subr.mxu0 0.0
    %5656 = vmatpush1.msra.mxu0 %v5612
    %5657 = vmatprep.subr.mxu0 0.0
    %5658 = vmatpush1.msra.mxu0 %v5613
    %5659 = vmatprep.subr.mxu0 0.0
    %5660 = vmatpush1.msra.mxu0 %v5614
    %5661 = vmatprep.subr.mxu0 0.0
    %5662 = vmatpush1.msra.mxu0 %v5615
    %5663 = vmatprep.subr.mxu0 0.0
    %5664 = vmatpush1.msra.mxu0 %v5616
    %5665 = vmatprep.subr.mxu0 0.0
    %5666 = vmatpush1.msra.mxu0 %v5617
    %5667 = vmatprep.subr.mxu0 0.0
    %5668 = vmatpush1.msra.mxu0 %v5618
    %5669 = vmatprep.subr.mxu0 0.0
    %5670 = vmatpush1.msra.mxu0 %v5619
    %5671 = vmatprep.subr.mxu0 0.0
    %5672 = vmatpush1.msra.mxu0 %v5620
    %5673 = vmatprep.subr.mxu0 0.0
    %5674 = vmatpush1.msra.mxu0 %v5621
    %5675 = vmatprep.subr.mxu0 0.0
    %5676 = vmatpush1.msra.mxu0 %v5622
    %5677 = vmatprep.subr.mxu0 0.0
    %5678 = vmatpush1.msra.mxu0 %v5623
    %5679 = vmatprep.subr.mxu0 0.0
    %5680 = vmatpush1.msra.mxu0 %v5624
    %5681 = vmatprep.subr.mxu0 0.0
    %5682 = vmatpush1.msra.mxu0 %v5625
    %5683 = vmatprep.subr.mxu0 0.0
    %5684 = vmatpush1.msra.mxu0 %v5626
    %5685 = vmatprep.subr.mxu0 0.0
    %5686 = vmatpush1.msra.mxu0 %v5627
    %5687 = vmatprep.subr.mxu0 0.0
    %5688 = vmatpush1.msra.mxu0 %v5628
    %5689 = vmatprep.subr.mxu0 0.0
    %5690 = vmatpush1.msra.mxu0 %v5629
    %5691 = vmatprep.subr.mxu0 0.0
    %5692 = vmatpush1.msra.mxu0 %v5630
    %5693 = vmatprep.subr.mxu0 0.0
    %5694 = vmatpush1.msra.mxu0 %v5631
    %5695 = vmatprep.subr.mxu0 0.0
    %5696 = vmatpush1.msra.mxu0 %v5632
    %5697 = vmatprep.subr.mxu0 0.0
    %5698 = vmatpush1.msra.mxu0 %v5633
    %5699 = vmatprep.subr.mxu0 0.0
    %5700 = vmatpush1.msra.mxu0 %v5634
    %5701 = vmatprep.subr.mxu0 0.0
    %5702 = vmatpush1.msra.mxu0 %v5635
    %5703 = vmatprep.subr.mxu0 0.0
    %5704 = vmatpush1.msra.mxu0 %v5636
    %5705 = vmatprep.subr.mxu0 0.0
    %5706 = vmatpush1.msra.mxu0 %v5637
    %5707 = vmatprep.subr.mxu0 0.0
    %5708 = vmatpush1.msra.mxu0 %v5638
    %5709 = vmatprep.subr.mxu0 0.0
    %5710 = vmatpush1.msra.mxu0 %v5639
    %5711 = vmatprep.subr.mxu0 0.0
    %5712 = vmatpush1.msra.mxu0 %v5640
    %5713 = vmatprep.subr.mxu0 0.0
    %5714 = vmatpush1.msra.mxu0 %v5641
    %5715 = vmatprep.subr.mxu0 0.0
    %5716 = vmatpush1.msra.mxu0 %v5642
    %5717 = vmatprep.subr.mxu0 0.0
    %5718 = vmatpush1.msra.mxu0 %v5643
    %5719 = vmatprep.mubr.f32.mxu0 %v5540
    %5720 = vmatmul.mubr.f32.gmra.mrb[0].mxu0 %v5538
    %v5721 = vpop.f32.mrb[0].mxu0
    %v5722 = vadd.f32 0.0, %v5721
    %v5723 = vpop.f32.mrb[0].mxu0
    %5724 = vdwg.mxu0
    %5725 = vmatprep.subr.mxu0 0.0
    %5726 = vmatpush1.msra.mxu0 %v5644
    %5727 = vmatprep.subr.mxu0 0.0
    %5728 = vmatpush1.msra.mxu0 %v5645
    %5729 = vmatprep.subr.mxu0 0.0
    %5730 = vmatpush1.msra.mxu0 %v5653
    %5731 = vmatprep.subr.mxu0 0.0
    %5732 = vmatpush1.msra.mxu0 0.0
    %5733 = vmatprep.subr.mxu0 0.0
    %5734 = vmatpush1.msra.mxu0 0.0
    %5735 = vmatprep.subr.mxu0 0.0
    %5736 = vmatpush1.msra.mxu0 0.0
    %5737 = vmatprep.subr.mxu0 0.0
    %5738 = vmatpush1.msra.mxu0 0.0
    %5739 = vmatprep.subr.mxu0 0.0
    %5740 = vmatpush1.msra.mxu0 0.0
    %5741 = vmatprep.subr.mxu0 0.0
    %5742 = vmatpush1.msra.mxu0 0.0
    %5743 = vmatprep.subr.mxu0 0.0
    %5744 = vmatpush1.msra.mxu0 0.0
    %5745 = vmatprep.subr.mxu0 0.0
    %5746 = vmatpush1.msra.mxu0 0.0
    %5747 = vmatprep.subr.mxu0 0.0
    %5748 = vmatpush1.msra.mxu0 0.0
    %5749 = vmatprep.subr.mxu0 0.0
    %5750 = vmatpush1.msra.mxu0 0.0
    %5751 = vmatprep.subr.mxu0 0.0
    %5752 = vmatpush1.msra.mxu0 0.0
    %5753 = vmatprep.subr.mxu0 0.0
    %5754 = vmatpush1.msra.mxu0 0.0
    %5755 = vmatprep.subr.mxu0 0.0
    %5756 = vmatpush1.msra.mxu0 0.0
    %5757 = vmatprep.subr.mxu0 0.0
    %5758 = vmatpush1.msra.mxu0 0.0
    %5759 = vmatprep.subr.mxu0 0.0
    %5760 = vmatpush1.msra.mxu0 0.0
    %5761 = vmatprep.subr.mxu0 0.0
    %5762 = vmatpush1.msra.mxu0 0.0
    %5763 = vmatprep.subr.mxu0 0.0
    %5764 = vmatpush1.msra.mxu0 0.0
    %5765 = vmatprep.subr.mxu0 0.0
    %5766 = vmatpush1.msra.mxu0 0.0
    %5767 = vmatprep.subr.mxu0 0.0
    %5768 = vmatpush1.msra.mxu0 0.0
    %5769 = vmatprep.subr.mxu0 0.0
    %5770 = vmatpush1.msra.mxu0 0.0
    %5771 = vmatprep.subr.mxu0 0.0
    %5772 = vmatpush1.msra.mxu0 0.0
    %5773 = vmatprep.subr.mxu0 0.0
    %5774 = vmatpush1.msra.mxu0 0.0
    %5775 = vmatprep.subr.mxu0 0.0
    %5776 = vmatpush1.msra.mxu0 0.0
    %5777 = vmatprep.subr.mxu0 0.0
    %5778 = vmatpush1.msra.mxu0 0.0
    %5779 = vmatprep.subr.mxu0 0.0
    %5780 = vmatpush1.msra.mxu0 0.0
    %5781 = vmatprep.subr.mxu0 0.0
    %5782 = vmatpush1.msra.mxu0 0.0
    %5783 = vmatprep.subr.mxu0 0.0
    %5784 = vmatpush1.msra.mxu0 0.0
    %5785 = vmatprep.subr.mxu0 0.0
    %5786 = vmatpush1.msra.mxu0 0.0
    %5787 = vmatprep.subr.mxu0 0.0
    %5788 = vmatpush1.msra.mxu0 0.0
    %5789 = vmatprep.mubr.f32.mxu0 0.0
    %5790 = vmatmul.mubr.f32.gmra.mrb[0].mxu0 %v5649
    %v5791 = vpop.f32.mrb[0].mxu0
    %v5792 = vadd.f32 %v5722, %v5791
    %v5793 = vpop.f32.mrb[0].mxu0
    %5794 = vdwg.mxu0
    %v5795 = vmax.f32 %v5792, 0.0
    %v5796 = vpack.c.bf16 %v5795, %v5795
    %v5797 = vld [vmem:[#allocation14] sm:$0xff]
    %v5798 = vld [vmem:[#allocation14 + $0x8] sm:$0xff]
    %v5799 = vld [vmem:[#allocation14 + $0x10] sm:$0xff]
    %v5800 = vld [vmem:[#allocation14 + $0x18] sm:$0xff]
    %v5801 = vld [vmem:[#allocation14 + $0x20] sm:$0xff]
    %v5802 = vld [vmem:[#allocation14 + $0x28] sm:$0xff]
    %v5803 = vld [vmem:[#allocation14 + $0x30] sm:$0xff]
    %v5804 = vld [vmem:[#allocation14 + $0x38] sm:$0xff]
    %v5805 = vld [vmem:[#allocation14 + $0x40] sm:$0xff]
    %v5806 = vld [vmem:[#allocation14 + $0x48] sm:$0xff]
    %v5807 = vld [vmem:[#allocation14 + $0x50] sm:$0xff]
    %v5808 = vld [vmem:[#allocation14 + $0x58] sm:$0xff]
    %v5809 = vld [vmem:[#allocation14 + $0x60] sm:$0xff]
    %v5810 = vld [vmem:[#allocation14 + $0x68] sm:$0xff]
    %v5811 = vld [vmem:[#allocation14 + $0x70] sm:$0xff]
    %v5812 = vld [vmem:[#allocation14 + $0x78] sm:$0xff]
    %v5813 = vld [vmem:[#allocation14 + $0x80] sm:$0xff]
    %v5814 = vld [vmem:[#allocation14 + $0x88] sm:$0xff]
    %v5815 = vld [vmem:[#allocation14 + $0x90] sm:$0xff]
    %v5816 = vld [vmem:[#allocation14 + $0x98] sm:$0xff]
    %v5817 = vld [vmem:[#allocation14 + $0xa0] sm:$0xff]
    %v5818 = vld [vmem:[#allocation14 + $0xa8] sm:$0xff]
    %v5819 = vld [vmem:[#allocation14 + $0xb0] sm:$0xff]
    %v5820 = vld [vmem:[#allocation14 + $0xb8] sm:$0xff]
    %v5821 = vld [vmem:[#allocation14 + $0xc0] sm:$0xff]
    %v5822 = vld [vmem:[#allocation14 + $0xc8] sm:$0xff]
    %v5823 = vld [vmem:[#allocation14 + $0xd0] sm:$0xff]
    %v5824 = vld [vmem:[#allocation14 + $0xd8] sm:$0xff]
    %v5825 = vld [vmem:[#allocation14 + $0xe0] sm:$0xff]
    %v5826 = vld [vmem:[#allocation14 + $0xe8] sm:$0xff]
    %v5827 = vld [vmem:[#allocation14 + $0xf0] sm:$0xff]
    %v5828 = vld [vmem:[#allocation14 + $0xf8] sm:$0xff]
    %v5829 = vld [vmem:[#allocation14 + $0x100] sm:$0xff]
    %v5830 = vld [vmem:[#allocation14 + $0x108] sm:$0xff]
    %v5831 = vld [vmem:[#allocation14 + $0x110] sm:$0xff]
    %v5832 = vld [vmem:[#allocation14 + $0x118] sm:$0xff]
    %v5833 = vld [vmem:[#allocation14 + $0x120] sm:$0xff]
    %v5834 = vld [vmem:[#allocation14 + $0x128] sm:$0xff]
    %v5835 = vld [vmem:[#allocation14 + $0x130] sm:$0xff]
    %v5836 = vld [vmem:[#allocation14 + $0x138] sm:$0xff]
    %v5837 = vld [vmem:[#allocation14 + $0x140] sm:$0xff]
    %v5838 = vld [vmem:[#allocation14 + $0x148] sm:$0xff]
    %v5839 = vld [vmem:[#allocation14 + $0x150] sm:$0xff]
    %v5840 = vld [vmem:[#allocation14 + $0x158] sm:$0xff]
    %v5841 = vld [vmem:[#allocation14 + $0x160] sm:$0xff]
    %v5842 = vld [vmem:[#allocation14 + $0x168] sm:$0xff]
    %v5843 = vld [vmem:[#allocation14 + $0x170] sm:$0xff]
    %v5844 = vld [vmem:[#allocation14 + $0x178] sm:$0xff]
    %v5845 = vld [vmem:[#allocation14 + $0x180] sm:$0xff]
    %v5846 = vld [vmem:[#allocation14 + $0x188] sm:$0xff]
    %v5847 = vld [vmem:[#allocation14 + $0x190] sm:$0xff]
    %v5848 = vld [vmem:[#allocation14 + $0x198] sm:$0xff]
    %v5849 = vld [vmem:[#allocation14 + $0x1a0] sm:$0xff]
    %v5850 = vld [vmem:[#allocation14 + $0x1a8] sm:$0xff]
    %v5851 = vld [vmem:[#allocation14 + $0x1b0] sm:$0xff]
    %v5852 = vld [vmem:[#allocation14 + $0x1b8] sm:$0xff]
    %v5853 = vld [vmem:[#allocation14 + $0x1c0] sm:$0xff]
    %v5854 = vld [vmem:[#allocation14 + $0x1c8] sm:$0xff]
    %v5855 = vld [vmem:[#allocation14 + $0x1d0] sm:$0xff]
    %v5856 = vld [vmem:[#allocation14 + $0x1d8] sm:$0xff]
    %v5857 = vld [vmem:[#allocation14 + $0x1e0] sm:$0xff]
    %v5858 = vld [vmem:[#allocation14 + $0x1e8] sm:$0xff]
    %v5859 = vld [vmem:[#allocation14 + $0x1f0] sm:$0xff]
    %v5860 = vld [vmem:[#allocation14 + $0x1f8] sm:$0xff]
    %v5861 = vld [vmem:[#allocation14 + $0x200] sm:$0xff]
    %v5862 = vld [vmem:[#allocation14 + $0x208] sm:$0xff]
    %v5863 = vld [vmem:[#allocation14 + $0x210] sm:$0xff]
    %v5864 = vld [vmem:[#allocation14 + $0x218] sm:$0xff]
    %v5865 = vld [vmem:[#allocation14 + $0x220] sm:$0xff]
    %v5866 = vld [vmem:[#allocation14 + $0x228] sm:$0xff]
    %v5867 = vld [vmem:[#allocation14 + $0x230] sm:$0xff]
    %v5868 = vld [vmem:[#allocation14 + $0x238] sm:$0xff]
    %v5869 = vld [vmem:[#allocation14 + $0x240] sm:$0xff]
    %v5870 = vld [vmem:[#allocation14 + $0x248] sm:$0xff]
    %v5871 = vld [vmem:[#allocation14 + $0x250] sm:$0xff]
    %v5872 = vld [vmem:[#allocation14 + $0x258] sm:$0xff]
    %v5873 = vld [vmem:[#allocation14 + $0x260] sm:$0xff]
    %v5874 = vld [vmem:[#allocation14 + $0x268] sm:$0xff]
    %v5875 = vld [vmem:[#allocation14 + $0x270] sm:$0xff]
    %v5876 = vld [vmem:[#allocation14 + $0x278] sm:$0xff]
    %v5877 = vld [vmem:[#allocation14 + $0x280] sm:$0xff]
    %v5878 = vld [vmem:[#allocation14 + $0x288] sm:$0xff]
    %v5879 = vld [vmem:[#allocation14 + $0x290] sm:$0xff]
    %v5880 = vld [vmem:[#allocation14 + $0x298] sm:$0xff]
    %v5881 = vld [vmem:[#allocation14 + $0x2a0] sm:$0xff]
    %v5882 = vld [vmem:[#allocation14 + $0x2a8] sm:$0xff]
    %v5883 = vld [vmem:[#allocation14 + $0x2b0] sm:$0xff]
    %v5884 = vld [vmem:[#allocation14 + $0x2b8] sm:$0xff]
    %v5885 = vld [vmem:[#allocation14 + $0x2c0] sm:$0xff]
    %v5886 = vld [vmem:[#allocation14 + $0x2c8] sm:$0xff]
    %v5887 = vld [vmem:[#allocation14 + $0x2d0] sm:$0xff]
    %v5888 = vld [vmem:[#allocation14 + $0x2d8] sm:$0xff]
    %v5889 = vld [vmem:[#allocation14 + $0x2e0] sm:$0xff]
    %v5890 = vld [vmem:[#allocation14 + $0x2e8] sm:$0xff]
    %v5891 = vld [vmem:[#allocation14 + $0x2f0] sm:$0xff]
    %v5892 = vld [vmem:[#allocation14 + $0x2f8] sm:$0xff]
    %v5893 = vld [vmem:[#allocation14 + $0x300] sm:$0xff]
    %v5894 = vld [vmem:[#allocation14 + $0x308] sm:$0xff]
    %v5895 = vld [vmem:[#allocation14 + $0x310] sm:$0xff]
    %v5896 = vld [vmem:[#allocation14 + $0x318] sm:$0xff]
    %v5897 = vld [vmem:[#allocation14 + $0x320] sm:$0xff]
    %v5898 = vld [vmem:[#allocation14 + $0x328] sm:$0xff]
    %v5899 = vld [vmem:[#allocation14 + $0x330] sm:$0xff]
    %v5900 = vld [vmem:[#allocation14 + $0x338] sm:$0xff]
    %v5901 = vld [vmem:[#allocation14 + $0x340] sm:$0xff]
    %v5902 = vld [vmem:[#allocation14 + $0x348] sm:$0xff]
    %v5903 = vld [vmem:[#allocation14 + $0x350] sm:$0xff]
    %v5904 = vld [vmem:[#allocation14 + $0x358] sm:$0xff]
    %v5905 = vld [vmem:[#allocation14 + $0x360] sm:$0xff]
    %v5906 = vld [vmem:[#allocation14 + $0x368] sm:$0xff]
    %v5907 = vld [vmem:[#allocation14 + $0x370] sm:$0xff]
    %v5908 = vld [vmem:[#allocation14 + $0x378] sm:$0xff]
    %v5909 = vld [vmem:[#allocation14 + $0x380] sm:$0xff]
    %v5910 = vld [vmem:[#allocation14 + $0x388] sm:$0xff]
    %v5911 = vld [vmem:[#allocation14 + $0x390] sm:$0xff]
    %v5912 = vld [vmem:[#allocation14 + $0x398] sm:$0xff]
    %v5913 = vld [vmem:[#allocation14 + $0x3a0] sm:$0xff]
    %v5914 = vld [vmem:[#allocation14 + $0x3a8] sm:$0xff]
    %v5915 = vld [vmem:[#allocation14 + $0x3b0] sm:$0xff]
    %v5916 = vld [vmem:[#allocation14 + $0x3b8] sm:$0xff]
    %v5917 = vld [vmem:[#allocation14 + $0x3c0] sm:$0xff]
    %v5918 = vld [vmem:[#allocation14 + $0x3c8] sm:$0xff]
    %v5919 = vld [vmem:[#allocation14 + $0x3d0] sm:$0xff]
    %v5920 = vld [vmem:[#allocation14 + $0x3d8] sm:$0xff]
    %v5921 = vld [vmem:[#allocation14 + $0x3e0] sm:$0xff]
    %v5922 = vld [vmem:[#allocation14 + $0x3e8] sm:$0xff]
    %v5923 = vld [vmem:[#allocation14 + $0x3f0] sm:$0xff]
    %v5924 = vld [vmem:[#allocation14 + $0x3f8] sm:$0xff]
    %v5925 = vld [vmem:[#allocation14 + $0x400] sm:$0xff]
    %v5926 = vld [vmem:[#allocation14 + $0x408] sm:$0xff]
    %v5927 = vld [vmem:[#allocation14 + $0x410] sm:$0xff]
    %v5928 = vld [vmem:[#allocation14 + $0x418] sm:$0xff]
    %v5929 = vld [vmem:[#allocation14 + $0x420] sm:$0xff]
    %v5930 = vld [vmem:[#allocation14 + $0x428] sm:$0xff]
    %v5931 = vld [vmem:[#allocation14 + $0x430] sm:$0xff]
    %v5932 = vld [vmem:[#allocation14 + $0x438] sm:$0xff]
    %v5933 = vld [vmem:[#allocation14 + $0x440] sm:$0xff]
    %v5934 = vld [vmem:[#allocation14 + $0x448] sm:$0xff]
    %v5935 = vld [vmem:[#allocation14 + $0x450] sm:$0x11]
    %v5936 = vld [vmem:[#allocation14 + $0x458] sm:$0x11]
    %v5937 = vld [vmem:[#allocation14 + $0x460] sm:$0x11]
    %v5938 = vld [vmem:[#allocation14 + $0x468] sm:$0x11]
    %v5939 = vld [vmem:[#allocation14 + $0x470] sm:$0x11]
    %v5940 = vld [vmem:[#allocation14 + $0x478] sm:$0x11]
    %v5941 = vld [vmem:[#allocation14 + $0x480] sm:$0x11]
    %v5942 = vld [vmem:[#allocation14 + $0x488] sm:$0x11]
    %v5943 = vld [vmem:[#allocation14 + $0x490] sm:$0x11]
    %v5944 = vld [vmem:[#allocation14 + $0x498] sm:$0x11]
    %v5945 = vld [vmem:[#allocation14 + $0x4a0] sm:$0x11]
    %v5946 = vld [vmem:[#allocation14 + $0x4a8] sm:$0x11]
    %v5947 = vld [vmem:[#allocation14 + $0x4b0] sm:$0x11]
    %v5948 = vld [vmem:[#allocation14 + $0x4b8] sm:$0x11]
    %v5949 = vld [vmem:[#allocation14 + $0x4c0] sm:$0x11]
    %v5950 = vld [vmem:[#allocation14 + $0x4c8] sm:$0x11]
    %v5951 = vld [vmem:[#allocation14 + $0x4d0] sm:$0x11]
    %v5952 = vld [vmem:[#allocation14 + $0x4d8] sm:$0x11]
    %v5953 = vld [vmem:[#allocation14 + $0x4e0] sm:$0x11]
    %v5954 = vld [vmem:[#allocation14 + $0x4e8] sm:$0x11]
    %v5955 = vld [vmem:[#allocation14 + $0x4f0] sm:$0x11]
    %v5956 = vld [vmem:[#allocation14 + $0x4f8] sm:$0x11]
    %v5957 = vld [vmem:[#allocation14 + $0x500] sm:$0x11]
    %v5958 = vld [vmem:[#allocation14 + $0x508] sm:$0x11]
    %v5959 = vld [vmem:[#allocation14 + $0x510] sm:$0x11]
    %v5960 = vld [vmem:[#allocation14 + $0x518] sm:$0x11]
    %v5961 = vld [vmem:[#allocation14 + $0x520] sm:$0x11]
    %v5962 = vld [vmem:[#allocation14 + $0x528] sm:$0x11]
    %v5963 = vld [vmem:[#allocation14 + $0x530] sm:$0x11]
    %v5964 = vld [vmem:[#allocation14 + $0x538] sm:$0x11]
    %v5965 = vld [vmem:[#allocation14 + $0x540] sm:$0x11]
    %v5966 = vld [vmem:[#allocation14 + $0x548] sm:$0x11]
    %v5967 = vld [vmem:[#allocation14 + $0x550] sm:$0x11]
    %v5968 = vld [vmem:[#allocation14 + $0x558] sm:$0x11]
    %v5969 = vld [vmem:[#allocation14 + $0x560] sm:$0x11]
    %v5970 = vld [vmem:[#allocation14 + $0x568] sm:$0x11]
    %v5971 = vld [vmem:[#allocation14 + $0x570] sm:$0x11]
    %v5972 = vld [vmem:[#allocation14 + $0x578] sm:$0x11]
    %v5973 = vld [vmem:[#allocation14 + $0x580] sm:$0x11]
    %v5974 = vld [vmem:[#allocation14 + $0x588] sm:$0x11]
    %v5975 = vld [vmem:[#allocation14 + $0x590] sm:$0x11]
    %v5976 = vld [vmem:[#allocation14 + $0x598] sm:$0x11]
    %v5977 = vld [vmem:[#allocation14 + $0x5a0] sm:$0x11]
    %v5978 = vld [vmem:[#allocation14 + $0x5a8] sm:$0x11]
    %v5979 = vld [vmem:[#allocation14 + $0x5b0] sm:$0x11]
    %v5980 = vld [vmem:[#allocation14 + $0x5b8] sm:$0x11]
    %v5981 = vld [vmem:[#allocation14 + $0x5c0] sm:$0x11]
    %v5982 = vld [vmem:[#allocation14 + $0x5c8] sm:$0x11]
    %v5983 = vld [vmem:[#allocation14 + $0x5d0] sm:$0x11]
    %v5984 = vld [vmem:[#allocation14 + $0x5d8] sm:$0x11]
    %v5985 = vld [vmem:[#allocation14 + $0x5e0] sm:$0x11]
    %v5986 = vld [vmem:[#allocation14 + $0x5e8] sm:$0x11]
    %v5987 = vld [vmem:[#allocation14 + $0x5f0] sm:$0x11]
    %v5988 = vld [vmem:[#allocation14 + $0x5f8] sm:$0x11]
    %v5989 = vld [vmem:[#allocation14 + $0x600] sm:$0x11]
    %v5990 = vld [vmem:[#allocation14 + $0x608] sm:$0x11]
    %v5991 = vld [vmem:[#allocation14 + $0x610] sm:$0x11]
    %v5992 = vld [vmem:[#allocation14 + $0x618] sm:$0x11]
    %v5993 = vld [vmem:[#allocation14 + $0x620] sm:$0x11]
    %v5994 = vld [vmem:[#allocation14 + $0x628] sm:$0x11]
    %v5995 = vld [vmem:[#allocation14 + $0x630] sm:$0x11]
    %v5996 = vld [vmem:[#allocation14 + $0x638] sm:$0x11]
    %v5997 = vld [vmem:[#allocation14 + $0x640] sm:$0x11]
    %v5998 = vld [vmem:[#allocation14 + $0x648] sm:$0x11]
    %v5999 = vld [vmem:[#allocation14 + $0x650] sm:$0x11]
    %v6000 = vld [vmem:[#allocation14 + $0x658] sm:$0x11]
    %v6001 = vld [vmem:[#allocation14 + $0x660] sm:$0x11]
    %v6002 = vld [vmem:[#allocation14 + $0x668] sm:$0x11]
    %v6003 = vld [vmem:[#allocation14 + $0x670] sm:$0x11]
    %v6211 = vunpack.c.l.b16 %v5797
    %v6212 = vunpack.c.h.b16 %v5797
    %v6213 = vunpack.c.l.b16 %v5798
    %v6214 = vunpack.c.h.b16 %v5798
    %v6215 = vunpack.c.l.b16 %v5799
    %v6216 = vunpack.c.h.b16 %v5799
    %v6217 = vunpack.c.l.b16 %v5800
    %v6218 = vunpack.c.h.b16 %v5800
    %v6219 = vunpack.c.l.b16 %v5801
    %v6220 = vunpack.c.h.b16 %v5801
    %v6221 = vunpack.c.l.b16 %v5802
    %v6222 = vunpack.c.h.b16 %v5802
    %v6223 = vunpack.c.l.b16 %v5803
    %v6224 = vunpack.c.h.b16 %v5803
    %v6225 = vunpack.c.l.b16 %v5804
    %v6226 = vunpack.c.h.b16 %v5804
    %v6227 = vunpack.c.l.b16 %v5805
    %v6228 = vunpack.c.h.b16 %v5805
    %v6229 = vunpack.c.l.b16 %v5806
    %v6230 = vunpack.c.h.b16 %v5806
    %v6231 = vunpack.c.l.b16 %v5807
    %v6232 = vunpack.c.h.b16 %v5807
    %v6233 = vunpack.c.l.b16 %v5808
    %v6234 = vunpack.c.h.b16 %v5808
    %v6235 = vunpack.c.l.b16 %v5809
    %v6236 = vunpack.c.h.b16 %v5809
    %v6237 = vunpack.c.l.b16 %v5810
    %v6238 = vunpack.c.h.b16 %v5810
    %v6239 = vunpack.c.l.b16 %v5811
    %v6240 = vunpack.c.h.b16 %v5811
    %v6241 = vunpack.c.l.b16 %v5812
    %v6242 = vunpack.c.h.b16 %v5812
    %v6243 = vunpack.c.l.b16 %v5813
    %v6244 = vunpack.c.h.b16 %v5813
    %v6245 = vunpack.c.l.b16 %v5814
    %v6246 = vunpack.c.h.b16 %v5814
    %v6247 = vunpack.c.l.b16 %v5815
    %v6248 = vunpack.c.h.b16 %v5815
    %v6249 = vunpack.c.l.b16 %v5816
    %v6250 = vunpack.c.h.b16 %v5816
    %v6251 = vunpack.c.l.b16 %v5817
    %v6252 = vunpack.c.h.b16 %v5817
    %v6253 = vunpack.c.l.b16 %v5818
    %v6254 = vunpack.c.h.b16 %v5818
    %v6255 = vunpack.c.l.b16 %v5819
    %v6256 = vunpack.c.h.b16 %v5819
    %v6257 = vunpack.c.l.b16 %v5820
    %v6258 = vunpack.c.h.b16 %v5820
    %v6259 = vunpack.c.l.b16 %v5821
    %v6260 = vunpack.c.h.b16 %v5821
    %v6261 = vunpack.c.l.b16 %v5822
    %v6262 = vunpack.c.h.b16 %v5822
    %v6263 = vunpack.c.l.b16 %v5823
    %v6264 = vunpack.c.h.b16 %v5823
    %v6265 = vunpack.c.l.b16 %v5824
    %v6266 = vunpack.c.h.b16 %v5824
    %v6267 = vunpack.c.l.b16 %v5825
    %v6268 = vunpack.c.h.b16 %v5825
    %v6269 = vunpack.c.l.b16 %v5826
    %v6270 = vunpack.c.h.b16 %v5826
    %v6271 = vunpack.c.l.b16 %v5827
    %v6272 = vunpack.c.h.b16 %v5827
    %v6273 = vunpack.c.l.b16 %v5828
    %v6274 = vunpack.c.h.b16 %v5828
    %v6275 = vunpack.c.l.b16 %v5829
    %v6276 = vunpack.c.h.b16 %v5829
    %v6277 = vunpack.c.l.b16 %v5830
    %v6278 = vunpack.c.h.b16 %v5830
    %v6279 = vunpack.c.l.b16 %v5831
    %v6280 = vunpack.c.h.b16 %v5831
    %v6281 = vunpack.c.l.b16 %v5832
    %v6282 = vunpack.c.h.b16 %v5832
    %v6283 = vunpack.c.l.b16 %v5833
    %v6284 = vunpack.c.h.b16 %v5833
    %v6285 = vunpack.c.l.b16 %v5834
    %v6286 = vunpack.c.h.b16 %v5834
    %v6287 = vunpack.c.l.b16 %v5835
    %v6288 = vunpack.c.h.b16 %v5835
    %v6289 = vunpack.c.l.b16 %v5836
    %v6290 = vunpack.c.h.b16 %v5836
    %v6291 = vunpack.c.l.b16 %v5837
    %v6292 = vunpack.c.h.b16 %v5837
    %v6293 = vunpack.c.l.b16 %v5838
    %v6294 = vunpack.c.h.b16 %v5838
    %v6295 = vunpack.c.l.b16 %v5839
    %v6296 = vunpack.c.h.b16 %v5839
    %v6297 = vunpack.c.l.b16 %v5840
    %v6298 = vunpack.c.h.b16 %v5840
    %v6299 = vunpack.c.l.b16 %v5841
    %v6300 = vunpack.c.h.b16 %v5841
    %v6301 = vunpack.c.l.b16 %v5842
    %v6302 = vunpack.c.h.b16 %v5842
    %v6303 = vunpack.c.l.b16 %v5843
    %v6304 = vunpack.c.h.b16 %v5843
    %v6305 = vunpack.c.l.b16 %v5844
    %v6306 = vunpack.c.h.b16 %v5844
    %v6307 = vunpack.c.l.b16 %v5845
    %v6308 = vunpack.c.h.b16 %v5845
    %v6309 = vunpack.c.l.b16 %v5846
    %v6310 = vunpack.c.h.b16 %v5846
    %v6311 = vunpack.c.l.b16 %v5847
    %v6312 = vunpack.c.h.b16 %v5847
    %v6313 = vunpack.c.l.b16 %v5848
    %v6314 = vunpack.c.h.b16 %v5848
    %v6315 = vunpack.c.l.b16 %v5849
    %v6316 = vunpack.c.h.b16 %v5849
    %v6317 = vunpack.c.l.b16 %v5850
    %v6318 = vunpack.c.h.b16 %v5850
    %v6319 = vunpack.c.l.b16 %v5851
    %v6320 = vunpack.c.h.b16 %v5851
    %v6321 = vunpack.c.l.b16 %v5852
    %v6322 = vunpack.c.h.b16 %v5852
    %v6323 = vunpack.c.l.b16 %v5853
    %v6324 = vunpack.c.h.b16 %v5853
    %v6325 = vunpack.c.l.b16 %v5854
    %v6326 = vunpack.c.h.b16 %v5854
    %v6327 = vunpack.c.l.b16 %v5855
    %v6328 = vunpack.c.h.b16 %v5855
    %v6329 = vunpack.c.l.b16 %v5856
    %v6330 = vunpack.c.h.b16 %v5856
    %v6331 = vunpack.c.l.b16 %v5857
    %v6332 = vunpack.c.h.b16 %v5857
    %v6333 = vunpack.c.l.b16 %v5858
    %v6334 = vunpack.c.h.b16 %v5858
    %v6335 = vunpack.c.l.b16 %v5859
    %v6336 = vunpack.c.h.b16 %v5859
    %v6337 = vunpack.c.l.b16 %v5860
    %v6338 = vunpack.c.h.b16 %v5860
    %v6339 = vunpack.c.l.b16 %v5861
    %v6340 = vunpack.c.h.b16 %v5861
    %v6341 = vunpack.c.l.b16 %v5862
    %v6342 = vunpack.c.h.b16 %v5862
    %v6343 = vunpack.c.l.b16 %v5863
    %v6344 = vunpack.c.h.b16 %v5863
    %v6345 = vunpack.c.l.b16 %v5864
    %v6346 = vunpack.c.h.b16 %v5864
    %v6347 = vunpack.c.l.b16 %v5865
    %v6348 = vunpack.c.h.b16 %v5865
    %v6349 = vunpack.c.l.b16 %v5866
    %v6350 = vunpack.c.h.b16 %v5866
    %v6351 = vunpack.c.l.b16 %v5867
    %v6352 = vunpack.c.h.b16 %v5867
    %v6353 = vunpack.c.l.b16 %v5868
    %v6354 = vunpack.c.h.b16 %v5868
    %v6355 = vunpack.c.l.b16 %v5869
    %v6356 = vunpack.c.h.b16 %v5869
    %v6357 = vunpack.c.l.b16 %v5870
    %v6358 = vunpack.c.h.b16 %v5870
    %v6359 = vunpack.c.l.b16 %v5871
    %v6360 = vunpack.c.h.b16 %v5871
    %v6361 = vunpack.c.l.b16 %v5872
    %v6362 = vunpack.c.h.b16 %v5872
    %v6363 = vunpack.c.l.b16 %v5873
    %v6364 = vunpack.c.h.b16 %v5873
    %v6365 = vunpack.c.l.b16 %v5874
    %v6366 = vunpack.c.h.b16 %v5874
    %v6367 = vunpack.c.l.b16 %v5875
    %v6368 = vunpack.c.h.b16 %v5875
    %v6369 = vunpack.c.l.b16 %v5876
    %v6370 = vunpack.c.h.b16 %v5876
    %v6371 = vunpack.c.l.b16 %v5877
    %v6372 = vunpack.c.h.b16 %v5877
    %v6373 = vunpack.c.l.b16 %v5878
    %v6374 = vunpack.c.h.b16 %v5878
    %v6375 = vunpack.c.l.b16 %v5879
    %v6376 = vunpack.c.h.b16 %v5879
    %v6377 = vunpack.c.l.b16 %v5880
    %v6378 = vunpack.c.h.b16 %v5880
    %v6379 = vunpack.c.l.b16 %v5881
    %v6380 = vunpack.c.h.b16 %v5881
    %v6381 = vunpack.c.l.b16 %v5882
    %v6382 = vunpack.c.h.b16 %v5882
    %v6383 = vunpack.c.l.b16 %v5883
    %v6384 = vunpack.c.h.b16 %v5883
    %v6385 = vunpack.c.l.b16 %v5884
    %v6386 = vunpack.c.h.b16 %v5884
    %v6387 = vunpack.c.l.b16 %v5885
    %v6388 = vunpack.c.h.b16 %v5885
    %v6389 = vunpack.c.l.b16 %v5886
    %v6390 = vunpack.c.h.b16 %v5886
    %v6391 = vunpack.c.l.b16 %v5887
    %v6392 = vunpack.c.h.b16 %v5887
    %v6393 = vunpack.c.l.b16 %v5888
    %v6394 = vunpack.c.h.b16 %v5888
    %v6395 = vunpack.c.l.b16 %v5889
    %v6396 = vunpack.c.h.b16 %v5889
    %v6397 = vunpack.c.l.b16 %v5890
    %v6398 = vunpack.c.h.b16 %v5890
    %v6399 = vunpack.c.l.b16 %v5891
    %v6400 = vunpack.c.h.b16 %v5891
    %v6401 = vunpack.c.l.b16 %v5892
    %v6402 = vunpack.c.h.b16 %v5892
    %v6403 = vunpack.c.l.b16 %v5893
    %v6404 = vunpack.c.h.b16 %v5893
    %v6405 = vunpack.c.l.b16 %v5894
    %v6406 = vunpack.c.h.b16 %v5894
    %v6407 = vunpack.c.l.b16 %v5895
    %v6408 = vunpack.c.h.b16 %v5895
    %v6409 = vunpack.c.l.b16 %v5896
    %v6410 = vunpack.c.h.b16 %v5896
    %v6411 = vunpack.c.l.b16 %v5897
    %v6412 = vunpack.c.h.b16 %v5897
    %v6413 = vunpack.c.l.b16 %v5898
    %v6414 = vunpack.c.h.b16 %v5898
    %v6415 = vunpack.c.l.b16 %v5899
    %v6416 = vunpack.c.h.b16 %v5899
    %v6417 = vunpack.c.l.b16 %v5900
    %v6418 = vunpack.c.h.b16 %v5900
    %v6419 = vunpack.c.l.b16 %v5901
    %v6420 = vunpack.c.h.b16 %v5901
    %v6421 = vunpack.c.l.b16 %v5902
    %v6422 = vunpack.c.h.b16 %v5902
    %v6423 = vunpack.c.l.b16 %v5903
    %v6424 = vunpack.c.h.b16 %v5903
    %v6425 = vunpack.c.l.b16 %v5904
    %v6426 = vunpack.c.h.b16 %v5904
    %v6427 = vunpack.c.l.b16 %v5905
    %v6428 = vunpack.c.h.b16 %v5905
    %v6429 = vunpack.c.l.b16 %v5906
    %v6430 = vunpack.c.h.b16 %v5906
    %v6431 = vunpack.c.l.b16 %v5907
    %v6432 = vunpack.c.h.b16 %v5907
    %v6433 = vunpack.c.l.b16 %v5908
    %v6434 = vunpack.c.h.b16 %v5908
    %v6435 = vunpack.c.l.b16 %v5909
    %v6436 = vunpack.c.h.b16 %v5909
    %v6437 = vunpack.c.l.b16 %v5910
    %v6438 = vunpack.c.h.b16 %v5910
    %v6439 = vunpack.c.l.b16 %v5911
    %v6440 = vunpack.c.h.b16 %v5911
    %v6441 = vunpack.c.l.b16 %v5912
    %v6442 = vunpack.c.h.b16 %v5912
    %v6443 = vunpack.c.l.b16 %v5913
    %v6444 = vunpack.c.h.b16 %v5913
    %v6445 = vunpack.c.l.b16 %v5914
    %v6446 = vunpack.c.h.b16 %v5914
    %v6447 = vunpack.c.l.b16 %v5915
    %v6448 = vunpack.c.h.b16 %v5915
    %v6449 = vunpack.c.l.b16 %v5916
    %v6450 = vunpack.c.h.b16 %v5916
    %v6451 = vunpack.c.l.b16 %v5917
    %v6452 = vunpack.c.h.b16 %v5917
    %v6453 = vunpack.c.l.b16 %v5918
    %v6454 = vunpack.c.h.b16 %v5918
    %v6455 = vunpack.c.l.b16 %v5919
    %v6456 = vunpack.c.h.b16 %v5919
    %v6457 = vunpack.c.l.b16 %v5920
    %v6458 = vunpack.c.h.b16 %v5920
    %v6459 = vunpack.c.l.b16 %v5921
    %v6460 = vunpack.c.h.b16 %v5921
    %v6461 = vunpack.c.l.b16 %v5922
    %v6462 = vunpack.c.h.b16 %v5922
    %v6463 = vunpack.c.l.b16 %v5923
    %v6464 = vunpack.c.h.b16 %v5923
    %v6465 = vunpack.c.l.b16 %v5924
    %v6466 = vunpack.c.h.b16 %v5924
    %v6467 = vunpack.c.l.b16 %v5925
    %v6468 = vunpack.c.h.b16 %v5925
    %v6469 = vunpack.c.l.b16 %v5926
    %v6470 = vunpack.c.h.b16 %v5926
    %v6471 = vunpack.c.l.b16 %v5927
    %v6472 = vunpack.c.h.b16 %v5927
    %v6473 = vunpack.c.l.b16 %v5928
    %v6474 = vunpack.c.h.b16 %v5928
    %v6475 = vunpack.c.l.b16 %v5929
    %v6476 = vunpack.c.h.b16 %v5929
    %v6477 = vunpack.c.l.b16 %v5930
    %v6478 = vunpack.c.h.b16 %v5930
    %v6479 = vunpack.c.l.b16 %v5931
    %v6480 = vunpack.c.h.b16 %v5931
    %v6481 = vunpack.c.l.b16 %v5932
    %v6482 = vunpack.c.h.b16 %v5932
    %v6483 = vunpack.c.l.b16 %v5933
    %v6484 = vunpack.c.h.b16 %v5933
    %v6485 = vunpack.c.l.b16 %v5934
    %v6486 = vunpack.c.h.b16 %v5934
    %v6487 = vunpack.c.l.b16 %v5935
    %v6488 = vunpack.c.h.b16 %v5935
    %v6489 = vunpack.c.l.b16 %v5936
    %v6490 = vunpack.c.h.b16 %v5936
    %v6491 = vunpack.c.l.b16 %v5937
    %v6492 = vunpack.c.h.b16 %v5937
    %v6493 = vunpack.c.l.b16 %v5938
    %v6494 = vunpack.c.h.b16 %v5938
    %v6495 = vunpack.c.l.b16 %v5939
    %v6496 = vunpack.c.h.b16 %v5939
    %v6497 = vunpack.c.l.b16 %v5940
    %v6498 = vunpack.c.h.b16 %v5940
    %v6499 = vunpack.c.l.b16 %v5941
    %v6500 = vunpack.c.h.b16 %v5941
    %v6501 = vunpack.c.l.b16 %v5942
    %v6502 = vunpack.c.h.b16 %v5942
    %v6503 = vunpack.c.l.b16 %v5943
    %v6504 = vunpack.c.h.b16 %v5943
    %v6505 = vunpack.c.l.b16 %v5944
    %v6506 = vunpack.c.h.b16 %v5944
    %v6507 = vunpack.c.l.b16 %v5945
    %v6508 = vunpack.c.h.b16 %v5945
    %v6509 = vunpack.c.l.b16 %v5946
    %v6510 = vunpack.c.h.b16 %v5946
    %v6511 = vunpack.c.l.b16 %v5947
    %v6512 = vunpack.c.h.b16 %v5947
    %v6513 = vunpack.c.l.b16 %v5948
    %v6514 = vunpack.c.h.b16 %v5948
    %v6515 = vunpack.c.l.b16 %v5949
    %v6516 = vunpack.c.h.b16 %v5949
    %v6517 = vunpack.c.l.b16 %v5950
    %v6518 = vunpack.c.h.b16 %v5950
    %v6519 = vunpack.c.l.b16 %v5951
    %v6520 = vunpack.c.h.b16 %v5951
    %v6521 = vunpack.c.l.b16 %v5952
    %v6522 = vunpack.c.h.b16 %v5952
    %v6523 = vunpack.c.l.b16 %v5953
    %v6524 = vunpack.c.h.b16 %v5953
    %v6525 = vunpack.c.l.b16 %v5954
    %v6526 = vunpack.c.h.b16 %v5954
    %v6527 = vunpack.c.l.b16 %v5955
    %v6528 = vunpack.c.h.b16 %v5955
    %v6529 = vunpack.c.l.b16 %v5956
    %v6530 = vunpack.c.h.b16 %v5956
    %v6531 = vunpack.c.l.b16 %v5957
    %v6532 = vunpack.c.h.b16 %v5957
    %v6533 = vunpack.c.l.b16 %v5958
    %v6534 = vunpack.c.h.b16 %v5958
    %v6535 = vunpack.c.l.b16 %v5959
    %v6536 = vunpack.c.h.b16 %v5959
    %v6537 = vunpack.c.l.b16 %v5960
    %v6538 = vunpack.c.h.b16 %v5960
    %v6539 = vunpack.c.l.b16 %v5961
    %v6540 = vunpack.c.h.b16 %v5961
    %v6541 = vunpack.c.l.b16 %v5962
    %v6542 = vunpack.c.h.b16 %v5962
    %v6543 = vunpack.c.l.b16 %v5963
    %v6544 = vunpack.c.h.b16 %v5963
    %v6545 = vunpack.c.l.b16 %v5964
    %v6546 = vunpack.c.h.b16 %v5964
    %v6547 = vunpack.c.l.b16 %v5965
    %v6548 = vunpack.c.h.b16 %v5965
    %v6549 = vunpack.c.l.b16 %v5966
    %v6550 = vunpack.c.h.b16 %v5966
    %v6551 = vunpack.c.l.b16 %v5967
    %v6552 = vunpack.c.h.b16 %v5967
    %v6553 = vunpack.c.l.b16 %v5968
    %v6554 = vunpack.c.h.b16 %v5968
    %v6555 = vunpack.c.l.b16 %v5969
    %v6556 = vunpack.c.h.b16 %v5969
    %v6557 = vunpack.c.l.b16 %v5970
    %v6558 = vunpack.c.h.b16 %v5970
    %v6559 = vunpack.c.l.b16 %v5971
    %v6560 = vunpack.c.h.b16 %v5971
    %v6561 = vunpack.c.l.b16 %v5972
    %v6562 = vunpack.c.h.b16 %v5972
    %v6563 = vunpack.c.l.b16 %v5973
    %v6564 = vunpack.c.h.b16 %v5973
    %v6565 = vunpack.c.l.b16 %v5974
    %v6566 = vunpack.c.h.b16 %v5974
    %v6567 = vunpack.c.l.b16 %v5975
    %v6568 = vunpack.c.h.b16 %v5975
    %v6569 = vunpack.c.l.b16 %v5976
    %v6570 = vunpack.c.h.b16 %v5976
    %v6571 = vunpack.c.l.b16 %v5977
    %v6572 = vunpack.c.h.b16 %v5977
    %v6573 = vunpack.c.l.b16 %v5978
    %v6574 = vunpack.c.h.b16 %v5978
    %v6575 = vunpack.c.l.b16 %v5979
    %v6576 = vunpack.c.h.b16 %v5979
    %v6577 = vunpack.c.l.b16 %v5980
    %v6578 = vunpack.c.h.b16 %v5980
    %v6579 = vunpack.c.l.b16 %v5981
    %v6580 = vunpack.c.h.b16 %v5981
    %v6581 = vunpack.c.l.b16 %v5982
    %v6582 = vunpack.c.h.b16 %v5982
    %v6583 = vunpack.c.l.b16 %v5983
    %v6584 = vunpack.c.h.b16 %v5983
    %v6585 = vunpack.c.l.b16 %v5984
    %v6586 = vunpack.c.h.b16 %v5984
    %v6587 = vunpack.c.l.b16 %v5985
    %v6588 = vunpack.c.h.b16 %v5985
    %v6589 = vunpack.c.l.b16 %v5986
    %v6590 = vunpack.c.h.b16 %v5986
    %v6591 = vunpack.c.l.b16 %v5987
    %v6592 = vunpack.c.h.b16 %v5987
    %v6593 = vunpack.c.l.b16 %v5988
    %v6594 = vunpack.c.h.b16 %v5988
    %v6595 = vunpack.c.l.b16 %v5989
    %v6596 = vunpack.c.h.b16 %v5989
    %v6597 = vunpack.c.l.b16 %v5990
    %v6598 = vunpack.c.h.b16 %v5990
    %v6599 = vunpack.c.l.b16 %v5991
    %v6600 = vunpack.c.h.b16 %v5991
    %v6601 = vunpack.c.l.b16 %v5992
    %v6602 = vunpack.c.h.b16 %v5992
    %v6603 = vunpack.c.l.b16 %v5993
    %v6604 = vunpack.c.h.b16 %v5993
    %v6605 = vunpack.c.l.b16 %v5994
    %v6606 = vunpack.c.h.b16 %v5994
    %v6607 = vunpack.c.l.b16 %v5995
    %v6608 = vunpack.c.h.b16 %v5995
    %v6609 = vunpack.c.l.b16 %v5996
    %v6610 = vunpack.c.h.b16 %v5996
    %v6611 = vunpack.c.l.b16 %v5997
    %v6612 = vunpack.c.h.b16 %v5997
    %v6613 = vunpack.c.l.b16 %v5998
    %v6614 = vunpack.c.h.b16 %v5998
    %v6615 = vunpack.c.l.b16 %v5999
    %v6616 = vunpack.c.h.b16 %v5999
    %v6617 = vunpack.c.l.b16 %v6000
    %v6618 = vunpack.c.h.b16 %v6000
    %v6619 = vunpack.c.l.b16 %v6001
    %v6620 = vunpack.c.h.b16 %v6001
    %v6621 = vunpack.c.l.b16 %v6002
    %v6622 = vunpack.c.h.b16 %v6002
    %v6623 = vunpack.c.l.b16 %v6003
    %v6624 = vunpack.c.h.b16 %v6003
    %v6625 = vpack.c.b16 %v6349, %v6211
    %v6626 = vpack.c.b16 %v6350, %v6212
    %v6627 = vpack.c.b16 %v6351, %v6213
    %v6628 = vpack.c.b16 %v6352, %v6214
    %v6629 = vpack.c.b16 %v6353, %v6215
    %v6630 = vpack.c.b16 %v6354, %v6216
    %v6631 = vpack.c.b16 %v6355, %v6217
    %v6632 = vpack.c.b16 %v6356, %v6218
    %v6633 = vpack.c.b16 %v6357, %v6219
    %v6634 = vpack.c.b16 %v6358, %v6220
    %v6635 = vpack.c.b16 %v6359, %v6221
    %v6636 = vpack.c.b16 %v6360, %v6222
    %v6637 = vpack.c.b16 %v6361, %v6223
    %v6638 = vpack.c.b16 %v6362, %v6224
    %v6639 = vpack.c.b16 %v6363, %v6225
    %v6640 = vpack.c.b16 %v6364, %v6226
    %v6641 = vpack.c.b16 %v6365, %v6227
    %v6642 = vpack.c.b16 %v6366, %v6228
    %v6643 = vpack.c.b16 %v6367, %v6229
    %v6644 = vpack.c.b16 %v6368, %v6230
    %v6645 = vpack.c.b16 %v6369, %v6231
    %v6646 = vpack.c.b16 %v6370, %v6232
    %v6647 = vpack.c.b16 %v6371, %v6233
    %v6648 = vpack.c.b16 %v6372, %v6234
    %v6649 = vpack.c.b16 %v6373, %v6235
    %v6650 = vpack.c.b16 %v6374, %v6236
    %v6651 = vpack.c.b16 %v6375, %v6237
    %v6652 = vpack.c.b16 %v6376, %v6238
    %v6653 = vpack.c.b16 %v6377, %v6239
    %v6654 = vpack.c.b16 %v6378, %v6240
    %v6655 = vpack.c.b16 %v6379, %v6241
    %v6656 = vpack.c.b16 %v6380, %v6242
    %v6657 = vpack.c.b16 %v6381, %v6243
    %v6658 = vpack.c.b16 %v6382, %v6244
    %v6659 = vpack.c.b16 %v6383, %v6245
    %v6660 = vpack.c.b16 %v6384, %v6246
    %v6661 = vpack.c.b16 %v6385, %v6247
    %v6662 = vpack.c.b16 %v6386, %v6248
    %v6663 = vpack.c.b16 %v6387, %v6249
    %v6664 = vpack.c.b16 %v6388, %v6250
    %v6665 = vpack.c.b16 %v6389, %v6251
    %v6666 = vpack.c.b16 %v6390, %v6252
    %v6667 = vpack.c.b16 %v6391, %v6253
    %v6668 = vpack.c.b16 %v6392, %v6254
    %v6669 = vpack.c.b16 %v6393, %v6255
    %v6670 = vpack.c.b16 %v6394, %v6256
    %v6671 = vpack.c.b16 %v6395, %v6257
    %v6672 = vpack.c.b16 %v6396, %v6258
    %v6673 = vpack.c.b16 %v6397, %v6259
    %v6674 = vpack.c.b16 %v6398, %v6260
    %v6675 = vpack.c.b16 %v6399, %v6261
    %v6676 = vpack.c.b16 %v6400, %v6262
    %v6677 = vpack.c.b16 %v6401, %v6263
    %v6678 = vpack.c.b16 %v6402, %v6264
    %v6679 = vpack.c.b16 %v6403, %v6265
    %v6680 = vpack.c.b16 %v6404, %v6266
    %v6681 = vpack.c.b16 %v6405, %v6267
    %v6682 = vpack.c.b16 %v6406, %v6268
    %v6683 = vpack.c.b16 %v6407, %v6269
    %v6684 = vpack.c.b16 %v6408, %v6270
    %v6685 = vpack.c.b16 %v6409, %v6271
    %v6686 = vpack.c.b16 %v6410, %v6272
    %v6687 = vpack.c.b16 %v6411, %v6273
    %v6688 = vpack.c.b16 %v6412, %v6274
    %v6689 = vpack.c.b16 %v6413, %v6275
    %v6690 = vpack.c.b16 %v6414, %v6276
    %v6691 = vpack.c.b16 %v6415, %v6277
    %v6692 = vpack.c.b16 %v6416, %v6278
    %v6693 = vpack.c.b16 %v6417, %v6279
    %v6694 = vpack.c.b16 %v6418, %v6280
    %v6695 = vpack.c.b16 %v6419, %v6281
    %v6696 = vpack.c.b16 %v6420, %v6282
    %v6697 = vpack.c.b16 %v6421, %v6283
    %v6698 = vpack.c.b16 %v6422, %v6284
    %v6699 = vpack.c.b16 %v6423, %v6285
    %v6700 = vpack.c.b16 %v6424, %v6286
    %v6701 = vpack.c.b16 %v6425, %v6287
    %v6702 = vpack.c.b16 %v6426, %v6288
    %v6703 = vpack.c.b16 %v6427, %v6289
    %v6704 = vpack.c.b16 %v6428, %v6290
    %v6705 = vpack.c.b16 %v6429, %v6291
    %v6706 = vpack.c.b16 %v6430, %v6292
    %v6707 = vpack.c.b16 %v6431, %v6293
    %v6708 = vpack.c.b16 %v6432, %v6294
    %v6709 = vpack.c.b16 %v6433, %v6295
    %v6710 = vpack.c.b16 %v6434, %v6296
    %v6711 = vpack.c.b16 %v6435, %v6297
    %v6712 = vpack.c.b16 %v6436, %v6298
    %v6713 = vpack.c.b16 %v6437, %v6299
    %v6714 = vpack.c.b16 %v6438, %v6300
    %v6715 = vpack.c.b16 %v6439, %v6301
    %v6716 = vpack.c.b16 %v6440, %v6302
    %v6717 = vpack.c.b16 %v6441, %v6303
    %v6718 = vpack.c.b16 %v6442, %v6304
    %v6719 = vpack.c.b16 %v6443, %v6305
    %v6720 = vpack.c.b16 %v6444, %v6306
    %v6721 = vpack.c.b16 %v6445, %v6307
    %v6722 = vpack.c.b16 %v6446, %v6308
    %v6723 = vpack.c.b16 %v6447, %v6309
    %v6724 = vpack.c.b16 %v6448, %v6310
    %v6725 = vpack.c.b16 %v6449, %v6311
    %v6726 = vpack.c.b16 %v6450, %v6312
    %v6727 = vpack.c.b16 %v6451, %v6313
    %v6728 = vpack.c.b16 %v6452, %v6314
    %v6729 = vpack.c.b16 %v6453, %v6315
    %v6730 = vpack.c.b16 %v6454, %v6316
    %v6731 = vpack.c.b16 %v6455, %v6317
    %v6732 = vpack.c.b16 %v6456, %v6318
    %v6733 = vpack.c.b16 %v6457, %v6319
    %v6734 = vpack.c.b16 %v6458, %v6320
    %v6735 = vpack.c.b16 %v6459, %v6321
    %v6736 = vpack.c.b16 %v6460, %v6322
    %v6737 = vpack.c.b16 %v6461, %v6323
    %v6738 = vpack.c.b16 %v6462, %v6324
    %v6739 = vpack.c.b16 %v6463, %v6325
    %v6740 = vpack.c.b16 %v6464, %v6326
    %v6741 = vpack.c.b16 %v6465, %v6327
    %v6742 = vpack.c.b16 %v6466, %v6328
    %v6743 = vpack.c.b16 %v6467, %v6329
    %v6744 = vpack.c.b16 %v6468, %v6330
    %v6745 = vpack.c.b16 %v6469, %v6331
    %v6746 = vpack.c.b16 %v6470, %v6332
    %v6747 = vpack.c.b16 %v6471, %v6333
    %v6748 = vpack.c.b16 %v6472, %v6334
    %v6749 = vpack.c.b16 %v6473, %v6335
    %v6750 = vpack.c.b16 %v6474, %v6336
    %v6751 = vpack.c.b16 %v6475, %v6337
    %v6752 = vpack.c.b16 %v6476, %v6338
    %v6753 = vpack.c.b16 %v6477, %v6339
    %v6754 = vpack.c.b16 %v6478, %v6340
    %v6755 = vpack.c.b16 %v6479, %v6341
    %v6756 = vpack.c.b16 %v6480, %v6342
    %v6757 = vpack.c.b16 %v6481, %v6343
    %v6758 = vpack.c.b16 %v6482, %v6344
    %v6759 = vpack.c.b16 %v6483, %v6345
    %v6760 = vpack.c.b16 %v6484, %v6346
    %v6761 = vpack.c.b16 %v6485, %v6347
    %v6762 = vpack.c.b16 %v6486, %v6348
    %v6763 = vpack.c.b16 %v6487, %v6487
    %v6764 = vpack.c.b16 %v6488, %v6488
    %v6765 = vpack.c.b16 %v6489, %v6489
    %v6766 = vpack.c.b16 %v6490, %v6490
    %v6767 = vpack.c.b16 %v6491, %v6491
    %v6768 = vpack.c.b16 %v6492, %v6492
    %v6769 = vpack.c.b16 %v6493, %v6493
    %v6770 = vpack.c.b16 %v6494, %v6494
    %v6771 = vpack.c.b16 %v6495, %v6495
    %v6772 = vpack.c.b16 %v6496, %v6496
    %v6773 = vpack.c.b16 %v6497, %v6497
    %v6774 = vpack.c.b16 %v6498, %v6498
    %v6775 = vpack.c.b16 %v6499, %v6499
    %v6776 = vpack.c.b16 %v6500, %v6500
    %v6777 = vpack.c.b16 %v6501, %v6501
    %v6778 = vpack.c.b16 %v6502, %v6502
    %v6779 = vpack.c.b16 %v6503, %v6503
    %v6780 = vpack.c.b16 %v6504, %v6504
    %v6781 = vpack.c.b16 %v6505, %v6505
    %v6782 = vpack.c.b16 %v6506, %v6506
    %v6783 = vpack.c.b16 %v6507, %v6507
    %v6784 = vpack.c.b16 %v6508, %v6508
    %v6785 = vpack.c.b16 %v6509, %v6509
    %v6786 = vpack.c.b16 %v6510, %v6510
    %v6787 = vpack.c.b16 %v6511, %v6511
    %v6788 = vpack.c.b16 %v6512, %v6512
    %v6789 = vpack.c.b16 %v6513, %v6513
    %v6790 = vpack.c.b16 %v6514, %v6514
    %v6791 = vpack.c.b16 %v6515, %v6515
    %v6792 = vpack.c.b16 %v6516, %v6516
    %v6793 = vpack.c.b16 %v6517, %v6517
    %v6794 = vpack.c.b16 %v6518, %v6518
    %v6795 = vpack.c.b16 %v6519, %v6519
    %v6796 = vpack.c.b16 %v6520, %v6520
    %v6797 = vpack.c.b16 %v6521, %v6521
    %v6798 = vpack.c.b16 %v6522, %v6522
    %v6799 = vpack.c.b16 %v6523, %v6523
    %v6800 = vpack.c.b16 %v6524, %v6524
    %v6801 = vpack.c.b16 %v6525, %v6525
    %v6802 = vpack.c.b16 %v6526, %v6526
    %v6803 = vpack.c.b16 %v6527, %v6527
    %v6804 = vpack.c.b16 %v6528, %v6528
    %v6805 = vpack.c.b16 %v6529, %v6529
    %v6806 = vpack.c.b16 %v6530, %v6530
    %v6807 = vpack.c.b16 %v6531, %v6531
    %v6808 = vpack.c.b16 %v6532, %v6532
    %v6809 = vpack.c.b16 %v6533, %v6533
    %v6810 = vpack.c.b16 %v6534, %v6534
    %v6811 = vpack.c.b16 %v6535, %v6535
    %v6812 = vpack.c.b16 %v6536, %v6536
    %v6813 = vpack.c.b16 %v6537, %v6537
    %v6814 = vpack.c.b16 %v6538, %v6538
    %v6815 = vpack.c.b16 %v6539, %v6539
    %v6816 = vpack.c.b16 %v6540, %v6540
    %v6817 = vpack.c.b16 %v6541, %v6541
    %v6818 = vpack.c.b16 %v6542, %v6542
    %v6819 = vpack.c.b16 %v6543, %v6543
    %v6820 = vpack.c.b16 %v6544, %v6544
    %v6821 = vpack.c.b16 %v6545, %v6545
    %v6822 = vpack.c.b16 %v6546, %v6546
    %v6823 = vpack.c.b16 %v6547, %v6547
    %v6824 = vpack.c.b16 %v6548, %v6548
    %v6825 = vpack.c.b16 %v6549, %v6549
    %v6826 = vpack.c.b16 %v6550, %v6550
    %v6827 = vpack.c.b16 %v6551, %v6551
    %v6828 = vpack.c.b16 %v6552, %v6552
    %v6829 = vpack.c.b16 %v6553, %v6553
    %v6830 = vpack.c.b16 %v6554, %v6554
    %v6831 = vpack.c.b16 %v6555, %v6555
    %v6832 = vpack.c.b16 %v6556, %v6556
    %v6833 = vpack.c.b16 %v6557, %v6557
    %v6834 = vpack.c.b16 %v6558, %v6558
    %v6835 = vpack.c.b16 %v6559, %v6559
    %v6836 = vpack.c.b16 %v6560, %v6560
    %v6837 = vpack.c.b16 %v6561, %v6561
    %v6838 = vpack.c.b16 %v6562, %v6562
    %v6839 = vpack.c.b16 %v6563, %v6563
    %v6840 = vpack.c.b16 %v6564, %v6564
    %v6841 = vpack.c.b16 %v6565, %v6565
    %v6842 = vpack.c.b16 %v6566, %v6566
    %v6843 = vpack.c.b16 %v6567, %v6567
    %v6844 = vpack.c.b16 %v6568, %v6568
    %v6845 = vpack.c.b16 %v6569, %v6569
    %v6846 = vpack.c.b16 %v6570, %v6570
    %v6847 = vpack.c.b16 %v6571, %v6571
    %v6848 = vpack.c.b16 %v6572, %v6572
    %v6849 = vpack.c.b16 %v6573, %v6573
    %v6850 = vpack.c.b16 %v6574, %v6574
    %v6851 = vpack.c.b16 %v6575, %v6575
    %v6852 = vpack.c.b16 %v6576, %v6576
    %v6853 = vpack.c.b16 %v6577, %v6577
    %v6854 = vpack.c.b16 %v6578, %v6578
    %v6855 = vpack.c.b16 %v6579, %v6579
    %v6856 = vpack.c.b16 %v6580, %v6580
    %v6857 = vpack.c.b16 %v6581, %v6581
    %v6858 = vpack.c.b16 %v6582, %v6582
    %v6859 = vpack.c.b16 %v6583, %v6583
    %v6860 = vpack.c.b16 %v6584, %v6584
    %v6861 = vpack.c.b16 %v6585, %v6585
    %v6862 = vpack.c.b16 %v6586, %v6586
    %v6863 = vpack.c.b16 %v6587, %v6587
    %v6864 = vpack.c.b16 %v6588, %v6588
    %v6865 = vpack.c.b16 %v6589, %v6589
    %v6866 = vpack.c.b16 %v6590, %v6590
    %v6867 = vpack.c.b16 %v6591, %v6591
    %v6868 = vpack.c.b16 %v6592, %v6592
    %v6869 = vpack.c.b16 %v6593, %v6593
    %v6870 = vpack.c.b16 %v6594, %v6594
    %v6871 = vpack.c.b16 %v6595, %v6595
    %v6872 = vpack.c.b16 %v6596, %v6596
    %v6873 = vpack.c.b16 %v6597, %v6597
    %v6874 = vpack.c.b16 %v6598, %v6598
    %v6875 = vpack.c.b16 %v6599, %v6599
    %v6876 = vpack.c.b16 %v6600, %v6600
    %v6877 = vpack.c.b16 %v6601, %v6601
    %v6878 = vpack.c.b16 %v6602, %v6602
    %v6879 = vpack.c.b16 %v6603, %v6603
    %v6880 = vpack.c.b16 %v6604, %v6604
    %v6881 = vpack.c.b16 %v6605, %v6605
    %v6882 = vpack.c.b16 %v6606, %v6606
    %v6883 = vpack.c.b16 %v6607, %v6607
    %v6884 = vpack.c.b16 %v6608, %v6608
    %v6885 = vpack.c.b16 %v6609, %v6609
    %v6886 = vpack.c.b16 %v6610, %v6610
    %v6887 = vpack.c.b16 %v6611, %v6611
    %v6888 = vpack.c.b16 %v6612, %v6612
    %v6889 = vpack.c.b16 %v6613, %v6613
    %v6890 = vpack.c.b16 %v6614, %v6614
    %v6891 = vpack.c.b16 %v6615, %v6615
    %v6892 = vpack.c.b16 %v6616, %v6616
    %v6893 = vpack.c.b16 %v6617, %v6617
    %v6894 = vpack.c.b16 %v6618, %v6618
    %v6895 = vpack.c.b16 %v6619, %v6619
    %v6896 = vpack.c.b16 %v6620, %v6620
    %v6897 = vpack.c.b16 %v6621, %v6621
    %v6898 = vpack.c.b16 %v6622, %v6622
    %v6899 = vpack.c.b16 %v6623, %v6623
    %v6900 = vpack.c.b16 %v6624, %v6624
    %vm7039 = vcmask 138240
    %v7041 = vsel %vm7039, %v5796, 0
    %vm7043 = vcmask 1040384
    %v7044 = vsel 0, 4294967295, 65535
    %v7045 = vsel %vm7043, %v7044, 0
    %v7047 = vand.u32 %v6763, %v7045
    %v7050 = vand.u32 %v6764, %v7045
    %v7053 = vand.u32 %v6765, %v7045
    %v7056 = vand.u32 %v6766, %v7045
    %v7059 = vand.u32 %v6767, %v7045
    %v7062 = vand.u32 %v6768, %v7045
    %v7065 = vand.u32 %v6769, %v7045
    %v7068 = vand.u32 %v6770, %v7045
    %v7071 = vand.u32 %v6771, %v7045
    %v7074 = vand.u32 %v6772, %v7045
    %v7077 = vand.u32 %v6773, %v7045
    %v7080 = vand.u32 %v6774, %v7045
    %v7083 = vand.u32 %v6775, %v7045
    %v7086 = vand.u32 %v6776, %v7045
    %v7089 = vand.u32 %v6777, %v7045
    %v7092 = vand.u32 %v6778, %v7045
    %v7095 = vand.u32 %v6779, %v7045
    %v7098 = vand.u32 %v6780, %v7045
    %v7101 = vand.u32 %v6781, %v7045
    %v7104 = vand.u32 %v6782, %v7045
    %v7107 = vand.u32 %v6783, %v7045
    %v7110 = vand.u32 %v6784, %v7045
    %v7113 = vand.u32 %v6785, %v7045
    %v7116 = vand.u32 %v6786, %v7045
    %v7119 = vand.u32 %v6787, %v7045
    %v7122 = vand.u32 %v6788, %v7045
    %v7125 = vand.u32 %v6789, %v7045
    %v7128 = vand.u32 %v6790, %v7045
    %v7131 = vand.u32 %v6791, %v7045
    %v7134 = vand.u32 %v6792, %v7045
    %v7137 = vand.u32 %v6793, %v7045
    %v7140 = vand.u32 %v6794, %v7045
    %v7143 = vand.u32 %v6795, %v7045
    %v7146 = vand.u32 %v6796, %v7045
    %v7149 = vand.u32 %v6797, %v7045
    %v7152 = vand.u32 %v6798, %v7045
    %v7155 = vand.u32 %v6799, %v7045
    %v7158 = vand.u32 %v6800, %v7045
    %v7161 = vand.u32 %v6801, %v7045
    %v7164 = vand.u32 %v6802, %v7045
    %v7167 = vand.u32 %v6803, %v7045
    %v7170 = vand.u32 %v6804, %v7045
    %v7173 = vand.u32 %v6805, %v7045
    %v7176 = vand.u32 %v6806, %v7045
    %v7179 = vand.u32 %v6807, %v7045
    %v7182 = vand.u32 %v6808, %v7045
    %v7185 = vand.u32 %v6809, %v7045
    %v7188 = vand.u32 %v6810, %v7045
    %v7191 = vand.u32 %v6811, %v7045
    %v7194 = vand.u32 %v6812, %v7045
    %v7197 = vand.u32 %v6813, %v7045
    %v7200 = vand.u32 %v6814, %v7045
    %v7203 = vand.u32 %v6815, %v7045
    %v7206 = vand.u32 %v6816, %v7045
    %v7209 = vand.u32 %v6817, %v7045
    %v7212 = vand.u32 %v6818, %v7045
    %v7215 = vand.u32 %v6819, %v7045
    %v7218 = vand.u32 %v6820, %v7045
    %v7221 = vand.u32 %v6821, %v7045
    %v7224 = vand.u32 %v6822, %v7045
    %v7227 = vand.u32 %v6823, %v7045
    %v7230 = vand.u32 %v6824, %v7045
    %v7233 = vand.u32 %v6825, %v7045
    %v7236 = vand.u32 %v6826, %v7045
    %v7239 = vand.u32 %v6827, %v7045
    %v7242 = vand.u32 %v6828, %v7045
    %v7245 = vand.u32 %v6829, %v7045
    %v7248 = vand.u32 %v6830, %v7045
    %v7251 = vand.u32 %v6831, %v7045
    %v7254 = vand.u32 %v6832, %v7045
    %v7257 = vand.u32 %v6833, %v7045
    %v7260 = vand.u32 %v6834, %v7045
    %v7263 = vand.u32 %v6835, %v7045
    %v7266 = vand.u32 %v6836, %v7045
    %v7269 = vand.u32 %v6837, %v7045
    %v7272 = vand.u32 %v6838, %v7045
    %v7275 = vand.u32 %v6839, %v7045
    %v7278 = vand.u32 %v6840, %v7045
    %v7281 = vand.u32 %v6841, %v7045
    %v7284 = vand.u32 %v6842, %v7045
    %v7287 = vand.u32 %v6843, %v7045
    %v7290 = vand.u32 %v6844, %v7045
    %v7293 = vand.u32 %v6845, %v7045
    %v7296 = vand.u32 %v6846, %v7045
    %v7299 = vand.u32 %v6847, %v7045
    %v7302 = vand.u32 %v6848, %v7045
    %v7305 = vand.u32 %v6849, %v7045
    %v7308 = vand.u32 %v6850, %v7045
    %v7311 = vand.u32 %v6851, %v7045
    %v7314 = vand.u32 %v6852, %v7045
    %v7317 = vand.u32 %v6853, %v7045
    %v7320 = vand.u32 %v6854, %v7045
    %v7323 = vand.u32 %v6855, %v7045
    %v7326 = vand.u32 %v6856, %v7045
    %v7329 = vand.u32 %v6857, %v7045
    %v7332 = vand.u32 %v6858, %v7045
    %v7335 = vand.u32 %v6859, %v7045
    %v7338 = vand.u32 %v6860, %v7045
    %v7341 = vand.u32 %v6861, %v7045
    %v7344 = vand.u32 %v6862, %v7045
    %v7347 = vand.u32 %v6863, %v7045
    %v7350 = vand.u32 %v6864, %v7045
    %v7353 = vand.u32 %v6865, %v7045
    %v7356 = vand.u32 %v6866, %v7045
    %v7359 = vand.u32 %v6867, %v7045
    %v7362 = vand.u32 %v6868, %v7045
    %v7365 = vand.u32 %v6869, %v7045
    %v7368 = vand.u32 %v6870, %v7045
    %v7371 = vand.u32 %v6871, %v7045
    %v7374 = vand.u32 %v6872, %v7045
    %v7377 = vand.u32 %v6873, %v7045
    %v7380 = vand.u32 %v6874, %v7045
    %v7383 = vand.u32 %v6875, %v7045
    %v7386 = vand.u32 %v6876, %v7045
    %v7389 = vand.u32 %v6877, %v7045
    %v7392 = vand.u32 %v6878, %v7045
    %v7395 = vand.u32 %v6879, %v7045
    %v7398 = vand.u32 %v6880, %v7045
    %v7401 = vand.u32 %v6881, %v7045
    %v7404 = vand.u32 %v6882, %v7045
    %v7407 = vand.u32 %v6883, %v7045
    %v7410 = vand.u32 %v6884, %v7045
    %v7413 = vand.u32 %v6885, %v7045
    %v7416 = vand.u32 %v6886, %v7045
    %v7419 = vand.u32 %v6887, %v7045
    %v7422 = vand.u32 %v6888, %v7045
    %v7425 = vand.u32 %v6889, %v7045
    %v7428 = vand.u32 %v6890, %v7045
    %v7431 = vand.u32 %v6891, %v7045
    %v7434 = vand.u32 %v6892, %v7045
    %v7437 = vand.u32 %v6893, %v7045
    %v7440 = vand.u32 %v6894, %v7045
    %v7443 = vand.u32 %v6895, %v7045
    %v7446 = vand.u32 %v6896, %v7045
    %v7449 = vand.u32 %v6897, %v7045
    %v7452 = vand.u32 %v6898, %v7045
    %v7455 = vand.u32 %v6899, %v7045
    %v7458 = vand.u32 %v6900, %v7045
    %7460 = vmatprep.subr.bf16.mxu0 %v6626
    %7461 = vmatpush1.bf16.msra.mxu0 %v6625
    %7462 = vmatprep.subr.bf16.mxu0 %v7050
    %7463 = vmatpush1.bf16.msra.mxu0 %v7047
    %7464 = vmatprep.subr.bf16.mxu0 0
    %7465 = vmatpush1.bf16.msra.mxu0 0
    %7466 = vmatprep.subr.bf16.mxu0 0
    %7467 = vmatpush1.bf16.msra.mxu0 0
    %7468 = vmatprep.subr.bf16.mxu0 0
    %7469 = vmatpush1.bf16.msra.mxu0 0
    %7470 = vmatprep.subr.bf16.mxu0 0
    %7471 = vmatpush1.bf16.msra.mxu0 0
    %7472 = vmatprep.subr.bf16.mxu0 0
    %7473 = vmatpush1.bf16.msra.mxu0 0
    %7474 = vmatprep.subr.bf16.mxu0 0
    %7475 = vmatpush1.bf16.msra.mxu0 0
    %7476 = vmatprep.subr.bf16.mxu0 0
    %7477 = vmatpush1.bf16.msra.mxu0 0
    %7478 = vmatprep.subr.bf16.mxu0 0
    %7479 = vmatpush1.bf16.msra.mxu0 0
    %7480 = vmatprep.subr.bf16.mxu0 0
    %7481 = vmatpush1.bf16.msra.mxu0 0
    %7482 = vmatprep.subr.bf16.mxu0 0
    %7483 = vmatpush1.bf16.msra.mxu0 0
    %7484 = vmatprep.subr.bf16.mxu0 0
    %7485 = vmatpush1.bf16.msra.mxu0 0
    %7486 = vmatprep.subr.bf16.mxu0 0
    %7487 = vmatpush1.bf16.msra.mxu0 0
    %7488 = vmatprep.subr.bf16.mxu0 0
    %7489 = vmatpush1.bf16.msra.mxu0 0
    %7490 = vmatprep.subr.bf16.mxu0 0
    %7491 = vmatpush1.bf16.msra.mxu0 0
    %7492 = vmatprep.mubr.bf16.mxu0 0
    %7493 = vmatmul.mubr.bf16.gmra.mrb[0].mxu0 %v7041
    %v7494 = vpop.f32.mrb[0].mxu0
    %v7495 = vadd.f32 0.0, %v7494
    %v7496 = vpop.f32.mrb[0].mxu0
    %v7497 = vadd.f32 0.0, %v7496
    %v7498 = vpop.f32.mrb[0].mxu0
    %v7499 = vpop.f32.mrb[0].mxu0
    %7500 = vdwg.mxu0
    %7501 = vmatprep.subr.bf16.mxu0 %v6628
    %7502 = vmatpush1.bf16.msra.mxu0 %v6627
    %7503 = vmatprep.subr.bf16.mxu0 %v7056
    %7504 = vmatpush1.bf16.msra.mxu0 %v7053
    %7505 = vmatprep.subr.bf16.mxu0 0
    %7506 = vmatpush1.bf16.msra.mxu0 0
    %7507 = vmatprep.subr.bf16.mxu0 0
    %7508 = vmatpush1.bf16.msra.mxu0 0
    %7509 = vmatprep.subr.bf16.mxu0 0
    %7510 = vmatpush1.bf16.msra.mxu0 0
    %7511 = vmatprep.subr.bf16.mxu0 0
    %7512 = vmatpush1.bf16.msra.mxu0 0
    %7513 = vmatprep.subr.bf16.mxu0 0
    %7514 = vmatpush1.bf16.msra.mxu0 0
    %7515 = vmatprep.subr.bf16.mxu0 0
    %7516 = vmatpush1.bf16.msra.mxu0 0
    %7517 = vmatprep.subr.bf16.mxu0 0
    %7518 = vmatpush1.bf16.msra.mxu0 0
    %7519 = vmatprep.subr.bf16.mxu0 0
    %7520 = vmatpush1.bf16.msra.mxu0 0
    %7521 = vmatprep.subr.bf16.mxu0 0
    %7522 = vmatpush1.bf16.msra.mxu0 0
    %7523 = vmatprep.subr.bf16.mxu0 0
    %7524 = vmatpush1.bf16.msra.mxu0 0
    %7525 = vmatprep.subr.bf16.mxu0 0
    %7526 = vmatpush1.bf16.msra.mxu0 0
    %7527 = vmatprep.subr.bf16.mxu0 0
    %7528 = vmatpush1.bf16.msra.mxu0 0
    %7529 = vmatprep.subr.bf16.mxu0 0
    %7530 = vmatpush1.bf16.msra.mxu0 0
    %7531 = vmatprep.subr.bf16.mxu0 0
    %7532 = vmatpush1.bf16.msra.mxu0 0
    %7533 = vmatprep.mubr.bf16.mxu0 0
    %7534 = vmatmul.mubr.bf16.gmra.mrb[0].mxu0 %v7041
    %v7535 = vpop.f32.mrb[0].mxu0
    %v7536 = vadd.f32 0.0, %v7535
    %v7537 = vpop.f32.mrb[0].mxu0
    %v7538 = vadd.f32 0.0, %v7537
    %v7539 = vpop.f32.mrb[0].mxu0
    %v7540 = vpop.f32.mrb[0].mxu0
    %7541 = vdwg.mxu0
    %7542 = vmatprep.subr.bf16.mxu0 %v6630
    %7543 = vmatpush1.bf16.msra.mxu0 %v6629
    %7544 = vmatprep.subr.bf16.mxu0 %v7062
    %7545 = vmatpush1.bf16.msra.mxu0 %v7059
    %7546 = vmatprep.subr.bf16.mxu0 0
    %7547 = vmatpush1.bf16.msra.mxu0 0
    %7548 = vmatprep.subr.bf16.mxu0 0
    %7549 = vmatpush1.bf16.msra.mxu0 0
    %7550 = vmatprep.subr.bf16.mxu0 0
    %7551 = vmatpush1.bf16.msra.mxu0 0
    %7552 = vmatprep.subr.bf16.mxu0 0
    %7553 = vmatpush1.bf16.msra.mxu0 0
    %7554 = vmatprep.subr.bf16.mxu0 0
    %7555 = vmatpush1.bf16.msra.mxu0 0
    %7556 = vmatprep.subr.bf16.mxu0 0
    %7557 = vmatpush1.bf16.msra.mxu0 0
    %7558 = vmatprep.subr.bf16.mxu0 0
    %7559 = vmatpush1.bf16.msra.mxu0 0
    %7560 = vmatprep.subr.bf16.mxu0 0
    %7561 = vmatpush1.bf16.msra.mxu0 0
    %7562 = vmatprep.subr.bf16.mxu0 0
    %7563 = vmatpush1.bf16.msra.mxu0 0
    %7564 = vmatprep.subr.bf16.mxu0 0
    %7565 = vmatpush1.bf16.msra.mxu0 0
    %7566 = vmatprep.subr.bf16.mxu0 0
    %7567 = vmatpush1.bf16.msra.mxu0 0
    %7568 = vmatprep.subr.bf16.mxu0 0
    %7569 = vmatpush1.bf16.msra.mxu0 0
    %7570 = vmatprep.subr.bf16.mxu0 0
    %7571 = vmatpush1.bf16.msra.mxu0 0
    %7572 = vmatprep.subr.bf16.mxu0 0
    %7573 = vmatpush1.bf16.msra.mxu0 0
    %7574 = vmatprep.mubr.bf16.mxu0 0
    %7575 = vmatmul.mubr.bf16.gmra.mrb[0].mxu0 %v7041
    %v7576 = vpop.f32.mrb[0].mxu0
    %v7577 = vadd.f32 0.0, %v7576
    %v7578 = vpop.f32.mrb[0].mxu0
    %v7579 = vadd.f32 0.0, %v7578
    %v7580 = vpop.f32.mrb[0].mxu0
    %v7581 = vpop.f32.mrb[0].mxu0
    %7582 = vdwg.mxu0
    %7583 = vmatprep.subr.bf16.mxu0 %v6632
    %7584 = vmatpush1.bf16.msra.mxu0 %v6631
    %7585 = vmatprep.subr.bf16.mxu0 %v7068
    %7586 = vmatpush1.bf16.msra.mxu0 %v7065
    %7587 = vmatprep.subr.bf16.mxu0 0
    %7588 = vmatpush1.bf16.msra.mxu0 0
    %7589 = vmatprep.subr.bf16.mxu0 0
    %7590 = vmatpush1.bf16.msra.mxu0 0
    %7591 = vmatprep.subr.bf16.mxu0 0
    %7592 = vmatpush1.bf16.msra.mxu0 0
    %7593 = vmatprep.subr.bf16.mxu0 0
    %7594 = vmatpush1.bf16.msra.mxu0 0
    %7595 = vmatprep.subr.bf16.mxu0 0
    %7596 = vmatpush1.bf16.msra.mxu0 0
    %7597 = vmatprep.subr.bf16.mxu0 0
    %7598 = vmatpush1.bf16.msra.mxu0 0
    %7599 = vmatprep.subr.bf16.mxu0 0
    %7600 = vmatpush1.bf16.msra.mxu0 0
    %7601 = vmatprep.subr.bf16.mxu0 0
    %7602 = vmatpush1.bf16.msra.mxu0 0
    %7603 = vmatprep.subr.bf16.mxu0 0
    %7604 = vmatpush1.bf16.msra.mxu0 0
    %7605 = vmatprep.subr.bf16.mxu0 0
    %7606 = vmatpush1.bf16.msra.mxu0 0
    %7607 = vmatprep.subr.bf16.mxu0 0
    %7608 = vmatpush1.bf16.msra.mxu0 0
    %7609 = vmatprep.subr.bf16.mxu0 0
    %7610 = vmatpush1.bf16.msra.mxu0 0
    %7611 = vmatprep.subr.bf16.mxu0 0
    %7612 = vmatpush1.bf16.msra.mxu0 0
    %7613 = vmatprep.subr.bf16.mxu0 0
    %7614 = vmatpush1.bf16.msra.mxu0 0
    %7615 = vmatprep.mubr.bf16.mxu0 0
    %7616 = vmatmul.mubr.bf16.gmra.mrb[0].mxu0 %v7041
    %v7617 = vpop.f32.mrb[0].mxu0
    %v7618 = vadd.f32 0.0, %v7617
    %v7619 = vpop.f32.mrb[0].mxu0
    %v7620 = vadd.f32 0.0, %v7619
    %v7621 = vpop.f32.mrb[0].mxu0
    %v7622 = vpop.f32.mrb[0].mxu0
    %7623 = vdwg.mxu0
    %7624 = vmatprep.subr.bf16.mxu0 %v6634
    %7625 = vmatpush1.bf16.msra.mxu0 %v6633
    %7626 = vmatprep.subr.bf16.mxu0 %v7074
    %7627 = vmatpush1.bf16.msra.mxu0 %v7071
    %7628 = vmatprep.subr.bf16.mxu0 0
    %7629 = vmatpush1.bf16.msra.mxu0 0
    %7630 = vmatprep.subr.bf16.mxu0 0
    %7631 = vmatpush1.bf16.msra.mxu0 0
    %7632 = vmatprep.subr.bf16.mxu0 0
    %7633 = vmatpush1.bf16.msra.mxu0 0
    %7634 = vmatprep.subr.bf16.mxu0 0
    %7635 = vmatpush1.bf16.msra.mxu0 0
    %7636 = vmatprep.subr.bf16.mxu0 0
    %7637 = vmatpush1.bf16.msra.mxu0 0
    %7638 = vmatprep.subr.bf16.mxu0 0
    %7639 = vmatpush1.bf16.msra.mxu0 0
    %7640 = vmatprep.subr.bf16.mxu0 0
    %7641 = vmatpush1.bf16.msra.mxu0 0
    %7642 = vmatprep.subr.bf16.mxu0 0
    %7643 = vmatpush1.bf16.msra.mxu0 0
    %7644 = vmatprep.subr.bf16.mxu0 0
    %7645 = vmatpush1.bf16.msra.mxu0 0
    %7646 = vmatprep.subr.bf16.mxu0 0
    %7647 = vmatpush1.bf16.msra.mxu0 0
    %7648 = vmatprep.subr.bf16.mxu0 0
    %7649 = vmatpush1.bf16.msra.mxu0 0
    %7650 = vmatprep.subr.bf16.mxu0 0
    %7651 = vmatpush1.bf16.msra.mxu0 0
    %7652 = vmatprep.subr.bf16.mxu0 0
    %7653 = vmatpush1.bf16.msra.mxu0 0
    %7654 = vmatprep.subr.bf16.mxu0 0
    %7655 = vmatpush1.bf16.msra.mxu0 0
    %7656 = vmatprep.mubr.bf16.mxu0 0
    %7657 = vmatmul.mubr.bf16.gmra.mrb[0].mxu0 %v7041
    %v7658 = vpop.f32.mrb[0].mxu0
    %v7659 = vadd.f32 0.0, %v7658
    %v7660 = vpop.f32.mrb[0].mxu0
    %v7661 = vadd.f32 0.0, %v7660
    %v7662 = vpop.f32.mrb[0].mxu0
    %v7663 = vpop.f32.mrb[0].mxu0
    %7664 = vdwg.mxu0
    %7665 = vmatprep.subr.bf16.mxu0 %v6636
    %7666 = vmatpush1.bf16.msra.mxu0 %v6635
    %7667 = vmatprep.subr.bf16.mxu0 %v7080
    %7668 = vmatpush1.bf16.msra.mxu0 %v7077
    %7669 = vmatprep.subr.bf16.mxu0 0
    %7670 = vmatpush1.bf16.msra.mxu0 0
    %7671 = vmatprep.subr.bf16.mxu0 0
    %7672 = vmatpush1.bf16.msra.mxu0 0
    %7673 = vmatprep.subr.bf16.mxu0 0
    %7674 = vmatpush1.bf16.msra.mxu0 0
    %7675 = vmatprep.subr.bf16.mxu0 0
    %7676 = vmatpush1.bf16.msra.mxu0 0
    %7677 = vmatprep.subr.bf16.mxu0 0
    %7678 = vmatpush1.bf16.msra.mxu0 0
    %7679 = vmatprep.subr.bf16.mxu0 0
    %7680 = vmatpush1.bf16.msra.mxu0 0
    %7681 = vmatprep.subr.bf16.mxu0 0
    %7682 = vmatpush1.bf16.msra.mxu0 0
    %7683 = vmatprep.subr.bf16.mxu0 0
    %7684 = vmatpush1.bf16.msra.mxu0 0
    %7685 = vmatprep.subr.bf16.mxu0 0
    %7686 = vmatpush1.bf16.msra.mxu0 0
    %7687 = vmatprep.subr.bf16.mxu0 0
    %7688 = vmatpush1.bf16.msra.mxu0 0
    %7689 = vmatprep.subr.bf16.mxu0 0
    %7690 = vmatpush1.bf16.msra.mxu0 0
    %7691 = vmatprep.subr.bf16.mxu0 0
    %7692 = vmatpush1.bf16.msra.mxu0 0
    %7693 = vmatprep.subr.bf16.mxu0 0
    %7694 = vmatpush1.bf16.msra.mxu0 0
    %7695 = vmatprep.subr.bf16.mxu0 0
    %7696 = vmatpush1.bf16.msra.mxu0 0
    %7697 = vmatprep.mubr.bf16.mxu0 0
    %7698 = vmatmul.mubr.bf16.gmra.mrb[0].mxu0 %v7041
    %v7699 = vpop.f32.mrb[0].mxu0
    %v7700 = vadd.f32 0.0, %v7699
    %v7701 = vpop.f32.mrb[0].mxu0
    %v7702 = vadd.f32 0.0, %v7701
    %v7703 = vpop.f32.mrb[0].mxu0
    %v7704 = vpop.f32.mrb[0].mxu0
    %7705 = vdwg.mxu0
    %7706 = vmatprep.subr.bf16.mxu0 %v6638
    %7707 = vmatpush1.bf16.msra.mxu0 %v6637
    %7708 = vmatprep.subr.bf16.mxu0 %v7086
    %7709 = vmatpush1.bf16.msra.mxu0 %v7083
    %7710 = vmatprep.subr.bf16.mxu0 0
    %7711 = vmatpush1.bf16.msra.mxu0 0
    %7712 = vmatprep.subr.bf16.mxu0 0
    %7713 = vmatpush1.bf16.msra.mxu0 0
    %7714 = vmatprep.subr.bf16.mxu0 0
    %7715 = vmatpush1.bf16.msra.mxu0 0
    %7716 = vmatprep.subr.bf16.mxu0 0
    %7717 = vmatpush1.bf16.msra.mxu0 0
    %7718 = vmatprep.subr.bf16.mxu0 0
    %7719 = vmatpush1.bf16.msra.mxu0 0
    %7720 = vmatprep.subr.bf16.mxu0 0
    %7721 = vmatpush1.bf16.msra.mxu0 0
    %7722 = vmatprep.subr.bf16.mxu0 0
    %7723 = vmatpush1.bf16.msra.mxu0 0
    %7724 = vmatprep.subr.bf16.mxu0 0
    %7725 = vmatpush1.bf16.msra.mxu0 0
    %7726 = vmatprep.subr.bf16.mxu0 0
    %7727 = vmatpush1.bf16.msra.mxu0 0
    %7728 = vmatprep.subr.bf16.mxu0 0
    %7729 = vmatpush1.bf16.msra.mxu0 0
    %7730 = vmatprep.subr.bf16.mxu0 0
    %7731 = vmatpush1.bf16.msra.mxu0 0
    %7732 = vmatprep.subr.bf16.mxu0 0
    %7733 = vmatpush1.bf16.msra.mxu0 0
    %7734 = vmatprep.subr.bf16.mxu0 0
    %7735 = vmatpush1.bf16.msra.mxu0 0
    %7736 = vmatprep.subr.bf16.mxu0 0
    %7737 = vmatpush1.bf16.msra.mxu0 0
    %7738 = vmatprep.mubr.bf16.mxu0 0
    %7739 = vmatmul.mubr.bf16.gmra.mrb[0].mxu0 %v7041
    %v7740 = vpop.f32.mrb[0].mxu0
    %v7741 = vadd.f32 0.0, %v7740
    %v7742 = vpop.f32.mrb[0].mxu0
    %v7743 = vadd.f32 0.0, %v7742
    %v7744 = vpop.f32.mrb[0].mxu0
    %v7745 = vpop.f32.mrb[0].mxu0
    %7746 = vdwg.mxu0
    %7747 = vmatprep.subr.bf16.mxu0 %v6640
    %7748 = vmatpush1.bf16.msra.mxu0 %v6639
    %7749 = vmatprep.subr.bf16.mxu0 %v7092
    %7750 = vmatpush1.bf16.msra.mxu0 %v7089
    %7751 = vmatprep.subr.bf16.mxu0 0
    %7752 = vmatpush1.bf16.msra.mxu0 0
    %7753 = vmatprep.subr.bf16.mxu0 0
    %7754 = vmatpush1.bf16.msra.mxu0 0
    %7755 = vmatprep.subr.bf16.mxu0 0
    %7756 = vmatpush1.bf16.msra.mxu0 0
    %7757 = vmatprep.subr.bf16.mxu0 0
    %7758 = vmatpush1.bf16.msra.mxu0 0
    %7759 = vmatprep.subr.bf16.mxu0 0
    %7760 = vmatpush1.bf16.msra.mxu0 0
    %7761 = vmatprep.subr.bf16.mxu0 0
    %7762 = vmatpush1.bf16.msra.mxu0 0
    %7763 = vmatprep.subr.bf16.mxu0 0
    %7764 = vmatpush1.bf16.msra.mxu0 0
    %7765 = vmatprep.subr.bf16.mxu0 0
    %7766 = vmatpush1.bf16.msra.mxu0 0
    %7767 = vmatprep.subr.bf16.mxu0 0
    %7768 = vmatpush1.bf16.msra.mxu0 0
    %7769 = vmatprep.subr.bf16.mxu0 0
    %7770 = vmatpush1.bf16.msra.mxu0 0
    %7771 = vmatprep.subr.bf16.mxu0 0
    %7772 = vmatpush1.bf16.msra.mxu0 0
    %7773 = vmatprep.subr.bf16.mxu0 0
    %7774 = vmatpush1.bf16.msra.mxu0 0
    %7775 = vmatprep.subr.bf16.mxu0 0
    %7776 = vmatpush1.bf16.msra.mxu0 0
    %7777 = vmatprep.subr.bf16.mxu0 0
    %7778 = vmatpush1.bf16.msra.mxu0 0
    %7779 = vmatprep.mubr.bf16.mxu0 0
    %7780 = vmatmul.mubr.bf16.gmra.mrb[0].mxu0 %v7041
    %v7781 = vpop.f32.mrb[0].mxu0
    %v7782 = vadd.f32 0.0, %v7781
    %v7783 = vpop.f32.mrb[0].mxu0
    %v7784 = vadd.f32 0.0, %v7783
    %v7785 = vpop.f32.mrb[0].mxu0
    %v7786 = vpop.f32.mrb[0].mxu0
    %7787 = vdwg.mxu0
    %7788 = vmatprep.subr.bf16.mxu0 %v6642
    %7789 = vmatpush1.bf16.msra.mxu0 %v6641
    %7790 = vmatprep.subr.bf16.mxu0 %v7098
    %7791 = vmatpush1.bf16.msra.mxu0 %v7095
    %7792 = vmatprep.subr.bf16.mxu0 0
    %7793 = vmatpush1.bf16.msra.mxu0 0
    %7794 = vmatprep.subr.bf16.mxu0 0
    %7795 = vmatpush1.bf16.msra.mxu0 0
    %7796 = vmatprep.subr.bf16.mxu0 0
    %7797 = vmatpush1.bf16.msra.mxu0 0
    %7798 = vmatprep.subr.bf16.mxu0 0
    %7799 = vmatpush1.bf16.msra.mxu0 0
    %7800 = vmatprep.subr.bf16.mxu0 0
    %7801 = vmatpush1.bf16.msra.mxu0 0
    %7802 = vmatprep.subr.bf16.mxu0 0
    %7803 = vmatpush1.bf16.msra.mxu0 0
    %7804 = vmatprep.subr.bf16.mxu0 0
    %7805 = vmatpush1.bf16.msra.mxu0 0
    %7806 = vmatprep.subr.bf16.mxu0 0
    %7807 = vmatpush1.bf16.msra.mxu0 0
    %7808 = vmatprep.subr.bf16.mxu0 0
    %7809 = vmatpush1.bf16.msra.mxu0 0
    %7810 = vmatprep.subr.bf16.mxu0 0
    %7811 = vmatpush1.bf16.msra.mxu0 0
    %7812 = vmatprep.subr.bf16.mxu0 0
    %7813 = vmatpush1.bf16.msra.mxu0 0
    %7814 = vmatprep.subr.bf16.mxu0 0
    %7815 = vmatpush1.bf16.msra.mxu0 0
    %7816 = vmatprep.subr.bf16.mxu0 0
    %7817 = vmatpush1.bf16.msra.mxu0 0
    %7818 = vmatprep.subr.bf16.mxu0 0
    %7819 = vmatpush1.bf16.msra.mxu0 0
    %7820 = vmatprep.mubr.bf16.mxu0 0
    %7821 = vmatmul.mubr.bf16.gmra.mrb[0].mxu0 %v7041
    %v7822 = vpop.f32.mrb[0].mxu0
    %v7823 = vadd.f32 0.0, %v7822
    %v7824 = vpop.f32.mrb[0].mxu0
    %v7825 = vadd.f32 0.0, %v7824
    %v7826 = vpop.f32.mrb[0].mxu0
    %v7827 = vpop.f32.mrb[0].mxu0
    %7828 = vdwg.mxu0
    %7829 = vmatprep.subr.bf16.mxu0 %v6644
    %7830 = vmatpush1.bf16.msra.mxu0 %v6643
    %7831 = vmatprep.subr.bf16.mxu0 %v7104
    %7832 = vmatpush1.bf16.msra.mxu0 %v7101
    %7833 = vmatprep.subr.bf16.mxu0 0
    %7834 = vmatpush1.bf16.msra.mxu0 0
    %7835 = vmatprep.subr.bf16.mxu0 0
    %7836 = vmatpush1.bf16.msra.mxu0 0
    %7837 = vmatprep.subr.bf16.mxu0 0
    %7838 = vmatpush1.bf16.msra.mxu0 0
    %7839 = vmatprep.subr.bf16.mxu0 0
    %7840 = vmatpush1.bf16.msra.mxu0 0
    %7841 = vmatprep.subr.bf16.mxu0 0
    %7842 = vmatpush1.bf16.msra.mxu0 0
    %7843 = vmatprep.subr.bf16.mxu0 0
    %7844 = vmatpush1.bf16.msra.mxu0 0
    %7845 = vmatprep.subr.bf16.mxu0 0
    %7846 = vmatpush1.bf16.msra.mxu0 0
    %7847 = vmatprep.subr.bf16.mxu0 0
    %7848 = vmatpush1.bf16.msra.mxu0 0
    %7849 = vmatprep.subr.bf16.mxu0 0
    %7850 = vmatpush1.bf16.msra.mxu0 0
    %7851 = vmatprep.subr.bf16.mxu0 0
    %7852 = vmatpush1.bf16.msra.mxu0 0
    %7853 = vmatprep.subr.bf16.mxu0 0
    %7854 = vmatpush1.bf16.msra.mxu0 0
    %7855 = vmatprep.subr.bf16.mxu0 0
    %7856 = vmatpush1.bf16.msra.mxu0 0
    %7857 = vmatprep.subr.bf16.mxu0 0
    %7858 = vmatpush1.bf16.msra.mxu0 0
    %7859 = vmatprep.subr.bf16.mxu0 0
    %7860 = vmatpush1.bf16.msra.mxu0 0
    %7861 = vmatprep.mubr.bf16.mxu0 0
    %7862 = vmatmul.mubr.bf16.gmra.mrb[0].mxu0 %v7041
    %v7863 = vpop.f32.mrb[0].mxu0
    %v7864 = vadd.f32 0.0, %v7863
    %v7865 = vpop.f32.mrb[0].mxu0
    %v7866 = vadd.f32 0.0, %v7865
    %v7867 = vpop.f32.mrb[0].mxu0
    %v7868 = vpop.f32.mrb[0].mxu0
    %7869 = vdwg.mxu0
    %7870 = vmatprep.subr.bf16.mxu0 %v6646
    %7871 = vmatpush1.bf16.msra.mxu0 %v6645
    %7872 = vmatprep.subr.bf16.mxu0 %v7110
    %7873 = vmatpush1.bf16.msra.mxu0 %v7107
    %7874 = vmatprep.subr.bf16.mxu0 0
    %7875 = vmatpush1.bf16.msra.mxu0 0
    %7876 = vmatprep.subr.bf16.mxu0 0
    %7877 = vmatpush1.bf16.msra.mxu0 0
    %7878 = vmatprep.subr.bf16.mxu0 0
    %7879 = vmatpush1.bf16.msra.mxu0 0
    %7880 = vmatprep.subr.bf16.mxu0 0
    %7881 = vmatpush1.bf16.msra.mxu0 0
    %7882 = vmatprep.subr.bf16.mxu0 0
    %7883 = vmatpush1.bf16.msra.mxu0 0
    %7884 = vmatprep.subr.bf16.mxu0 0
    %7885 = vmatpush1.bf16.msra.mxu0 0
    %7886 = vmatprep.subr.bf16.mxu0 0
    %7887 = vmatpush1.bf16.msra.mxu0 0
    %7888 = vmatprep.subr.bf16.mxu0 0
    %7889 = vmatpush1.bf16.msra.mxu0 0
    %7890 = vmatprep.subr.bf16.mxu0 0
    %7891 = vmatpush1.bf16.msra.mxu0 0
    %7892 = vmatprep.subr.bf16.mxu0 0
    %7893 = vmatpush1.bf16.msra.mxu0 0
    %7894 = vmatprep.subr.bf16.mxu0 0
    %7895 = vmatpush1.bf16.msra.mxu0 0
    %7896 = vmatprep.subr.bf16.mxu0 0
    %7897 = vmatpush1.bf16.msra.mxu0 0
    %7898 = vmatprep.subr.bf16.mxu0 0
    %7899 = vmatpush1.bf16.msra.mxu0 0
    %7900 = vmatprep.subr.bf16.mxu0 0
    %7901 = vmatpush1.bf16.msra.mxu0 0
    %7902 = vmatprep.mubr.bf16.mxu0 0
    %7903 = vmatmul.mubr.bf16.gmra.mrb[0].mxu0 %v7041
    %v7904 = vpop.f32.mrb[0].mxu0
    %v7905 = vadd.f32 0.0, %v7904
    %v7906 = vpop.f32.mrb[0].mxu0
    %v7907 = vadd.f32 0.0, %v7906
    %v7908 = vpop.f32.mrb[0].mxu0
    %v7909 = vpop.f32.mrb[0].mxu0
    %7910 = vdwg.mxu0
    %7911 = vmatprep.subr.bf16.mxu0 %v6648
    %7912 = vmatpush1.bf16.msra.mxu0 %v6647
    %7913 = vmatprep.subr.bf16.mxu0 %v7116
    %7914 = vmatpush1.bf16.msra.mxu0 %v7113
    %7915 = vmatprep.subr.bf16.mxu0 0
    %7916 = vmatpush1.bf16.msra.mxu0 0
    %7917 = vmatprep.subr.bf16.mxu0 0
    %7918 = vmatpush1.bf16.msra.mxu0 0
    %7919 = vmatprep.subr.bf16.mxu0 0
    %7920 = vmatpush1.bf16.msra.mxu0 0
    %7921 = vmatprep.subr.bf16.mxu0 0
    %7922 = vmatpush1.bf16.msra.mxu0 0
    %7923 = vmatprep.subr.bf16.mxu0 0
    %7924 = vmatpush1.bf16.msra.mxu0 0
    %7925 = vmatprep.subr.bf16.mxu0 0
    %7926 = vmatpush1.bf16.msra.mxu0 0
    %7927 = vmatprep.subr.bf16.mxu0 0
    %7928 = vmatpush1.bf16.msra.mxu0 0
    %7929 = vmatprep.subr.bf16.mxu0 0
    %7930 = vmatpush1.bf16.msra.mxu0 0
    %7931 = vmatprep.subr.bf16.mxu0 0
    %7932 = vmatpush1.bf16.msra.mxu0 0
    %7933 = vmatprep.subr.bf16.mxu0 0
    %7934 = vmatpush1.bf16.msra.mxu0 0
    %7935 = vmatprep.subr.bf16.mxu0 0
    %7936 = vmatpush1.bf16.msra.mxu0 0
    %7937 = vmatprep.subr.bf16.mxu0 0
    %7938 = vmatpush1.bf16.msra.mxu0 0
    %7939 = vmatprep.subr.bf16.mxu0 0
    %7940 = vmatpush1.bf16.msra.mxu0 0
    %7941 = vmatprep.subr.bf16.mxu0 0
    %7942 = vmatpush1.bf16.msra.mxu0 0
    %7943 = vmatprep.mubr.bf16.mxu0 0
    %7944 = vmatmul.mubr.bf16.gmra.mrb[0].mxu0 %v7041
    %v7945 = vpop.f32.mrb[0].mxu0
    %v7946 = vadd.f32 0.0, %v7945
    %v7947 = vpop.f32.mrb[0].mxu0
    %v7948 = vadd.f32 0.0, %v7947
    %v7949 = vpop.f32.mrb[0].mxu0
    %v7950 = vpop.f32.mrb[0].mxu0
    %7951 = vdwg.mxu0
    %7952 = vmatprep.subr.bf16.mxu0 %v6650
    %7953 = vmatpush1.bf16.msra.mxu0 %v6649
    %7954 = vmatprep.subr.bf16.mxu0 %v7122
    %7955 = vmatpush1.bf16.msra.mxu0 %v7119
    %7956 = vmatprep.subr.bf16.mxu0 0
    %7957 = vmatpush1.bf16.msra.mxu0 0
    %7958 = vmatprep.subr.bf16.mxu0 0
    %7959 = vmatpush1.bf16.msra.mxu0 0
    %7960 = vmatprep.subr.bf16.mxu0 0
    %7961 = vmatpush1.bf16.msra.mxu0 0
    %7962 = vmatprep.subr.bf16.mxu0 0
    %7963 = vmatpush1.bf16.msra.mxu0 0
    %7964 = vmatprep.subr.bf16.mxu0 0
    %7965 = vmatpush1.bf16.msra.mxu0 0
    %7966 = vmatprep.subr.bf16.mxu0 0
    %7967 = vmatpush1.bf16.msra.mxu0 0
    %7968 = vmatprep.subr.bf16.mxu0 0
    %7969 = vmatpush1.bf16.msra.mxu0 0
    %7970 = vmatprep.subr.bf16.mxu0 0
    %7971 = vmatpush1.bf16.msra.mxu0 0
    %7972 = vmatprep.subr.bf16.mxu0 0
    %7973 = vmatpush1.bf16.msra.mxu0 0
    %7974 = vmatprep.subr.bf16.mxu0 0
    %7975 = vmatpush1.bf16.msra.mxu0 0
    %7976 = vmatprep.subr.bf16.mxu0 0
    %7977 = vmatpush1.bf16.msra.mxu0 0
    %7978 = vmatprep.subr.bf16.mxu0 0
    %7979 = vmatpush1.bf16.msra.mxu0 0
    %7980 = vmatprep.subr.bf16.mxu0 0
    %7981 = vmatpush1.bf16.msra.mxu0 0
    %7982 = vmatprep.subr.bf16.mxu0 0
    %7983 = vmatpush1.bf16.msra.mxu0 0
    %7984 = vmatprep.mubr.bf16.mxu0 0
    %7985 = vmatmul.mubr.bf16.gmra.mrb[0].mxu0 %v7041
    %v7986 = vpop.f32.mrb[0].mxu0
    %v7987 = vadd.f32 0.0, %v7986
    %v7988 = vpop.f32.mrb[0].mxu0
    %v7989 = vadd.f32 0.0, %v7988
    %v7990 = vpop.f32.mrb[0].mxu0
    %v7991 = vpop.f32.mrb[0].mxu0
    %7992 = vdwg.mxu0
    %7993 = vmatprep.subr.bf16.mxu0 %v6652
    %7994 = vmatpush1.bf16.msra.mxu0 %v6651
    %7995 = vmatprep.subr.bf16.mxu0 %v7128
    %7996 = vmatpush1.bf16.msra.mxu0 %v7125
    %7997 = vmatprep.subr.bf16.mxu0 0
    %7998 = vmatpush1.bf16.msra.mxu0 0
    %7999 = vmatprep.subr.bf16.mxu0 0
    %8000 = vmatpush1.bf16.msra.mxu0 0
    %8001 = vmatprep.subr.bf16.mxu0 0
    %8002 = vmatpush1.bf16.msra.mxu0 0
    %8003 = vmatprep.subr.bf16.mxu0 0
    %8004 = vmatpush1.bf16.msra.mxu0 0
    %8005 = vmatprep.subr.bf16.mxu0 0
    %8006 = vmatpush1.bf16.msra.mxu0 0
    %8007 = vmatprep.subr.bf16.mxu0 0
    %8008 = vmatpush1.bf16.msra.mxu0 0
    %8009 = vmatprep.subr.bf16.mxu0 0
    %8010 = vmatpush1.bf16.msra.mxu0 0
    %8011 = vmatprep.subr.bf16.mxu0 0
    %8012 = vmatpush1.bf16.msra.mxu0 0
    %8013 = vmatprep.subr.bf16.mxu0 0
    %8014 = vmatpush1.bf16.msra.mxu0 0
    %8015 = vmatprep.subr.bf16.mxu0 0
    %8016 = vmatpush1.bf16.msra.mxu0 0
    %8017 = vmatprep.subr.bf16.mxu0 0
    %8018 = vmatpush1.bf16.msra.mxu0 0
    %8019 = vmatprep.subr.bf16.mxu0 0
    %8020 = vmatpush1.bf16.msra.mxu0 0
    %8021 = vmatprep.subr.bf16.mxu0 0
    %8022 = vmatpush1.bf16.msra.mxu0 0
    %8023 = vmatprep.subr.bf16.mxu0 0
    %8024 = vmatpush1.bf16.msra.mxu0 0
    %8025 = vmatprep.mubr.bf16.mxu0 0
    %8026 = vmatmul.mubr.bf16.gmra.mrb[0].mxu0 %v7041
    %v8027 = vpop.f32.mrb[0].mxu0
    %v8028 = vadd.f32 0.0, %v8027
    %v8029 = vpop.f32.mrb[0].mxu0
    %v8030 = vadd.f32 0.0, %v8029
    %v8031 = vpop.f32.mrb[0].mxu0
    %v8032 = vpop.f32.mrb[0].mxu0
    %8033 = vdwg.mxu0
    %8034 = vmatprep.subr.bf16.mxu0 %v6654
    %8035 = vmatpush1.bf16.msra.mxu0 %v6653
    %8036 = vmatprep.subr.bf16.mxu0 %v7134
    %8037 = vmatpush1.bf16.msra.mxu0 %v7131
    %8038 = vmatprep.subr.bf16.mxu0 0
    %8039 = vmatpush1.bf16.msra.mxu0 0
    %8040 = vmatprep.subr.bf16.mxu0 0
    %8041 = vmatpush1.bf16.msra.mxu0 0
    %8042 = vmatprep.subr.bf16.mxu0 0
    %8043 = vmatpush1.bf16.msra.mxu0 0
    %8044 = vmatprep.subr.bf16.mxu0 0
    %8045 = vmatpush1.bf16.msra.mxu0 0
    %8046 = vmatprep.subr.bf16.mxu0 0
    %8047 = vmatpush1.bf16.msra.mxu0 0
    %8048 = vmatprep.subr.bf16.mxu0 0
    %8049 = vmatpush1.bf16.msra.mxu0 0
    %8050 = vmatprep.subr.bf16.mxu0 0
    %8051 = vmatpush1.bf16.msra.mxu0 0
    %8052 = vmatprep.subr.bf16.mxu0 0
    %8053 = vmatpush1.bf16.msra.mxu0 0
    %8054 = vmatprep.subr.bf16.mxu0 0
    %8055 = vmatpush1.bf16.msra.mxu0 0
    %8056 = vmatprep.subr.bf16.mxu0 0
    %8057 = vmatpush1.bf16.msra.mxu0 0
    %8058 = vmatprep.subr.bf16.mxu0 0
    %8059 = vmatpush1.bf16.msra.mxu0 0
    %8060 = vmatprep.subr.bf16.mxu0 0
    %8061 = vmatpush1.bf16.msra.mxu0 0
    %8062 = vmatprep.subr.bf16.mxu0 0
    %8063 = vmatpush1.bf16.msra.mxu0 0
    %8064 = vmatprep.subr.bf16.mxu0 0
    %8065 = vmatpush1.bf16.msra.mxu0 0
    %8066 = vmatprep.mubr.bf16.mxu0 0
    %8067 = vmatmul.mubr.bf16.gmra.mrb[0].mxu0 %v7041
    %v8068 = vpop.f32.mrb[0].mxu0
    %v8069 = vadd.f32 0.0, %v8068
    %v8070 = vpop.f32.mrb[0].mxu0
    %v8071 = vadd.f32 0.0, %v8070
    %v8072 = vpop.f32.mrb[0].mxu0
    %v8073 = vpop.f32.mrb[0].mxu0
    %8074 = vdwg.mxu0
    %8075 = vmatprep.subr.bf16.mxu0 %v6656
    %8076 = vmatpush1.bf16.msra.mxu0 %v6655
    %8077 = vmatprep.subr.bf16.mxu0 %v7140
    %8078 = vmatpush1.bf16.msra.mxu0 %v7137
    %8079 = vmatprep.subr.bf16.mxu0 0
    %8080 = vmatpush1.bf16.msra.mxu0 0
    %8081 = vmatprep.subr.bf16.mxu0 0
    %8082 = vmatpush1.bf16.msra.mxu0 0
    %8083 = vmatprep.subr.bf16.mxu0 0
    %8084 = vmatpush1.bf16.msra.mxu0 0
    %8085 = vmatprep.subr.bf16.mxu0 0
    %8086 = vmatpush1.bf16.msra.mxu0 0
    %8087 = vmatprep.subr.bf16.mxu0 0
    %8088 = vmatpush1.bf16.msra.mxu0 0
    %8089 = vmatprep.subr.bf16.mxu0 0
    %8090 = vmatpush1.bf16.msra.mxu0 0
    %8091 = vmatprep.subr.bf16.mxu0 0
    %8092 = vmatpush1.bf16.msra.mxu0 0
    %8093 = vmatprep.subr.bf16.mxu0 0
    %8094 = vmatpush1.bf16.msra.mxu0 0
    %8095 = vmatprep.subr.bf16.mxu0 0
    %8096 = vmatpush1.bf16.msra.mxu0 0
    %8097 = vmatprep.subr.bf16.mxu0 0
    %8098 = vmatpush1.bf16.msra.mxu0 0
    %8099 = vmatprep.subr.bf16.mxu0 0
    %8100 = vmatpush1.bf16.msra.mxu0 0
    %8101 = vmatprep.subr.bf16.mxu0 0
    %8102 = vmatpush1.bf16.msra.mxu0 0
    %8103 = vmatprep.subr.bf16.mxu0 0
    %8104 = vmatpush1.bf16.msra.mxu0 0
    %8105 = vmatprep.subr.bf16.mxu0 0
    %8106 = vmatpush1.bf16.msra.mxu0 0
    %8107 = vmatprep.mubr.bf16.mxu0 0
    %8108 = vmatmul.mubr.bf16.gmra.mrb[0].mxu0 %v7041
    %v8109 = vpop.f32.mrb[0].mxu0
    %v8110 = vadd.f32 0.0, %v8109
    %v8111 = vpop.f32.mrb[0].mxu0
    %v8112 = vadd.f32 0.0, %v8111
    %v8113 = vpop.f32.mrb[0].mxu0
    %v8114 = vpop.f32.mrb[0].mxu0
    %8115 = vdwg.mxu0
    %8116 = vmatprep.subr.bf16.mxu0 %v6658
    %8117 = vmatpush1.bf16.msra.mxu0 %v6657
    %8118 = vmatprep.subr.bf16.mxu0 %v7146
    %8119 = vmatpush1.bf16.msra.mxu0 %v7143
    %8120 = vmatprep.subr.bf16.mxu0 0
    %8121 = vmatpush1.bf16.msra.mxu0 0
    %8122 = vmatprep.subr.bf16.mxu0 0
    %8123 = vmatpush1.bf16.msra.mxu0 0
    %8124 = vmatprep.subr.bf16.mxu0 0
    %8125 = vmatpush1.bf16.msra.mxu0 0
    %8126 = vmatprep.subr.bf16.mxu0 0
    %8127 = vmatpush1.bf16.msra.mxu0 0
    %8128 = vmatprep.subr.bf16.mxu0 0
    %8129 = vmatpush1.bf16.msra.mxu0 0
    %8130 = vmatprep.subr.bf16.mxu0 0
    %8131 = vmatpush1.bf16.msra.mxu0 0
    %8132 = vmatprep.subr.bf16.mxu0 0
    %8133 = vmatpush1.bf16.msra.mxu0 0
    %8134 = vmatprep.subr.bf16.mxu0 0
    %8135 = vmatpush1.bf16.msra.mxu0 0
    %8136 = vmatprep.subr.bf16.mxu0 0
    %8137 = vmatpush1.bf16.msra.mxu0 0
    %8138 = vmatprep.subr.bf16.mxu0 0
    %8139 = vmatpush1.bf16.msra.mxu0 0
    %8140 = vmatprep.subr.bf16.mxu0 0
    %8141 = vmatpush1.bf16.msra.mxu0 0
    %8142 = vmatprep.subr.bf16.mxu0 0
    %8143 = vmatpush1.bf16.msra.mxu0 0
    %8144 = vmatprep.subr.bf16.mxu0 0
    %8145 = vmatpush1.bf16.msra.mxu0 0
    %8146 = vmatprep.subr.bf16.mxu0 0
    %8147 = vmatpush1.bf16.msra.mxu0 0
    %8148 = vmatprep.mubr.bf16.mxu0 0
    %8149 = vmatmul.mubr.bf16.gmra.mrb[0].mxu0 %v7041
    %v8150 = vpop.f32.mrb[0].mxu0
    %v8151 = vadd.f32 0.0, %v8150
    %v8152 = vpop.f32.mrb[0].mxu0
    %v8153 = vadd.f32 0.0, %v8152
    %v8154 = vpop.f32.mrb[0].mxu0
    %v8155 = vpop.f32.mrb[0].mxu0
    %8156 = vdwg.mxu0
    %8157 = vmatprep.subr.bf16.mxu0 %v6660
    %8158 = vmatpush1.bf16.msra.mxu0 %v6659
    %8159 = vmatprep.subr.bf16.mxu0 %v7152
    %8160 = vmatpush1.bf16.msra.mxu0 %v7149
    %8161 = vmatprep.subr.bf16.mxu0 0
    %8162 = vmatpush1.bf16.msra.mxu0 0
    %8163 = vmatprep.subr.bf16.mxu0 0
    %8164 = vmatpush1.bf16.msra.mxu0 0
    %8165 = vmatprep.subr.bf16.mxu0 0
    %8166 = vmatpush1.bf16.msra.mxu0 0
    %8167 = vmatprep.subr.bf16.mxu0 0
    %8168 = vmatpush1.bf16.msra.mxu0 0
    %8169 = vmatprep.subr.bf16.mxu0 0
    %8170 = vmatpush1.bf16.msra.mxu0 0
    %8171 = vmatprep.subr.bf16.mxu0 0
    %8172 = vmatpush1.bf16.msra.mxu0 0
    %8173 = vmatprep.subr.bf16.mxu0 0
    %8174 = vmatpush1.bf16.msra.mxu0 0
    %8175 = vmatprep.subr.bf16.mxu0 0
    %8176 = vmatpush1.bf16.msra.mxu0 0
    %8177 = vmatprep.subr.bf16.mxu0 0
    %8178 = vmatpush1.bf16.msra.mxu0 0
    %8179 = vmatprep.subr.bf16.mxu0 0
    %8180 = vmatpush1.bf16.msra.mxu0 0
    %8181 = vmatprep.subr.bf16.mxu0 0
    %8182 = vmatpush1.bf16.msra.mxu0 0
    %8183 = vmatprep.subr.bf16.mxu0 0
    %8184 = vmatpush1.bf16.msra.mxu0 0
    %8185 = vmatprep.subr.bf16.mxu0 0
    %8186 = vmatpush1.bf16.msra.mxu0 0
    %8187 = vmatprep.subr.bf16.mxu0 0
    %8188 = vmatpush1.bf16.msra.mxu0 0
    %8189 = vmatprep.mubr.bf16.mxu0 0
    %8190 = vmatmul.mubr.bf16.gmra.mrb[0].mxu0 %v7041
    %v8191 = vpop.f32.mrb[0].mxu0
    %v8192 = vadd.f32 0.0, %v8191
    %v8193 = vpop.f32.mrb[0].mxu0
    %v8194 = vadd.f32 0.0, %v8193
    %v8195 = vpop.f32.mrb[0].mxu0
    %v8196 = vpop.f32.mrb[0].mxu0
    %8197 = vdwg.mxu0
    %8198 = vmatprep.subr.bf16.mxu0 %v6662
    %8199 = vmatpush1.bf16.msra.mxu0 %v6661
    %8200 = vmatprep.subr.bf16.mxu0 %v7158
    %8201 = vmatpush1.bf16.msra.mxu0 %v7155
    %8202 = vmatprep.subr.bf16.mxu0 0
    %8203 = vmatpush1.bf16.msra.mxu0 0
    %8204 = vmatprep.subr.bf16.mxu0 0
    %8205 = vmatpush1.bf16.msra.mxu0 0
    %8206 = vmatprep.subr.bf16.mxu0 0
    %8207 = vmatpush1.bf16.msra.mxu0 0
    %8208 = vmatprep.subr.bf16.mxu0 0
    %8209 = vmatpush1.bf16.msra.mxu0 0
    %8210 = vmatprep.subr.bf16.mxu0 0
    %8211 = vmatpush1.bf16.msra.mxu0 0
    %8212 = vmatprep.subr.bf16.mxu0 0
    %8213 = vmatpush1.bf16.msra.mxu0 0
    %8214 = vmatprep.subr.bf16.mxu0 0
    %8215 = vmatpush1.bf16.msra.mxu0 0
    %8216 = vmatprep.subr.bf16.mxu0 0
    %8217 = vmatpush1.bf16.msra.mxu0 0
    %8218 = vmatprep.subr.bf16.mxu0 0
    %8219 = vmatpush1.bf16.msra.mxu0 0
    %8220 = vmatprep.subr.bf16.mxu0 0
    %8221 = vmatpush1.bf16.msra.mxu0 0
    %8222 = vmatprep.subr.bf16.mxu0 0
    %8223 = vmatpush1.bf16.msra.mxu0 0
    %8224 = vmatprep.subr.bf16.mxu0 0
    %8225 = vmatpush1.bf16.msra.mxu0 0
    %8226 = vmatprep.subr.bf16.mxu0 0
    %8227 = vmatpush1.bf16.msra.mxu0 0
    %8228 = vmatprep.subr.bf16.mxu0 0
    %8229 = vmatpush1.bf16.msra.mxu0 0
    %8230 = vmatprep.mubr.bf16.mxu0 0
    %8231 = vmatmul.mubr.bf16.gmra.mrb[0].mxu0 %v7041
    %v8232 = vpop.f32.mrb[0].mxu0
    %v8233 = vadd.f32 0.0, %v8232
    %v8234 = vpop.f32.mrb[0].mxu0
    %v8235 = vadd.f32 0.0, %v8234
    %v8236 = vpop.f32.mrb[0].mxu0
    %v8237 = vpop.f32.mrb[0].mxu0
    %8238 = vdwg.mxu0
    %8239 = vmatprep.subr.bf16.mxu0 %v6664
    %8240 = vmatpush1.bf16.msra.mxu0 %v6663
    %8241 = vmatprep.subr.bf16.mxu0 %v7164
    %8242 = vmatpush1.bf16.msra.mxu0 %v7161
    %8243 = vmatprep.subr.bf16.mxu0 0
    %8244 = vmatpush1.bf16.msra.mxu0 0
    %8245 = vmatprep.subr.bf16.mxu0 0
    %8246 = vmatpush1.bf16.msra.mxu0 0
    %8247 = vmatprep.subr.bf16.mxu0 0
    %8248 = vmatpush1.bf16.msra.mxu0 0
    %8249 = vmatprep.subr.bf16.mxu0 0
    %8250 = vmatpush1.bf16.msra.mxu0 0
    %8251 = vmatprep.subr.bf16.mxu0 0
    %8252 = vmatpush1.bf16.msra.mxu0 0
    %8253 = vmatprep.subr.bf16.mxu0 0
    %8254 = vmatpush1.bf16.msra.mxu0 0
    %8255 = vmatprep.subr.bf16.mxu0 0
    %8256 = vmatpush1.bf16.msra.mxu0 0
    %8257 = vmatprep.subr.bf16.mxu0 0
    %8258 = vmatpush1.bf16.msra.mxu0 0
    %8259 = vmatprep.subr.bf16.mxu0 0
    %8260 = vmatpush1.bf16.msra.mxu0 0
    %8261 = vmatprep.subr.bf16.mxu0 0
    %8262 = vmatpush1.bf16.msra.mxu0 0
    %8263 = vmatprep.subr.bf16.mxu0 0
    %8264 = vmatpush1.bf16.msra.mxu0 0
    %8265 = vmatprep.subr.bf16.mxu0 0
    %8266 = vmatpush1.bf16.msra.mxu0 0
    %8267 = vmatprep.subr.bf16.mxu0 0
    %8268 = vmatpush1.bf16.msra.mxu0 0
    %8269 = vmatprep.subr.bf16.mxu0 0
    %8270 = vmatpush1.bf16.msra.mxu0 0
    %8271 = vmatprep.mubr.bf16.mxu0 0
    %8272 = vmatmul.mubr.bf16.gmra.mrb[0].mxu0 %v7041
    %v8273 = vpop.f32.mrb[0].mxu0
    %v8274 = vadd.f32 0.0, %v8273
    %v8275 = vpop.f32.mrb[0].mxu0
    %v8276 = vadd.f32 0.0, %v8275
    %v8277 = vpop.f32.mrb[0].mxu0
    %v8278 = vpop.f32.mrb[0].mxu0
    %8279 = vdwg.mxu0
    %8280 = vmatprep.subr.bf16.mxu0 %v6666
    %8281 = vmatpush1.bf16.msra.mxu0 %v6665
    %8282 = vmatprep.subr.bf16.mxu0 %v7170
    %8283 = vmatpush1.bf16.msra.mxu0 %v7167
    %8284 = vmatprep.subr.bf16.mxu0 0
    %8285 = vmatpush1.bf16.msra.mxu0 0
    %8286 = vmatprep.subr.bf16.mxu0 0
    %8287 = vmatpush1.bf16.msra.mxu0 0
    %8288 = vmatprep.subr.bf16.mxu0 0
    %8289 = vmatpush1.bf16.msra.mxu0 0
    %8290 = vmatprep.subr.bf16.mxu0 0
    %8291 = vmatpush1.bf16.msra.mxu0 0
    %8292 = vmatprep.subr.bf16.mxu0 0
    %8293 = vmatpush1.bf16.msra.mxu0 0
    %8294 = vmatprep.subr.bf16.mxu0 0
    %8295 = vmatpush1.bf16.msra.mxu0 0
    %8296 = vmatprep.subr.bf16.mxu0 0
    %8297 = vmatpush1.bf16.msra.mxu0 0
    %8298 = vmatprep.subr.bf16.mxu0 0
    %8299 = vmatpush1.bf16.msra.mxu0 0
    %8300 = vmatprep.subr.bf16.mxu0 0
    %8301 = vmatpush1.bf16.msra.mxu0 0
    %8302 = vmatprep.subr.bf16.mxu0 0
    %8303 = vmatpush1.bf16.msra.mxu0 0
    %8304 = vmatprep.subr.bf16.mxu0 0
    %8305 = vmatpush1.bf16.msra.mxu0 0
    %8306 = vmatprep.subr.bf16.mxu0 0
    %8307 = vmatpush1.bf16.msra.mxu0 0
    %8308 = vmatprep.subr.bf16.mxu0 0
    %8309 = vmatpush1.bf16.msra.mxu0 0
    %8310 = vmatprep.subr.bf16.mxu0 0
    %8311 = vmatpush1.bf16.msra.mxu0 0
    %8312 = vmatprep.mubr.bf16.mxu0 0
    %8313 = vmatmul.mubr.bf16.gmra.mrb[0].mxu0 %v7041
    %v8314 = vpop.f32.mrb[0].mxu0
    %v8315 = vadd.f32 0.0, %v8314
    %v8316 = vpop.f32.mrb[0].mxu0
    %v8317 = vadd.f32 0.0, %v8316
    %v8318 = vpop.f32.mrb[0].mxu0
    %v8319 = vpop.f32.mrb[0].mxu0
    %8320 = vdwg.mxu0
    %8321 = vmatprep.subr.bf16.mxu0 %v6668
    %8322 = vmatpush1.bf16.msra.mxu0 %v6667
    %8323 = vmatprep.subr.bf16.mxu0 %v7176
    %8324 = vmatpush1.bf16.msra.mxu0 %v7173
    %8325 = vmatprep.subr.bf16.mxu0 0
    %8326 = vmatpush1.bf16.msra.mxu0 0
    %8327 = vmatprep.subr.bf16.mxu0 0
    %8328 = vmatpush1.bf16.msra.mxu0 0
    %8329 = vmatprep.subr.bf16.mxu0 0
    %8330 = vmatpush1.bf16.msra.mxu0 0
    %8331 = vmatprep.subr.bf16.mxu0 0
    %8332 = vmatpush1.bf16.msra.mxu0 0
    %8333 = vmatprep.subr.bf16.mxu0 0
    %8334 = vmatpush1.bf16.msra.mxu0 0
    %8335 = vmatprep.subr.bf16.mxu0 0
    %8336 = vmatpush1.bf16.msra.mxu0 0
    %8337 = vmatprep.subr.bf16.mxu0 0
    %8338 = vmatpush1.bf16.msra.mxu0 0
    %8339 = vmatprep.subr.bf16.mxu0 0
    %8340 = vmatpush1.bf16.msra.mxu0 0
    %8341 = vmatprep.subr.bf16.mxu0 0
    %8342 = vmatpush1.bf16.msra.mxu0 0
    %8343 = vmatprep.subr.bf16.mxu0 0
    %8344 = vmatpush1.bf16.msra.mxu0 0
    %8345 = vmatprep.subr.bf16.mxu0 0
    %8346 = vmatpush1.bf16.msra.mxu0 0
    %8347 = vmatprep.subr.bf16.mxu0 0
    %8348 = vmatpush1.bf16.msra.mxu0 0
    %8349 = vmatprep.subr.bf16.mxu0 0
    %8350 = vmatpush1.bf16.msra.mxu0 0
    %8351 = vmatprep.subr.bf16.mxu0 0
    %8352 = vmatpush1.bf16.msra.mxu0 0
    %8353 = vmatprep.mubr.bf16.mxu0 0
    %8354 = vmatmul.mubr.bf16.gmra.mrb[0].mxu0 %v7041
    %v8355 = vpop.f32.mrb[0].mxu0
    %v8356 = vadd.f32 0.0, %v8355
    %v8357 = vpop.f32.mrb[0].mxu0
    %v8358 = vadd.f32 0.0, %v8357
    %v8359 = vpop.f32.mrb[0].mxu0
    %v8360 = vpop.f32.mrb[0].mxu0
    %8361 = vdwg.mxu0
    %8362 = vmatprep.subr.bf16.mxu0 %v6670
    %8363 = vmatpush1.bf16.msra.mxu0 %v6669
    %8364 = vmatprep.subr.bf16.mxu0 %v7182
    %8365 = vmatpush1.bf16.msra.mxu0 %v7179
    %8366 = vmatprep.subr.bf16.mxu0 0
    %8367 = vmatpush1.bf16.msra.mxu0 0
    %8368 = vmatprep.subr.bf16.mxu0 0
    %8369 = vmatpush1.bf16.msra.mxu0 0
    %8370 = vmatprep.subr.bf16.mxu0 0
    %8371 = vmatpush1.bf16.msra.mxu0 0
    %8372 = vmatprep.subr.bf16.mxu0 0
    %8373 = vmatpush1.bf16.msra.mxu0 0
    %8374 = vmatprep.subr.bf16.mxu0 0
    %8375 = vmatpush1.bf16.msra.mxu0 0
    %8376 = vmatprep.subr.bf16.mxu0 0
    %8377 = vmatpush1.bf16.msra.mxu0 0
    %8378 = vmatprep.subr.bf16.mxu0 0
    %8379 = vmatpush1.bf16.msra.mxu0 0
    %8380 = vmatprep.subr.bf16.mxu0 0
    %8381 = vmatpush1.bf16.msra.mxu0 0
    %8382 = vmatprep.subr.bf16.mxu0 0
    %8383 = vmatpush1.bf16.msra.mxu0 0
    %8384 = vmatprep.subr.bf16.mxu0 0
    %8385 = vmatpush1.bf16.msra.mxu0 0
    %8386 = vmatprep.subr.bf16.mxu0 0
    %8387 = vmatpush1.bf16.msra.mxu0 0
    %8388 = vmatprep.subr.bf16.mxu0 0
    %8389 = vmatpush1.bf16.msra.mxu0 0
    %8390 = vmatprep.subr.bf16.mxu0 0
    %8391 = vmatpush1.bf16.msra.mxu0 0
    %8392 = vmatprep.subr.bf16.mxu0 0
    %8393 = vmatpush1.bf16.msra.mxu0 0
    %8394 = vmatprep.mubr.bf16.mxu0 0
    %8395 = vmatmul.mubr.bf16.gmra.mrb[0].mxu0 %v7041
    %v8396 = vpop.f32.mrb[0].mxu0
    %v8397 = vadd.f32 0.0, %v8396
    %v8398 = vpop.f32.mrb[0].mxu0
    %v8399 = vadd.f32 0.0, %v8398
    %v8400 = vpop.f32.mrb[0].mxu0
    %v8401 = vpop.f32.mrb[0].mxu0
    %8402 = vdwg.mxu0
    %8403 = vmatprep.subr.bf16.mxu0 %v6672
    %8404 = vmatpush1.bf16.msra.mxu0 %v6671
    %8405 = vmatprep.subr.bf16.mxu0 %v7188
    %8406 = vmatpush1.bf16.msra.mxu0 %v7185
    %8407 = vmatprep.subr.bf16.mxu0 0
    %8408 = vmatpush1.bf16.msra.mxu0 0
    %8409 = vmatprep.subr.bf16.mxu0 0
    %8410 = vmatpush1.bf16.msra.mxu0 0
    %8411 = vmatprep.subr.bf16.mxu0 0
    %8412 = vmatpush1.bf16.msra.mxu0 0
    %8413 = vmatprep.subr.bf16.mxu0 0
    %8414 = vmatpush1.bf16.msra.mxu0 0
    %8415 = vmatprep.subr.bf16.mxu0 0
    %8416 = vmatpush1.bf16.msra.mxu0 0
    %8417 = vmatprep.subr.bf16.mxu0 0
    %8418 = vmatpush1.bf16.msra.mxu0 0
    %8419 = vmatprep.subr.bf16.mxu0 0
    %8420 = vmatpush1.bf16.msra.mxu0 0
    %8421 = vmatprep.subr.bf16.mxu0 0
    %8422 = vmatpush1.bf16.msra.mxu0 0
    %8423 = vmatprep.subr.bf16.mxu0 0
    %8424 = vmatpush1.bf16.msra.mxu0 0
    %8425 = vmatprep.subr.bf16.mxu0 0
    %8426 = vmatpush1.bf16.msra.mxu0 0
    %8427 = vmatprep.subr.bf16.mxu0 0
    %8428 = vmatpush1.bf16.msra.mxu0 0
    %8429 = vmatprep.subr.bf16.mxu0 0
    %8430 = vmatpush1.bf16.msra.mxu0 0
    %8431 = vmatprep.subr.bf16.mxu0 0
    %8432 = vmatpush1.bf16.msra.mxu0 0
    %8433 = vmatprep.subr.bf16.mxu0 0
    %8434 = vmatpush1.bf16.msra.mxu0 0
    %8435 = vmatprep.mubr.bf16.mxu0 0
    %8436 = vmatmul.mubr.bf16.gmra.mrb[0].mxu0 %v7041
    %v8437 = vpop.f32.mrb[0].mxu0
    %v8438 = vadd.f32 0.0, %v8437
    %v8439 = vpop.f32.mrb[0].mxu0
    %v8440 = vadd.f32 0.0, %v8439
    %v8441 = vpop.f32.mrb[0].mxu0
    %v8442 = vpop.f32.mrb[0].mxu0
    %8443 = vdwg.mxu0
    %8444 = vmatprep.subr.bf16.mxu0 %v6674
    %8445 = vmatpush1.bf16.msra.mxu0 %v6673
    %8446 = vmatprep.subr.bf16.mxu0 %v7194
    %8447 = vmatpush1.bf16.msra.mxu0 %v7191
    %8448 = vmatprep.subr.bf16.mxu0 0
    %8449 = vmatpush1.bf16.msra.mxu0 0
    %8450 = vmatprep.subr.bf16.mxu0 0
    %8451 = vmatpush1.bf16.msra.mxu0 0
    %8452 = vmatprep.subr.bf16.mxu0 0
    %8453 = vmatpush1.bf16.msra.mxu0 0
    %8454 = vmatprep.subr.bf16.mxu0 0
    %8455 = vmatpush1.bf16.msra.mxu0 0
    %8456 = vmatprep.subr.bf16.mxu0 0
    %8457 = vmatpush1.bf16.msra.mxu0 0
    %8458 = vmatprep.subr.bf16.mxu0 0
    %8459 = vmatpush1.bf16.msra.mxu0 0
    %8460 = vmatprep.subr.bf16.mxu0 0
    %8461 = vmatpush1.bf16.msra.mxu0 0
    %8462 = vmatprep.subr.bf16.mxu0 0
    %8463 = vmatpush1.bf16.msra.mxu0 0
    %8464 = vmatprep.subr.bf16.mxu0 0
    %8465 = vmatpush1.bf16.msra.mxu0 0
    %8466 = vmatprep.subr.bf16.mxu0 0
    %8467 = vmatpush1.bf16.msra.mxu0 0
    %8468 = vmatprep.subr.bf16.mxu0 0
    %8469 = vmatpush1.bf16.msra.mxu0 0
    %8470 = vmatprep.subr.bf16.mxu0 0
    %8471 = vmatpush1.bf16.msra.mxu0 0
    %8472 = vmatprep.subr.bf16.mxu0 0
    %8473 = vmatpush1.bf16.msra.mxu0 0
    %8474 = vmatprep.subr.bf16.mxu0 0
    %8475 = vmatpush1.bf16.msra.mxu0 0
    %8476 = vmatprep.mubr.bf16.mxu0 0
    %8477 = vmatmul.mubr.bf16.gmra.mrb[0].mxu0 %v7041
    %v8478 = vpop.f32.mrb[0].mxu0
    %v8479 = vadd.f32 0.0, %v8478
    %v8480 = vpop.f32.mrb[0].mxu0
    %v8481 = vadd.f32 0.0, %v8480
    %v8482 = vpop.f32.mrb[0].mxu0
    %v8483 = vpop.f32.mrb[0].mxu0
    %8484 = vdwg.mxu0
    %8485 = vmatprep.subr.bf16.mxu0 %v6676
    %8486 = vmatpush1.bf16.msra.mxu0 %v6675
    %8487 = vmatprep.subr.bf16.mxu0 %v7200
    %8488 = vmatpush1.bf16.msra.mxu0 %v7197
    %8489 = vmatprep.subr.bf16.mxu0 0
    %8490 = vmatpush1.bf16.msra.mxu0 0
    %8491 = vmatprep.subr.bf16.mxu0 0
    %8492 = vmatpush1.bf16.msra.mxu0 0
    %8493 = vmatprep.subr.bf16.mxu0 0
    %8494 = vmatpush1.bf16.msra.mxu0 0
    %8495 = vmatprep.subr.bf16.mxu0 0
    %8496 = vmatpush1.bf16.msra.mxu0 0
    %8497 = vmatprep.subr.bf16.mxu0 0
    %8498 = vmatpush1.bf16.msra.mxu0 0
    %8499 = vmatprep.subr.bf16.mxu0 0
    %8500 = vmatpush1.bf16.msra.mxu0 0
    %8501 = vmatprep.subr.bf16.mxu0 0
    %8502 = vmatpush1.bf16.msra.mxu0 0
    %8503 = vmatprep.subr.bf16.mxu0 0
    %8504 = vmatpush1.bf16.msra.mxu0 0
    %8505 = vmatprep.subr.bf16.mxu0 0
    %8506 = vmatpush1.bf16.msra.mxu0 0
    %8507 = vmatprep.subr.bf16.mxu0 0
    %8508 = vmatpush1.bf16.msra.mxu0 0
    %8509 = vmatprep.subr.bf16.mxu0 0
    %8510 = vmatpush1.bf16.msra.mxu0 0
    %8511 = vmatprep.subr.bf16.mxu0 0
    %8512 = vmatpush1.bf16.msra.mxu0 0
    %8513 = vmatprep.subr.bf16.mxu0 0
    %8514 = vmatpush1.bf16.msra.mxu0 0
    %8515 = vmatprep.subr.bf16.mxu0 0
    %8516 = vmatpush1.bf16.msra.mxu0 0
    %8517 = vmatprep.mubr.bf16.mxu0 0
    %8518 = vmatmul.mubr.bf16.gmra.mrb[0].mxu0 %v7041
    %v8519 = vpop.f32.mrb[0].mxu0
    %v8520 = vadd.f32 0.0, %v8519
    %v8521 = vpop.f32.mrb[0].mxu0
    %v8522 = vadd.f32 0.0, %v8521
    %v8523 = vpop.f32.mrb[0].mxu0
    %v8524 = vpop.f32.mrb[0].mxu0
    %8525 = vdwg.mxu0
    %8526 = vmatprep.subr.bf16.mxu0 %v6678
    %8527 = vmatpush1.bf16.msra.mxu0 %v6677
    %8528 = vmatprep.subr.bf16.mxu0 %v7206
    %8529 = vmatpush1.bf16.msra.mxu0 %v7203
    %8530 = vmatprep.subr.bf16.mxu0 0
    %8531 = vmatpush1.bf16.msra.mxu0 0
    %8532 = vmatprep.subr.bf16.mxu0 0
    %8533 = vmatpush1.bf16.msra.mxu0 0
    %8534 = vmatprep.subr.bf16.mxu0 0
    %8535 = vmatpush1.bf16.msra.mxu0 0
    %8536 = vmatprep.subr.bf16.mxu0 0
    %8537 = vmatpush1.bf16.msra.mxu0 0
    %8538 = vmatprep.subr.bf16.mxu0 0
    %8539 = vmatpush1.bf16.msra.mxu0 0
    %8540 = vmatprep.subr.bf16.mxu0 0
    %8541 = vmatpush1.bf16.msra.mxu0 0
    %8542 = vmatprep.subr.bf16.mxu0 0
    %8543 = vmatpush1.bf16.msra.mxu0 0
    %8544 = vmatprep.subr.bf16.mxu0 0
    %8545 = vmatpush1.bf16.msra.mxu0 0
    %8546 = vmatprep.subr.bf16.mxu0 0
    %8547 = vmatpush1.bf16.msra.mxu0 0
    %8548 = vmatprep.subr.bf16.mxu0 0
    %8549 = vmatpush1.bf16.msra.mxu0 0
    %8550 = vmatprep.subr.bf16.mxu0 0
    %8551 = vmatpush1.bf16.msra.mxu0 0
    %8552 = vmatprep.subr.bf16.mxu0 0
    %8553 = vmatpush1.bf16.msra.mxu0 0
    %8554 = vmatprep.subr.bf16.mxu0 0
    %8555 = vmatpush1.bf16.msra.mxu0 0
    %8556 = vmatprep.subr.bf16.mxu0 0
    %8557 = vmatpush1.bf16.msra.mxu0 0
    %8558 = vmatprep.mubr.bf16.mxu0 0
    %8559 = vmatmul.mubr.bf16.gmra.mrb[0].mxu0 %v7041
    %v8560 = vpop.f32.mrb[0].mxu0
    %v8561 = vadd.f32 0.0, %v8560
    %v8562 = vpop.f32.mrb[0].mxu0
    %v8563 = vadd.f32 0.0, %v8562
    %v8564 = vpop.f32.mrb[0].mxu0
    %v8565 = vpop.f32.mrb[0].mxu0
    %8566 = vdwg.mxu0
    %8567 = vmatprep.subr.bf16.mxu0 %v6680
    %8568 = vmatpush1.bf16.msra.mxu0 %v6679
    %8569 = vmatprep.subr.bf16.mxu0 %v7212
    %8570 = vmatpush1.bf16.msra.mxu0 %v7209
    %8571 = vmatprep.subr.bf16.mxu0 0
    %8572 = vmatpush1.bf16.msra.mxu0 0
    %8573 = vmatprep.subr.bf16.mxu0 0
    %8574 = vmatpush1.bf16.msra.mxu0 0
    %8575 = vmatprep.subr.bf16.mxu0 0
    %8576 = vmatpush1.bf16.msra.mxu0 0
    %8577 = vmatprep.subr.bf16.mxu0 0
    %8578 = vmatpush1.bf16.msra.mxu0 0
    %8579 = vmatprep.subr.bf16.mxu0 0
    %8580 = vmatpush1.bf16.msra.mxu0 0
    %8581 = vmatprep.subr.bf16.mxu0 0
    %8582 = vmatpush1.bf16.msra.mxu0 0
    %8583 = vmatprep.subr.bf16.mxu0 0
    %8584 = vmatpush1.bf16.msra.mxu0 0
    %8585 = vmatprep.subr.bf16.mxu0 0
    %8586 = vmatpush1.bf16.msra.mxu0 0
    %8587 = vmatprep.subr.bf16.mxu0 0
    %8588 = vmatpush1.bf16.msra.mxu0 0
    %8589 = vmatprep.subr.bf16.mxu0 0
    %8590 = vmatpush1.bf16.msra.mxu0 0
    %8591 = vmatprep.subr.bf16.mxu0 0
    %8592 = vmatpush1.bf16.msra.mxu0 0
    %8593 = vmatprep.subr.bf16.mxu0 0
    %8594 = vmatpush1.bf16.msra.mxu0 0
    %8595 = vmatprep.subr.bf16.mxu0 0
    %8596 = vmatpush1.bf16.msra.mxu0 0
    %8597 = vmatprep.subr.bf16.mxu0 0
    %8598 = vmatpush1.bf16.msra.mxu0 0
    %8599 = vmatprep.mubr.bf16.mxu0 0
    %8600 = vmatmul.mubr.bf16.gmra.mrb[0].mxu0 %v7041
    %v8601 = vpop.f32.mrb[0].mxu0
    %v8602 = vadd.f32 0.0, %v8601
    %v8603 = vpop.f32.mrb[0].mxu0
    %v8604 = vadd.f32 0.0, %v8603
    %v8605 = vpop.f32.mrb[0].mxu0
    %v8606 = vpop.f32.mrb[0].mxu0
    %8607 = vdwg.mxu0
    %8608 = vmatprep.subr.bf16.mxu0 %v6682
    %8609 = vmatpush1.bf16.msra.mxu0 %v6681
    %8610 = vmatprep.subr.bf16.mxu0 %v7218
    %8611 = vmatpush1.bf16.msra.mxu0 %v7215
    %8612 = vmatprep.subr.bf16.mxu0 0
    %8613 = vmatpush1.bf16.msra.mxu0 0
    %8614 = vmatprep.subr.bf16.mxu0 0
    %8615 = vmatpush1.bf16.msra.mxu0 0
    %8616 = vmatprep.subr.bf16.mxu0 0
    %8617 = vmatpush1.bf16.msra.mxu0 0
    %8618 = vmatprep.subr.bf16.mxu0 0
    %8619 = vmatpush1.bf16.msra.mxu0 0
    %8620 = vmatprep.subr.bf16.mxu0 0
    %8621 = vmatpush1.bf16.msra.mxu0 0
    %8622 = vmatprep.subr.bf16.mxu0 0
    %8623 = vmatpush1.bf16.msra.mxu0 0
    %8624 = vmatprep.subr.bf16.mxu0 0
    %8625 = vmatpush1.bf16.msra.mxu0 0
    %8626 = vmatprep.subr.bf16.mxu0 0
    %8627 = vmatpush1.bf16.msra.mxu0 0
    %8628 = vmatprep.subr.bf16.mxu0 0
    %8629 = vmatpush1.bf16.msra.mxu0 0
    %8630 = vmatprep.subr.bf16.mxu0 0
    %8631 = vmatpush1.bf16.msra.mxu0 0
    %8632 = vmatprep.subr.bf16.mxu0 0
    %8633 = vmatpush1.bf16.msra.mxu0 0
    %8634 = vmatprep.subr.bf16.mxu0 0
    %8635 = vmatpush1.bf16.msra.mxu0 0
    %8636 = vmatprep.subr.bf16.mxu0 0
    %8637 = vmatpush1.bf16.msra.mxu0 0
    %8638 = vmatprep.subr.bf16.mxu0 0
    %8639 = vmatpush1.bf16.msra.mxu0 0
    %8640 = vmatprep.mubr.bf16.mxu0 0
    %8641 = vmatmul.mubr.bf16.gmra.mrb[0].mxu0 %v7041
    %v8642 = vpop.f32.mrb[0].mxu0
    %v8643 = vadd.f32 0.0, %v8642
    %v8644 = vpop.f32.mrb[0].mxu0
    %v8645 = vadd.f32 0.0, %v8644
    %v8646 = vpop.f32.mrb[0].mxu0
    %v8647 = vpop.f32.mrb[0].mxu0
    %8648 = vdwg.mxu0
    %8649 = vmatprep.subr.bf16.mxu0 %v6684
    %8650 = vmatpush1.bf16.msra.mxu0 %v6683
    %8651 = vmatprep.subr.bf16.mxu0 %v7224
    %8652 = vmatpush1.bf16.msra.mxu0 %v7221
    %8653 = vmatprep.subr.bf16.mxu0 0
    %8654 = vmatpush1.bf16.msra.mxu0 0
    %8655 = vmatprep.subr.bf16.mxu0 0
    %8656 = vmatpush1.bf16.msra.mxu0 0
    %8657 = vmatprep.subr.bf16.mxu0 0
    %8658 = vmatpush1.bf16.msra.mxu0 0
    %8659 = vmatprep.subr.bf16.mxu0 0
    %8660 = vmatpush1.bf16.msra.mxu0 0
    %8661 = vmatprep.subr.bf16.mxu0 0
    %8662 = vmatpush1.bf16.msra.mxu0 0
    %8663 = vmatprep.subr.bf16.mxu0 0
    %8664 = vmatpush1.bf16.msra.mxu0 0
    %8665 = vmatprep.subr.bf16.mxu0 0
    %8666 = vmatpush1.bf16.msra.mxu0 0
    %8667 = vmatprep.subr.bf16.mxu0 0
    %8668 = vmatpush1.bf16.msra.mxu0 0
    %8669 = vmatprep.subr.bf16.mxu0 0
    %8670 = vmatpush1.bf16.msra.mxu0 0
    %8671 = vmatprep.subr.bf16.mxu0 0
    %8672 = vmatpush1.bf16.msra.mxu0 0
    %8673 = vmatprep.subr.bf16.mxu0 0
    %8674 = vmatpush1.bf16.msra.mxu0 0
    %8675 = vmatprep.subr.bf16.mxu0 0
    %8676 = vmatpush1.bf16.msra.mxu0 0
    %8677 = vmatprep.subr.bf16.mxu0 0
    %8678 = vmatpush1.bf16.msra.mxu0 0
    %8679 = vmatprep.subr.bf16.mxu0 0
    %8680 = vmatpush1.bf16.msra.mxu0 0
    %8681 = vmatprep.mubr.bf16.mxu0 0
    %8682 = vmatmul.mubr.bf16.gmra.mrb[0].mxu0 %v7041
    %v8683 = vpop.f32.mrb[0].mxu0
    %v8684 = vadd.f32 0.0, %v8683
    %v8685 = vpop.f32.mrb[0].mxu0
    %v8686 = vadd.f32 0.0, %v8685
    %v8687 = vpop.f32.mrb[0].mxu0
    %v8688 = vpop.f32.mrb[0].mxu0
    %8689 = vdwg.mxu0
    %8690 = vmatprep.subr.bf16.mxu0 %v6686
    %8691 = vmatpush1.bf16.msra.mxu0 %v6685
    %8692 = vmatprep.subr.bf16.mxu0 %v7230
    %8693 = vmatpush1.bf16.msra.mxu0 %v7227
    %8694 = vmatprep.subr.bf16.mxu0 0
    %8695 = vmatpush1.bf16.msra.mxu0 0
    %8696 = vmatprep.subr.bf16.mxu0 0
    %8697 = vmatpush1.bf16.msra.mxu0 0
    %8698 = vmatprep.subr.bf16.mxu0 0
    %8699 = vmatpush1.bf16.msra.mxu0 0
    %8700 = vmatprep.subr.bf16.mxu0 0
    %8701 = vmatpush1.bf16.msra.mxu0 0
    %8702 = vmatprep.subr.bf16.mxu0 0
    %8703 = vmatpush1.bf16.msra.mxu0 0
    %8704 = vmatprep.subr.bf16.mxu0 0
    %8705 = vmatpush1.bf16.msra.mxu0 0
    %8706 = vmatprep.subr.bf16.mxu0 0
    %8707 = vmatpush1.bf16.msra.mxu0 0
    %8708 = vmatprep.subr.bf16.mxu0 0
    %8709 = vmatpush1.bf16.msra.mxu0 0
    %8710 = vmatprep.subr.bf16.mxu0 0
    %8711 = vmatpush1.bf16.msra.mxu0 0
    %8712 = vmatprep.subr.bf16.mxu0 0
    %8713 = vmatpush1.bf16.msra.mxu0 0
    %8714 = vmatprep.subr.bf16.mxu0 0
    %8715 = vmatpush1.bf16.msra.mxu0 0
    %8716 = vmatprep.subr.bf16.mxu0 0
    %8717 = vmatpush1.bf16.msra.mxu0 0
    %8718 = vmatprep.subr.bf16.mxu0 0
    %8719 = vmatpush1.bf16.msra.mxu0 0
    %8720 = vmatprep.subr.bf16.mxu0 0
    %8721 = vmatpush1.bf16.msra.mxu0 0
    %8722 = vmatprep.mubr.bf16.mxu0 0
    %8723 = vmatmul.mubr.bf16.gmra.mrb[0].mxu0 %v7041
    %v8724 = vpop.f32.mrb[0].mxu0
    %v8725 = vadd.f32 0.0, %v8724
    %v8726 = vpop.f32.mrb[0].mxu0
    %v8727 = vadd.f32 0.0, %v8726
    %v8728 = vpop.f32.mrb[0].mxu0
    %v8729 = vpop.f32.mrb[0].mxu0
    %8730 = vdwg.mxu0
    %8731 = vmatprep.subr.bf16.mxu0 %v6688
    %8732 = vmatpush1.bf16.msra.mxu0 %v6687
    %8733 = vmatprep.subr.bf16.mxu0 %v7236
    %8734 = vmatpush1.bf16.msra.mxu0 %v7233
    %8735 = vmatprep.subr.bf16.mxu0 0
    %8736 = vmatpush1.bf16.msra.mxu0 0
    %8737 = vmatprep.subr.bf16.mxu0 0
    %8738 = vmatpush1.bf16.msra.mxu0 0
    %8739 = vmatprep.subr.bf16.mxu0 0
    %8740 = vmatpush1.bf16.msra.mxu0 0
    %8741 = vmatprep.subr.bf16.mxu0 0
    %8742 = vmatpush1.bf16.msra.mxu0 0
    %8743 = vmatprep.subr.bf16.mxu0 0
    %8744 = vmatpush1.bf16.msra.mxu0 0
    %8745 = vmatprep.subr.bf16.mxu0 0
    %8746 = vmatpush1.bf16.msra.mxu0 0
    %8747 = vmatprep.subr.bf16.mxu0 0
    %8748 = vmatpush1.bf16.msra.mxu0 0
    %8749 = vmatprep.subr.bf16.mxu0 0
    %8750 = vmatpush1.bf16.msra.mxu0 0
    %8751 = vmatprep.subr.bf16.mxu0 0
    %8752 = vmatpush1.bf16.msra.mxu0 0
    %8753 = vmatprep.subr.bf16.mxu0 0
    %8754 = vmatpush1.bf16.msra.mxu0 0
    %8755 = vmatprep.subr.bf16.mxu0 0
    %8756 = vmatpush1.bf16.msra.mxu0 0
    %8757 = vmatprep.subr.bf16.mxu0 0
    %8758 = vmatpush1.bf16.msra.mxu0 0
    %8759 = vmatprep.subr.bf16.mxu0 0
    %8760 = vmatpush1.bf16.msra.mxu0 0
    %8761 = vmatprep.subr.bf16.mxu0 0
    %8762 = vmatpush1.bf16.msra.mxu0 0
    %8763 = vmatprep.mubr.bf16.mxu0 0
    %8764 = vmatmul.mubr.bf16.gmra.mrb[0].mxu0 %v7041
    %v8765 = vpop.f32.mrb[0].mxu0
    %v8766 = vadd.f32 0.0, %v8765
    %v8767 = vpop.f32.mrb[0].mxu0
    %v8768 = vadd.f32 0.0, %v8767
    %v8769 = vpop.f32.mrb[0].mxu0
    %v8770 = vpop.f32.mrb[0].mxu0
    %8771 = vdwg.mxu0
    %8772 = vmatprep.subr.bf16.mxu0 %v6690
    %8773 = vmatpush1.bf16.msra.mxu0 %v6689
    %8774 = vmatprep.subr.bf16.mxu0 %v7242
    %8775 = vmatpush1.bf16.msra.mxu0 %v7239
    %8776 = vmatprep.subr.bf16.mxu0 0
    %8777 = vmatpush1.bf16.msra.mxu0 0
    %8778 = vmatprep.subr.bf16.mxu0 0
    %8779 = vmatpush1.bf16.msra.mxu0 0
    %8780 = vmatprep.subr.bf16.mxu0 0
    %8781 = vmatpush1.bf16.msra.mxu0 0
    %8782 = vmatprep.subr.bf16.mxu0 0
    %8783 = vmatpush1.bf16.msra.mxu0 0
    %8784 = vmatprep.subr.bf16.mxu0 0
    %8785 = vmatpush1.bf16.msra.mxu0 0
    %8786 = vmatprep.subr.bf16.mxu0 0
    %8787 = vmatpush1.bf16.msra.mxu0 0
    %8788 = vmatprep.subr.bf16.mxu0 0
    %8789 = vmatpush1.bf16.msra.mxu0 0
    %8790 = vmatprep.subr.bf16.mxu0 0
    %8791 = vmatpush1.bf16.msra.mxu0 0
    %8792 = vmatprep.subr.bf16.mxu0 0
    %8793 = vmatpush1.bf16.msra.mxu0 0
    %8794 = vmatprep.subr.bf16.mxu0 0
    %8795 = vmatpush1.bf16.msra.mxu0 0
    %8796 = vmatprep.subr.bf16.mxu0 0
    %8797 = vmatpush1.bf16.msra.mxu0 0
    %8798 = vmatprep.subr.bf16.mxu0 0
    %8799 = vmatpush1.bf16.msra.mxu0 0
    %8800 = vmatprep.subr.bf16.mxu0 0
    %8801 = vmatpush1.bf16.msra.mxu0 0
    %8802 = vmatprep.subr.bf16.mxu0 0
    %8803 = vmatpush1.bf16.msra.mxu0 0
    %8804 = vmatprep.mubr.bf16.mxu0 0
    %8805 = vmatmul.mubr.bf16.gmra.mrb[0].mxu0 %v7041
    %v8806 = vpop.f32.mrb[0].mxu0
    %v8807 = vadd.f32 0.0, %v8806
    %v8808 = vpop.f32.mrb[0].mxu0
    %v8809 = vadd.f32 0.0, %v8808
    %v8810 = vpop.f32.mrb[0].mxu0
    %v8811 = vpop.f32.mrb[0].mxu0
    %8812 = vdwg.mxu0
    %8813 = vmatprep.subr.bf16.mxu0 %v6692
    %8814 = vmatpush1.bf16.msra.mxu0 %v6691
    %8815 = vmatprep.subr.bf16.mxu0 %v7248
    %8816 = vmatpush1.bf16.msra.mxu0 %v7245
    %8817 = vmatprep.subr.bf16.mxu0 0
    %8818 = vmatpush1.bf16.msra.mxu0 0
    %8819 = vmatprep.subr.bf16.mxu0 0
    %8820 = vmatpush1.bf16.msra.mxu0 0
    %8821 = vmatprep.subr.bf16.mxu0 0
    %8822 = vmatpush1.bf16.msra.mxu0 0
    %8823 = vmatprep.subr.bf16.mxu0 0
    %8824 = vmatpush1.bf16.msra.mxu0 0
    %8825 = vmatprep.subr.bf16.mxu0 0
    %8826 = vmatpush1.bf16.msra.mxu0 0
    %8827 = vmatprep.subr.bf16.mxu0 0
    %8828 = vmatpush1.bf16.msra.mxu0 0
    %8829 = vmatprep.subr.bf16.mxu0 0
    %8830 = vmatpush1.bf16.msra.mxu0 0
    %8831 = vmatprep.subr.bf16.mxu0 0
    %8832 = vmatpush1.bf16.msra.mxu0 0
    %8833 = vmatprep.subr.bf16.mxu0 0
    %8834 = vmatpush1.bf16.msra.mxu0 0
    %8835 = vmatprep.subr.bf16.mxu0 0
    %8836 = vmatpush1.bf16.msra.mxu0 0
    %8837 = vmatprep.subr.bf16.mxu0 0
    %8838 = vmatpush1.bf16.msra.mxu0 0
    %8839 = vmatprep.subr.bf16.mxu0 0
    %8840 = vmatpush1.bf16.msra.mxu0 0
    %8841 = vmatprep.subr.bf16.mxu0 0
    %8842 = vmatpush1.bf16.msra.mxu0 0
    %8843 = vmatprep.subr.bf16.mxu0 0
    %8844 = vmatpush1.bf16.msra.mxu0 0
    %8845 = vmatprep.mubr.bf16.mxu0 0
    %8846 = vmatmul.mubr.bf16.gmra.mrb[0].mxu0 %v7041
    %v8847 = vpop.f32.mrb[0].mxu0
    %v8848 = vadd.f32 0.0, %v8847
    %v8849 = vpop.f32.mrb[0].mxu0
    %v8850 = vadd.f32 0.0, %v8849
    %v8851 = vpop.f32.mrb[0].mxu0
    %v8852 = vpop.f32.mrb[0].mxu0
    %8853 = vdwg.mxu0
    %8854 = vmatprep.subr.bf16.mxu0 %v6694
    %8855 = vmatpush1.bf16.msra.mxu0 %v6693
    %8856 = vmatprep.subr.bf16.mxu0 %v7254
    %8857 = vmatpush1.bf16.msra.mxu0 %v7251
    %8858 = vmatprep.subr.bf16.mxu0 0
    %8859 = vmatpush1.bf16.msra.mxu0 0
    %8860 = vmatprep.subr.bf16.mxu0 0
    %8861 = vmatpush1.bf16.msra.mxu0 0
    %8862 = vmatprep.subr.bf16.mxu0 0
    %8863 = vmatpush1.bf16.msra.mxu0 0
    %8864 = vmatprep.subr.bf16.mxu0 0
    %8865 = vmatpush1.bf16.msra.mxu0 0
    %8866 = vmatprep.subr.bf16.mxu0 0
    %8867 = vmatpush1.bf16.msra.mxu0 0
    %8868 = vmatprep.subr.bf16.mxu0 0
    %8869 = vmatpush1.bf16.msra.mxu0 0
    %8870 = vmatprep.subr.bf16.mxu0 0
    %8871 = vmatpush1.bf16.msra.mxu0 0
    %8872 = vmatprep.subr.bf16.mxu0 0
    %8873 = vmatpush1.bf16.msra.mxu0 0
    %8874 = vmatprep.subr.bf16.mxu0 0
    %8875 = vmatpush1.bf16.msra.mxu0 0
    %8876 = vmatprep.subr.bf16.mxu0 0
    %8877 = vmatpush1.bf16.msra.mxu0 0
    %8878 = vmatprep.subr.bf16.mxu0 0
    %8879 = vmatpush1.bf16.msra.mxu0 0
    %8880 = vmatprep.subr.bf16.mxu0 0
    %8881 = vmatpush1.bf16.msra.mxu0 0
    %8882 = vmatprep.subr.bf16.mxu0 0
    %8883 = vmatpush1.bf16.msra.mxu0 0
    %8884 = vmatprep.subr.bf16.mxu0 0
    %8885 = vmatpush1.bf16.msra.mxu0 0
    %8886 = vmatprep.mubr.bf16.mxu0 0
    %8887 = vmatmul.mubr.bf16.gmra.mrb[0].mxu0 %v7041
    %v8888 = vpop.f32.mrb[0].mxu0
    %v8889 = vadd.f32 0.0, %v8888
    %v8890 = vpop.f32.mrb[0].mxu0
    %v8891 = vadd.f32 0.0, %v8890
    %v8892 = vpop.f32.mrb[0].mxu0
    %v8893 = vpop.f32.mrb[0].mxu0
    %8894 = vdwg.mxu0
    %8895 = vmatprep.subr.bf16.mxu0 %v6696
    %8896 = vmatpush1.bf16.msra.mxu0 %v6695
    %8897 = vmatprep.subr.bf16.mxu0 %v7260
    %8898 = vmatpush1.bf16.msra.mxu0 %v7257
    %8899 = vmatprep.subr.bf16.mxu0 0
    %8900 = vmatpush1.bf16.msra.mxu0 0
    %8901 = vmatprep.subr.bf16.mxu0 0
    %8902 = vmatpush1.bf16.msra.mxu0 0
    %8903 = vmatprep.subr.bf16.mxu0 0
    %8904 = vmatpush1.bf16.msra.mxu0 0
    %8905 = vmatprep.subr.bf16.mxu0 0
    %8906 = vmatpush1.bf16.msra.mxu0 0
    %8907 = vmatprep.subr.bf16.mxu0 0
    %8908 = vmatpush1.bf16.msra.mxu0 0
    %8909 = vmatprep.subr.bf16.mxu0 0
    %8910 = vmatpush1.bf16.msra.mxu0 0
    %8911 = vmatprep.subr.bf16.mxu0 0
    %8912 = vmatpush1.bf16.msra.mxu0 0
    %8913 = vmatprep.subr.bf16.mxu0 0
    %8914 = vmatpush1.bf16.msra.mxu0 0
    %8915 = vmatprep.subr.bf16.mxu0 0
    %8916 = vmatpush1.bf16.msra.mxu0 0
    %8917 = vmatprep.subr.bf16.mxu0 0
    %8918 = vmatpush1.bf16.msra.mxu0 0
    %8919 = vmatprep.subr.bf16.mxu0 0
    %8920 = vmatpush1.bf16.msra.mxu0 0
    %8921 = vmatprep.subr.bf16.mxu0 0
    %8922 = vmatpush1.bf16.msra.mxu0 0
    %8923 = vmatprep.subr.bf16.mxu0 0
    %8924 = vmatpush1.bf16.msra.mxu0 0
    %8925 = vmatprep.subr.bf16.mxu0 0
    %8926 = vmatpush1.bf16.msra.mxu0 0
    %8927 = vmatprep.mubr.bf16.mxu0 0
    %8928 = vmatmul.mubr.bf16.gmra.mrb[0].mxu0 %v7041
    %v8929 = vpop.f32.mrb[0].mxu0
    %v8930 = vadd.f32 0.0, %v8929
    %v8931 = vpop.f32.mrb[0].mxu0
    %v8932 = vadd.f32 0.0, %v8931
    %v8933 = vpop.f32.mrb[0].mxu0
    %v8934 = vpop.f32.mrb[0].mxu0
    %8935 = vdwg.mxu0
    %8936 = vmatprep.subr.bf16.mxu0 %v6698
    %8937 = vmatpush1.bf16.msra.mxu0 %v6697
    %8938 = vmatprep.subr.bf16.mxu0 %v7266
    %8939 = vmatpush1.bf16.msra.mxu0 %v7263
    %8940 = vmatprep.subr.bf16.mxu0 0
    %8941 = vmatpush1.bf16.msra.mxu0 0
    %8942 = vmatprep.subr.bf16.mxu0 0
    %8943 = vmatpush1.bf16.msra.mxu0 0
    %8944 = vmatprep.subr.bf16.mxu0 0
    %8945 = vmatpush1.bf16.msra.mxu0 0
    %8946 = vmatprep.subr.bf16.mxu0 0
    %8947 = vmatpush1.bf16.msra.mxu0 0
    %8948 = vmatprep.subr.bf16.mxu0 0
    %8949 = vmatpush1.bf16.msra.mxu0 0
    %8950 = vmatprep.subr.bf16.mxu0 0
    %8951 = vmatpush1.bf16.msra.mxu0 0
    %8952 = vmatprep.subr.bf16.mxu0 0
    %8953 = vmatpush1.bf16.msra.mxu0 0
    %8954 = vmatprep.subr.bf16.mxu0 0
    %8955 = vmatpush1.bf16.msra.mxu0 0
    %8956 = vmatprep.subr.bf16.mxu0 0
    %8957 = vmatpush1.bf16.msra.mxu0 0
    %8958 = vmatprep.subr.bf16.mxu0 0
    %8959 = vmatpush1.bf16.msra.mxu0 0
    %8960 = vmatprep.subr.bf16.mxu0 0
    %8961 = vmatpush1.bf16.msra.mxu0 0
    %8962 = vmatprep.subr.bf16.mxu0 0
    %8963 = vmatpush1.bf16.msra.mxu0 0
    %8964 = vmatprep.subr.bf16.mxu0 0
    %8965 = vmatpush1.bf16.msra.mxu0 0
    %8966 = vmatprep.subr.bf16.mxu0 0
    %8967 = vmatpush1.bf16.msra.mxu0 0
    %8968 = vmatprep.mubr.bf16.mxu0 0
    %8969 = vmatmul.mubr.bf16.gmra.mrb[0].mxu0 %v7041
    %v8970 = vpop.f32.mrb[0].mxu0
    %v8971 = vadd.f32 0.0, %v8970
    %v8972 = vpop.f32.mrb[0].mxu0
    %v8973 = vadd.f32 0.0, %v8972
    %v8974 = vpop.f32.mrb[0].mxu0
    %v8975 = vpop.f32.mrb[0].mxu0
    %8976 = vdwg.mxu0
    %8977 = vmatprep.subr.bf16.mxu0 %v6700
    %8978 = vmatpush1.bf16.msra.mxu0 %v6699
    %8979 = vmatprep.subr.bf16.mxu0 %v7272
    %8980 = vmatpush1.bf16.msra.mxu0 %v7269
    %8981 = vmatprep.subr.bf16.mxu0 0
    %8982 = vmatpush1.bf16.msra.mxu0 0
    %8983 = vmatprep.subr.bf16.mxu0 0
    %8984 = vmatpush1.bf16.msra.mxu0 0
    %8985 = vmatprep.subr.bf16.mxu0 0
    %8986 = vmatpush1.bf16.msra.mxu0 0
    %8987 = vmatprep.subr.bf16.mxu0 0
    %8988 = vmatpush1.bf16.msra.mxu0 0
    %8989 = vmatprep.subr.bf16.mxu0 0
    %8990 = vmatpush1.bf16.msra.mxu0 0
    %8991 = vmatprep.subr.bf16.mxu0 0
    %8992 = vmatpush1.bf16.msra.mxu0 0
    %8993 = vmatprep.subr.bf16.mxu0 0
    %8994 = vmatpush1.bf16.msra.mxu0 0
    %8995 = vmatprep.subr.bf16.mxu0 0
    %8996 = vmatpush1.bf16.msra.mxu0 0
    %8997 = vmatprep.subr.bf16.mxu0 0
    %8998 = vmatpush1.bf16.msra.mxu0 0
    %8999 = vmatprep.subr.bf16.mxu0 0
    %9000 = vmatpush1.bf16.msra.mxu0 0
    %9001 = vmatprep.subr.bf16.mxu0 0
    %9002 = vmatpush1.bf16.msra.mxu0 0
    %9003 = vmatprep.subr.bf16.mxu0 0
    %9004 = vmatpush1.bf16.msra.mxu0 0
    %9005 = vmatprep.subr.bf16.mxu0 0
    %9006 = vmatpush1.bf16.msra.mxu0 0
    %9007 = vmatprep.subr.bf16.mxu0 0
    %9008 = vmatpush1.bf16.msra.mxu0 0
    %9009 = vmatprep.mubr.bf16.mxu0 0
    %9010 = vmatmul.mubr.bf16.gmra.mrb[0].mxu0 %v7041
    %v9011 = vpop.f32.mrb[0].mxu0
    %v9012 = vadd.f32 0.0, %v9011
    %v9013 = vpop.f32.mrb[0].mxu0
    %v9014 = vadd.f32 0.0, %v9013
    %v9015 = vpop.f32.mrb[0].mxu0
    %v9016 = vpop.f32.mrb[0].mxu0
    %9017 = vdwg.mxu0
    %9018 = vmatprep.subr.bf16.mxu0 %v6702
    %9019 = vmatpush1.bf16.msra.mxu0 %v6701
    %9020 = vmatprep.subr.bf16.mxu0 %v7278
    %9021 = vmatpush1.bf16.msra.mxu0 %v7275
    %9022 = vmatprep.subr.bf16.mxu0 0
    %9023 = vmatpush1.bf16.msra.mxu0 0
    %9024 = vmatprep.subr.bf16.mxu0 0
    %9025 = vmatpush1.bf16.msra.mxu0 0
    %9026 = vmatprep.subr.bf16.mxu0 0
    %9027 = vmatpush1.bf16.msra.mxu0 0
    %9028 = vmatprep.subr.bf16.mxu0 0
    %9029 = vmatpush1.bf16.msra.mxu0 0
    %9030 = vmatprep.subr.bf16.mxu0 0
    %9031 = vmatpush1.bf16.msra.mxu0 0
    %9032 = vmatprep.subr.bf16.mxu0 0
    %9033 = vmatpush1.bf16.msra.mxu0 0
    %9034 = vmatprep.subr.bf16.mxu0 0
    %9035 = vmatpush1.bf16.msra.mxu0 0
    %9036 = vmatprep.subr.bf16.mxu0 0
    %9037 = vmatpush1.bf16.msra.mxu0 0
    %9038 = vmatprep.subr.bf16.mxu0 0
    %9039 = vmatpush1.bf16.msra.mxu0 0
    %9040 = vmatprep.subr.bf16.mxu0 0
    %9041 = vmatpush1.bf16.msra.mxu0 0
    %9042 = vmatprep.subr.bf16.mxu0 0
    %9043 = vmatpush1.bf16.msra.mxu0 0
    %9044 = vmatprep.subr.bf16.mxu0 0
    %9045 = vmatpush1.bf16.msra.mxu0 0
    %9046 = vmatprep.subr.bf16.mxu0 0
    %9047 = vmatpush1.bf16.msra.mxu0 0
    %9048 = vmatprep.subr.bf16.mxu0 0
    %9049 = vmatpush1.bf16.msra.mxu0 0
    %9050 = vmatprep.mubr.bf16.mxu0 0
    %9051 = vmatmul.mubr.bf16.gmra.mrb[0].mxu0 %v7041
    %v9052 = vpop.f32.mrb[0].mxu0
    %v9053 = vadd.f32 0.0, %v9052
    %v9054 = vpop.f32.mrb[0].mxu0
    %v9055 = vadd.f32 0.0, %v9054
    %v9056 = vpop.f32.mrb[0].mxu0
    %v9057 = vpop.f32.mrb[0].mxu0
    %9058 = vdwg.mxu0
    %9059 = vmatprep.subr.bf16.mxu0 %v6704
    %9060 = vmatpush1.bf16.msra.mxu0 %v6703
    %9061 = vmatprep.subr.bf16.mxu0 %v7284
    %9062 = vmatpush1.bf16.msra.mxu0 %v7281
    %9063 = vmatprep.subr.bf16.mxu0 0
    %9064 = vmatpush1.bf16.msra.mxu0 0
    %9065 = vmatprep.subr.bf16.mxu0 0
    %9066 = vmatpush1.bf16.msra.mxu0 0
    %9067 = vmatprep.subr.bf16.mxu0 0
    %9068 = vmatpush1.bf16.msra.mxu0 0
    %9069 = vmatprep.subr.bf16.mxu0 0
    %9070 = vmatpush1.bf16.msra.mxu0 0
    %9071 = vmatprep.subr.bf16.mxu0 0
    %9072 = vmatpush1.bf16.msra.mxu0 0
    %9073 = vmatprep.subr.bf16.mxu0 0
    %9074 = vmatpush1.bf16.msra.mxu0 0
    %9075 = vmatprep.subr.bf16.mxu0 0
    %9076 = vmatpush1.bf16.msra.mxu0 0
    %9077 = vmatprep.subr.bf16.mxu0 0
    %9078 = vmatpush1.bf16.msra.mxu0 0
    %9079 = vmatprep.subr.bf16.mxu0 0
    %9080 = vmatpush1.bf16.msra.mxu0 0
    %9081 = vmatprep.subr.bf16.mxu0 0
    %9082 = vmatpush1.bf16.msra.mxu0 0
    %9083 = vmatprep.subr.bf16.mxu0 0
    %9084 = vmatpush1.bf16.msra.mxu0 0
    %9085 = vmatprep.subr.bf16.mxu0 0
    %9086 = vmatpush1.bf16.msra.mxu0 0
    %9087 = vmatprep.subr.bf16.mxu0 0
    %9088 = vmatpush1.bf16.msra.mxu0 0
    %9089 = vmatprep.subr.bf16.mxu0 0
    %9090 = vmatpush1.bf16.msra.mxu0 0
    %9091 = vmatprep.mubr.bf16.mxu0 0
    %9092 = vmatmul.mubr.bf16.gmra.mrb[0].mxu0 %v7041
    %v9093 = vpop.f32.mrb[0].mxu0
    %v9094 = vadd.f32 0.0, %v9093
    %v9095 = vpop.f32.mrb[0].mxu0
    %v9096 = vadd.f32 0.0, %v9095
    %v9097 = vpop.f32.mrb[0].mxu0
    %v9098 = vpop.f32.mrb[0].mxu0
    %9099 = vdwg.mxu0
    %9100 = vmatprep.subr.bf16.mxu0 %v6706
    %9101 = vmatpush1.bf16.msra.mxu0 %v6705
    %9102 = vmatprep.subr.bf16.mxu0 %v7290
    %9103 = vmatpush1.bf16.msra.mxu0 %v7287
    %9104 = vmatprep.subr.bf16.mxu0 0
    %9105 = vmatpush1.bf16.msra.mxu0 0
    %9106 = vmatprep.subr.bf16.mxu0 0
    %9107 = vmatpush1.bf16.msra.mxu0 0
    %9108 = vmatprep.subr.bf16.mxu0 0
    %9109 = vmatpush1.bf16.msra.mxu0 0
    %9110 = vmatprep.subr.bf16.mxu0 0
    %9111 = vmatpush1.bf16.msra.mxu0 0
    %9112 = vmatprep.subr.bf16.mxu0 0
    %9113 = vmatpush1.bf16.msra.mxu0 0
    %9114 = vmatprep.subr.bf16.mxu0 0
    %9115 = vmatpush1.bf16.msra.mxu0 0
    %9116 = vmatprep.subr.bf16.mxu0 0
    %9117 = vmatpush1.bf16.msra.mxu0 0
    %9118 = vmatprep.subr.bf16.mxu0 0
    %9119 = vmatpush1.bf16.msra.mxu0 0
    %9120 = vmatprep.subr.bf16.mxu0 0
    %9121 = vmatpush1.bf16.msra.mxu0 0
    %9122 = vmatprep.subr.bf16.mxu0 0
    %9123 = vmatpush1.bf16.msra.mxu0 0
    %9124 = vmatprep.subr.bf16.mxu0 0
    %9125 = vmatpush1.bf16.msra.mxu0 0
    %9126 = vmatprep.subr.bf16.mxu0 0
    %9127 = vmatpush1.bf16.msra.mxu0 0
    %9128 = vmatprep.subr.bf16.mxu0 0
    %9129 = vmatpush1.bf16.msra.mxu0 0
    %9130 = vmatprep.subr.bf16.mxu0 0
    %9131 = vmatpush1.bf16.msra.mxu0 0
    %9132 = vmatprep.mubr.bf16.mxu0 0
    %9133 = vmatmul.mubr.bf16.gmra.mrb[0].mxu0 %v7041
    %v9134 = vpop.f32.mrb[0].mxu0
    %v9135 = vadd.f32 0.0, %v9134
    %v9136 = vpop.f32.mrb[0].mxu0
    %v9137 = vadd.f32 0.0, %v9136
    %v9138 = vpop.f32.mrb[0].mxu0
    %v9139 = vpop.f32.mrb[0].mxu0
    %9140 = vdwg.mxu0
    %9141 = vmatprep.subr.bf16.mxu0 %v6708
    %9142 = vmatpush1.bf16.msra.mxu0 %v6707
    %9143 = vmatprep.subr.bf16.mxu0 %v7296
    %9144 = vmatpush1.bf16.msra.mxu0 %v7293
    %9145 = vmatprep.subr.bf16.mxu0 0
    %9146 = vmatpush1.bf16.msra.mxu0 0
    %9147 = vmatprep.subr.bf16.mxu0 0
    %9148 = vmatpush1.bf16.msra.mxu0 0
    %9149 = vmatprep.subr.bf16.mxu0 0
    %9150 = vmatpush1.bf16.msra.mxu0 0
    %9151 = vmatprep.subr.bf16.mxu0 0
    %9152 = vmatpush1.bf16.msra.mxu0 0
    %9153 = vmatprep.subr.bf16.mxu0 0
    %9154 = vmatpush1.bf16.msra.mxu0 0
    %9155 = vmatprep.subr.bf16.mxu0 0
    %9156 = vmatpush1.bf16.msra.mxu0 0
    %9157 = vmatprep.subr.bf16.mxu0 0
    %9158 = vmatpush1.bf16.msra.mxu0 0
    %9159 = vmatprep.subr.bf16.mxu0 0
    %9160 = vmatpush1.bf16.msra.mxu0 0
    %9161 = vmatprep.subr.bf16.mxu0 0
    %9162 = vmatpush1.bf16.msra.mxu0 0
    %9163 = vmatprep.subr.bf16.mxu0 0
    %9164 = vmatpush1.bf16.msra.mxu0 0
    %9165 = vmatprep.subr.bf16.mxu0 0
    %9166 = vmatpush1.bf16.msra.mxu0 0
    %9167 = vmatprep.subr.bf16.mxu0 0
    %9168 = vmatpush1.bf16.msra.mxu0 0
    %9169 = vmatprep.subr.bf16.mxu0 0
    %9170 = vmatpush1.bf16.msra.mxu0 0
    %9171 = vmatprep.subr.bf16.mxu0 0
    %9172 = vmatpush1.bf16.msra.mxu0 0
    %9173 = vmatprep.mubr.bf16.mxu0 0
    %9174 = vmatmul.mubr.bf16.gmra.mrb[0].mxu0 %v7041
    %v9175 = vpop.f32.mrb[0].mxu0
    %v9176 = vadd.f32 0.0, %v9175
    %v9177 = vpop.f32.mrb[0].mxu0
    %v9178 = vadd.f32 0.0, %v9177
    %v9179 = vpop.f32.mrb[0].mxu0
    %v9180 = vpop.f32.mrb[0].mxu0
    %9181 = vdwg.mxu0
    %9182 = vmatprep.subr.bf16.mxu0 %v6710
    %9183 = vmatpush1.bf16.msra.mxu0 %v6709
    %9184 = vmatprep.subr.bf16.mxu0 %v7302
    %9185 = vmatpush1.bf16.msra.mxu0 %v7299
    %9186 = vmatprep.subr.bf16.mxu0 0
    %9187 = vmatpush1.bf16.msra.mxu0 0
    %9188 = vmatprep.subr.bf16.mxu0 0
    %9189 = vmatpush1.bf16.msra.mxu0 0
    %9190 = vmatprep.subr.bf16.mxu0 0
    %9191 = vmatpush1.bf16.msra.mxu0 0
    %9192 = vmatprep.subr.bf16.mxu0 0
    %9193 = vmatpush1.bf16.msra.mxu0 0
    %9194 = vmatprep.subr.bf16.mxu0 0
    %9195 = vmatpush1.bf16.msra.mxu0 0
    %9196 = vmatprep.subr.bf16.mxu0 0
    %9197 = vmatpush1.bf16.msra.mxu0 0
    %9198 = vmatprep.subr.bf16.mxu0 0
    %9199 = vmatpush1.bf16.msra.mxu0 0
    %9200 = vmatprep.subr.bf16.mxu0 0
    %9201 = vmatpush1.bf16.msra.mxu0 0
    %9202 = vmatprep.subr.bf16.mxu0 0
    %9203 = vmatpush1.bf16.msra.mxu0 0
    %9204 = vmatprep.subr.bf16.mxu0 0
    %9205 = vmatpush1.bf16.msra.mxu0 0
    %9206 = vmatprep.subr.bf16.mxu0 0
    %9207 = vmatpush1.bf16.msra.mxu0 0
    %9208 = vmatprep.subr.bf16.mxu0 0
    %9209 = vmatpush1.bf16.msra.mxu0 0
    %9210 = vmatprep.subr.bf16.mxu0 0
    %9211 = vmatpush1.bf16.msra.mxu0 0
    %9212 = vmatprep.subr.bf16.mxu0 0
    %9213 = vmatpush1.bf16.msra.mxu0 0
    %9214 = vmatprep.mubr.bf16.mxu0 0
    %9215 = vmatmul.mubr.bf16.gmra.mrb[0].mxu0 %v7041
    %v9216 = vpop.f32.mrb[0].mxu0
    %v9217 = vadd.f32 0.0, %v9216
    %v9218 = vpop.f32.mrb[0].mxu0
    %v9219 = vadd.f32 0.0, %v9218
    %v9220 = vpop.f32.mrb[0].mxu0
    %v9221 = vpop.f32.mrb[0].mxu0
    %9222 = vdwg.mxu0
    %9223 = vmatprep.subr.bf16.mxu0 %v6712
    %9224 = vmatpush1.bf16.msra.mxu0 %v6711
    %9225 = vmatprep.subr.bf16.mxu0 %v7308
    %9226 = vmatpush1.bf16.msra.mxu0 %v7305
    %9227 = vmatprep.subr.bf16.mxu0 0
    %9228 = vmatpush1.bf16.msra.mxu0 0
    %9229 = vmatprep.subr.bf16.mxu0 0
    %9230 = vmatpush1.bf16.msra.mxu0 0
    %9231 = vmatprep.subr.bf16.mxu0 0
    %9232 = vmatpush1.bf16.msra.mxu0 0
    %9233 = vmatprep.subr.bf16.mxu0 0
    %9234 = vmatpush1.bf16.msra.mxu0 0
    %9235 = vmatprep.subr.bf16.mxu0 0
    %9236 = vmatpush1.bf16.msra.mxu0 0
    %9237 = vmatprep.subr.bf16.mxu0 0
    %9238 = vmatpush1.bf16.msra.mxu0 0
    %9239 = vmatprep.subr.bf16.mxu0 0
    %9240 = vmatpush1.bf16.msra.mxu0 0
    %9241 = vmatprep.subr.bf16.mxu0 0
    %9242 = vmatpush1.bf16.msra.mxu0 0
    %9243 = vmatprep.subr.bf16.mxu0 0
    %9244 = vmatpush1.bf16.msra.mxu0 0
    %9245 = vmatprep.subr.bf16.mxu0 0
    %9246 = vmatpush1.bf16.msra.mxu0 0
    %9247 = vmatprep.subr.bf16.mxu0 0
    %9248 = vmatpush1.bf16.msra.mxu0 0
    %9249 = vmatprep.subr.bf16.mxu0 0
    %9250 = vmatpush1.bf16.msra.mxu0 0
    %9251 = vmatprep.subr.bf16.mxu0 0
    %9252 = vmatpush1.bf16.msra.mxu0 0
    %9253 = vmatprep.subr.bf16.mxu0 0
    %9254 = vmatpush1.bf16.msra.mxu0 0
    %9255 = vmatprep.mubr.bf16.mxu0 0
    %9256 = vmatmul.mubr.bf16.gmra.mrb[0].mxu0 %v7041
    %v9257 = vpop.f32.mrb[0].mxu0
    %v9258 = vadd.f32 0.0, %v9257
    %v9259 = vpop.f32.mrb[0].mxu0
    %v9260 = vadd.f32 0.0, %v9259
    %v9261 = vpop.f32.mrb[0].mxu0
    %v9262 = vpop.f32.mrb[0].mxu0
    %9263 = vdwg.mxu0
    %9264 = vmatprep.subr.bf16.mxu0 %v6714
    %9265 = vmatpush1.bf16.msra.mxu0 %v6713
    %9266 = vmatprep.subr.bf16.mxu0 %v7314
    %9267 = vmatpush1.bf16.msra.mxu0 %v7311
    %9268 = vmatprep.subr.bf16.mxu0 0
    %9269 = vmatpush1.bf16.msra.mxu0 0
    %9270 = vmatprep.subr.bf16.mxu0 0
    %9271 = vmatpush1.bf16.msra.mxu0 0
    %9272 = vmatprep.subr.bf16.mxu0 0
    %9273 = vmatpush1.bf16.msra.mxu0 0
    %9274 = vmatprep.subr.bf16.mxu0 0
    %9275 = vmatpush1.bf16.msra.mxu0 0
    %9276 = vmatprep.subr.bf16.mxu0 0
    %9277 = vmatpush1.bf16.msra.mxu0 0
    %9278 = vmatprep.subr.bf16.mxu0 0
    %9279 = vmatpush1.bf16.msra.mxu0 0
    %9280 = vmatprep.subr.bf16.mxu0 0
    %9281 = vmatpush1.bf16.msra.mxu0 0
    %9282 = vmatprep.subr.bf16.mxu0 0
    %9283 = vmatpush1.bf16.msra.mxu0 0
    %9284 = vmatprep.subr.bf16.mxu0 0
    %9285 = vmatpush1.bf16.msra.mxu0 0
    %9286 = vmatprep.subr.bf16.mxu0 0
    %9287 = vmatpush1.bf16.msra.mxu0 0
    %9288 = vmatprep.subr.bf16.mxu0 0
    %9289 = vmatpush1.bf16.msra.mxu0 0
    %9290 = vmatprep.subr.bf16.mxu0 0
    %9291 = vmatpush1.bf16.msra.mxu0 0
    %9292 = vmatprep.subr.bf16.mxu0 0
    %9293 = vmatpush1.bf16.msra.mxu0 0
    %9294 = vmatprep.subr.bf16.mxu0 0
    %9295 = vmatpush1.bf16.msra.mxu0 0
    %9296 = vmatprep.mubr.bf16.mxu0 0
    %9297 = vmatmul.mubr.bf16.gmra.mrb[0].mxu0 %v7041
    %v9298 = vpop.f32.mrb[0].mxu0
    %v9299 = vadd.f32 0.0, %v9298
    %v9300 = vpop.f32.mrb[0].mxu0
    %v9301 = vadd.f32 0.0, %v9300
    %v9302 = vpop.f32.mrb[0].mxu0
    %v9303 = vpop.f32.mrb[0].mxu0
    %9304 = vdwg.mxu0
    %9305 = vmatprep.subr.bf16.mxu0 %v6716
    %9306 = vmatpush1.bf16.msra.mxu0 %v6715
    %9307 = vmatprep.subr.bf16.mxu0 %v7320
    %9308 = vmatpush1.bf16.msra.mxu0 %v7317
    %9309 = vmatprep.subr.bf16.mxu0 0
    %9310 = vmatpush1.bf16.msra.mxu0 0
    %9311 = vmatprep.subr.bf16.mxu0 0
    %9312 = vmatpush1.bf16.msra.mxu0 0
    %9313 = vmatprep.subr.bf16.mxu0 0
    %9314 = vmatpush1.bf16.msra.mxu0 0
    %9315 = vmatprep.subr.bf16.mxu0 0
    %9316 = vmatpush1.bf16.msra.mxu0 0
    %9317 = vmatprep.subr.bf16.mxu0 0
    %9318 = vmatpush1.bf16.msra.mxu0 0
    %9319 = vmatprep.subr.bf16.mxu0 0
    %9320 = vmatpush1.bf16.msra.mxu0 0
    %9321 = vmatprep.subr.bf16.mxu0 0
    %9322 = vmatpush1.bf16.msra.mxu0 0
    %9323 = vmatprep.subr.bf16.mxu0 0
    %9324 = vmatpush1.bf16.msra.mxu0 0
    %9325 = vmatprep.subr.bf16.mxu0 0
    %9326 = vmatpush1.bf16.msra.mxu0 0
    %9327 = vmatprep.subr.bf16.mxu0 0
    %9328 = vmatpush1.bf16.msra.mxu0 0
    %9329 = vmatprep.subr.bf16.mxu0 0
    %9330 = vmatpush1.bf16.msra.mxu0 0
    %9331 = vmatprep.subr.bf16.mxu0 0
    %9332 = vmatpush1.bf16.msra.mxu0 0
    %9333 = vmatprep.subr.bf16.mxu0 0
    %9334 = vmatpush1.bf16.msra.mxu0 0
    %9335 = vmatprep.subr.bf16.mxu0 0
    %9336 = vmatpush1.bf16.msra.mxu0 0
    %9337 = vmatprep.mubr.bf16.mxu0 0
    %9338 = vmatmul.mubr.bf16.gmra.mrb[0].mxu0 %v7041
    %v9339 = vpop.f32.mrb[0].mxu0
    %v9340 = vadd.f32 0.0, %v9339
    %v9341 = vpop.f32.mrb[0].mxu0
    %v9342 = vadd.f32 0.0, %v9341
    %v9343 = vpop.f32.mrb[0].mxu0
    %v9344 = vpop.f32.mrb[0].mxu0
    %9345 = vdwg.mxu0
    %9346 = vmatprep.subr.bf16.mxu0 %v6718
    %9347 = vmatpush1.bf16.msra.mxu0 %v6717
    %9348 = vmatprep.subr.bf16.mxu0 %v7326
    %9349 = vmatpush1.bf16.msra.mxu0 %v7323
    %9350 = vmatprep.subr.bf16.mxu0 0
    %9351 = vmatpush1.bf16.msra.mxu0 0
    %9352 = vmatprep.subr.bf16.mxu0 0
    %9353 = vmatpush1.bf16.msra.mxu0 0
    %9354 = vmatprep.subr.bf16.mxu0 0
    %9355 = vmatpush1.bf16.msra.mxu0 0
    %9356 = vmatprep.subr.bf16.mxu0 0
    %9357 = vmatpush1.bf16.msra.mxu0 0
    %9358 = vmatprep.subr.bf16.mxu0 0
    %9359 = vmatpush1.bf16.msra.mxu0 0
    %9360 = vmatprep.subr.bf16.mxu0 0
    %9361 = vmatpush1.bf16.msra.mxu0 0
    %9362 = vmatprep.subr.bf16.mxu0 0
    %9363 = vmatpush1.bf16.msra.mxu0 0
    %9364 = vmatprep.subr.bf16.mxu0 0
    %9365 = vmatpush1.bf16.msra.mxu0 0
    %9366 = vmatprep.subr.bf16.mxu0 0
    %9367 = vmatpush1.bf16.msra.mxu0 0
    %9368 = vmatprep.subr.bf16.mxu0 0
    %9369 = vmatpush1.bf16.msra.mxu0 0
    %9370 = vmatprep.subr.bf16.mxu0 0
    %9371 = vmatpush1.bf16.msra.mxu0 0
    %9372 = vmatprep.subr.bf16.mxu0 0
    %9373 = vmatpush1.bf16.msra.mxu0 0
    %9374 = vmatprep.subr.bf16.mxu0 0
    %9375 = vmatpush1.bf16.msra.mxu0 0
    %9376 = vmatprep.subr.bf16.mxu0 0
    %9377 = vmatpush1.bf16.msra.mxu0 0
    %9378 = vmatprep.mubr.bf16.mxu0 0
    %9379 = vmatmul.mubr.bf16.gmra.mrb[0].mxu0 %v7041
    %v9380 = vpop.f32.mrb[0].mxu0
    %v9381 = vadd.f32 0.0, %v9380
    %v9382 = vpop.f32.mrb[0].mxu0
    %v9383 = vadd.f32 0.0, %v9382
    %v9384 = vpop.f32.mrb[0].mxu0
    %v9385 = vpop.f32.mrb[0].mxu0
    %9386 = vdwg.mxu0
    %9387 = vmatprep.subr.bf16.mxu0 %v6720
    %9388 = vmatpush1.bf16.msra.mxu0 %v6719
    %9389 = vmatprep.subr.bf16.mxu0 %v7332
    %9390 = vmatpush1.bf16.msra.mxu0 %v7329
    %9391 = vmatprep.subr.bf16.mxu0 0
    %9392 = vmatpush1.bf16.msra.mxu0 0
    %9393 = vmatprep.subr.bf16.mxu0 0
    %9394 = vmatpush1.bf16.msra.mxu0 0
    %9395 = vmatprep.subr.bf16.mxu0 0
    %9396 = vmatpush1.bf16.msra.mxu0 0
    %9397 = vmatprep.subr.bf16.mxu0 0
    %9398 = vmatpush1.bf16.msra.mxu0 0
    %9399 = vmatprep.subr.bf16.mxu0 0
    %9400 = vmatpush1.bf16.msra.mxu0 0
    %9401 = vmatprep.subr.bf16.mxu0 0
    %9402 = vmatpush1.bf16.msra.mxu0 0
    %9403 = vmatprep.subr.bf16.mxu0 0
    %9404 = vmatpush1.bf16.msra.mxu0 0
    %9405 = vmatprep.subr.bf16.mxu0 0
    %9406 = vmatpush1.bf16.msra.mxu0 0
    %9407 = vmatprep.subr.bf16.mxu0 0
    %9408 = vmatpush1.bf16.msra.mxu0 0
    %9409 = vmatprep.subr.bf16.mxu0 0
    %9410 = vmatpush1.bf16.msra.mxu0 0
    %9411 = vmatprep.subr.bf16.mxu0 0
    %9412 = vmatpush1.bf16.msra.mxu0 0
    %9413 = vmatprep.subr.bf16.mxu0 0
    %9414 = vmatpush1.bf16.msra.mxu0 0
    %9415 = vmatprep.subr.bf16.mxu0 0
    %9416 = vmatpush1.bf16.msra.mxu0 0
    %9417 = vmatprep.subr.bf16.mxu0 0
    %9418 = vmatpush1.bf16.msra.mxu0 0
    %9419 = vmatprep.mubr.bf16.mxu0 0
    %9420 = vmatmul.mubr.bf16.gmra.mrb[0].mxu0 %v7041
    %v9421 = vpop.f32.mrb[0].mxu0
    %v9422 = vadd.f32 0.0, %v9421
    %v9423 = vpop.f32.mrb[0].mxu0
    %v9424 = vadd.f32 0.0, %v9423
    %v9425 = vpop.f32.mrb[0].mxu0
    %v9426 = vpop.f32.mrb[0].mxu0
    %9427 = vdwg.mxu0
    %9428 = vmatprep.subr.bf16.mxu0 %v6722
    %9429 = vmatpush1.bf16.msra.mxu0 %v6721
    %9430 = vmatprep.subr.bf16.mxu0 %v7338
    %9431 = vmatpush1.bf16.msra.mxu0 %v7335
    %9432 = vmatprep.subr.bf16.mxu0 0
    %9433 = vmatpush1.bf16.msra.mxu0 0
    %9434 = vmatprep.subr.bf16.mxu0 0
    %9435 = vmatpush1.bf16.msra.mxu0 0
    %9436 = vmatprep.subr.bf16.mxu0 0
    %9437 = vmatpush1.bf16.msra.mxu0 0
    %9438 = vmatprep.subr.bf16.mxu0 0
    %9439 = vmatpush1.bf16.msra.mxu0 0
    %9440 = vmatprep.subr.bf16.mxu0 0
    %9441 = vmatpush1.bf16.msra.mxu0 0
    %9442 = vmatprep.subr.bf16.mxu0 0
    %9443 = vmatpush1.bf16.msra.mxu0 0
    %9444 = vmatprep.subr.bf16.mxu0 0
    %9445 = vmatpush1.bf16.msra.mxu0 0
    %9446 = vmatprep.subr.bf16.mxu0 0
    %9447 = vmatpush1.bf16.msra.mxu0 0
    %9448 = vmatprep.subr.bf16.mxu0 0
    %9449 = vmatpush1.bf16.msra.mxu0 0
    %9450 = vmatprep.subr.bf16.mxu0 0
    %9451 = vmatpush1.bf16.msra.mxu0 0
    %9452 = vmatprep.subr.bf16.mxu0 0
    %9453 = vmatpush1.bf16.msra.mxu0 0
    %9454 = vmatprep.subr.bf16.mxu0 0
    %9455 = vmatpush1.bf16.msra.mxu0 0
    %9456 = vmatprep.subr.bf16.mxu0 0
    %9457 = vmatpush1.bf16.msra.mxu0 0
    %9458 = vmatprep.subr.bf16.mxu0 0
    %9459 = vmatpush1.bf16.msra.mxu0 0
    %9460 = vmatprep.mubr.bf16.mxu0 0
    %9461 = vmatmul.mubr.bf16.gmra.mrb[0].mxu0 %v7041
    %v9462 = vpop.f32.mrb[0].mxu0
    %v9463 = vadd.f32 0.0, %v9462
    %v9464 = vpop.f32.mrb[0].mxu0
    %v9465 = vadd.f32 0.0, %v9464
    %v9466 = vpop.f32.mrb[0].mxu0
    %v9467 = vpop.f32.mrb[0].mxu0
    %9468 = vdwg.mxu0
    %9469 = vmatprep.subr.bf16.mxu0 %v6724
    %9470 = vmatpush1.bf16.msra.mxu0 %v6723
    %9471 = vmatprep.subr.bf16.mxu0 %v7344
    %9472 = vmatpush1.bf16.msra.mxu0 %v7341
    %9473 = vmatprep.subr.bf16.mxu0 0
    %9474 = vmatpush1.bf16.msra.mxu0 0
    %9475 = vmatprep.subr.bf16.mxu0 0
    %9476 = vmatpush1.bf16.msra.mxu0 0
    %9477 = vmatprep.subr.bf16.mxu0 0
    %9478 = vmatpush1.bf16.msra.mxu0 0
    %9479 = vmatprep.subr.bf16.mxu0 0
    %9480 = vmatpush1.bf16.msra.mxu0 0
    %9481 = vmatprep.subr.bf16.mxu0 0
    %9482 = vmatpush1.bf16.msra.mxu0 0
    %9483 = vmatprep.subr.bf16.mxu0 0
    %9484 = vmatpush1.bf16.msra.mxu0 0
    %9485 = vmatprep.subr.bf16.mxu0 0
    %9486 = vmatpush1.bf16.msra.mxu0 0
    %9487 = vmatprep.subr.bf16.mxu0 0
    %9488 = vmatpush1.bf16.msra.mxu0 0
    %9489 = vmatprep.subr.bf16.mxu0 0
    %9490 = vmatpush1.bf16.msra.mxu0 0
    %9491 = vmatprep.subr.bf16.mxu0 0
    %9492 = vmatpush1.bf16.msra.mxu0 0
    %9493 = vmatprep.subr.bf16.mxu0 0
    %9494 = vmatpush1.bf16.msra.mxu0 0
    %9495 = vmatprep.subr.bf16.mxu0 0
    %9496 = vmatpush1.bf16.msra.mxu0 0
    %9497 = vmatprep.subr.bf16.mxu0 0
    %9498 = vmatpush1.bf16.msra.mxu0 0
    %9499 = vmatprep.subr.bf16.mxu0 0
    %9500 = vmatpush1.bf16.msra.mxu0 0
    %9501 = vmatprep.mubr.bf16.mxu0 0
    %9502 = vmatmul.mubr.bf16.gmra.mrb[0].mxu0 %v7041
    %v9503 = vpop.f32.mrb[0].mxu0
    %v9504 = vadd.f32 0.0, %v9503
    %v9505 = vpop.f32.mrb[0].mxu0
    %v9506 = vadd.f32 0.0, %v9505
    %v9507 = vpop.f32.mrb[0].mxu0
    %v9508 = vpop.f32.mrb[0].mxu0
    %9509 = vdwg.mxu0
    %9510 = vmatprep.subr.bf16.mxu0 %v6726
    %9511 = vmatpush1.bf16.msra.mxu0 %v6725
    %9512 = vmatprep.subr.bf16.mxu0 %v7350
    %9513 = vmatpush1.bf16.msra.mxu0 %v7347
    %9514 = vmatprep.subr.bf16.mxu0 0
    %9515 = vmatpush1.bf16.msra.mxu0 0
    %9516 = vmatprep.subr.bf16.mxu0 0
    %9517 = vmatpush1.bf16.msra.mxu0 0
    %9518 = vmatprep.subr.bf16.mxu0 0
    %9519 = vmatpush1.bf16.msra.mxu0 0
    %9520 = vmatprep.subr.bf16.mxu0 0
    %9521 = vmatpush1.bf16.msra.mxu0 0
    %9522 = vmatprep.subr.bf16.mxu0 0
    %9523 = vmatpush1.bf16.msra.mxu0 0
    %9524 = vmatprep.subr.bf16.mxu0 0
    %9525 = vmatpush1.bf16.msra.mxu0 0
    %9526 = vmatprep.subr.bf16.mxu0 0
    %9527 = vmatpush1.bf16.msra.mxu0 0
    %9528 = vmatprep.subr.bf16.mxu0 0
    %9529 = vmatpush1.bf16.msra.mxu0 0
    %9530 = vmatprep.subr.bf16.mxu0 0
    %9531 = vmatpush1.bf16.msra.mxu0 0
    %9532 = vmatprep.subr.bf16.mxu0 0
    %9533 = vmatpush1.bf16.msra.mxu0 0
    %9534 = vmatprep.subr.bf16.mxu0 0
    %9535 = vmatpush1.bf16.msra.mxu0 0
    %9536 = vmatprep.subr.bf16.mxu0 0
    %9537 = vmatpush1.bf16.msra.mxu0 0
    %9538 = vmatprep.subr.bf16.mxu0 0
    %9539 = vmatpush1.bf16.msra.mxu0 0
    %9540 = vmatprep.subr.bf16.mxu0 0
    %9541 = vmatpush1.bf16.msra.mxu0 0
    %9542 = vmatprep.mubr.bf16.mxu0 0
    %9543 = vmatmul.mubr.bf16.gmra.mrb[0].mxu0 %v7041
    %v9544 = vpop.f32.mrb[0].mxu0
    %v9545 = vadd.f32 0.0, %v9544
    %v9546 = vpop.f32.mrb[0].mxu0
    %v9547 = vadd.f32 0.0, %v9546
    %v9548 = vpop.f32.mrb[0].mxu0
    %v9549 = vpop.f32.mrb[0].mxu0
    %9550 = vdwg.mxu0
    %9551 = vmatprep.subr.bf16.mxu0 %v6728
    %9552 = vmatpush1.bf16.msra.mxu0 %v6727
    %9553 = vmatprep.subr.bf16.mxu0 %v7356
    %9554 = vmatpush1.bf16.msra.mxu0 %v7353
    %9555 = vmatprep.subr.bf16.mxu0 0
    %9556 = vmatpush1.bf16.msra.mxu0 0
    %9557 = vmatprep.subr.bf16.mxu0 0
    %9558 = vmatpush1.bf16.msra.mxu0 0
    %9559 = vmatprep.subr.bf16.mxu0 0
    %9560 = vmatpush1.bf16.msra.mxu0 0
    %9561 = vmatprep.subr.bf16.mxu0 0
    %9562 = vmatpush1.bf16.msra.mxu0 0
    %9563 = vmatprep.subr.bf16.mxu0 0
    %9564 = vmatpush1.bf16.msra.mxu0 0
    %9565 = vmatprep.subr.bf16.mxu0 0
    %9566 = vmatpush1.bf16.msra.mxu0 0
    %9567 = vmatprep.subr.bf16.mxu0 0
    %9568 = vmatpush1.bf16.msra.mxu0 0
    %9569 = vmatprep.subr.bf16.mxu0 0
    %9570 = vmatpush1.bf16.msra.mxu0 0
    %9571 = vmatprep.subr.bf16.mxu0 0
    %9572 = vmatpush1.bf16.msra.mxu0 0
    %9573 = vmatprep.subr.bf16.mxu0 0
    %9574 = vmatpush1.bf16.msra.mxu0 0
    %9575 = vmatprep.subr.bf16.mxu0 0
    %9576 = vmatpush1.bf16.msra.mxu0 0
    %9577 = vmatprep.subr.bf16.mxu0 0
    %9578 = vmatpush1.bf16.msra.mxu0 0
    %9579 = vmatprep.subr.bf16.mxu0 0
    %9580 = vmatpush1.bf16.msra.mxu0 0
    %9581 = vmatprep.subr.bf16.mxu0 0
    %9582 = vmatpush1.bf16.msra.mxu0 0
    %9583 = vmatprep.mubr.bf16.mxu0 0
    %9584 = vmatmul.mubr.bf16.gmra.mrb[0].mxu0 %v7041
    %v9585 = vpop.f32.mrb[0].mxu0
    %v9586 = vadd.f32 0.0, %v9585
    %v9587 = vpop.f32.mrb[0].mxu0
    %v9588 = vadd.f32 0.0, %v9587
    %v9589 = vpop.f32.mrb[0].mxu0
    %v9590 = vpop.f32.mrb[0].mxu0
    %9591 = vdwg.mxu0
    %9592 = vmatprep.subr.bf16.mxu0 %v6730
    %9593 = vmatpush1.bf16.msra.mxu0 %v6729
    %9594 = vmatprep.subr.bf16.mxu0 %v7362
    %9595 = vmatpush1.bf16.msra.mxu0 %v7359
    %9596 = vmatprep.subr.bf16.mxu0 0
    %9597 = vmatpush1.bf16.msra.mxu0 0
    %9598 = vmatprep.subr.bf16.mxu0 0
    %9599 = vmatpush1.bf16.msra.mxu0 0
    %9600 = vmatprep.subr.bf16.mxu0 0
    %9601 = vmatpush1.bf16.msra.mxu0 0
    %9602 = vmatprep.subr.bf16.mxu0 0
    %9603 = vmatpush1.bf16.msra.mxu0 0
    %9604 = vmatprep.subr.bf16.mxu0 0
    %9605 = vmatpush1.bf16.msra.mxu0 0
    %9606 = vmatprep.subr.bf16.mxu0 0
    %9607 = vmatpush1.bf16.msra.mxu0 0
    %9608 = vmatprep.subr.bf16.mxu0 0
    %9609 = vmatpush1.bf16.msra.mxu0 0
    %9610 = vmatprep.subr.bf16.mxu0 0
    %9611 = vmatpush1.bf16.msra.mxu0 0
    %9612 = vmatprep.subr.bf16.mxu0 0
    %9613 = vmatpush1.bf16.msra.mxu0 0
    %9614 = vmatprep.subr.bf16.mxu0 0
    %9615 = vmatpush1.bf16.msra.mxu0 0
    %9616 = vmatprep.subr.bf16.mxu0 0
    %9617 = vmatpush1.bf16.msra.mxu0 0
    %9618 = vmatprep.subr.bf16.mxu0 0
    %9619 = vmatpush1.bf16.msra.mxu0 0
    %9620 = vmatprep.subr.bf16.mxu0 0
    %9621 = vmatpush1.bf16.msra.mxu0 0
    %9622 = vmatprep.subr.bf16.mxu0 0
    %9623 = vmatpush1.bf16.msra.mxu0 0
    %9624 = vmatprep.mubr.bf16.mxu0 0
    %9625 = vmatmul.mubr.bf16.gmra.mrb[0].mxu0 %v7041
    %v9626 = vpop.f32.mrb[0].mxu0
    %v9627 = vadd.f32 0.0, %v9626
    %v9628 = vpop.f32.mrb[0].mxu0
    %v9629 = vadd.f32 0.0, %v9628
    %v9630 = vpop.f32.mrb[0].mxu0
    %v9631 = vpop.f32.mrb[0].mxu0
    %9632 = vdwg.mxu0
    %9633 = vmatprep.subr.bf16.mxu0 %v6732
    %9634 = vmatpush1.bf16.msra.mxu0 %v6731
    %9635 = vmatprep.subr.bf16.mxu0 %v7368
    %9636 = vmatpush1.bf16.msra.mxu0 %v7365
    %9637 = vmatprep.subr.bf16.mxu0 0
    %9638 = vmatpush1.bf16.msra.mxu0 0
    %9639 = vmatprep.subr.bf16.mxu0 0
    %9640 = vmatpush1.bf16.msra.mxu0 0
    %9641 = vmatprep.subr.bf16.mxu0 0
    %9642 = vmatpush1.bf16.msra.mxu0 0
    %9643 = vmatprep.subr.bf16.mxu0 0
    %9644 = vmatpush1.bf16.msra.mxu0 0
    %9645 = vmatprep.subr.bf16.mxu0 0
    %9646 = vmatpush1.bf16.msra.mxu0 0
    %9647 = vmatprep.subr.bf16.mxu0 0
    %9648 = vmatpush1.bf16.msra.mxu0 0
    %9649 = vmatprep.subr.bf16.mxu0 0
    %9650 = vmatpush1.bf16.msra.mxu0 0
    %9651 = vmatprep.subr.bf16.mxu0 0
    %9652 = vmatpush1.bf16.msra.mxu0 0
    %9653 = vmatprep.subr.bf16.mxu0 0
    %9654 = vmatpush1.bf16.msra.mxu0 0
    %9655 = vmatprep.subr.bf16.mxu0 0
    %9656 = vmatpush1.bf16.msra.mxu0 0
    %9657 = vmatprep.subr.bf16.mxu0 0
    %9658 = vmatpush1.bf16.msra.mxu0 0
    %9659 = vmatprep.subr.bf16.mxu0 0
    %9660 = vmatpush1.bf16.msra.mxu0 0
    %9661 = vmatprep.subr.bf16.mxu0 0
    %9662 = vmatpush1.bf16.msra.mxu0 0
    %9663 = vmatprep.subr.bf16.mxu0 0
    %9664 = vmatpush1.bf16.msra.mxu0 0
    %9665 = vmatprep.mubr.bf16.mxu0 0
    %9666 = vmatmul.mubr.bf16.gmra.mrb[0].mxu0 %v7041
    %v9667 = vpop.f32.mrb[0].mxu0
    %v9668 = vadd.f32 0.0, %v9667
    %v9669 = vpop.f32.mrb[0].mxu0
    %v9670 = vadd.f32 0.0, %v9669
    %v9671 = vpop.f32.mrb[0].mxu0
    %v9672 = vpop.f32.mrb[0].mxu0
    %9673 = vdwg.mxu0
    %9674 = vmatprep.subr.bf16.mxu0 %v6734
    %9675 = vmatpush1.bf16.msra.mxu0 %v6733
    %9676 = vmatprep.subr.bf16.mxu0 %v7374
    %9677 = vmatpush1.bf16.msra.mxu0 %v7371
    %9678 = vmatprep.subr.bf16.mxu0 0
    %9679 = vmatpush1.bf16.msra.mxu0 0
    %9680 = vmatprep.subr.bf16.mxu0 0
    %9681 = vmatpush1.bf16.msra.mxu0 0
    %9682 = vmatprep.subr.bf16.mxu0 0
    %9683 = vmatpush1.bf16.msra.mxu0 0
    %9684 = vmatprep.subr.bf16.mxu0 0
    %9685 = vmatpush1.bf16.msra.mxu0 0
    %9686 = vmatprep.subr.bf16.mxu0 0
    %9687 = vmatpush1.bf16.msra.mxu0 0
    %9688 = vmatprep.subr.bf16.mxu0 0
    %9689 = vmatpush1.bf16.msra.mxu0 0
    %9690 = vmatprep.subr.bf16.mxu0 0
    %9691 = vmatpush1.bf16.msra.mxu0 0
    %9692 = vmatprep.subr.bf16.mxu0 0
    %9693 = vmatpush1.bf16.msra.mxu0 0
    %9694 = vmatprep.subr.bf16.mxu0 0
    %9695 = vmatpush1.bf16.msra.mxu0 0
    %9696 = vmatprep.subr.bf16.mxu0 0
    %9697 = vmatpush1.bf16.msra.mxu0 0
    %9698 = vmatprep.subr.bf16.mxu0 0
    %9699 = vmatpush1.bf16.msra.mxu0 0
    %9700 = vmatprep.subr.bf16.mxu0 0
    %9701 = vmatpush1.bf16.msra.mxu0 0
    %9702 = vmatprep.subr.bf16.mxu0 0
    %9703 = vmatpush1.bf16.msra.mxu0 0
    %9704 = vmatprep.subr.bf16.mxu0 0
    %9705 = vmatpush1.bf16.msra.mxu0 0
    %9706 = vmatprep.mubr.bf16.mxu0 0
    %9707 = vmatmul.mubr.bf16.gmra.mrb[0].mxu0 %v7041
    %v9708 = vpop.f32.mrb[0].mxu0
    %v9709 = vadd.f32 0.0, %v9708
    %v9710 = vpop.f32.mrb[0].mxu0
    %v9711 = vadd.f32 0.0, %v9710
    %v9712 = vpop.f32.mrb[0].mxu0
    %v9713 = vpop.f32.mrb[0].mxu0
    %9714 = vdwg.mxu0
    %9715 = vmatprep.subr.bf16.mxu0 %v6736
    %9716 = vmatpush1.bf16.msra.mxu0 %v6735
    %9717 = vmatprep.subr.bf16.mxu0 %v7380
    %9718 = vmatpush1.bf16.msra.mxu0 %v7377
    %9719 = vmatprep.subr.bf16.mxu0 0
    %9720 = vmatpush1.bf16.msra.mxu0 0
    %9721 = vmatprep.subr.bf16.mxu0 0
    %9722 = vmatpush1.bf16.msra.mxu0 0
    %9723 = vmatprep.subr.bf16.mxu0 0
    %9724 = vmatpush1.bf16.msra.mxu0 0
    %9725 = vmatprep.subr.bf16.mxu0 0
    %9726 = vmatpush1.bf16.msra.mxu0 0
    %9727 = vmatprep.subr.bf16.mxu0 0
    %9728 = vmatpush1.bf16.msra.mxu0 0
    %9729 = vmatprep.subr.bf16.mxu0 0
    %9730 = vmatpush1.bf16.msra.mxu0 0
    %9731 = vmatprep.subr.bf16.mxu0 0
    %9732 = vmatpush1.bf16.msra.mxu0 0
    %9733 = vmatprep.subr.bf16.mxu0 0
    %9734 = vmatpush1.bf16.msra.mxu0 0
    %9735 = vmatprep.subr.bf16.mxu0 0
    %9736 = vmatpush1.bf16.msra.mxu0 0
    %9737 = vmatprep.subr.bf16.mxu0 0
    %9738 = vmatpush1.bf16.msra.mxu0 0
    %9739 = vmatprep.subr.bf16.mxu0 0
    %9740 = vmatpush1.bf16.msra.mxu0 0
    %9741 = vmatprep.subr.bf16.mxu0 0
    %9742 = vmatpush1.bf16.msra.mxu0 0
    %9743 = vmatprep.subr.bf16.mxu0 0
    %9744 = vmatpush1.bf16.msra.mxu0 0
    %9745 = vmatprep.subr.bf16.mxu0 0
    %9746 = vmatpush1.bf16.msra.mxu0 0
    %9747 = vmatprep.mubr.bf16.mxu0 0
    %9748 = vmatmul.mubr.bf16.gmra.mrb[0].mxu0 %v7041
    %v9749 = vpop.f32.mrb[0].mxu0
    %v9750 = vadd.f32 0.0, %v9749
    %v9751 = vpop.f32.mrb[0].mxu0
    %v9752 = vadd.f32 0.0, %v9751
    %v9753 = vpop.f32.mrb[0].mxu0
    %v9754 = vpop.f32.mrb[0].mxu0
    %9755 = vdwg.mxu0
    %9756 = vmatprep.subr.bf16.mxu0 %v6738
    %9757 = vmatpush1.bf16.msra.mxu0 %v6737
    %9758 = vmatprep.subr.bf16.mxu0 %v7386
    %9759 = vmatpush1.bf16.msra.mxu0 %v7383
    %9760 = vmatprep.subr.bf16.mxu0 0
    %9761 = vmatpush1.bf16.msra.mxu0 0
    %9762 = vmatprep.subr.bf16.mxu0 0
    %9763 = vmatpush1.bf16.msra.mxu0 0
    %9764 = vmatprep.subr.bf16.mxu0 0
    %9765 = vmatpush1.bf16.msra.mxu0 0
    %9766 = vmatprep.subr.bf16.mxu0 0
    %9767 = vmatpush1.bf16.msra.mxu0 0
    %9768 = vmatprep.subr.bf16.mxu0 0
    %9769 = vmatpush1.bf16.msra.mxu0 0
    %9770 = vmatprep.subr.bf16.mxu0 0
    %9771 = vmatpush1.bf16.msra.mxu0 0
    %9772 = vmatprep.subr.bf16.mxu0 0
    %9773 = vmatpush1.bf16.msra.mxu0 0
    %9774 = vmatprep.subr.bf16.mxu0 0
    %9775 = vmatpush1.bf16.msra.mxu0 0
    %9776 = vmatprep.subr.bf16.mxu0 0
    %9777 = vmatpush1.bf16.msra.mxu0 0
    %9778 = vmatprep.subr.bf16.mxu0 0
    %9779 = vmatpush1.bf16.msra.mxu0 0
    %9780 = vmatprep.subr.bf16.mxu0 0
    %9781 = vmatpush1.bf16.msra.mxu0 0
    %9782 = vmatprep.subr.bf16.mxu0 0
    %9783 = vmatpush1.bf16.msra.mxu0 0
    %9784 = vmatprep.subr.bf16.mxu0 0
    %9785 = vmatpush1.bf16.msra.mxu0 0
    %9786 = vmatprep.subr.bf16.mxu0 0
    %9787 = vmatpush1.bf16.msra.mxu0 0
    %9788 = vmatprep.mubr.bf16.mxu0 0
    %9789 = vmatmul.mubr.bf16.gmra.mrb[0].mxu0 %v7041
    %v9790 = vpop.f32.mrb[0].mxu0
    %v9791 = vadd.f32 0.0, %v9790
    %v9792 = vpop.f32.mrb[0].mxu0
    %v9793 = vadd.f32 0.0, %v9792
    %v9794 = vpop.f32.mrb[0].mxu0
    %v9795 = vpop.f32.mrb[0].mxu0
    %9796 = vdwg.mxu0
    %9797 = vmatprep.subr.bf16.mxu0 %v6740
    %9798 = vmatpush1.bf16.msra.mxu0 %v6739
    %9799 = vmatprep.subr.bf16.mxu0 %v7392
    %9800 = vmatpush1.bf16.msra.mxu0 %v7389
    %9801 = vmatprep.subr.bf16.mxu0 0
    %9802 = vmatpush1.bf16.msra.mxu0 0
    %9803 = vmatprep.subr.bf16.mxu0 0
    %9804 = vmatpush1.bf16.msra.mxu0 0
    %9805 = vmatprep.subr.bf16.mxu0 0
    %9806 = vmatpush1.bf16.msra.mxu0 0
    %9807 = vmatprep.subr.bf16.mxu0 0
    %9808 = vmatpush1.bf16.msra.mxu0 0
    %9809 = vmatprep.subr.bf16.mxu0 0
    %9810 = vmatpush1.bf16.msra.mxu0 0
    %9811 = vmatprep.subr.bf16.mxu0 0
    %9812 = vmatpush1.bf16.msra.mxu0 0
    %9813 = vmatprep.subr.bf16.mxu0 0
    %9814 = vmatpush1.bf16.msra.mxu0 0
    %9815 = vmatprep.subr.bf16.mxu0 0
    %9816 = vmatpush1.bf16.msra.mxu0 0
    %9817 = vmatprep.subr.bf16.mxu0 0
    %9818 = vmatpush1.bf16.msra.mxu0 0
    %9819 = vmatprep.subr.bf16.mxu0 0
    %9820 = vmatpush1.bf16.msra.mxu0 0
    %9821 = vmatprep.subr.bf16.mxu0 0
    %9822 = vmatpush1.bf16.msra.mxu0 0
    %9823 = vmatprep.subr.bf16.mxu0 0
    %9824 = vmatpush1.bf16.msra.mxu0 0
    %9825 = vmatprep.subr.bf16.mxu0 0
    %9826 = vmatpush1.bf16.msra.mxu0 0
    %9827 = vmatprep.subr.bf16.mxu0 0
    %9828 = vmatpush1.bf16.msra.mxu0 0
    %9829 = vmatprep.mubr.bf16.mxu0 0
    %9830 = vmatmul.mubr.bf16.gmra.mrb[0].mxu0 %v7041
    %v9831 = vpop.f32.mrb[0].mxu0
    %v9832 = vadd.f32 0.0, %v9831
    %v9833 = vpop.f32.mrb[0].mxu0
    %v9834 = vadd.f32 0.0, %v9833
    %v9835 = vpop.f32.mrb[0].mxu0
    %v9836 = vpop.f32.mrb[0].mxu0
    %9837 = vdwg.mxu0
    %9838 = vmatprep.subr.bf16.mxu0 %v6742
    %9839 = vmatpush1.bf16.msra.mxu0 %v6741
    %9840 = vmatprep.subr.bf16.mxu0 %v7398
    %9841 = vmatpush1.bf16.msra.mxu0 %v7395
    %9842 = vmatprep.subr.bf16.mxu0 0
    %9843 = vmatpush1.bf16.msra.mxu0 0
    %9844 = vmatprep.subr.bf16.mxu0 0
    %9845 = vmatpush1.bf16.msra.mxu0 0
    %9846 = vmatprep.subr.bf16.mxu0 0
    %9847 = vmatpush1.bf16.msra.mxu0 0
    %9848 = vmatprep.subr.bf16.mxu0 0
    %9849 = vmatpush1.bf16.msra.mxu0 0
    %9850 = vmatprep.subr.bf16.mxu0 0
    %9851 = vmatpush1.bf16.msra.mxu0 0
    %9852 = vmatprep.subr.bf16.mxu0 0
    %9853 = vmatpush1.bf16.msra.mxu0 0
    %9854 = vmatprep.subr.bf16.mxu0 0
    %9855 = vmatpush1.bf16.msra.mxu0 0
    %9856 = vmatprep.subr.bf16.mxu0 0
    %9857 = vmatpush1.bf16.msra.mxu0 0
    %9858 = vmatprep.subr.bf16.mxu0 0
    %9859 = vmatpush1.bf16.msra.mxu0 0
    %9860 = vmatprep.subr.bf16.mxu0 0
    %9861 = vmatpush1.bf16.msra.mxu0 0
    %9862 = vmatprep.subr.bf16.mxu0 0
    %9863 = vmatpush1.bf16.msra.mxu0 0
    %9864 = vmatprep.subr.bf16.mxu0 0
    %9865 = vmatpush1.bf16.msra.mxu0 0
    %9866 = vmatprep.subr.bf16.mxu0 0
    %9867 = vmatpush1.bf16.msra.mxu0 0
    %9868 = vmatprep.subr.bf16.mxu0 0
    %9869 = vmatpush1.bf16.msra.mxu0 0
    %9870 = vmatprep.mubr.bf16.mxu0 0
    %9871 = vmatmul.mubr.bf16.gmra.mrb[0].mxu0 %v7041
    %v9872 = vpop.f32.mrb[0].mxu0
    %v9873 = vadd.f32 0.0, %v9872
    %v9874 = vpop.f32.mrb[0].mxu0
    %v9875 = vadd.f32 0.0, %v9874
    %v9876 = vpop.f32.mrb[0].mxu0
    %v9877 = vpop.f32.mrb[0].mxu0
    %9878 = vdwg.mxu0
    %9879 = vmatprep.subr.bf16.mxu0 %v6744
    %9880 = vmatpush1.bf16.msra.mxu0 %v6743
    %9881 = vmatprep.subr.bf16.mxu0 %v7404
    %9882 = vmatpush1.bf16.msra.mxu0 %v7401
    %9883 = vmatprep.subr.bf16.mxu0 0
    %9884 = vmatpush1.bf16.msra.mxu0 0
    %9885 = vmatprep.subr.bf16.mxu0 0
    %9886 = vmatpush1.bf16.msra.mxu0 0
    %9887 = vmatprep.subr.bf16.mxu0 0
    %9888 = vmatpush1.bf16.msra.mxu0 0
    %9889 = vmatprep.subr.bf16.mxu0 0
    %9890 = vmatpush1.bf16.msra.mxu0 0
    %9891 = vmatprep.subr.bf16.mxu0 0
    %9892 = vmatpush1.bf16.msra.mxu0 0
    %9893 = vmatprep.subr.bf16.mxu0 0
    %9894 = vmatpush1.bf16.msra.mxu0 0
    %9895 = vmatprep.subr.bf16.mxu0 0
    %9896 = vmatpush1.bf16.msra.mxu0 0
    %9897 = vmatprep.subr.bf16.mxu0 0
    %9898 = vmatpush1.bf16.msra.mxu0 0
    %9899 = vmatprep.subr.bf16.mxu0 0
    %9900 = vmatpush1.bf16.msra.mxu0 0
    %9901 = vmatprep.subr.bf16.mxu0 0
    %9902 = vmatpush1.bf16.msra.mxu0 0
    %9903 = vmatprep.subr.bf16.mxu0 0
    %9904 = vmatpush1.bf16.msra.mxu0 0
    %9905 = vmatprep.subr.bf16.mxu0 0
    %9906 = vmatpush1.bf16.msra.mxu0 0
    %9907 = vmatprep.subr.bf16.mxu0 0
    %9908 = vmatpush1.bf16.msra.mxu0 0
    %9909 = vmatprep.subr.bf16.mxu0 0
    %9910 = vmatpush1.bf16.msra.mxu0 0
    %9911 = vmatprep.mubr.bf16.mxu0 0
    %9912 = vmatmul.mubr.bf16.gmra.mrb[0].mxu0 %v7041
    %v9913 = vpop.f32.mrb[0].mxu0
    %v9914 = vadd.f32 0.0, %v9913
    %v9915 = vpop.f32.mrb[0].mxu0
    %v9916 = vadd.f32 0.0, %v9915
    %v9917 = vpop.f32.mrb[0].mxu0
    %v9918 = vpop.f32.mrb[0].mxu0
    %9919 = vdwg.mxu0
    %9920 = vmatprep.subr.bf16.mxu0 %v6746
    %9921 = vmatpush1.bf16.msra.mxu0 %v6745
    %9922 = vmatprep.subr.bf16.mxu0 %v7410
    %9923 = vmatpush1.bf16.msra.mxu0 %v7407
    %9924 = vmatprep.subr.bf16.mxu0 0
    %9925 = vmatpush1.bf16.msra.mxu0 0
    %9926 = vmatprep.subr.bf16.mxu0 0
    %9927 = vmatpush1.bf16.msra.mxu0 0
    %9928 = vmatprep.subr.bf16.mxu0 0
    %9929 = vmatpush1.bf16.msra.mxu0 0
    %9930 = vmatprep.subr.bf16.mxu0 0
    %9931 = vmatpush1.bf16.msra.mxu0 0
    %9932 = vmatprep.subr.bf16.mxu0 0
    %9933 = vmatpush1.bf16.msra.mxu0 0
    %9934 = vmatprep.subr.bf16.mxu0 0
    %9935 = vmatpush1.bf16.msra.mxu0 0
    %9936 = vmatprep.subr.bf16.mxu0 0
    %9937 = vmatpush1.bf16.msra.mxu0 0
    %9938 = vmatprep.subr.bf16.mxu0 0
    %9939 = vmatpush1.bf16.msra.mxu0 0
    %9940 = vmatprep.subr.bf16.mxu0 0
    %9941 = vmatpush1.bf16.msra.mxu0 0
    %9942 = vmatprep.subr.bf16.mxu0 0
    %9943 = vmatpush1.bf16.msra.mxu0 0
    %9944 = vmatprep.subr.bf16.mxu0 0
    %9945 = vmatpush1.bf16.msra.mxu0 0
    %9946 = vmatprep.subr.bf16.mxu0 0
    %9947 = vmatpush1.bf16.msra.mxu0 0
    %9948 = vmatprep.subr.bf16.mxu0 0
    %9949 = vmatpush1.bf16.msra.mxu0 0
    %9950 = vmatprep.subr.bf16.mxu0 0
    %9951 = vmatpush1.bf16.msra.mxu0 0
    %9952 = vmatprep.mubr.bf16.mxu0 0
    %9953 = vmatmul.mubr.bf16.gmra.mrb[0].mxu0 %v7041
    %v9954 = vpop.f32.mrb[0].mxu0
    %v9955 = vadd.f32 0.0, %v9954
    %v9956 = vpop.f32.mrb[0].mxu0
    %v9957 = vadd.f32 0.0, %v9956
    %v9958 = vpop.f32.mrb[0].mxu0
    %v9959 = vpop.f32.mrb[0].mxu0
    %9960 = vdwg.mxu0
    %9961 = vmatprep.subr.bf16.mxu0 %v6748
    %9962 = vmatpush1.bf16.msra.mxu0 %v6747
    %9963 = vmatprep.subr.bf16.mxu0 %v7416
    %9964 = vmatpush1.bf16.msra.mxu0 %v7413
    %9965 = vmatprep.subr.bf16.mxu0 0
    %9966 = vmatpush1.bf16.msra.mxu0 0
    %9967 = vmatprep.subr.bf16.mxu0 0
    %9968 = vmatpush1.bf16.msra.mxu0 0
    %9969 = vmatprep.subr.bf16.mxu0 0
    %9970 = vmatpush1.bf16.msra.mxu0 0
    %9971 = vmatprep.subr.bf16.mxu0 0
    %9972 = vmatpush1.bf16.msra.mxu0 0
    %9973 = vmatprep.subr.bf16.mxu0 0
    %9974 = vmatpush1.bf16.msra.mxu0 0
    %9975 = vmatprep.subr.bf16.mxu0 0
    %9976 = vmatpush1.bf16.msra.mxu0 0
    %9977 = vmatprep.subr.bf16.mxu0 0
    %9978 = vmatpush1.bf16.msra.mxu0 0
    %9979 = vmatprep.subr.bf16.mxu0 0
    %9980 = vmatpush1.bf16.msra.mxu0 0
    %9981 = vmatprep.subr.bf16.mxu0 0
    %9982 = vmatpush1.bf16.msra.mxu0 0
    %9983 = vmatprep.subr.bf16.mxu0 0
    %9984 = vmatpush1.bf16.msra.mxu0 0
    %9985 = vmatprep.subr.bf16.mxu0 0
    %9986 = vmatpush1.bf16.msra.mxu0 0
    %9987 = vmatprep.subr.bf16.mxu0 0
    %9988 = vmatpush1.bf16.msra.mxu0 0
    %9989 = vmatprep.subr.bf16.mxu0 0
    %9990 = vmatpush1.bf16.msra.mxu0 0
    %9991 = vmatprep.subr.bf16.mxu0 0
    %9992 = vmatpush1.bf16.msra.mxu0 0
    %9993 = vmatprep.mubr.bf16.mxu0 0
    %9994 = vmatmul.mubr.bf16.gmra.mrb[0].mxu0 %v7041
    %v9995 = vpop.f32.mrb[0].mxu0
    %v9996 = vadd.f32 0.0, %v9995
    %v9997 = vpop.f32.mrb[0].mxu0
    %v9998 = vadd.f32 0.0, %v9997
    %v9999 = vpop.f32.mrb[0].mxu0
    %v10000 = vpop.f32.mrb[0].mxu0
    %10001 = vdwg.mxu0
    %10002 = vmatprep.subr.bf16.mxu0 %v6750
    %10003 = vmatpush1.bf16.msra.mxu0 %v6749
    %10004 = vmatprep.subr.bf16.mxu0 %v7422
    %10005 = vmatpush1.bf16.msra.mxu0 %v7419
    %10006 = vmatprep.subr.bf16.mxu0 0
    %10007 = vmatpush1.bf16.msra.mxu0 0
    %10008 = vmatprep.subr.bf16.mxu0 0
    %10009 = vmatpush1.bf16.msra.mxu0 0
    %10010 = vmatprep.subr.bf16.mxu0 0
    %10011 = vmatpush1.bf16.msra.mxu0 0
    %10012 = vmatprep.subr.bf16.mxu0 0
    %10013 = vmatpush1.bf16.msra.mxu0 0
    %10014 = vmatprep.subr.bf16.mxu0 0
    %10015 = vmatpush1.bf16.msra.mxu0 0
    %10016 = vmatprep.subr.bf16.mxu0 0
    %10017 = vmatpush1.bf16.msra.mxu0 0
    %10018 = vmatprep.subr.bf16.mxu0 0
    %10019 = vmatpush1.bf16.msra.mxu0 0
    %10020 = vmatprep.subr.bf16.mxu0 0
    %10021 = vmatpush1.bf16.msra.mxu0 0
    %10022 = vmatprep.subr.bf16.mxu0 0
    %10023 = vmatpush1.bf16.msra.mxu0 0
    %10024 = vmatprep.subr.bf16.mxu0 0
    %10025 = vmatpush1.bf16.msra.mxu0 0
    %10026 = vmatprep.subr.bf16.mxu0 0
    %10027 = vmatpush1.bf16.msra.mxu0 0
    %10028 = vmatprep.subr.bf16.mxu0 0
    %10029 = vmatpush1.bf16.msra.mxu0 0
    %10030 = vmatprep.subr.bf16.mxu0 0
    %10031 = vmatpush1.bf16.msra.mxu0 0
    %10032 = vmatprep.subr.bf16.mxu0 0
    %10033 = vmatpush1.bf16.msra.mxu0 0
    %10034 = vmatprep.mubr.bf16.mxu0 0
    %10035 = vmatmul.mubr.bf16.gmra.mrb[0].mxu0 %v7041
    %v10036 = vpop.f32.mrb[0].mxu0
    %v10037 = vadd.f32 0.0, %v10036
    %v10038 = vpop.f32.mrb[0].mxu0
    %v10039 = vadd.f32 0.0, %v10038
    %v10040 = vpop.f32.mrb[0].mxu0
    %v10041 = vpop.f32.mrb[0].mxu0
    %10042 = vdwg.mxu0
    %10043 = vmatprep.subr.bf16.mxu0 %v6752
    %10044 = vmatpush1.bf16.msra.mxu0 %v6751
    %10045 = vmatprep.subr.bf16.mxu0 %v7428
    %10046 = vmatpush1.bf16.msra.mxu0 %v7425
    %10047 = vmatprep.subr.bf16.mxu0 0
    %10048 = vmatpush1.bf16.msra.mxu0 0
    %10049 = vmatprep.subr.bf16.mxu0 0
    %10050 = vmatpush1.bf16.msra.mxu0 0
    %10051 = vmatprep.subr.bf16.mxu0 0
    %10052 = vmatpush1.bf16.msra.mxu0 0
    %10053 = vmatprep.subr.bf16.mxu0 0
    %10054 = vmatpush1.bf16.msra.mxu0 0
    %10055 = vmatprep.subr.bf16.mxu0 0
    %10056 = vmatpush1.bf16.msra.mxu0 0
    %10057 = vmatprep.subr.bf16.mxu0 0
    %10058 = vmatpush1.bf16.msra.mxu0 0
    %10059 = vmatprep.subr.bf16.mxu0 0
    %10060 = vmatpush1.bf16.msra.mxu0 0
    %10061 = vmatprep.subr.bf16.mxu0 0
    %10062 = vmatpush1.bf16.msra.mxu0 0
    %10063 = vmatprep.subr.bf16.mxu0 0
    %10064 = vmatpush1.bf16.msra.mxu0 0
    %10065 = vmatprep.subr.bf16.mxu0 0
    %10066 = vmatpush1.bf16.msra.mxu0 0
    %10067 = vmatprep.subr.bf16.mxu0 0
    %10068 = vmatpush1.bf16.msra.mxu0 0
    %10069 = vmatprep.subr.bf16.mxu0 0
    %10070 = vmatpush1.bf16.msra.mxu0 0
    %10071 = vmatprep.subr.bf16.mxu0 0
    %10072 = vmatpush1.bf16.msra.mxu0 0
    %10073 = vmatprep.subr.bf16.mxu0 0
    %10074 = vmatpush1.bf16.msra.mxu0 0
    %10075 = vmatprep.mubr.bf16.mxu0 0
    %10076 = vmatmul.mubr.bf16.gmra.mrb[0].mxu0 %v7041
    %v10077 = vpop.f32.mrb[0].mxu0
    %v10078 = vadd.f32 0.0, %v10077
    %v10079 = vpop.f32.mrb[0].mxu0
    %v10080 = vadd.f32 0.0, %v10079
    %v10081 = vpop.f32.mrb[0].mxu0
    %v10082 = vpop.f32.mrb[0].mxu0
    %10083 = vdwg.mxu0
    %10084 = vmatprep.subr.bf16.mxu0 %v6754
    %10085 = vmatpush1.bf16.msra.mxu0 %v6753
    %10086 = vmatprep.subr.bf16.mxu0 %v7434
    %10087 = vmatpush1.bf16.msra.mxu0 %v7431
    %10088 = vmatprep.subr.bf16.mxu0 0
    %10089 = vmatpush1.bf16.msra.mxu0 0
    %10090 = vmatprep.subr.bf16.mxu0 0
    %10091 = vmatpush1.bf16.msra.mxu0 0
    %10092 = vmatprep.subr.bf16.mxu0 0
    %10093 = vmatpush1.bf16.msra.mxu0 0
    %10094 = vmatprep.subr.bf16.mxu0 0
    %10095 = vmatpush1.bf16.msra.mxu0 0
    %10096 = vmatprep.subr.bf16.mxu0 0
    %10097 = vmatpush1.bf16.msra.mxu0 0
    %10098 = vmatprep.subr.bf16.mxu0 0
    %10099 = vmatpush1.bf16.msra.mxu0 0
    %10100 = vmatprep.subr.bf16.mxu0 0
    %10101 = vmatpush1.bf16.msra.mxu0 0
    %10102 = vmatprep.subr.bf16.mxu0 0
    %10103 = vmatpush1.bf16.msra.mxu0 0
    %10104 = vmatprep.subr.bf16.mxu0 0
    %10105 = vmatpush1.bf16.msra.mxu0 0
    %10106 = vmatprep.subr.bf16.mxu0 0
    %10107 = vmatpush1.bf16.msra.mxu0 0
    %10108 = vmatprep.subr.bf16.mxu0 0
    %10109 = vmatpush1.bf16.msra.mxu0 0
    %10110 = vmatprep.subr.bf16.mxu0 0
    %10111 = vmatpush1.bf16.msra.mxu0 0
    %10112 = vmatprep.subr.bf16.mxu0 0
    %10113 = vmatpush1.bf16.msra.mxu0 0
    %10114 = vmatprep.subr.bf16.mxu0 0
    %10115 = vmatpush1.bf16.msra.mxu0 0
    %10116 = vmatprep.mubr.bf16.mxu0 0
    %10117 = vmatmul.mubr.bf16.gmra.mrb[0].mxu0 %v7041
    %v10118 = vpop.f32.mrb[0].mxu0
    %v10119 = vadd.f32 0.0, %v10118
    %v10120 = vpop.f32.mrb[0].mxu0
    %v10121 = vadd.f32 0.0, %v10120
    %v10122 = vpop.f32.mrb[0].mxu0
    %v10123 = vpop.f32.mrb[0].mxu0
    %10124 = vdwg.mxu0
    %10125 = vmatprep.subr.bf16.mxu0 %v6756
    %10126 = vmatpush1.bf16.msra.mxu0 %v6755
    %10127 = vmatprep.subr.bf16.mxu0 %v7440
    %10128 = vmatpush1.bf16.msra.mxu0 %v7437
    %10129 = vmatprep.subr.bf16.mxu0 0
    %10130 = vmatpush1.bf16.msra.mxu0 0
    %10131 = vmatprep.subr.bf16.mxu0 0
    %10132 = vmatpush1.bf16.msra.mxu0 0
    %10133 = vmatprep.subr.bf16.mxu0 0
    %10134 = vmatpush1.bf16.msra.mxu0 0
    %10135 = vmatprep.subr.bf16.mxu0 0
    %10136 = vmatpush1.bf16.msra.mxu0 0
    %10137 = vmatprep.subr.bf16.mxu0 0
    %10138 = vmatpush1.bf16.msra.mxu0 0
    %10139 = vmatprep.subr.bf16.mxu0 0
    %10140 = vmatpush1.bf16.msra.mxu0 0
    %10141 = vmatprep.subr.bf16.mxu0 0
    %10142 = vmatpush1.bf16.msra.mxu0 0
    %10143 = vmatprep.subr.bf16.mxu0 0
    %10144 = vmatpush1.bf16.msra.mxu0 0
    %10145 = vmatprep.subr.bf16.mxu0 0
    %10146 = vmatpush1.bf16.msra.mxu0 0
    %10147 = vmatprep.subr.bf16.mxu0 0
    %10148 = vmatpush1.bf16.msra.mxu0 0
    %10149 = vmatprep.subr.bf16.mxu0 0
    %10150 = vmatpush1.bf16.msra.mxu0 0
    %10151 = vmatprep.subr.bf16.mxu0 0
    %10152 = vmatpush1.bf16.msra.mxu0 0
    %10153 = vmatprep.subr.bf16.mxu0 0
    %10154 = vmatpush1.bf16.msra.mxu0 0
    %10155 = vmatprep.subr.bf16.mxu0 0
    %10156 = vmatpush1.bf16.msra.mxu0 0
    %10157 = vmatprep.mubr.bf16.mxu0 0
    %10158 = vmatmul.mubr.bf16.gmra.mrb[0].mxu0 %v7041
    %v10159 = vpop.f32.mrb[0].mxu0
    %v10160 = vadd.f32 0.0, %v10159
    %v10161 = vpop.f32.mrb[0].mxu0
    %v10162 = vadd.f32 0.0, %v10161
    %v10163 = vpop.f32.mrb[0].mxu0
    %v10164 = vpop.f32.mrb[0].mxu0
    %10165 = vdwg.mxu0
    %10166 = vmatprep.subr.bf16.mxu0 %v6758
    %10167 = vmatpush1.bf16.msra.mxu0 %v6757
    %10168 = vmatprep.subr.bf16.mxu0 %v7446
    %10169 = vmatpush1.bf16.msra.mxu0 %v7443
    %10170 = vmatprep.subr.bf16.mxu0 0
    %10171 = vmatpush1.bf16.msra.mxu0 0
    %10172 = vmatprep.subr.bf16.mxu0 0
    %10173 = vmatpush1.bf16.msra.mxu0 0
    %10174 = vmatprep.subr.bf16.mxu0 0
    %10175 = vmatpush1.bf16.msra.mxu0 0
    %10176 = vmatprep.subr.bf16.mxu0 0
    %10177 = vmatpush1.bf16.msra.mxu0 0
    %10178 = vmatprep.subr.bf16.mxu0 0
    %10179 = vmatpush1.bf16.msra.mxu0 0
    %10180 = vmatprep.subr.bf16.mxu0 0
    %10181 = vmatpush1.bf16.msra.mxu0 0
    %10182 = vmatprep.subr.bf16.mxu0 0
    %10183 = vmatpush1.bf16.msra.mxu0 0
    %10184 = vmatprep.subr.bf16.mxu0 0
    %10185 = vmatpush1.bf16.msra.mxu0 0
    %10186 = vmatprep.subr.bf16.mxu0 0
    %10187 = vmatpush1.bf16.msra.mxu0 0
    %10188 = vmatprep.subr.bf16.mxu0 0
    %10189 = vmatpush1.bf16.msra.mxu0 0
    %10190 = vmatprep.subr.bf16.mxu0 0
    %10191 = vmatpush1.bf16.msra.mxu0 0
    %10192 = vmatprep.subr.bf16.mxu0 0
    %10193 = vmatpush1.bf16.msra.mxu0 0
    %10194 = vmatprep.subr.bf16.mxu0 0
    %10195 = vmatpush1.bf16.msra.mxu0 0
    %10196 = vmatprep.subr.bf16.mxu0 0
    %10197 = vmatpush1.bf16.msra.mxu0 0
    %10198 = vmatprep.mubr.bf16.mxu0 0
    %10199 = vmatmul.mubr.bf16.gmra.mrb[0].mxu0 %v7041
    %v10200 = vpop.f32.mrb[0].mxu0
    %v10201 = vadd.f32 0.0, %v10200
    %v10202 = vpop.f32.mrb[0].mxu0
    %v10203 = vadd.f32 0.0, %v10202
    %v10204 = vpop.f32.mrb[0].mxu0
    %v10205 = vpop.f32.mrb[0].mxu0
    %10206 = vdwg.mxu0
    %10207 = vmatprep.subr.bf16.mxu0 %v6760
    %10208 = vmatpush1.bf16.msra.mxu0 %v6759
    %10209 = vmatprep.subr.bf16.mxu0 %v7452
    %10210 = vmatpush1.bf16.msra.mxu0 %v7449
    %10211 = vmatprep.subr.bf16.mxu0 0
    %10212 = vmatpush1.bf16.msra.mxu0 0
    %10213 = vmatprep.subr.bf16.mxu0 0
    %10214 = vmatpush1.bf16.msra.mxu0 0
    %10215 = vmatprep.subr.bf16.mxu0 0
    %10216 = vmatpush1.bf16.msra.mxu0 0
    %10217 = vmatprep.subr.bf16.mxu0 0
    %10218 = vmatpush1.bf16.msra.mxu0 0
    %10219 = vmatprep.subr.bf16.mxu0 0
    %10220 = vmatpush1.bf16.msra.mxu0 0
    %10221 = vmatprep.subr.bf16.mxu0 0
    %10222 = vmatpush1.bf16.msra.mxu0 0
    %10223 = vmatprep.subr.bf16.mxu0 0
    %10224 = vmatpush1.bf16.msra.mxu0 0
    %10225 = vmatprep.subr.bf16.mxu0 0
    %10226 = vmatpush1.bf16.msra.mxu0 0
    %10227 = vmatprep.subr.bf16.mxu0 0
    %10228 = vmatpush1.bf16.msra.mxu0 0
    %10229 = vmatprep.subr.bf16.mxu0 0
    %10230 = vmatpush1.bf16.msra.mxu0 0
    %10231 = vmatprep.subr.bf16.mxu0 0
    %10232 = vmatpush1.bf16.msra.mxu0 0
    %10233 = vmatprep.subr.bf16.mxu0 0
    %10234 = vmatpush1.bf16.msra.mxu0 0
    %10235 = vmatprep.subr.bf16.mxu0 0
    %10236 = vmatpush1.bf16.msra.mxu0 0
    %10237 = vmatprep.subr.bf16.mxu0 0
    %10238 = vmatpush1.bf16.msra.mxu0 0
    %10239 = vmatprep.mubr.bf16.mxu0 0
    %10240 = vmatmul.mubr.bf16.gmra.mrb[0].mxu0 %v7041
    %v10241 = vpop.f32.mrb[0].mxu0
    %v10242 = vadd.f32 0.0, %v10241
    %v10243 = vpop.f32.mrb[0].mxu0
    %v10244 = vadd.f32 0.0, %v10243
    %v10245 = vpop.f32.mrb[0].mxu0
    %v10246 = vpop.f32.mrb[0].mxu0
    %10247 = vdwg.mxu0
    %10248 = vmatprep.subr.bf16.mxu0 %v6762
    %10249 = vmatpush1.bf16.msra.mxu0 %v6761
    %10250 = vmatprep.subr.bf16.mxu0 %v7458
    %10251 = vmatpush1.bf16.msra.mxu0 %v7455
    %10252 = vmatprep.subr.bf16.mxu0 0
    %10253 = vmatpush1.bf16.msra.mxu0 0
    %10254 = vmatprep.subr.bf16.mxu0 0
    %10255 = vmatpush1.bf16.msra.mxu0 0
    %10256 = vmatprep.subr.bf16.mxu0 0
    %10257 = vmatpush1.bf16.msra.mxu0 0
    %10258 = vmatprep.subr.bf16.mxu0 0
    %10259 = vmatpush1.bf16.msra.mxu0 0
    %10260 = vmatprep.subr.bf16.mxu0 0
    %10261 = vmatpush1.bf16.msra.mxu0 0
    %10262 = vmatprep.subr.bf16.mxu0 0
    %10263 = vmatpush1.bf16.msra.mxu0 0
    %10264 = vmatprep.subr.bf16.mxu0 0
    %10265 = vmatpush1.bf16.msra.mxu0 0
    %10266 = vmatprep.subr.bf16.mxu0 0
    %10267 = vmatpush1.bf16.msra.mxu0 0
    %10268 = vmatprep.subr.bf16.mxu0 0
    %10269 = vmatpush1.bf16.msra.mxu0 0
    %10270 = vmatprep.subr.bf16.mxu0 0
    %10271 = vmatpush1.bf16.msra.mxu0 0
    %10272 = vmatprep.subr.bf16.mxu0 0
    %10273 = vmatpush1.bf16.msra.mxu0 0
    %10274 = vmatprep.subr.bf16.mxu0 0
    %10275 = vmatpush1.bf16.msra.mxu0 0
    %10276 = vmatprep.subr.bf16.mxu0 0
    %10277 = vmatpush1.bf16.msra.mxu0 0
    %10278 = vmatprep.subr.bf16.mxu0 0
    %10279 = vmatpush1.bf16.msra.mxu0 0
    %10280 = vmatprep.mubr.bf16.mxu0 0
    %10281 = vmatmul.mubr.bf16.gmra.mrb[0].mxu0 %v7041
    %v10282 = vpop.f32.mrb[0].mxu0
    %v10283 = vadd.f32 0.0, %v10282
    %v10284 = vpop.f32.mrb[0].mxu0
    %v10285 = vadd.f32 0.0, %v10284
    %v10286 = vpop.f32.mrb[0].mxu0
    %v10287 = vpop.f32.mrb[0].mxu0
    %10288 = vdwg.mxu0
    %v10289 = vxor.u32 %v7495, 2147483648
    %v10290 = vxor.u32 %v7497, 2147483648
    %v10291 = vxor.u32 %v7536, 2147483648
    %v10292 = vxor.u32 %v7538, 2147483648
    %v10293 = vxor.u32 %v7577, 2147483648
    %v10294 = vxor.u32 %v7579, 2147483648
    %v10295 = vxor.u32 %v7618, 2147483648
    %v10296 = vxor.u32 %v7620, 2147483648
    %v10297 = vxor.u32 %v7659, 2147483648
    %v10298 = vxor.u32 %v7661, 2147483648
    %v10299 = vxor.u32 %v7700, 2147483648
    %v10300 = vxor.u32 %v7702, 2147483648
    %v10301 = vxor.u32 %v7741, 2147483648
    %v10302 = vxor.u32 %v7743, 2147483648
    %v10303 = vxor.u32 %v7782, 2147483648
    %v10304 = vxor.u32 %v7784, 2147483648
    %v10305 = vxor.u32 %v7823, 2147483648
    %v10306 = vxor.u32 %v7825, 2147483648
    %v10307 = vxor.u32 %v7864, 2147483648
    %v10308 = vxor.u32 %v7866, 2147483648
    %v10309 = vxor.u32 %v7905, 2147483648
    %v10310 = vxor.u32 %v7907, 2147483648
    %v10311 = vxor.u32 %v7946, 2147483648
    %v10312 = vxor.u32 %v7948, 2147483648
    %v10313 = vxor.u32 %v7987, 2147483648
    %v10314 = vxor.u32 %v7989, 2147483648
    %v10315 = vxor.u32 %v8028, 2147483648
    %v10316 = vxor.u32 %v8030, 2147483648
    %v10317 = vxor.u32 %v8069, 2147483648
    %v10318 = vxor.u32 %v8071, 2147483648
    %v10319 = vxor.u32 %v8110, 2147483648
    %v10320 = vxor.u32 %v8112, 2147483648
    %v10321 = vxor.u32 %v8151, 2147483648
    %v10322 = vxor.u32 %v8153, 2147483648
    %v10323 = vxor.u32 %v8192, 2147483648
    %v10324 = vxor.u32 %v8194, 2147483648
    %v10325 = vxor.u32 %v8233, 2147483648
    %v10326 = vxor.u32 %v8235, 2147483648
    %v10327 = vxor.u32 %v8274, 2147483648
    %v10328 = vxor.u32 %v8276, 2147483648
    %v10329 = vxor.u32 %v8315, 2147483648
    %v10330 = vxor.u32 %v8317, 2147483648
    %v10331 = vxor.u32 %v8356, 2147483648
    %v10332 = vxor.u32 %v8358, 2147483648
    %v10333 = vxor.u32 %v8397, 2147483648
    %v10334 = vxor.u32 %v8399, 2147483648
    %v10335 = vxor.u32 %v8438, 2147483648
    %v10336 = vxor.u32 %v8440, 2147483648
    %v10337 = vxor.u32 %v8479, 2147483648
    %v10338 = vxor.u32 %v8481, 2147483648
    %v10339 = vxor.u32 %v8520, 2147483648
    %v10340 = vxor.u32 %v8522, 2147483648
    %v10341 = vxor.u32 %v8561, 2147483648
    %v10342 = vxor.u32 %v8563, 2147483648
    %v10343 = vxor.u32 %v8602, 2147483648
    %v10344 = vxor.u32 %v8604, 2147483648
    %v10345 = vxor.u32 %v8643, 2147483648
    %v10346 = vxor.u32 %v8645, 2147483648
    %v10347 = vxor.u32 %v8684, 2147483648
    %v10348 = vxor.u32 %v8686, 2147483648
    %v10349 = vxor.u32 %v8725, 2147483648
    %v10350 = vxor.u32 %v8727, 2147483648
    %v10351 = vxor.u32 %v8766, 2147483648
    %v10352 = vxor.u32 %v8768, 2147483648
    %v10353 = vxor.u32 %v8807, 2147483648
    %v10354 = vxor.u32 %v8809, 2147483648
    %v10355 = vxor.u32 %v8848, 2147483648
    %v10356 = vxor.u32 %v8850, 2147483648
    %v10357 = vxor.u32 %v8889, 2147483648
    %v10358 = vxor.u32 %v8891, 2147483648
    %v10359 = vxor.u32 %v8930, 2147483648
    %v10360 = vxor.u32 %v8932, 2147483648
    %v10361 = vxor.u32 %v8971, 2147483648
    %v10362 = vxor.u32 %v8973, 2147483648
    %v10363 = vxor.u32 %v9012, 2147483648
    %v10364 = vxor.u32 %v9014, 2147483648
    %v10365 = vxor.u32 %v9053, 2147483648
    %v10366 = vxor.u32 %v9055, 2147483648
    %v10367 = vxor.u32 %v9094, 2147483648
    %v10368 = vxor.u32 %v9096, 2147483648
    %v10369 = vxor.u32 %v9135, 2147483648
    %v10370 = vxor.u32 %v9137, 2147483648
    %v10371 = vxor.u32 %v9176, 2147483648
    %v10372 = vxor.u32 %v9178, 2147483648
    %v10373 = vxor.u32 %v9217, 2147483648
    %v10374 = vxor.u32 %v9219, 2147483648
    %v10375 = vxor.u32 %v9258, 2147483648
    %v10376 = vxor.u32 %v9260, 2147483648
    %v10377 = vxor.u32 %v9299, 2147483648
    %v10378 = vxor.u32 %v9301, 2147483648
    %v10379 = vxor.u32 %v9340, 2147483648
    %v10380 = vxor.u32 %v9342, 2147483648
    %v10381 = vxor.u32 %v9381, 2147483648
    %v10382 = vxor.u32 %v9383, 2147483648
    %v10383 = vxor.u32 %v9422, 2147483648
    %v10384 = vxor.u32 %v9424, 2147483648
    %v10385 = vxor.u32 %v9463, 2147483648
    %v10386 = vxor.u32 %v9465, 2147483648
    %v10387 = vxor.u32 %v9504, 2147483648
    %v10388 = vxor.u32 %v9506, 2147483648
    %v10389 = vxor.u32 %v9545, 2147483648
    %v10390 = vxor.u32 %v9547, 2147483648
    %v10391 = vxor.u32 %v9586, 2147483648
    %v10392 = vxor.u32 %v9588, 2147483648
    %v10393 = vxor.u32 %v9627, 2147483648
    %v10394 = vxor.u32 %v9629, 2147483648
    %v10395 = vxor.u32 %v9668, 2147483648
    %v10396 = vxor.u32 %v9670, 2147483648
    %v10397 = vxor.u32 %v9709, 2147483648
    %v10398 = vxor.u32 %v9711, 2147483648
    %v10399 = vxor.u32 %v9750, 2147483648
    %v10400 = vxor.u32 %v9752, 2147483648
    %v10401 = vxor.u32 %v9791, 2147483648
    %v10402 = vxor.u32 %v9793, 2147483648
    %v10403 = vxor.u32 %v9832, 2147483648
    %v10404 = vxor.u32 %v9834, 2147483648
    %v10405 = vxor.u32 %v9873, 2147483648
    %v10406 = vxor.u32 %v9875, 2147483648
    %v10407 = vxor.u32 %v9914, 2147483648
    %v10408 = vxor.u32 %v9916, 2147483648
    %v10409 = vxor.u32 %v9955, 2147483648
    %v10410 = vxor.u32 %v9957, 2147483648
    %v10411 = vxor.u32 %v9996, 2147483648
    %v10412 = vxor.u32 %v9998, 2147483648
    %v10413 = vxor.u32 %v10037, 2147483648
    %v10414 = vxor.u32 %v10039, 2147483648
    %v10415 = vxor.u32 %v10078, 2147483648
    %v10416 = vxor.u32 %v10080, 2147483648
    %v10417 = vxor.u32 %v10119, 2147483648
    %v10418 = vxor.u32 %v10121, 2147483648
    %v10419 = vxor.u32 %v10160, 2147483648
    %v10420 = vxor.u32 %v10162, 2147483648
    %v10421 = vxor.u32 %v10201, 2147483648
    %v10422 = vxor.u32 %v10203, 2147483648
    %v10423 = vxor.u32 %v10242, 2147483648
    %v10424 = vxor.u32 %v10244, 2147483648
    %v10425 = vxor.u32 %v10283, 2147483648
    %v10426 = vxor.u32 %v10285, 2147483648
    %v10427 = vmul.f32 %v10289, 1.442695
    %v10428 = vpow.pop %v10427
    %v10429 = vmul.f32 %v10290, 1.442695
    %v10430 = vpow.pop %v10429
    %v10431 = vmul.f32 %v10291, 1.442695
    %v10432 = vpow.pop %v10431
    %v10433 = vmul.f32 %v10292, 1.442695
    %v10434 = vpow.pop %v10433
    %v10435 = vmul.f32 %v10293, 1.442695
    %v10436 = vpow.pop %v10435
    %v10437 = vmul.f32 %v10294, 1.442695
    %v10438 = vpow.pop %v10437
    %v10439 = vmul.f32 %v10295, 1.442695
    %v10440 = vpow.pop %v10439
    %v10441 = vmul.f32 %v10296, 1.442695
    %v10442 = vpow.pop %v10441
    %v10443 = vmul.f32 %v10297, 1.442695
    %v10444 = vpow.pop %v10443
    %v10445 = vmul.f32 %v10298, 1.442695
    %v10446 = vpow.pop %v10445
    %v10447 = vmul.f32 %v10299, 1.442695
    %v10448 = vpow.pop %v10447
    %v10449 = vmul.f32 %v10300, 1.442695
    %v10450 = vpow.pop %v10449
    %v10451 = vmul.f32 %v10301, 1.442695
    %v10452 = vpow.pop %v10451
    %v10453 = vmul.f32 %v10302, 1.442695
    %v10454 = vpow.pop %v10453
    %v10455 = vmul.f32 %v10303, 1.442695
    %v10456 = vpow.pop %v10455
    %v10457 = vmul.f32 %v10304, 1.442695
    %v10458 = vpow.pop %v10457
    %v10459 = vmul.f32 %v10305, 1.442695
    %v10460 = vpow.pop %v10459
    %v10461 = vmul.f32 %v10306, 1.442695
    %v10462 = vpow.pop %v10461
    %v10463 = vmul.f32 %v10307, 1.442695
    %v10464 = vpow.pop %v10463
    %v10465 = vmul.f32 %v10308, 1.442695
    %v10466 = vpow.pop %v10465
    %v10467 = vmul.f32 %v10309, 1.442695
    %v10468 = vpow.pop %v10467
    %v10469 = vmul.f32 %v10310, 1.442695
    %v10470 = vpow.pop %v10469
    %v10471 = vmul.f32 %v10311, 1.442695
    %v10472 = vpow.pop %v10471
    %v10473 = vmul.f32 %v10312, 1.442695
    %v10474 = vpow.pop %v10473
    %v10475 = vmul.f32 %v10313, 1.442695
    %v10476 = vpow.pop %v10475
    %v10477 = vmul.f32 %v10314, 1.442695
    %v10478 = vpow.pop %v10477
    %v10479 = vmul.f32 %v10315, 1.442695
    %v10480 = vpow.pop %v10479
    %v10481 = vmul.f32 %v10316, 1.442695
    %v10482 = vpow.pop %v10481
    %v10483 = vmul.f32 %v10317, 1.442695
    %v10484 = vpow.pop %v10483
    %v10485 = vmul.f32 %v10318, 1.442695
    %v10486 = vpow.pop %v10485
    %v10487 = vmul.f32 %v10319, 1.442695
    %v10488 = vpow.pop %v10487
    %v10489 = vmul.f32 %v10320, 1.442695
    %v10490 = vpow.pop %v10489
    %v10491 = vmul.f32 %v10321, 1.442695
    %v10492 = vpow.pop %v10491
    %v10493 = vmul.f32 %v10322, 1.442695
    %v10494 = vpow.pop %v10493
    %v10495 = vmul.f32 %v10323, 1.442695
    %v10496 = vpow.pop %v10495
    %v10497 = vmul.f32 %v10324, 1.442695
    %v10498 = vpow.pop %v10497
    %v10499 = vmul.f32 %v10325, 1.442695
    %v10500 = vpow.pop %v10499
    %v10501 = vmul.f32 %v10326, 1.442695
    %v10502 = vpow.pop %v10501
    %v10503 = vmul.f32 %v10327, 1.442695
    %v10504 = vpow.pop %v10503
    %v10505 = vmul.f32 %v10328, 1.442695
    %v10506 = vpow.pop %v10505
    %v10507 = vmul.f32 %v10329, 1.442695
    %v10508 = vpow.pop %v10507
    %v10509 = vmul.f32 %v10330, 1.442695
    %v10510 = vpow.pop %v10509
    %v10511 = vmul.f32 %v10331, 1.442695
    %v10512 = vpow.pop %v10511
    %v10513 = vmul.f32 %v10332, 1.442695
    %v10514 = vpow.pop %v10513
    %v10515 = vmul.f32 %v10333, 1.442695
    %v10516 = vpow.pop %v10515
    %v10517 = vmul.f32 %v10334, 1.442695
    %v10518 = vpow.pop %v10517
    %v10519 = vmul.f32 %v10335, 1.442695
    %v10520 = vpow.pop %v10519
    %v10521 = vmul.f32 %v10336, 1.442695
    %v10522 = vpow.pop %v10521
    %v10523 = vmul.f32 %v10337, 1.442695
    %v10524 = vpow.pop %v10523
    %v10525 = vmul.f32 %v10338, 1.442695
    %v10526 = vpow.pop %v10525
    %v10527 = vmul.f32 %v10339, 1.442695
    %v10528 = vpow.pop %v10527
    %v10529 = vmul.f32 %v10340, 1.442695
    %v10530 = vpow.pop %v10529
    %v10531 = vmul.f32 %v10341, 1.442695
    %v10532 = vpow.pop %v10531
    %v10533 = vmul.f32 %v10342, 1.442695
    %v10534 = vpow.pop %v10533
    %v10535 = vmul.f32 %v10343, 1.442695
    %v10536 = vpow.pop %v10535
    %v10537 = vmul.f32 %v10344, 1.442695
    %v10538 = vpow.pop %v10537
    %v10539 = vmul.f32 %v10345, 1.442695
    %v10540 = vpow.pop %v10539
    %v10541 = vmul.f32 %v10346, 1.442695
    %v10542 = vpow.pop %v10541
    %v10543 = vmul.f32 %v10347, 1.442695
    %v10544 = vpow.pop %v10543
    %v10545 = vmul.f32 %v10348, 1.442695
    %v10546 = vpow.pop %v10545
    %v10547 = vmul.f32 %v10349, 1.442695
    %v10548 = vpow.pop %v10547
    %v10549 = vmul.f32 %v10350, 1.442695
    %v10550 = vpow.pop %v10549
    %v10551 = vmul.f32 %v10351, 1.442695
    %v10552 = vpow.pop %v10551
    %v10553 = vmul.f32 %v10352, 1.442695
    %v10554 = vpow.pop %v10553
    %v10555 = vmul.f32 %v10353, 1.442695
    %v10556 = vpow.pop %v10555
    %v10557 = vmul.f32 %v10354, 1.442695
    %v10558 = vpow.pop %v10557
    %v10559 = vmul.f32 %v10355, 1.442695
    %v10560 = vpow.pop %v10559
    %v10561 = vmul.f32 %v10356, 1.442695
    %v10562 = vpow.pop %v10561
    %v10563 = vmul.f32 %v10357, 1.442695
    %v10564 = vpow.pop %v10563
    %v10565 = vmul.f32 %v10358, 1.442695
    %v10566 = vpow.pop %v10565
    %v10567 = vmul.f32 %v10359, 1.442695
    %v10568 = vpow.pop %v10567
    %v10569 = vmul.f32 %v10360, 1.442695
    %v10570 = vpow.pop %v10569
    %v10571 = vmul.f32 %v10361, 1.442695
    %v10572 = vpow.pop %v10571
    %v10573 = vmul.f32 %v10362, 1.442695
    %v10574 = vpow.pop %v10573
    %v10575 = vmul.f32 %v10363, 1.442695
    %v10576 = vpow.pop %v10575
    %v10577 = vmul.f32 %v10364, 1.442695
    %v10578 = vpow.pop %v10577
    %v10579 = vmul.f32 %v10365, 1.442695
    %v10580 = vpow.pop %v10579
    %v10581 = vmul.f32 %v10366, 1.442695
    %v10582 = vpow.pop %v10581
    %v10583 = vmul.f32 %v10367, 1.442695
    %v10584 = vpow.pop %v10583
    %v10585 = vmul.f32 %v10368, 1.442695
    %v10586 = vpow.pop %v10585
    %v10587 = vmul.f32 %v10369, 1.442695
    %v10588 = vpow.pop %v10587
    %v10589 = vmul.f32 %v10370, 1.442695
    %v10590 = vpow.pop %v10589
    %v10591 = vmul.f32 %v10371, 1.442695
    %v10592 = vpow.pop %v10591
    %v10593 = vmul.f32 %v10372, 1.442695
    %v10594 = vpow.pop %v10593
    %v10595 = vmul.f32 %v10373, 1.442695
    %v10596 = vpow.pop %v10595
    %v10597 = vmul.f32 %v10374, 1.442695
    %v10598 = vpow.pop %v10597
    %v10599 = vmul.f32 %v10375, 1.442695
    %v10600 = vpow.pop %v10599
    %v10601 = vmul.f32 %v10376, 1.442695
    %v10602 = vpow.pop %v10601
    %v10603 = vmul.f32 %v10377, 1.442695
    %v10604 = vpow.pop %v10603
    %v10605 = vmul.f32 %v10378, 1.442695
    %v10606 = vpow.pop %v10605
    %v10607 = vmul.f32 %v10379, 1.442695
    %v10608 = vpow.pop %v10607
    %v10609 = vmul.f32 %v10380, 1.442695
    %v10610 = vpow.pop %v10609
    %v10611 = vmul.f32 %v10381, 1.442695
    %v10612 = vpow.pop %v10611
    %v10613 = vmul.f32 %v10382, 1.442695
    %v10614 = vpow.pop %v10613
    %v10615 = vmul.f32 %v10383, 1.442695
    %v10616 = vpow.pop %v10615
    %v10617 = vmul.f32 %v10384, 1.442695
    %v10618 = vpow.pop %v10617
    %v10619 = vmul.f32 %v10385, 1.442695
    %v10620 = vpow.pop %v10619
    %v10621 = vmul.f32 %v10386, 1.442695
    %v10622 = vpow.pop %v10621
    %v10623 = vmul.f32 %v10387, 1.442695
    %v10624 = vpow.pop %v10623
    %v10625 = vmul.f32 %v10388, 1.442695
    %v10626 = vpow.pop %v10625
    %v10627 = vmul.f32 %v10389, 1.442695
    %v10628 = vpow.pop %v10627
    %v10629 = vmul.f32 %v10390, 1.442695
    %v10630 = vpow.pop %v10629
    %v10631 = vmul.f32 %v10391, 1.442695
    %v10632 = vpow.pop %v10631
    %v10633 = vmul.f32 %v10392, 1.442695
    %v10634 = vpow.pop %v10633
    %v10635 = vmul.f32 %v10393, 1.442695
    %v10636 = vpow.pop %v10635
    %v10637 = vmul.f32 %v10394, 1.442695
    %v10638 = vpow.pop %v10637
    %v10639 = vmul.f32 %v10395, 1.442695
    %v10640 = vpow.pop %v10639
    %v10641 = vmul.f32 %v10396, 1.442695
    %v10642 = vpow.pop %v10641
    %v10643 = vmul.f32 %v10397, 1.442695
    %v10644 = vpow.pop %v10643
    %v10645 = vmul.f32 %v10398, 1.442695
    %v10646 = vpow.pop %v10645
    %v10647 = vmul.f32 %v10399, 1.442695
    %v10648 = vpow.pop %v10647
    %v10649 = vmul.f32 %v10400, 1.442695
    %v10650 = vpow.pop %v10649
    %v10651 = vmul.f32 %v10401, 1.442695
    %v10652 = vpow.pop %v10651
    %v10653 = vmul.f32 %v10402, 1.442695
    %v10654 = vpow.pop %v10653
    %v10655 = vmul.f32 %v10403, 1.442695
    %v10656 = vpow.pop %v10655
    %v10657 = vmul.f32 %v10404, 1.442695
    %v10658 = vpow.pop %v10657
    %v10659 = vmul.f32 %v10405, 1.442695
    %v10660 = vpow.pop %v10659
    %v10661 = vmul.f32 %v10406, 1.442695
    %v10662 = vpow.pop %v10661
    %v10663 = vmul.f32 %v10407, 1.442695
    %v10664 = vpow.pop %v10663
    %v10665 = vmul.f32 %v10408, 1.442695
    %v10666 = vpow.pop %v10665
    %v10667 = vmul.f32 %v10409, 1.442695
    %v10668 = vpow.pop %v10667
    %v10669 = vmul.f32 %v10410, 1.442695
    %v10670 = vpow.pop %v10669
    %v10671 = vmul.f32 %v10411, 1.442695
    %v10672 = vpow.pop %v10671
    %v10673 = vmul.f32 %v10412, 1.442695
    %v10674 = vpow.pop %v10673
    %v10675 = vmul.f32 %v10413, 1.442695
    %v10676 = vpow.pop %v10675
    %v10677 = vmul.f32 %v10414, 1.442695
    %v10678 = vpow.pop %v10677
    %v10679 = vmul.f32 %v10415, 1.442695
    %v10680 = vpow.pop %v10679
    %v10681 = vmul.f32 %v10416, 1.442695
    %v10682 = vpow.pop %v10681
    %v10683 = vmul.f32 %v10417, 1.442695
    %v10684 = vpow.pop %v10683
    %v10685 = vmul.f32 %v10418, 1.442695
    %v10686 = vpow.pop %v10685
    %v10687 = vmul.f32 %v10419, 1.442695
    %v10688 = vpow.pop %v10687
    %v10689 = vmul.f32 %v10420, 1.442695
    %v10690 = vpow.pop %v10689
    %v10691 = vmul.f32 %v10421, 1.442695
    %v10692 = vpow.pop %v10691
    %v10693 = vmul.f32 %v10422, 1.442695
    %v10694 = vpow.pop %v10693
    %v10695 = vmul.f32 %v10423, 1.442695
    %v10696 = vpow.pop %v10695
    %v10697 = vmul.f32 %v10424, 1.442695
    %v10698 = vpow.pop %v10697
    %v10699 = vmul.f32 %v10425, 1.442695
    %v10700 = vpow.pop %v10699
    %v10701 = vmul.f32 %v10426, 1.442695
    %v10702 = vpow.pop %v10701
    %v10703 = vadd.f32 %v10428, 1.0
    %v10704 = vadd.f32 %v10430, 1.0
    %v10705 = vadd.f32 %v10432, 1.0
    %v10706 = vadd.f32 %v10434, 1.0
    %v10707 = vadd.f32 %v10436, 1.0
    %v10708 = vadd.f32 %v10438, 1.0
    %v10709 = vadd.f32 %v10440, 1.0
    %v10710 = vadd.f32 %v10442, 1.0
    %v10711 = vadd.f32 %v10444, 1.0
    %v10712 = vadd.f32 %v10446, 1.0
    %v10713 = vadd.f32 %v10448, 1.0
    %v10714 = vadd.f32 %v10450, 1.0
    %v10715 = vadd.f32 %v10452, 1.0
    %v10716 = vadd.f32 %v10454, 1.0
    %v10717 = vadd.f32 %v10456, 1.0
    %v10718 = vadd.f32 %v10458, 1.0
    %v10719 = vadd.f32 %v10460, 1.0
    %v10720 = vadd.f32 %v10462, 1.0
    %v10721 = vadd.f32 %v10464, 1.0
    %v10722 = vadd.f32 %v10466, 1.0
    %v10723 = vadd.f32 %v10468, 1.0
    %v10724 = vadd.f32 %v10470, 1.0
    %v10725 = vadd.f32 %v10472, 1.0
    %v10726 = vadd.f32 %v10474, 1.0
    %v10727 = vadd.f32 %v10476, 1.0
    %v10728 = vadd.f32 %v10478, 1.0
    %v10729 = vadd.f32 %v10480, 1.0
    %v10730 = vadd.f32 %v10482, 1.0
    %v10731 = vadd.f32 %v10484, 1.0
    %v10732 = vadd.f32 %v10486, 1.0
    %v10733 = vadd.f32 %v10488, 1.0
    %v10734 = vadd.f32 %v10490, 1.0
    %v10735 = vadd.f32 %v10492, 1.0
    %v10736 = vadd.f32 %v10494, 1.0
    %v10737 = vadd.f32 %v10496, 1.0
    %v10738 = vadd.f32 %v10498, 1.0
    %v10739 = vadd.f32 %v10500, 1.0
    %v10740 = vadd.f32 %v10502, 1.0
    %v10741 = vadd.f32 %v10504, 1.0
    %v10742 = vadd.f32 %v10506, 1.0
    %v10743 = vadd.f32 %v10508, 1.0
    %v10744 = vadd.f32 %v10510, 1.0
    %v10745 = vadd.f32 %v10512, 1.0
    %v10746 = vadd.f32 %v10514, 1.0
    %v10747 = vadd.f32 %v10516, 1.0
    %v10748 = vadd.f32 %v10518, 1.0
    %v10749 = vadd.f32 %v10520, 1.0
    %v10750 = vadd.f32 %v10522, 1.0
    %v10751 = vadd.f32 %v10524, 1.0
    %v10752 = vadd.f32 %v10526, 1.0
    %v10753 = vadd.f32 %v10528, 1.0
    %v10754 = vadd.f32 %v10530, 1.0
    %v10755 = vadd.f32 %v10532, 1.0
    %v10756 = vadd.f32 %v10534, 1.0
    %v10757 = vadd.f32 %v10536, 1.0
    %v10758 = vadd.f32 %v10538, 1.0
    %v10759 = vadd.f32 %v10540, 1.0
    %v10760 = vadd.f32 %v10542, 1.0
    %v10761 = vadd.f32 %v10544, 1.0
    %v10762 = vadd.f32 %v10546, 1.0
    %v10763 = vadd.f32 %v10548, 1.0
    %v10764 = vadd.f32 %v10550, 1.0
    %v10765 = vadd.f32 %v10552, 1.0
    %v10766 = vadd.f32 %v10554, 1.0
    %v10767 = vadd.f32 %v10556, 1.0
    %v10768 = vadd.f32 %v10558, 1.0
    %v10769 = vadd.f32 %v10560, 1.0
    %v10770 = vadd.f32 %v10562, 1.0
    %v10771 = vadd.f32 %v10564, 1.0
    %v10772 = vadd.f32 %v10566, 1.0
    %v10773 = vadd.f32 %v10568, 1.0
    %v10774 = vadd.f32 %v10570, 1.0
    %v10775 = vadd.f32 %v10572, 1.0
    %v10776 = vadd.f32 %v10574, 1.0
    %v10777 = vadd.f32 %v10576, 1.0
    %v10778 = vadd.f32 %v10578, 1.0
    %v10779 = vadd.f32 %v10580, 1.0
    %v10780 = vadd.f32 %v10582, 1.0
    %v10781 = vadd.f32 %v10584, 1.0
    %v10782 = vadd.f32 %v10586, 1.0
    %v10783 = vadd.f32 %v10588, 1.0
    %v10784 = vadd.f32 %v10590, 1.0
    %v10785 = vadd.f32 %v10592, 1.0
    %v10786 = vadd.f32 %v10594, 1.0
    %v10787 = vadd.f32 %v10596, 1.0
    %v10788 = vadd.f32 %v10598, 1.0
    %v10789 = vadd.f32 %v10600, 1.0
    %v10790 = vadd.f32 %v10602, 1.0
    %v10791 = vadd.f32 %v10604, 1.0
    %v10792 = vadd.f32 %v10606, 1.0
    %v10793 = vadd.f32 %v10608, 1.0
    %v10794 = vadd.f32 %v10610, 1.0
    %v10795 = vadd.f32 %v10612, 1.0
    %v10796 = vadd.f32 %v10614, 1.0
    %v10797 = vadd.f32 %v10616, 1.0
    %v10798 = vadd.f32 %v10618, 1.0
    %v10799 = vadd.f32 %v10620, 1.0
    %v10800 = vadd.f32 %v10622, 1.0
    %v10801 = vadd.f32 %v10624, 1.0
    %v10802 = vadd.f32 %v10626, 1.0
    %v10803 = vadd.f32 %v10628, 1.0
    %v10804 = vadd.f32 %v10630, 1.0
    %v10805 = vadd.f32 %v10632, 1.0
    %v10806 = vadd.f32 %v10634, 1.0
    %v10807 = vadd.f32 %v10636, 1.0
    %v10808 = vadd.f32 %v10638, 1.0
    %v10809 = vadd.f32 %v10640, 1.0
    %v10810 = vadd.f32 %v10642, 1.0
    %v10811 = vadd.f32 %v10644, 1.0
    %v10812 = vadd.f32 %v10646, 1.0
    %v10813 = vadd.f32 %v10648, 1.0
    %v10814 = vadd.f32 %v10650, 1.0
    %v10815 = vadd.f32 %v10652, 1.0
    %v10816 = vadd.f32 %v10654, 1.0
    %v10817 = vadd.f32 %v10656, 1.0
    %v10818 = vadd.f32 %v10658, 1.0
    %v10819 = vadd.f32 %v10660, 1.0
    %v10820 = vadd.f32 %v10662, 1.0
    %v10821 = vadd.f32 %v10664, 1.0
    %v10822 = vadd.f32 %v10666, 1.0
    %v10823 = vadd.f32 %v10668, 1.0
    %v10824 = vadd.f32 %v10670, 1.0
    %v10825 = vadd.f32 %v10672, 1.0
    %v10826 = vadd.f32 %v10674, 1.0
    %v10827 = vadd.f32 %v10676, 1.0
    %v10828 = vadd.f32 %v10678, 1.0
    %v10829 = vadd.f32 %v10680, 1.0
    %v10830 = vadd.f32 %v10682, 1.0
    %v10831 = vadd.f32 %v10684, 1.0
    %v10832 = vadd.f32 %v10686, 1.0
    %v10833 = vadd.f32 %v10688, 1.0
    %v10834 = vadd.f32 %v10690, 1.0
    %v10835 = vadd.f32 %v10692, 1.0
    %v10836 = vadd.f32 %v10694, 1.0
    %v10837 = vadd.f32 %v10696, 1.0
    %v10838 = vadd.f32 %v10698, 1.0
    %v10839 = vadd.f32 %v10700, 1.0
    %v10840 = vadd.f32 %v10702, 1.0
    %v10841 = vrcp.pop %v10703
    %v10842 = vmul.f32 1.0, %v10841
    %v10843 = vrcp.pop %v10704
    %v10844 = vmul.f32 1.0, %v10843
    %v10845 = vrcp.pop %v10705
    %v10846 = vmul.f32 1.0, %v10845
    %v10847 = vrcp.pop %v10706
    %v10848 = vmul.f32 1.0, %v10847
    %v10849 = vrcp.pop %v10707
    %v10850 = vmul.f32 1.0, %v10849
    %v10851 = vrcp.pop %v10708
    %v10852 = vmul.f32 1.0, %v10851
    %v10853 = vrcp.pop %v10709
    %v10854 = vmul.f32 1.0, %v10853
    %v10855 = vrcp.pop %v10710
    %v10856 = vmul.f32 1.0, %v10855
    %v10857 = vrcp.pop %v10711
    %v10858 = vmul.f32 1.0, %v10857
    %v10859 = vrcp.pop %v10712
    %v10860 = vmul.f32 1.0, %v10859
    %v10861 = vrcp.pop %v10713
    %v10862 = vmul.f32 1.0, %v10861
    %v10863 = vrcp.pop %v10714
    %v10864 = vmul.f32 1.0, %v10863
    %v10865 = vrcp.pop %v10715
    %v10866 = vmul.f32 1.0, %v10865
    %v10867 = vrcp.pop %v10716
    %v10868 = vmul.f32 1.0, %v10867
    %v10869 = vrcp.pop %v10717
    %v10870 = vmul.f32 1.0, %v10869
    %v10871 = vrcp.pop %v10718
    %v10872 = vmul.f32 1.0, %v10871
    %v10873 = vrcp.pop %v10719
    %v10874 = vmul.f32 1.0, %v10873
    %v10875 = vrcp.pop %v10720
    %v10876 = vmul.f32 1.0, %v10875
    %v10877 = vrcp.pop %v10721
    %v10878 = vmul.f32 1.0, %v10877
    %v10879 = vrcp.pop %v10722
    %v10880 = vmul.f32 1.0, %v10879
    %v10881 = vrcp.pop %v10723
    %v10882 = vmul.f32 1.0, %v10881
    %v10883 = vrcp.pop %v10724
    %v10884 = vmul.f32 1.0, %v10883
    %v10885 = vrcp.pop %v10725
    %v10886 = vmul.f32 1.0, %v10885
    %v10887 = vrcp.pop %v10726
    %v10888 = vmul.f32 1.0, %v10887
    %v10889 = vrcp.pop %v10727
    %v10890 = vmul.f32 1.0, %v10889
    %v10891 = vrcp.pop %v10728
    %v10892 = vmul.f32 1.0, %v10891
    %v10893 = vrcp.pop %v10729
    %v10894 = vmul.f32 1.0, %v10893
    %v10895 = vrcp.pop %v10730
    %v10896 = vmul.f32 1.0, %v10895
    %v10897 = vrcp.pop %v10731
    %v10898 = vmul.f32 1.0, %v10897
    %v10899 = vrcp.pop %v10732
    %v10900 = vmul.f32 1.0, %v10899
    %v10901 = vrcp.pop %v10733
    %v10902 = vmul.f32 1.0, %v10901
    %v10903 = vrcp.pop %v10734
    %v10904 = vmul.f32 1.0, %v10903
    %v10905 = vrcp.pop %v10735
    %v10906 = vmul.f32 1.0, %v10905
    %v10907 = vrcp.pop %v10736
    %v10908 = vmul.f32 1.0, %v10907
    %v10909 = vrcp.pop %v10737
    %v10910 = vmul.f32 1.0, %v10909
    %v10911 = vrcp.pop %v10738
    %v10912 = vmul.f32 1.0, %v10911
    %v10913 = vrcp.pop %v10739
    %v10914 = vmul.f32 1.0, %v10913
    %v10915 = vrcp.pop %v10740
    %v10916 = vmul.f32 1.0, %v10915
    %v10917 = vrcp.pop %v10741
    %v10918 = vmul.f32 1.0, %v10917
    %v10919 = vrcp.pop %v10742
    %v10920 = vmul.f32 1.0, %v10919
    %v10921 = vrcp.pop %v10743
    %v10922 = vmul.f32 1.0, %v10921
    %v10923 = vrcp.pop %v10744
    %v10924 = vmul.f32 1.0, %v10923
    %v10925 = vrcp.pop %v10745
    %v10926 = vmul.f32 1.0, %v10925
    %v10927 = vrcp.pop %v10746
    %v10928 = vmul.f32 1.0, %v10927
    %v10929 = vrcp.pop %v10747
    %v10930 = vmul.f32 1.0, %v10929
    %v10931 = vrcp.pop %v10748
    %v10932 = vmul.f32 1.0, %v10931
    %v10933 = vrcp.pop %v10749
    %v10934 = vmul.f32 1.0, %v10933
    %v10935 = vrcp.pop %v10750
    %v10936 = vmul.f32 1.0, %v10935
    %v10937 = vrcp.pop %v10751
    %v10938 = vmul.f32 1.0, %v10937
    %v10939 = vrcp.pop %v10752
    %v10940 = vmul.f32 1.0, %v10939
    %v10941 = vrcp.pop %v10753
    %v10942 = vmul.f32 1.0, %v10941
    %v10943 = vrcp.pop %v10754
    %v10944 = vmul.f32 1.0, %v10943
    %v10945 = vrcp.pop %v10755
    %v10946 = vmul.f32 1.0, %v10945
    %v10947 = vrcp.pop %v10756
    %v10948 = vmul.f32 1.0, %v10947
    %v10949 = vrcp.pop %v10757
    %v10950 = vmul.f32 1.0, %v10949
    %v10951 = vrcp.pop %v10758
    %v10952 = vmul.f32 1.0, %v10951
    %v10953 = vrcp.pop %v10759
    %v10954 = vmul.f32 1.0, %v10953
    %v10955 = vrcp.pop %v10760
    %v10956 = vmul.f32 1.0, %v10955
    %v10957 = vrcp.pop %v10761
    %v10958 = vmul.f32 1.0, %v10957
    %v10959 = vrcp.pop %v10762
    %v10960 = vmul.f32 1.0, %v10959
    %v10961 = vrcp.pop %v10763
    %v10962 = vmul.f32 1.0, %v10961
    %v10963 = vrcp.pop %v10764
    %v10964 = vmul.f32 1.0, %v10963
    %v10965 = vrcp.pop %v10765
    %v10966 = vmul.f32 1.0, %v10965
    %v10967 = vrcp.pop %v10766
    %v10968 = vmul.f32 1.0, %v10967
    %v10969 = vrcp.pop %v10767
    %v10970 = vmul.f32 1.0, %v10969
    %v10971 = vrcp.pop %v10768
    %v10972 = vmul.f32 1.0, %v10971
    %v10973 = vrcp.pop %v10769
    %v10974 = vmul.f32 1.0, %v10973
    %v10975 = vrcp.pop %v10770
    %v10976 = vmul.f32 1.0, %v10975
    %v10977 = vrcp.pop %v10771
    %v10978 = vmul.f32 1.0, %v10977
    %v10979 = vrcp.pop %v10772
    %v10980 = vmul.f32 1.0, %v10979
    %v10981 = vrcp.pop %v10773
    %v10982 = vmul.f32 1.0, %v10981
    %v10983 = vrcp.pop %v10774
    %v10984 = vmul.f32 1.0, %v10983
    %v10985 = vrcp.pop %v10775
    %v10986 = vmul.f32 1.0, %v10985
    %v10987 = vrcp.pop %v10776
    %v10988 = vmul.f32 1.0, %v10987
    %v10989 = vrcp.pop %v10777
    %v10990 = vmul.f32 1.0, %v10989
    %v10991 = vrcp.pop %v10778
    %v10992 = vmul.f32 1.0, %v10991
    %v10993 = vrcp.pop %v10779
    %v10994 = vmul.f32 1.0, %v10993
    %v10995 = vrcp.pop %v10780
    %v10996 = vmul.f32 1.0, %v10995
    %v10997 = vrcp.pop %v10781
    %v10998 = vmul.f32 1.0, %v10997
    %v10999 = vrcp.pop %v10782
    %v11000 = vmul.f32 1.0, %v10999
    %v11001 = vrcp.pop %v10783
    %v11002 = vmul.f32 1.0, %v11001
    %v11003 = vrcp.pop %v10784
    %v11004 = vmul.f32 1.0, %v11003
    %v11005 = vrcp.pop %v10785
    %v11006 = vmul.f32 1.0, %v11005
    %v11007 = vrcp.pop %v10786
    %v11008 = vmul.f32 1.0, %v11007
    %v11009 = vrcp.pop %v10787
    %v11010 = vmul.f32 1.0, %v11009
    %v11011 = vrcp.pop %v10788
    %v11012 = vmul.f32 1.0, %v11011
    %v11013 = vrcp.pop %v10789
    %v11014 = vmul.f32 1.0, %v11013
    %v11015 = vrcp.pop %v10790
    %v11016 = vmul.f32 1.0, %v11015
    %v11017 = vrcp.pop %v10791
    %v11018 = vmul.f32 1.0, %v11017
    %v11019 = vrcp.pop %v10792
    %v11020 = vmul.f32 1.0, %v11019
    %v11021 = vrcp.pop %v10793
    %v11022 = vmul.f32 1.0, %v11021
    %v11023 = vrcp.pop %v10794
    %v11024 = vmul.f32 1.0, %v11023
    %v11025 = vrcp.pop %v10795
    %v11026 = vmul.f32 1.0, %v11025
    %v11027 = vrcp.pop %v10796
    %v11028 = vmul.f32 1.0, %v11027
    %v11029 = vrcp.pop %v10797
    %v11030 = vmul.f32 1.0, %v11029
    %v11031 = vrcp.pop %v10798
    %v11032 = vmul.f32 1.0, %v11031
    %v11033 = vrcp.pop %v10799
    %v11034 = vmul.f32 1.0, %v11033
    %v11035 = vrcp.pop %v10800
    %v11036 = vmul.f32 1.0, %v11035
    %v11037 = vrcp.pop %v10801
    %v11038 = vmul.f32 1.0, %v11037
    %v11039 = vrcp.pop %v10802
    %v11040 = vmul.f32 1.0, %v11039
    %v11041 = vrcp.pop %v10803
    %v11042 = vmul.f32 1.0, %v11041
    %v11043 = vrcp.pop %v10804
    %v11044 = vmul.f32 1.0, %v11043
    %v11045 = vrcp.pop %v10805
    %v11046 = vmul.f32 1.0, %v11045
    %v11047 = vrcp.pop %v10806
    %v11048 = vmul.f32 1.0, %v11047
    %v11049 = vrcp.pop %v10807
    %v11050 = vmul.f32 1.0, %v11049
    %v11051 = vrcp.pop %v10808
    %v11052 = vmul.f32 1.0, %v11051
    %v11053 = vrcp.pop %v10809
    %v11054 = vmul.f32 1.0, %v11053
    %v11055 = vrcp.pop %v10810
    %v11056 = vmul.f32 1.0, %v11055
    %v11057 = vrcp.pop %v10811
    %v11058 = vmul.f32 1.0, %v11057
    %v11059 = vrcp.pop %v10812
    %v11060 = vmul.f32 1.0, %v11059
    %v11061 = vrcp.pop %v10813
    %v11062 = vmul.f32 1.0, %v11061
    %v11063 = vrcp.pop %v10814
    %v11064 = vmul.f32 1.0, %v11063
    %v11065 = vrcp.pop %v10815
    %v11066 = vmul.f32 1.0, %v11065
    %v11067 = vrcp.pop %v10816
    %v11068 = vmul.f32 1.0, %v11067
    %v11069 = vrcp.pop %v10817
    %v11070 = vmul.f32 1.0, %v11069
    %v11071 = vrcp.pop %v10818
    %v11072 = vmul.f32 1.0, %v11071
    %v11073 = vrcp.pop %v10819
    %v11074 = vmul.f32 1.0, %v11073
    %v11075 = vrcp.pop %v10820
    %v11076 = vmul.f32 1.0, %v11075
    %v11077 = vrcp.pop %v10821
    %v11078 = vmul.f32 1.0, %v11077
    %v11079 = vrcp.pop %v10822
    %v11080 = vmul.f32 1.0, %v11079
    %v11081 = vrcp.pop %v10823
    %v11082 = vmul.f32 1.0, %v11081
    %v11083 = vrcp.pop %v10824
    %v11084 = vmul.f32 1.0, %v11083
    %v11085 = vrcp.pop %v10825
    %v11086 = vmul.f32 1.0, %v11085
    %v11087 = vrcp.pop %v10826
    %v11088 = vmul.f32 1.0, %v11087
    %v11089 = vrcp.pop %v10827
    %v11090 = vmul.f32 1.0, %v11089
    %v11091 = vrcp.pop %v10828
    %v11092 = vmul.f32 1.0, %v11091
    %v11093 = vrcp.pop %v10829
    %v11094 = vmul.f32 1.0, %v11093
    %v11095 = vrcp.pop %v10830
    %v11096 = vmul.f32 1.0, %v11095
    %v11097 = vrcp.pop %v10831
    %v11098 = vmul.f32 1.0, %v11097
    %v11099 = vrcp.pop %v10832
    %v11100 = vmul.f32 1.0, %v11099
    %v11101 = vrcp.pop %v10833
    %v11102 = vmul.f32 1.0, %v11101
    %v11103 = vrcp.pop %v10834
    %v11104 = vmul.f32 1.0, %v11103
    %v11105 = vrcp.pop %v10835
    %v11106 = vmul.f32 1.0, %v11105
    %v11107 = vrcp.pop %v10836
    %v11108 = vmul.f32 1.0, %v11107
    %v11109 = vrcp.pop %v10837
    %v11110 = vmul.f32 1.0, %v11109
    %v11111 = vrcp.pop %v10838
    %v11112 = vmul.f32 1.0, %v11111
    %v11113 = vrcp.pop %v10839
    %v11114 = vmul.f32 1.0, %v11113
    %v11115 = vrcp.pop %v10840
    %v11116 = vmul.f32 1.0, %v11115
    %v11117 = vmul.f32 %v2645, %v10842
    %v11118 = vmul.f32 %v2647, %v10844
    %v11119 = vmul.f32 %v2686, %v10846
    %v11120 = vmul.f32 %v2688, %v10848
    %v11121 = vmul.f32 %v2727, %v10850
    %v11122 = vmul.f32 %v2729, %v10852
    %v11123 = vmul.f32 %v2768, %v10854
    %v11124 = vmul.f32 %v2770, %v10856
    %v11125 = vmul.f32 %v2809, %v10858
    %v11126 = vmul.f32 %v2811, %v10860
    %v11127 = vmul.f32 %v2850, %v10862
    %v11128 = vmul.f32 %v2852, %v10864
    %v11129 = vmul.f32 %v2891, %v10866
    %v11130 = vmul.f32 %v2893, %v10868
    %v11131 = vmul.f32 %v2932, %v10870
    %v11132 = vmul.f32 %v2934, %v10872
    %v11133 = vmul.f32 %v2973, %v10874
    %v11134 = vmul.f32 %v2975, %v10876
    %v11135 = vmul.f32 %v3014, %v10878
    %v11136 = vmul.f32 %v3016, %v10880
    %v11137 = vmul.f32 %v3055, %v10882
    %v11138 = vmul.f32 %v3057, %v10884
    %v11139 = vmul.f32 %v3096, %v10886
    %v11140 = vmul.f32 %v3098, %v10888
    %v11141 = vmul.f32 %v3137, %v10890
    %v11142 = vmul.f32 %v3139, %v10892
    %v11143 = vmul.f32 %v3178, %v10894
    %v11144 = vmul.f32 %v3180, %v10896
    %v11145 = vmul.f32 %v3219, %v10898
    %v11146 = vmul.f32 %v3221, %v10900
    %v11147 = vmul.f32 %v3260, %v10902
    %v11148 = vmul.f32 %v3262, %v10904
    %v11149 = vmul.f32 %v3301, %v10906
    %v11150 = vmul.f32 %v3303, %v10908
    %v11151 = vmul.f32 %v3342, %v10910
    %v11152 = vmul.f32 %v3344, %v10912
    %v11153 = vmul.f32 %v3383, %v10914
    %v11154 = vmul.f32 %v3385, %v10916
    %v11155 = vmul.f32 %v3424, %v10918
    %v11156 = vmul.f32 %v3426, %v10920
    %v11157 = vmul.f32 %v3465, %v10922
    %v11158 = vmul.f32 %v3467, %v10924
    %v11159 = vmul.f32 %v3506, %v10926
    %v11160 = vmul.f32 %v3508, %v10928
    %v11161 = vmul.f32 %v3547, %v10930
    %v11162 = vmul.f32 %v3549, %v10932
    %v11163 = vmul.f32 %v3588, %v10934
    %v11164 = vmul.f32 %v3590, %v10936
    %v11165 = vmul.f32 %v3629, %v10938
    %v11166 = vmul.f32 %v3631, %v10940
    %v11167 = vmul.f32 %v3670, %v10942
    %v11168 = vmul.f32 %v3672, %v10944
    %v11169 = vmul.f32 %v3711, %v10946
    %v11170 = vmul.f32 %v3713, %v10948
    %v11171 = vmul.f32 %v3752, %v10950
    %v11172 = vmul.f32 %v3754, %v10952
    %v11173 = vmul.f32 %v3793, %v10954
    %v11174 = vmul.f32 %v3795, %v10956
    %v11175 = vmul.f32 %v3834, %v10958
    %v11176 = vmul.f32 %v3836, %v10960
    %v11177 = vmul.f32 %v3875, %v10962
    %v11178 = vmul.f32 %v3877, %v10964
    %v11179 = vmul.f32 %v3916, %v10966
    %v11180 = vmul.f32 %v3918, %v10968
    %v11181 = vmul.f32 %v3957, %v10970
    %v11182 = vmul.f32 %v3959, %v10972
    %v11183 = vmul.f32 %v3998, %v10974
    %v11184 = vmul.f32 %v4000, %v10976
    %v11185 = vmul.f32 %v4039, %v10978
    %v11186 = vmul.f32 %v4041, %v10980
    %v11187 = vmul.f32 %v4080, %v10982
    %v11188 = vmul.f32 %v4082, %v10984
    %v11189 = vmul.f32 %v4121, %v10986
    %v11190 = vmul.f32 %v4123, %v10988
    %v11191 = vmul.f32 %v4162, %v10990
    %v11192 = vmul.f32 %v4164, %v10992
    %v11193 = vmul.f32 %v4203, %v10994
    %v11194 = vmul.f32 %v4205, %v10996
    %v11195 = vmul.f32 %v4244, %v10998
    %v11196 = vmul.f32 %v4246, %v11000
    %v11197 = vmul.f32 %v4285, %v11002
    %v11198 = vmul.f32 %v4287, %v11004
    %v11199 = vmul.f32 %v4326, %v11006
    %v11200 = vmul.f32 %v4328, %v11008
    %v11201 = vmul.f32 %v4367, %v11010
    %v11202 = vmul.f32 %v4369, %v11012
    %v11203 = vmul.f32 %v4408, %v11014
    %v11204 = vmul.f32 %v4410, %v11016
    %v11205 = vmul.f32 %v4449, %v11018
    %v11206 = vmul.f32 %v4451, %v11020
    %v11207 = vmul.f32 %v4490, %v11022
    %v11208 = vmul.f32 %v4492, %v11024
    %v11209 = vmul.f32 %v4531, %v11026
    %v11210 = vmul.f32 %v4533, %v11028
    %v11211 = vmul.f32 %v4572, %v11030
    %v11212 = vmul.f32 %v4574, %v11032
    %v11213 = vmul.f32 %v4613, %v11034
    %v11214 = vmul.f32 %v4615, %v11036
    %v11215 = vmul.f32 %v4654, %v11038
    %v11216 = vmul.f32 %v4656, %v11040
    %v11217 = vmul.f32 %v4695, %v11042
    %v11218 = vmul.f32 %v4697, %v11044
    %v11219 = vmul.f32 %v4736, %v11046
    %v11220 = vmul.f32 %v4738, %v11048
    %v11221 = vmul.f32 %v4777, %v11050
    %v11222 = vmul.f32 %v4779, %v11052
    %v11223 = vmul.f32 %v4818, %v11054
    %v11224 = vmul.f32 %v4820, %v11056
    %v11225 = vmul.f32 %v4859, %v11058
    %v11226 = vmul.f32 %v4861, %v11060
    %v11227 = vmul.f32 %v4900, %v11062
    %v11228 = vmul.f32 %v4902, %v11064
    %v11229 = vmul.f32 %v4941, %v11066
    %v11230 = vmul.f32 %v4943, %v11068
    %v11231 = vmul.f32 %v4982, %v11070
    %v11232 = vmul.f32 %v4984, %v11072
    %v11233 = vmul.f32 %v5023, %v11074
    %v11234 = vmul.f32 %v5025, %v11076
    %v11235 = vmul.f32 %v5064, %v11078
    %v11236 = vmul.f32 %v5066, %v11080
    %v11237 = vmul.f32 %v5105, %v11082
    %v11238 = vmul.f32 %v5107, %v11084
    %v11239 = vmul.f32 %v5146, %v11086
    %v11240 = vmul.f32 %v5148, %v11088
    %v11241 = vmul.f32 %v5187, %v11090
    %v11242 = vmul.f32 %v5189, %v11092
    %v11243 = vmul.f32 %v5228, %v11094
    %v11244 = vmul.f32 %v5230, %v11096
    %v11245 = vmul.f32 %v5269, %v11098
    %v11246 = vmul.f32 %v5271, %v11100
    %v11247 = vmul.f32 %v5310, %v11102
    %v11248 = vmul.f32 %v5312, %v11104
    %v11249 = vmul.f32 %v5351, %v11106
    %v11250 = vmul.f32 %v5353, %v11108
    %v11251 = vmul.f32 %v5392, %v11110
    %v11252 = vmul.f32 %v5394, %v11112
    %v11253 = vmul.f32 %v5433, %v11114
    %v11254 = vmul.f32 %v5435, %v11116
    %v11255 = vxor.u32 %v11117, 2147483648
    %v11256 = vxor.u32 %v11118, 2147483648
    %v11257 = vxor.u32 %v11119, 2147483648
    %v11258 = vxor.u32 %v11120, 2147483648
    %v11259 = vxor.u32 %v11121, 2147483648
    %v11260 = vxor.u32 %v11122, 2147483648
    %v11261 = vxor.u32 %v11123, 2147483648
    %v11262 = vxor.u32 %v11124, 2147483648
    %v11263 = vxor.u32 %v11125, 2147483648
    %v11264 = vxor.u32 %v11126, 2147483648
    %v11265 = vxor.u32 %v11127, 2147483648
    %v11266 = vxor.u32 %v11128, 2147483648
    %v11267 = vxor.u32 %v11129, 2147483648
    %v11268 = vxor.u32 %v11130, 2147483648
    %v11269 = vxor.u32 %v11131, 2147483648
    %v11270 = vxor.u32 %v11132, 2147483648
    %v11271 = vxor.u32 %v11133, 2147483648
    %v11272 = vxor.u32 %v11134, 2147483648
    %v11273 = vxor.u32 %v11135, 2147483648
    %v11274 = vxor.u32 %v11136, 2147483648
    %v11275 = vxor.u32 %v11137, 2147483648
    %v11276 = vxor.u32 %v11138, 2147483648
    %v11277 = vxor.u32 %v11139, 2147483648
    %v11278 = vxor.u32 %v11140, 2147483648
    %v11279 = vxor.u32 %v11141, 2147483648
    %v11280 = vxor.u32 %v11142, 2147483648
    %v11281 = vxor.u32 %v11143, 2147483648
    %v11282 = vxor.u32 %v11144, 2147483648
    %v11283 = vxor.u32 %v11145, 2147483648
    %v11284 = vxor.u32 %v11146, 2147483648
    %v11285 = vxor.u32 %v11147, 2147483648
    %v11286 = vxor.u32 %v11148, 2147483648
    %v11287 = vxor.u32 %v11149, 2147483648
    %v11288 = vxor.u32 %v11150, 2147483648
    %v11289 = vxor.u32 %v11151, 2147483648
    %v11290 = vxor.u32 %v11152, 2147483648
    %v11291 = vxor.u32 %v11153, 2147483648
    %v11292 = vxor.u32 %v11154, 2147483648
    %v11293 = vxor.u32 %v11155, 2147483648
    %v11294 = vxor.u32 %v11156, 2147483648
    %v11295 = vxor.u32 %v11157, 2147483648
    %v11296 = vxor.u32 %v11158, 2147483648
    %v11297 = vxor.u32 %v11159, 2147483648
    %v11298 = vxor.u32 %v11160, 2147483648
    %v11299 = vxor.u32 %v11161, 2147483648
    %v11300 = vxor.u32 %v11162, 2147483648
    %v11301 = vxor.u32 %v11163, 2147483648
    %v11302 = vxor.u32 %v11164, 2147483648
    %v11303 = vxor.u32 %v11165, 2147483648
    %v11304 = vxor.u32 %v11166, 2147483648
    %v11305 = vxor.u32 %v11167, 2147483648
    %v11306 = vxor.u32 %v11168, 2147483648
    %v11307 = vxor.u32 %v11169, 2147483648
    %v11308 = vxor.u32 %v11170, 2147483648
    %v11309 = vxor.u32 %v11171, 2147483648
    %v11310 = vxor.u32 %v11172, 2147483648
    %v11311 = vxor.u32 %v11173, 2147483648
    %v11312 = vxor.u32 %v11174, 2147483648
    %v11313 = vxor.u32 %v11175, 2147483648
    %v11314 = vxor.u32 %v11176, 2147483648
    %v11315 = vxor.u32 %v11177, 2147483648
    %v11316 = vxor.u32 %v11178, 2147483648
    %v11317 = vxor.u32 %v11179, 2147483648
    %v11318 = vxor.u32 %v11180, 2147483648
    %v11319 = vxor.u32 %v11181, 2147483648
    %v11320 = vxor.u32 %v11182, 2147483648
    %v11321 = vxor.u32 %v11183, 2147483648
    %v11322 = vxor.u32 %v11184, 2147483648
    %v11323 = vxor.u32 %v11185, 2147483648
    %v11324 = vxor.u32 %v11186, 2147483648
    %v11325 = vxor.u32 %v11187, 2147483648
    %v11326 = vxor.u32 %v11188, 2147483648
    %v11327 = vxor.u32 %v11189, 2147483648
    %v11328 = vxor.u32 %v11190, 2147483648
    %v11329 = vxor.u32 %v11191, 2147483648
    %v11330 = vxor.u32 %v11192, 2147483648
    %v11331 = vxor.u32 %v11193, 2147483648
    %v11332 = vxor.u32 %v11194, 2147483648
    %v11333 = vxor.u32 %v11195, 2147483648
    %v11334 = vxor.u32 %v11196, 2147483648
    %v11335 = vxor.u32 %v11197, 2147483648
    %v11336 = vxor.u32 %v11198, 2147483648
    %v11337 = vxor.u32 %v11199, 2147483648
    %v11338 = vxor.u32 %v11200, 2147483648
    %v11339 = vxor.u32 %v11201, 2147483648
    %v11340 = vxor.u32 %v11202, 2147483648
    %v11341 = vxor.u32 %v11203, 2147483648
    %v11342 = vxor.u32 %v11204, 2147483648
    %v11343 = vxor.u32 %v11205, 2147483648
    %v11344 = vxor.u32 %v11206, 2147483648
    %v11345 = vxor.u32 %v11207, 2147483648
    %v11346 = vxor.u32 %v11208, 2147483648
    %v11347 = vxor.u32 %v11209, 2147483648
    %v11348 = vxor.u32 %v11210, 2147483648
    %v11349 = vxor.u32 %v11211, 2147483648
    %v11350 = vxor.u32 %v11212, 2147483648
    %v11351 = vxor.u32 %v11213, 2147483648
    %v11352 = vxor.u32 %v11214, 2147483648
    %v11353 = vxor.u32 %v11215, 2147483648
    %v11354 = vxor.u32 %v11216, 2147483648
    %v11355 = vxor.u32 %v11217, 2147483648
    %v11356 = vxor.u32 %v11218, 2147483648
    %v11357 = vxor.u32 %v11219, 2147483648
    %v11358 = vxor.u32 %v11220, 2147483648
    %v11359 = vxor.u32 %v11221, 2147483648
    %v11360 = vxor.u32 %v11222, 2147483648
    %v11361 = vxor.u32 %v11223, 2147483648
    %v11362 = vxor.u32 %v11224, 2147483648
    %v11363 = vxor.u32 %v11225, 2147483648
    %v11364 = vxor.u32 %v11226, 2147483648
    %v11365 = vxor.u32 %v11227, 2147483648
    %v11366 = vxor.u32 %v11228, 2147483648
    %v11367 = vxor.u32 %v11229, 2147483648
    %v11368 = vxor.u32 %v11230, 2147483648
    %v11369 = vxor.u32 %v11231, 2147483648
    %v11370 = vxor.u32 %v11232, 2147483648
    %v11371 = vxor.u32 %v11233, 2147483648
    %v11372 = vxor.u32 %v11234, 2147483648
    %v11373 = vxor.u32 %v11235, 2147483648
    %v11374 = vxor.u32 %v11236, 2147483648
    %v11375 = vxor.u32 %v11237, 2147483648
    %v11376 = vxor.u32 %v11238, 2147483648
    %v11377 = vxor.u32 %v11239, 2147483648
    %v11378 = vxor.u32 %v11240, 2147483648
    %v11379 = vxor.u32 %v11241, 2147483648
    %v11380 = vxor.u32 %v11242, 2147483648
    %v11381 = vxor.u32 %v11243, 2147483648
    %v11382 = vxor.u32 %v11244, 2147483648
    %v11383 = vxor.u32 %v11245, 2147483648
    %v11384 = vxor.u32 %v11246, 2147483648
    %v11385 = vxor.u32 %v11247, 2147483648
    %v11386 = vxor.u32 %v11248, 2147483648
    %v11387 = vxor.u32 %v11249, 2147483648
    %v11388 = vxor.u32 %v11250, 2147483648
    %v11389 = vxor.u32 %v11251, 2147483648
    %v11390 = vxor.u32 %v11252, 2147483648
    %v11391 = vxor.u32 %v11253, 2147483648
    %v11392 = vxor.u32 %v11254, 2147483648
    %v11393 = vmul.f32 %v11255, 1.442695
    %v11394 = vpow.pop %v11393
    %v11395 = vmul.f32 %v11256, 1.442695
    %v11396 = vpow.pop %v11395
    %v11397 = vmul.f32 %v11257, 1.442695
    %v11398 = vpow.pop %v11397
    %v11399 = vmul.f32 %v11258, 1.442695
    %v11400 = vpow.pop %v11399
    %v11401 = vmul.f32 %v11259, 1.442695
    %v11402 = vpow.pop %v11401
    %v11403 = vmul.f32 %v11260, 1.442695
    %v11404 = vpow.pop %v11403
    %v11405 = vmul.f32 %v11261, 1.442695
    %v11406 = vpow.pop %v11405
    %v11407 = vmul.f32 %v11262, 1.442695
    %v11408 = vpow.pop %v11407
    %v11409 = vmul.f32 %v11263, 1.442695
    %v11410 = vpow.pop %v11409
    %v11411 = vmul.f32 %v11264, 1.442695
    %v11412 = vpow.pop %v11411
    %v11413 = vmul.f32 %v11265, 1.442695
    %v11414 = vpow.pop %v11413
    %v11415 = vmul.f32 %v11266, 1.442695
    %v11416 = vpow.pop %v11415
    %v11417 = vmul.f32 %v11267, 1.442695
    %v11418 = vpow.pop %v11417
    %v11419 = vmul.f32 %v11268, 1.442695
    %v11420 = vpow.pop %v11419
    %v11421 = vmul.f32 %v11269, 1.442695
    %v11422 = vpow.pop %v11421
    %v11423 = vmul.f32 %v11270, 1.442695
    %v11424 = vpow.pop %v11423
    %v11425 = vmul.f32 %v11271, 1.442695
    %v11426 = vpow.pop %v11425
    %v11427 = vmul.f32 %v11272, 1.442695
    %v11428 = vpow.pop %v11427
    %v11429 = vmul.f32 %v11273, 1.442695
    %v11430 = vpow.pop %v11429
    %v11431 = vmul.f32 %v11274, 1.442695
    %v11432 = vpow.pop %v11431
    %v11433 = vmul.f32 %v11275, 1.442695
    %v11434 = vpow.pop %v11433
    %v11435 = vmul.f32 %v11276, 1.442695
    %v11436 = vpow.pop %v11435
    %v11437 = vmul.f32 %v11277, 1.442695
    %v11438 = vpow.pop %v11437
    %v11439 = vmul.f32 %v11278, 1.442695
    %v11440 = vpow.pop %v11439
    %v11441 = vmul.f32 %v11279, 1.442695
    %v11442 = vpow.pop %v11441
    %v11443 = vmul.f32 %v11280, 1.442695
    %v11444 = vpow.pop %v11443
    %v11445 = vmul.f32 %v11281, 1.442695
    %v11446 = vpow.pop %v11445
    %v11447 = vmul.f32 %v11282, 1.442695
    %v11448 = vpow.pop %v11447
    %v11449 = vmul.f32 %v11283, 1.442695
    %v11450 = vpow.pop %v11449
    %v11451 = vmul.f32 %v11284, 1.442695
    %v11452 = vpow.pop %v11451
    %v11453 = vmul.f32 %v11285, 1.442695
    %v11454 = vpow.pop %v11453
    %v11455 = vmul.f32 %v11286, 1.442695
    %v11456 = vpow.pop %v11455
    %v11457 = vmul.f32 %v11287, 1.442695
    %v11458 = vpow.pop %v11457
    %v11459 = vmul.f32 %v11288, 1.442695
    %v11460 = vpow.pop %v11459
    %v11461 = vmul.f32 %v11289, 1.442695
    %v11462 = vpow.pop %v11461
    %v11463 = vmul.f32 %v11290, 1.442695
    %v11464 = vpow.pop %v11463
    %v11465 = vmul.f32 %v11291, 1.442695
    %v11466 = vpow.pop %v11465
    %v11467 = vmul.f32 %v11292, 1.442695
    %v11468 = vpow.pop %v11467
    %v11469 = vmul.f32 %v11293, 1.442695
    %v11470 = vpow.pop %v11469
    %v11471 = vmul.f32 %v11294, 1.442695
    %v11472 = vpow.pop %v11471
    %v11473 = vmul.f32 %v11295, 1.442695
    %v11474 = vpow.pop %v11473
    %v11475 = vmul.f32 %v11296, 1.442695
    %v11476 = vpow.pop %v11475
    %v11477 = vmul.f32 %v11297, 1.442695
    %v11478 = vpow.pop %v11477
    %v11479 = vmul.f32 %v11298, 1.442695
    %v11480 = vpow.pop %v11479
    %v11481 = vmul.f32 %v11299, 1.442695
    %v11482 = vpow.pop %v11481
    %v11483 = vmul.f32 %v11300, 1.442695
    %v11484 = vpow.pop %v11483
    %v11485 = vmul.f32 %v11301, 1.442695
    %v11486 = vpow.pop %v11485
    %v11487 = vmul.f32 %v11302, 1.442695
    %v11488 = vpow.pop %v11487
    %v11489 = vmul.f32 %v11303, 1.442695
    %v11490 = vpow.pop %v11489
    %v11491 = vmul.f32 %v11304, 1.442695
    %v11492 = vpow.pop %v11491
    %v11493 = vmul.f32 %v11305, 1.442695
    %v11494 = vpow.pop %v11493
    %v11495 = vmul.f32 %v11306, 1.442695
    %v11496 = vpow.pop %v11495
    %v11497 = vmul.f32 %v11307, 1.442695
    %v11498 = vpow.pop %v11497
    %v11499 = vmul.f32 %v11308, 1.442695
    %v11500 = vpow.pop %v11499
    %v11501 = vmul.f32 %v11309, 1.442695
    %v11502 = vpow.pop %v11501
    %v11503 = vmul.f32 %v11310, 1.442695
    %v11504 = vpow.pop %v11503
    %v11505 = vmul.f32 %v11311, 1.442695
    %v11506 = vpow.pop %v11505
    %v11507 = vmul.f32 %v11312, 1.442695
    %v11508 = vpow.pop %v11507
    %v11509 = vmul.f32 %v11313, 1.442695
    %v11510 = vpow.pop %v11509
    %v11511 = vmul.f32 %v11314, 1.442695
    %v11512 = vpow.pop %v11511
    %v11513 = vmul.f32 %v11315, 1.442695
    %v11514 = vpow.pop %v11513
    %v11515 = vmul.f32 %v11316, 1.442695
    %v11516 = vpow.pop %v11515
    %v11517 = vmul.f32 %v11317, 1.442695
    %v11518 = vpow.pop %v11517
    %v11519 = vmul.f32 %v11318, 1.442695
    %v11520 = vpow.pop %v11519
    %v11521 = vmul.f32 %v11319, 1.442695
    %v11522 = vpow.pop %v11521
    %v11523 = vmul.f32 %v11320, 1.442695
    %v11524 = vpow.pop %v11523
    %v11525 = vmul.f32 %v11321, 1.442695
    %v11526 = vpow.pop %v11525
    %v11527 = vmul.f32 %v11322, 1.442695
    %v11528 = vpow.pop %v11527
    %v11529 = vmul.f32 %v11323, 1.442695
    %v11530 = vpow.pop %v11529
    %v11531 = vmul.f32 %v11324, 1.442695
    %v11532 = vpow.pop %v11531
    %v11533 = vmul.f32 %v11325, 1.442695
    %v11534 = vpow.pop %v11533
    %v11535 = vmul.f32 %v11326, 1.442695
    %v11536 = vpow.pop %v11535
    %v11537 = vmul.f32 %v11327, 1.442695
    %v11538 = vpow.pop %v11537
    %v11539 = vmul.f32 %v11328, 1.442695
    %v11540 = vpow.pop %v11539
    %v11541 = vmul.f32 %v11329, 1.442695
    %v11542 = vpow.pop %v11541
    %v11543 = vmul.f32 %v11330, 1.442695
    %v11544 = vpow.pop %v11543
    %v11545 = vmul.f32 %v11331, 1.442695
    %v11546 = vpow.pop %v11545
    %v11547 = vmul.f32 %v11332, 1.442695
    %v11548 = vpow.pop %v11547
    %v11549 = vmul.f32 %v11333, 1.442695
    %v11550 = vpow.pop %v11549
    %v11551 = vmul.f32 %v11334, 1.442695
    %v11552 = vpow.pop %v11551
    %v11553 = vmul.f32 %v11335, 1.442695
    %v11554 = vpow.pop %v11553
    %v11555 = vmul.f32 %v11336, 1.442695
    %v11556 = vpow.pop %v11555
    %v11557 = vmul.f32 %v11337, 1.442695
    %v11558 = vpow.pop %v11557
    %v11559 = vmul.f32 %v11338, 1.442695
    %v11560 = vpow.pop %v11559
    %v11561 = vmul.f32 %v11339, 1.442695
    %v11562 = vpow.pop %v11561
    %v11563 = vmul.f32 %v11340, 1.442695
    %v11564 = vpow.pop %v11563
    %v11565 = vmul.f32 %v11341, 1.442695
    %v11566 = vpow.pop %v11565
    %v11567 = vmul.f32 %v11342, 1.442695
    %v11568 = vpow.pop %v11567
    %v11569 = vmul.f32 %v11343, 1.442695
    %v11570 = vpow.pop %v11569
    %v11571 = vmul.f32 %v11344, 1.442695
    %v11572 = vpow.pop %v11571
    %v11573 = vmul.f32 %v11345, 1.442695
    %v11574 = vpow.pop %v11573
    %v11575 = vmul.f32 %v11346, 1.442695
    %v11576 = vpow.pop %v11575
    %v11577 = vmul.f32 %v11347, 1.442695
    %v11578 = vpow.pop %v11577
    %v11579 = vmul.f32 %v11348, 1.442695
    %v11580 = vpow.pop %v11579
    %v11581 = vmul.f32 %v11349, 1.442695
    %v11582 = vpow.pop %v11581
    %v11583 = vmul.f32 %v11350, 1.442695
    %v11584 = vpow.pop %v11583
    %v11585 = vmul.f32 %v11351, 1.442695
    %v11586 = vpow.pop %v11585
    %v11587 = vmul.f32 %v11352, 1.442695
    %v11588 = vpow.pop %v11587
    %v11589 = vmul.f32 %v11353, 1.442695
    %v11590 = vpow.pop %v11589
    %v11591 = vmul.f32 %v11354, 1.442695
    %v11592 = vpow.pop %v11591
    %v11593 = vmul.f32 %v11355, 1.442695
    %v11594 = vpow.pop %v11593
    %v11595 = vmul.f32 %v11356, 1.442695
    %v11596 = vpow.pop %v11595
    %v11597 = vmul.f32 %v11357, 1.442695
    %v11598 = vpow.pop %v11597
    %v11599 = vmul.f32 %v11358, 1.442695
    %v11600 = vpow.pop %v11599
    %v11601 = vmul.f32 %v11359, 1.442695
    %v11602 = vpow.pop %v11601
    %v11603 = vmul.f32 %v11360, 1.442695
    %v11604 = vpow.pop %v11603
    %v11605 = vmul.f32 %v11361, 1.442695
    %v11606 = vpow.pop %v11605
    %v11607 = vmul.f32 %v11362, 1.442695
    %v11608 = vpow.pop %v11607
    %v11609 = vmul.f32 %v11363, 1.442695
    %v11610 = vpow.pop %v11609
    %v11611 = vmul.f32 %v11364, 1.442695
    %v11612 = vpow.pop %v11611
    %v11613 = vmul.f32 %v11365, 1.442695
    %v11614 = vpow.pop %v11613
    %v11615 = vmul.f32 %v11366, 1.442695
    %v11616 = vpow.pop %v11615
    %v11617 = vmul.f32 %v11367, 1.442695
    %v11618 = vpow.pop %v11617
    %v11619 = vmul.f32 %v11368, 1.442695
    %v11620 = vpow.pop %v11619
    %v11621 = vmul.f32 %v11369, 1.442695
    %v11622 = vpow.pop %v11621
    %v11623 = vmul.f32 %v11370, 1.442695
    %v11624 = vpow.pop %v11623
    %v11625 = vmul.f32 %v11371, 1.442695
    %v11626 = vpow.pop %v11625
    %v11627 = vmul.f32 %v11372, 1.442695
    %v11628 = vpow.pop %v11627
    %v11629 = vmul.f32 %v11373, 1.442695
    %v11630 = vpow.pop %v11629
    %v11631 = vmul.f32 %v11374, 1.442695
    %v11632 = vpow.pop %v11631
    %v11633 = vmul.f32 %v11375, 1.442695
    %v11634 = vpow.pop %v11633
    %v11635 = vmul.f32 %v11376, 1.442695
    %v11636 = vpow.pop %v11635
    %v11637 = vmul.f32 %v11377, 1.442695
    %v11638 = vpow.pop %v11637
    %v11639 = vmul.f32 %v11378, 1.442695
    %v11640 = vpow.pop %v11639
    %v11641 = vmul.f32 %v11379, 1.442695
    %v11642 = vpow.pop %v11641
    %v11643 = vmul.f32 %v11380, 1.442695
    %v11644 = vpow.pop %v11643
    %v11645 = vmul.f32 %v11381, 1.442695
    %v11646 = vpow.pop %v11645
    %v11647 = vmul.f32 %v11382, 1.442695
    %v11648 = vpow.pop %v11647
    %v11649 = vmul.f32 %v11383, 1.442695
    %v11650 = vpow.pop %v11649
    %v11651 = vmul.f32 %v11384, 1.442695
    %v11652 = vpow.pop %v11651
    %v11653 = vmul.f32 %v11385, 1.442695
    %v11654 = vpow.pop %v11653
    %v11655 = vmul.f32 %v11386, 1.442695
    %v11656 = vpow.pop %v11655
    %v11657 = vmul.f32 %v11387, 1.442695
    %v11658 = vpow.pop %v11657
    %v11659 = vmul.f32 %v11388, 1.442695
    %v11660 = vpow.pop %v11659
    %v11661 = vmul.f32 %v11389, 1.442695
    %v11662 = vpow.pop %v11661
    %v11663 = vmul.f32 %v11390, 1.442695
    %v11664 = vpow.pop %v11663
    %v11665 = vmul.f32 %v11391, 1.442695
    %v11666 = vpow.pop %v11665
    %v11667 = vmul.f32 %v11392, 1.442695
    %v11668 = vpow.pop %v11667
    %v11669 = vadd.f32 %v11394, 1.0
    %v11670 = vadd.f32 %v11396, 1.0
    %v11671 = vadd.f32 %v11398, 1.0
    %v11672 = vadd.f32 %v11400, 1.0
    %v11673 = vadd.f32 %v11402, 1.0
    %v11674 = vadd.f32 %v11404, 1.0
    %v11675 = vadd.f32 %v11406, 1.0
    %v11676 = vadd.f32 %v11408, 1.0
    %v11677 = vadd.f32 %v11410, 1.0
    %v11678 = vadd.f32 %v11412, 1.0
    %v11679 = vadd.f32 %v11414, 1.0
    %v11680 = vadd.f32 %v11416, 1.0
    %v11681 = vadd.f32 %v11418, 1.0
    %v11682 = vadd.f32 %v11420, 1.0
    %v11683 = vadd.f32 %v11422, 1.0
    %v11684 = vadd.f32 %v11424, 1.0
    %v11685 = vadd.f32 %v11426, 1.0
    %v11686 = vadd.f32 %v11428, 1.0
    %v11687 = vadd.f32 %v11430, 1.0
    %v11688 = vadd.f32 %v11432, 1.0
    %v11689 = vadd.f32 %v11434, 1.0
    %v11690 = vadd.f32 %v11436, 1.0
    %v11691 = vadd.f32 %v11438, 1.0
    %v11692 = vadd.f32 %v11440, 1.0
    %v11693 = vadd.f32 %v11442, 1.0
    %v11694 = vadd.f32 %v11444, 1.0
    %v11695 = vadd.f32 %v11446, 1.0
    %v11696 = vadd.f32 %v11448, 1.0
    %v11697 = vadd.f32 %v11450, 1.0
    %v11698 = vadd.f32 %v11452, 1.0
    %v11699 = vadd.f32 %v11454, 1.0
    %v11700 = vadd.f32 %v11456, 1.0
    %v11701 = vadd.f32 %v11458, 1.0
    %v11702 = vadd.f32 %v11460, 1.0
    %v11703 = vadd.f32 %v11462, 1.0
    %v11704 = vadd.f32 %v11464, 1.0
    %v11705 = vadd.f32 %v11466, 1.0
    %v11706 = vadd.f32 %v11468, 1.0
    %v11707 = vadd.f32 %v11470, 1.0
    %v11708 = vadd.f32 %v11472, 1.0
    %v11709 = vadd.f32 %v11474, 1.0
    %v11710 = vadd.f32 %v11476, 1.0
    %v11711 = vadd.f32 %v11478, 1.0
    %v11712 = vadd.f32 %v11480, 1.0
    %v11713 = vadd.f32 %v11482, 1.0
    %v11714 = vadd.f32 %v11484, 1.0
    %v11715 = vadd.f32 %v11486, 1.0
    %v11716 = vadd.f32 %v11488, 1.0
    %v11717 = vadd.f32 %v11490, 1.0
    %v11718 = vadd.f32 %v11492, 1.0
    %v11719 = vadd.f32 %v11494, 1.0
    %v11720 = vadd.f32 %v11496, 1.0
    %v11721 = vadd.f32 %v11498, 1.0
    %v11722 = vadd.f32 %v11500, 1.0
    %v11723 = vadd.f32 %v11502, 1.0
    %v11724 = vadd.f32 %v11504, 1.0
    %v11725 = vadd.f32 %v11506, 1.0
    %v11726 = vadd.f32 %v11508, 1.0
    %v11727 = vadd.f32 %v11510, 1.0
    %v11728 = vadd.f32 %v11512, 1.0
    %v11729 = vadd.f32 %v11514, 1.0
    %v11730 = vadd.f32 %v11516, 1.0
    %v11731 = vadd.f32 %v11518, 1.0
    %v11732 = vadd.f32 %v11520, 1.0
    %v11733 = vadd.f32 %v11522, 1.0
    %v11734 = vadd.f32 %v11524, 1.0
    %v11735 = vadd.f32 %v11526, 1.0
    %v11736 = vadd.f32 %v11528, 1.0
    %v11737 = vadd.f32 %v11530, 1.0
    %v11738 = vadd.f32 %v11532, 1.0
    %v11739 = vadd.f32 %v11534, 1.0
    %v11740 = vadd.f32 %v11536, 1.0
    %v11741 = vadd.f32 %v11538, 1.0
    %v11742 = vadd.f32 %v11540, 1.0
    %v11743 = vadd.f32 %v11542, 1.0
    %v11744 = vadd.f32 %v11544, 1.0
    %v11745 = vadd.f32 %v11546, 1.0
    %v11746 = vadd.f32 %v11548, 1.0
    %v11747 = vadd.f32 %v11550, 1.0
    %v11748 = vadd.f32 %v11552, 1.0
    %v11749 = vadd.f32 %v11554, 1.0
    %v11750 = vadd.f32 %v11556, 1.0
    %v11751 = vadd.f32 %v11558, 1.0
    %v11752 = vadd.f32 %v11560, 1.0
    %v11753 = vadd.f32 %v11562, 1.0
    %v11754 = vadd.f32 %v11564, 1.0
    %v11755 = vadd.f32 %v11566, 1.0
    %v11756 = vadd.f32 %v11568, 1.0
    %v11757 = vadd.f32 %v11570, 1.0
    %v11758 = vadd.f32 %v11572, 1.0
    %v11759 = vadd.f32 %v11574, 1.0
    %v11760 = vadd.f32 %v11576, 1.0
    %v11761 = vadd.f32 %v11578, 1.0
    %v11762 = vadd.f32 %v11580, 1.0
    %v11763 = vadd.f32 %v11582, 1.0
    %v11764 = vadd.f32 %v11584, 1.0
    %v11765 = vadd.f32 %v11586, 1.0
    %v11766 = vadd.f32 %v11588, 1.0
    %v11767 = vadd.f32 %v11590, 1.0
    %v11768 = vadd.f32 %v11592, 1.0
    %v11769 = vadd.f32 %v11594, 1.0
    %v11770 = vadd.f32 %v11596, 1.0
    %v11771 = vadd.f32 %v11598, 1.0
    %v11772 = vadd.f32 %v11600, 1.0
    %v11773 = vadd.f32 %v11602, 1.0
    %v11774 = vadd.f32 %v11604, 1.0
    %v11775 = vadd.f32 %v11606, 1.0
    %v11776 = vadd.f32 %v11608, 1.0
    %v11777 = vadd.f32 %v11610, 1.0
    %v11778 = vadd.f32 %v11612, 1.0
    %v11779 = vadd.f32 %v11614, 1.0
    %v11780 = vadd.f32 %v11616, 1.0
    %v11781 = vadd.f32 %v11618, 1.0
    %v11782 = vadd.f32 %v11620, 1.0
    %v11783 = vadd.f32 %v11622, 1.0
    %v11784 = vadd.f32 %v11624, 1.0
    %v11785 = vadd.f32 %v11626, 1.0
    %v11786 = vadd.f32 %v11628, 1.0
    %v11787 = vadd.f32 %v11630, 1.0
    %v11788 = vadd.f32 %v11632, 1.0
    %v11789 = vadd.f32 %v11634, 1.0
    %v11790 = vadd.f32 %v11636, 1.0
    %v11791 = vadd.f32 %v11638, 1.0
    %v11792 = vadd.f32 %v11640, 1.0
    %v11793 = vadd.f32 %v11642, 1.0
    %v11794 = vadd.f32 %v11644, 1.0
    %v11795 = vadd.f32 %v11646, 1.0
    %v11796 = vadd.f32 %v11648, 1.0
    %v11797 = vadd.f32 %v11650, 1.0
    %v11798 = vadd.f32 %v11652, 1.0
    %v11799 = vadd.f32 %v11654, 1.0
    %v11800 = vadd.f32 %v11656, 1.0
    %v11801 = vadd.f32 %v11658, 1.0
    %v11802 = vadd.f32 %v11660, 1.0
    %v11803 = vadd.f32 %v11662, 1.0
    %v11804 = vadd.f32 %v11664, 1.0
    %v11805 = vadd.f32 %v11666, 1.0
    %v11806 = vadd.f32 %v11668, 1.0
    %v11807 = vrcp.pop %v11669
    %v11808 = vmul.f32 1.0, %v11807
    %v11809 = vrcp.pop %v11670
    %v11810 = vmul.f32 1.0, %v11809
    %v11811 = vrcp.pop %v11671
    %v11812 = vmul.f32 1.0, %v11811
    %v11813 = vrcp.pop %v11672
    %v11814 = vmul.f32 1.0, %v11813
    %v11815 = vrcp.pop %v11673
    %v11816 = vmul.f32 1.0, %v11815
    %v11817 = vrcp.pop %v11674
    %v11818 = vmul.f32 1.0, %v11817
    %v11819 = vrcp.pop %v11675
    %v11820 = vmul.f32 1.0, %v11819
    %v11821 = vrcp.pop %v11676
    %v11822 = vmul.f32 1.0, %v11821
    %v11823 = vrcp.pop %v11677
    %v11824 = vmul.f32 1.0, %v11823
    %v11825 = vrcp.pop %v11678
    %v11826 = vmul.f32 1.0, %v11825
    %v11827 = vrcp.pop %v11679
    %v11828 = vmul.f32 1.0, %v11827
    %v11829 = vrcp.pop %v11680
    %v11830 = vmul.f32 1.0, %v11829
    %v11831 = vrcp.pop %v11681
    %v11832 = vmul.f32 1.0, %v11831
    %v11833 = vrcp.pop %v11682
    %v11834 = vmul.f32 1.0, %v11833
    %v11835 = vrcp.pop %v11683
    %v11836 = vmul.f32 1.0, %v11835
    %v11837 = vrcp.pop %v11684
    %v11838 = vmul.f32 1.0, %v11837
    %v11839 = vrcp.pop %v11685
    %v11840 = vmul.f32 1.0, %v11839
    %v11841 = vrcp.pop %v11686
    %v11842 = vmul.f32 1.0, %v11841
    %v11843 = vrcp.pop %v11687
    %v11844 = vmul.f32 1.0, %v11843
    %v11845 = vrcp.pop %v11688
    %v11846 = vmul.f32 1.0, %v11845
    %v11847 = vrcp.pop %v11689
    %v11848 = vmul.f32 1.0, %v11847
    %v11849 = vrcp.pop %v11690
    %v11850 = vmul.f32 1.0, %v11849
    %v11851 = vrcp.pop %v11691
    %v11852 = vmul.f32 1.0, %v11851
    %v11853 = vrcp.pop %v11692
    %v11854 = vmul.f32 1.0, %v11853
    %v11855 = vrcp.pop %v11693
    %v11856 = vmul.f32 1.0, %v11855
    %v11857 = vrcp.pop %v11694
    %v11858 = vmul.f32 1.0, %v11857
    %v11859 = vrcp.pop %v11695
    %v11860 = vmul.f32 1.0, %v11859
    %v11861 = vrcp.pop %v11696
    %v11862 = vmul.f32 1.0, %v11861
    %v11863 = vrcp.pop %v11697
    %v11864 = vmul.f32 1.0, %v11863
    %v11865 = vrcp.pop %v11698
    %v11866 = vmul.f32 1.0, %v11865
    %v11867 = vrcp.pop %v11699
    %v11868 = vmul.f32 1.0, %v11867
    %v11869 = vrcp.pop %v11700
    %v11870 = vmul.f32 1.0, %v11869
    %v11871 = vrcp.pop %v11701
    %v11872 = vmul.f32 1.0, %v11871
    %v11873 = vrcp.pop %v11702
    %v11874 = vmul.f32 1.0, %v11873
    %v11875 = vrcp.pop %v11703
    %v11876 = vmul.f32 1.0, %v11875
    %v11877 = vrcp.pop %v11704
    %v11878 = vmul.f32 1.0, %v11877
    %v11879 = vrcp.pop %v11705
    %v11880 = vmul.f32 1.0, %v11879
    %v11881 = vrcp.pop %v11706
    %v11882 = vmul.f32 1.0, %v11881
    %v11883 = vrcp.pop %v11707
    %v11884 = vmul.f32 1.0, %v11883
    %v11885 = vrcp.pop %v11708
    %v11886 = vmul.f32 1.0, %v11885
    %v11887 = vrcp.pop %v11709
    %v11888 = vmul.f32 1.0, %v11887
    %v11889 = vrcp.pop %v11710
    %v11890 = vmul.f32 1.0, %v11889
    %v11891 = vrcp.pop %v11711
    %v11892 = vmul.f32 1.0, %v11891
    %v11893 = vrcp.pop %v11712
    %v11894 = vmul.f32 1.0, %v11893
    %v11895 = vrcp.pop %v11713
    %v11896 = vmul.f32 1.0, %v11895
    %v11897 = vrcp.pop %v11714
    %v11898 = vmul.f32 1.0, %v11897
    %v11899 = vrcp.pop %v11715
    %v11900 = vmul.f32 1.0, %v11899
    %v11901 = vrcp.pop %v11716
    %v11902 = vmul.f32 1.0, %v11901
    %v11903 = vrcp.pop %v11717
    %v11904 = vmul.f32 1.0, %v11903
    %v11905 = vrcp.pop %v11718
    %v11906 = vmul.f32 1.0, %v11905
    %v11907 = vrcp.pop %v11719
    %v11908 = vmul.f32 1.0, %v11907
    %v11909 = vrcp.pop %v11720
    %v11910 = vmul.f32 1.0, %v11909
    %v11911 = vrcp.pop %v11721
    %v11912 = vmul.f32 1.0, %v11911
    %v11913 = vrcp.pop %v11722
    %v11914 = vmul.f32 1.0, %v11913
    %v11915 = vrcp.pop %v11723
    %v11916 = vmul.f32 1.0, %v11915
    %v11917 = vrcp.pop %v11724
    %v11918 = vmul.f32 1.0, %v11917
    %v11919 = vrcp.pop %v11725
    %v11920 = vmul.f32 1.0, %v11919
    %v11921 = vrcp.pop %v11726
    %v11922 = vmul.f32 1.0, %v11921
    %v11923 = vrcp.pop %v11727
    %v11924 = vmul.f32 1.0, %v11923
    %v11925 = vrcp.pop %v11728
    %v11926 = vmul.f32 1.0, %v11925
    %v11927 = vrcp.pop %v11729
    %v11928 = vmul.f32 1.0, %v11927
    %v11929 = vrcp.pop %v11730
    %v11930 = vmul.f32 1.0, %v11929
    %v11931 = vrcp.pop %v11731
    %v11932 = vmul.f32 1.0, %v11931
    %v11933 = vrcp.pop %v11732
    %v11934 = vmul.f32 1.0, %v11933
    %v11935 = vrcp.pop %v11733
    %v11936 = vmul.f32 1.0, %v11935
    %v11937 = vrcp.pop %v11734
    %v11938 = vmul.f32 1.0, %v11937
    %v11939 = vrcp.pop %v11735
    %v11940 = vmul.f32 1.0, %v11939
    %v11941 = vrcp.pop %v11736
    %v11942 = vmul.f32 1.0, %v11941
    %v11943 = vrcp.pop %v11737
    %v11944 = vmul.f32 1.0, %v11943
    %v11945 = vrcp.pop %v11738
    %v11946 = vmul.f32 1.0, %v11945
    %v11947 = vrcp.pop %v11739
    %v11948 = vmul.f32 1.0, %v11947
    %v11949 = vrcp.pop %v11740
    %v11950 = vmul.f32 1.0, %v11949
    %v11951 = vrcp.pop %v11741
    %v11952 = vmul.f32 1.0, %v11951
    %v11953 = vrcp.pop %v11742
    %v11954 = vmul.f32 1.0, %v11953
    %v11955 = vrcp.pop %v11743
    %v11956 = vmul.f32 1.0, %v11955
    %v11957 = vrcp.pop %v11744
    %v11958 = vmul.f32 1.0, %v11957
    %v11959 = vrcp.pop %v11745
    %v11960 = vmul.f32 1.0, %v11959
    %v11961 = vrcp.pop %v11746
    %v11962 = vmul.f32 1.0, %v11961
    %v11963 = vrcp.pop %v11747
    %v11964 = vmul.f32 1.0, %v11963
    %v11965 = vrcp.pop %v11748
    %v11966 = vmul.f32 1.0, %v11965
    %v11967 = vrcp.pop %v11749
    %v11968 = vmul.f32 1.0, %v11967
    %v11969 = vrcp.pop %v11750
    %v11970 = vmul.f32 1.0, %v11969
    %v11971 = vrcp.pop %v11751
    %v11972 = vmul.f32 1.0, %v11971
    %v11973 = vrcp.pop %v11752
    %v11974 = vmul.f32 1.0, %v11973
    %v11975 = vrcp.pop %v11753
    %v11976 = vmul.f32 1.0, %v11975
    %v11977 = vrcp.pop %v11754
    %v11978 = vmul.f32 1.0, %v11977
    %v11979 = vrcp.pop %v11755
    %v11980 = vmul.f32 1.0, %v11979
    %v11981 = vrcp.pop %v11756
    %v11982 = vmul.f32 1.0, %v11981
    %v11983 = vrcp.pop %v11757
    %v11984 = vmul.f32 1.0, %v11983
    %v11985 = vrcp.pop %v11758
    %v11986 = vmul.f32 1.0, %v11985
    %v11987 = vrcp.pop %v11759
    %v11988 = vmul.f32 1.0, %v11987
    %v11989 = vrcp.pop %v11760
    %v11990 = vmul.f32 1.0, %v11989
    %v11991 = vrcp.pop %v11761
    %v11992 = vmul.f32 1.0, %v11991
    %v11993 = vrcp.pop %v11762
    %v11994 = vmul.f32 1.0, %v11993
    %v11995 = vrcp.pop %v11763
    %v11996 = vmul.f32 1.0, %v11995
    %v11997 = vrcp.pop %v11764
    %v11998 = vmul.f32 1.0, %v11997
    %v11999 = vrcp.pop %v11765
    %v12000 = vmul.f32 1.0, %v11999
    %v12001 = vrcp.pop %v11766
    %v12002 = vmul.f32 1.0, %v12001
    %v12003 = vrcp.pop %v11767
    %v12004 = vmul.f32 1.0, %v12003
    %v12005 = vrcp.pop %v11768
    %v12006 = vmul.f32 1.0, %v12005
    %v12007 = vrcp.pop %v11769
    %v12008 = vmul.f32 1.0, %v12007
    %v12009 = vrcp.pop %v11770
    %v12010 = vmul.f32 1.0, %v12009
    %v12011 = vrcp.pop %v11771
    %v12012 = vmul.f32 1.0, %v12011
    %v12013 = vrcp.pop %v11772
    %v12014 = vmul.f32 1.0, %v12013
    %v12015 = vrcp.pop %v11773
    %v12016 = vmul.f32 1.0, %v12015
    %v12017 = vrcp.pop %v11774
    %v12018 = vmul.f32 1.0, %v12017
    %v12019 = vrcp.pop %v11775
    %v12020 = vmul.f32 1.0, %v12019
    %v12021 = vrcp.pop %v11776
    %v12022 = vmul.f32 1.0, %v12021
    %v12023 = vrcp.pop %v11777
    %v12024 = vmul.f32 1.0, %v12023
    %v12025 = vrcp.pop %v11778
    %v12026 = vmul.f32 1.0, %v12025
    %v12027 = vrcp.pop %v11779
    %v12028 = vmul.f32 1.0, %v12027
    %v12029 = vrcp.pop %v11780
    %v12030 = vmul.f32 1.0, %v12029
    %v12031 = vrcp.pop %v11781
    %v12032 = vmul.f32 1.0, %v12031
    %v12033 = vrcp.pop %v11782
    %v12034 = vmul.f32 1.0, %v12033
    %v12035 = vrcp.pop %v11783
    %v12036 = vmul.f32 1.0, %v12035
    %v12037 = vrcp.pop %v11784
    %v12038 = vmul.f32 1.0, %v12037
    %v12039 = vrcp.pop %v11785
    %v12040 = vmul.f32 1.0, %v12039
    %v12041 = vrcp.pop %v11786
    %v12042 = vmul.f32 1.0, %v12041
    %v12043 = vrcp.pop %v11787
    %v12044 = vmul.f32 1.0, %v12043
    %v12045 = vrcp.pop %v11788
    %v12046 = vmul.f32 1.0, %v12045
    %v12047 = vrcp.pop %v11789
    %v12048 = vmul.f32 1.0, %v12047
    %v12049 = vrcp.pop %v11790
    %v12050 = vmul.f32 1.0, %v12049
    %v12051 = vrcp.pop %v11791
    %v12052 = vmul.f32 1.0, %v12051
    %v12053 = vrcp.pop %v11792
    %v12054 = vmul.f32 1.0, %v12053
    %v12055 = vrcp.pop %v11793
    %v12056 = vmul.f32 1.0, %v12055
    %v12057 = vrcp.pop %v11794
    %v12058 = vmul.f32 1.0, %v12057
    %v12059 = vrcp.pop %v11795
    %v12060 = vmul.f32 1.0, %v12059
    %v12061 = vrcp.pop %v11796
    %v12062 = vmul.f32 1.0, %v12061
    %v12063 = vrcp.pop %v11797
    %v12064 = vmul.f32 1.0, %v12063
    %v12065 = vrcp.pop %v11798
    %v12066 = vmul.f32 1.0, %v12065
    %v12067 = vrcp.pop %v11799
    %v12068 = vmul.f32 1.0, %v12067
    %v12069 = vrcp.pop %v11800
    %v12070 = vmul.f32 1.0, %v12069
    %v12071 = vrcp.pop %v11801
    %v12072 = vmul.f32 1.0, %v12071
    %v12073 = vrcp.pop %v11802
    %v12074 = vmul.f32 1.0, %v12073
    %v12075 = vrcp.pop %v11803
    %v12076 = vmul.f32 1.0, %v12075
    %v12077 = vrcp.pop %v11804
    %v12078 = vmul.f32 1.0, %v12077
    %v12079 = vrcp.pop %v11805
    %v12080 = vmul.f32 1.0, %v12079
    %v12081 = vrcp.pop %v11806
    %v12082 = vmul.f32 1.0, %v12081
    %v12221 = vcombine.low %v11808, %v11810
    %v12222 = vcombine.low %v11812, %v11814
    %v12224 = vunpack.c.l.s4 1983009808
    %v12225 = vunpack.c.0.s8 %v12224
    %v12226 = vlaneseq
    %v12227 = vshrl.u32 %v12226, 7
    %v12228 = vsub.s32 %v12225, %v12227
    %v12229 = vrot.slane %v12221, %v12228
    %v12231 = vunpack.c.l.s4 1983009808
    %v12232 = vunpack.c.0.s8 %v12231
    %v12233 = vlaneseq
    %v12234 = vshrl.u32 %v12233, 7
    %v12235 = vsub.s32 %v12232, %v12234
    %v12236 = vrot.slane %v12222, %v12235
    %v12237 = vcombine.low %v12229, %v12236
    %v12238 = vcombine.low %v11816, %v11818
    %v12239 = vcombine.low %v11820, %v11822
    %v12241 = vunpack.c.l.s4 1983009808
    %v12242 = vunpack.c.0.s8 %v12241
    %v12243 = vlaneseq
    %v12244 = vshrl.u32 %v12243, 7
    %v12245 = vsub.s32 %v12242, %v12244
    %v12246 = vrot.slane %v12238, %v12245
    %v12248 = vunpack.c.l.s4 1983009808
    %v12249 = vunpack.c.0.s8 %v12248
    %v12250 = vlaneseq
    %v12251 = vshrl.u32 %v12250, 7
    %v12252 = vsub.s32 %v12249, %v12251
    %v12253 = vrot.slane %v12239, %v12252
    %v12254 = vcombine.low %v12246, %v12253
    %v12255 = vcombine.low %v11824, %v11826
    %v12256 = vcombine.low %v11828, %v11830
    %v12258 = vunpack.c.l.s4 1983009808
    %v12259 = vunpack.c.0.s8 %v12258
    %v12260 = vlaneseq
    %v12261 = vshrl.u32 %v12260, 7
    %v12262 = vsub.s32 %v12259, %v12261
    %v12263 = vrot.slane %v12255, %v12262
    %v12265 = vunpack.c.l.s4 1983009808
    %v12266 = vunpack.c.0.s8 %v12265
    %v12267 = vlaneseq
    %v12268 = vshrl.u32 %v12267, 7
    %v12269 = vsub.s32 %v12266, %v12268
    %v12270 = vrot.slane %v12256, %v12269
    %v12271 = vcombine.low %v12263, %v12270
    %v12272 = vcombine.low %v11832, %v11834
    %v12273 = vcombine.low %v11836, %v11838
    %v12275 = vunpack.c.l.s4 1983009808
    %v12276 = vunpack.c.0.s8 %v12275
    %v12277 = vlaneseq
    %v12278 = vshrl.u32 %v12277, 7
    %v12279 = vsub.s32 %v12276, %v12278
    %v12280 = vrot.slane %v12272, %v12279
    %v12282 = vunpack.c.l.s4 1983009808
    %v12283 = vunpack.c.0.s8 %v12282
    %v12284 = vlaneseq
    %v12285 = vshrl.u32 %v12284, 7
    %v12286 = vsub.s32 %v12283, %v12285
    %v12287 = vrot.slane %v12273, %v12286
    %v12288 = vcombine.low %v12280, %v12287
    %v12289 = vcombine.low %v11840, %v11842
    %v12290 = vcombine.low %v11844, %v11846
    %v12292 = vunpack.c.l.s4 1983009808
    %v12293 = vunpack.c.0.s8 %v12292
    %v12294 = vlaneseq
    %v12295 = vshrl.u32 %v12294, 7
    %v12296 = vsub.s32 %v12293, %v12295
    %v12297 = vrot.slane %v12289, %v12296
    %v12299 = vunpack.c.l.s4 1983009808
    %v12300 = vunpack.c.0.s8 %v12299
    %v12301 = vlaneseq
    %v12302 = vshrl.u32 %v12301, 7
    %v12303 = vsub.s32 %v12300, %v12302
    %v12304 = vrot.slane %v12290, %v12303
    %v12305 = vcombine.low %v12297, %v12304
    %v12306 = vcombine.low %v11848, %v11850
    %v12307 = vcombine.low %v11852, %v11854
    %v12309 = vunpack.c.l.s4 1983009808
    %v12310 = vunpack.c.0.s8 %v12309
    %v12311 = vlaneseq
    %v12312 = vshrl.u32 %v12311, 7
    %v12313 = vsub.s32 %v12310, %v12312
    %v12314 = vrot.slane %v12306, %v12313
    %v12316 = vunpack.c.l.s4 1983009808
    %v12317 = vunpack.c.0.s8 %v12316
    %v12318 = vlaneseq
    %v12319 = vshrl.u32 %v12318, 7
    %v12320 = vsub.s32 %v12317, %v12319
    %v12321 = vrot.slane %v12307, %v12320
    %v12322 = vcombine.low %v12314, %v12321
    %v12323 = vcombine.low %v11856, %v11858
    %v12324 = vcombine.low %v11860, %v11862
    %v12326 = vunpack.c.l.s4 1983009808
    %v12327 = vunpack.c.0.s8 %v12326
    %v12328 = vlaneseq
    %v12329 = vshrl.u32 %v12328, 7
    %v12330 = vsub.s32 %v12327, %v12329
    %v12331 = vrot.slane %v12323, %v12330
    %v12333 = vunpack.c.l.s4 1983009808
    %v12334 = vunpack.c.0.s8 %v12333
    %v12335 = vlaneseq
    %v12336 = vshrl.u32 %v12335, 7
    %v12337 = vsub.s32 %v12334, %v12336
    %v12338 = vrot.slane %v12324, %v12337
    %v12339 = vcombine.low %v12331, %v12338
    %v12340 = vcombine.low %v11864, %v11866
    %v12341 = vcombine.low %v11868, %v11870
    %v12343 = vunpack.c.l.s4 1983009808
    %v12344 = vunpack.c.0.s8 %v12343
    %v12345 = vlaneseq
    %v12346 = vshrl.u32 %v12345, 7
    %v12347 = vsub.s32 %v12344, %v12346
    %v12348 = vrot.slane %v12340, %v12347
    %v12350 = vunpack.c.l.s4 1983009808
    %v12351 = vunpack.c.0.s8 %v12350
    %v12352 = vlaneseq
    %v12353 = vshrl.u32 %v12352, 7
    %v12354 = vsub.s32 %v12351, %v12353
    %v12355 = vrot.slane %v12341, %v12354
    %v12356 = vcombine.low %v12348, %v12355
    %v12357 = vcombine.low %v11872, %v11874
    %v12358 = vcombine.low %v11876, %v11878
    %v12360 = vunpack.c.l.s4 1983009808
    %v12361 = vunpack.c.0.s8 %v12360
    %v12362 = vlaneseq
    %v12363 = vshrl.u32 %v12362, 7
    %v12364 = vsub.s32 %v12361, %v12363
    %v12365 = vrot.slane %v12357, %v12364
    %v12367 = vunpack.c.l.s4 1983009808
    %v12368 = vunpack.c.0.s8 %v12367
    %v12369 = vlaneseq
    %v12370 = vshrl.u32 %v12369, 7
    %v12371 = vsub.s32 %v12368, %v12370
    %v12372 = vrot.slane %v12358, %v12371
    %v12373 = vcombine.low %v12365, %v12372
    %v12374 = vcombine.low %v11880, %v11882
    %v12375 = vcombine.low %v11884, %v11886
    %v12377 = vunpack.c.l.s4 1983009808
    %v12378 = vunpack.c.0.s8 %v12377
    %v12379 = vlaneseq
    %v12380 = vshrl.u32 %v12379, 7
    %v12381 = vsub.s32 %v12378, %v12380
    %v12382 = vrot.slane %v12374, %v12381
    %v12384 = vunpack.c.l.s4 1983009808
    %v12385 = vunpack.c.0.s8 %v12384
    %v12386 = vlaneseq
    %v12387 = vshrl.u32 %v12386, 7
    %v12388 = vsub.s32 %v12385, %v12387
    %v12389 = vrot.slane %v12375, %v12388
    %v12390 = vcombine.low %v12382, %v12389
    %v12391 = vcombine.low %v11888, %v11890
    %v12392 = vcombine.low %v11892, %v11894
    %v12394 = vunpack.c.l.s4 1983009808
    %v12395 = vunpack.c.0.s8 %v12394
    %v12396 = vlaneseq
    %v12397 = vshrl.u32 %v12396, 7
    %v12398 = vsub.s32 %v12395, %v12397
    %v12399 = vrot.slane %v12391, %v12398
    %v12401 = vunpack.c.l.s4 1983009808
    %v12402 = vunpack.c.0.s8 %v12401
    %v12403 = vlaneseq
    %v12404 = vshrl.u32 %v12403, 7
    %v12405 = vsub.s32 %v12402, %v12404
    %v12406 = vrot.slane %v12392, %v12405
    %v12407 = vcombine.low %v12399, %v12406
    %v12408 = vcombine.low %v11896, %v11898
    %v12409 = vcombine.low %v11900, %v11902
    %v12411 = vunpack.c.l.s4 1983009808
    %v12412 = vunpack.c.0.s8 %v12411
    %v12413 = vlaneseq
    %v12414 = vshrl.u32 %v12413, 7
    %v12415 = vsub.s32 %v12412, %v12414
    %v12416 = vrot.slane %v12408, %v12415
    %v12418 = vunpack.c.l.s4 1983009808
    %v12419 = vunpack.c.0.s8 %v12418
    %v12420 = vlaneseq
    %v12421 = vshrl.u32 %v12420, 7
    %v12422 = vsub.s32 %v12419, %v12421
    %v12423 = vrot.slane %v12409, %v12422
    %v12424 = vcombine.low %v12416, %v12423
    %v12425 = vcombine.low %v11904, %v11906
    %v12426 = vcombine.low %v11908, %v11910
    %v12428 = vunpack.c.l.s4 1983009808
    %v12429 = vunpack.c.0.s8 %v12428
    %v12430 = vlaneseq
    %v12431 = vshrl.u32 %v12430, 7
    %v12432 = vsub.s32 %v12429, %v12431
    %v12433 = vrot.slane %v12425, %v12432
    %v12435 = vunpack.c.l.s4 1983009808
    %v12436 = vunpack.c.0.s8 %v12435
    %v12437 = vlaneseq
    %v12438 = vshrl.u32 %v12437, 7
    %v12439 = vsub.s32 %v12436, %v12438
    %v12440 = vrot.slane %v12426, %v12439
    %v12441 = vcombine.low %v12433, %v12440
    %v12442 = vcombine.low %v11912, %v11914
    %v12443 = vcombine.low %v11916, %v11918
    %v12445 = vunpack.c.l.s4 1983009808
    %v12446 = vunpack.c.0.s8 %v12445
    %v12447 = vlaneseq
    %v12448 = vshrl.u32 %v12447, 7
    %v12449 = vsub.s32 %v12446, %v12448
    %v12450 = vrot.slane %v12442, %v12449
    %v12452 = vunpack.c.l.s4 1983009808
    %v12453 = vunpack.c.0.s8 %v12452
    %v12454 = vlaneseq
    %v12455 = vshrl.u32 %v12454, 7
    %v12456 = vsub.s32 %v12453, %v12455
    %v12457 = vrot.slane %v12443, %v12456
    %v12458 = vcombine.low %v12450, %v12457
    %v12459 = vcombine.low %v11920, %v11922
    %v12460 = vcombine.low %v11924, %v11926
    %v12462 = vunpack.c.l.s4 1983009808
    %v12463 = vunpack.c.0.s8 %v12462
    %v12464 = vlaneseq
    %v12465 = vshrl.u32 %v12464, 7
    %v12466 = vsub.s32 %v12463, %v12465
    %v12467 = vrot.slane %v12459, %v12466
    %v12469 = vunpack.c.l.s4 1983009808
    %v12470 = vunpack.c.0.s8 %v12469
    %v12471 = vlaneseq
    %v12472 = vshrl.u32 %v12471, 7
    %v12473 = vsub.s32 %v12470, %v12472
    %v12474 = vrot.slane %v12460, %v12473
    %v12475 = vcombine.low %v12467, %v12474
    %v12476 = vcombine.low %v11928, %v11930
    %v12477 = vcombine.low %v11932, %v11934
    %v12479 = vunpack.c.l.s4 1983009808
    %v12480 = vunpack.c.0.s8 %v12479
    %v12481 = vlaneseq
    %v12482 = vshrl.u32 %v12481, 7
    %v12483 = vsub.s32 %v12480, %v12482
    %v12484 = vrot.slane %v12476, %v12483
    %v12486 = vunpack.c.l.s4 1983009808
    %v12487 = vunpack.c.0.s8 %v12486
    %v12488 = vlaneseq
    %v12489 = vshrl.u32 %v12488, 7
    %v12490 = vsub.s32 %v12487, %v12489
    %v12491 = vrot.slane %v12477, %v12490
    %v12492 = vcombine.low %v12484, %v12491
    %v12493 = vcombine.low %v11936, %v11938
    %v12494 = vcombine.low %v11940, %v11942
    %v12496 = vunpack.c.l.s4 1983009808
    %v12497 = vunpack.c.0.s8 %v12496
    %v12498 = vlaneseq
    %v12499 = vshrl.u32 %v12498, 7
    %v12500 = vsub.s32 %v12497, %v12499
    %v12501 = vrot.slane %v12493, %v12500
    %v12503 = vunpack.c.l.s4 1983009808
    %v12504 = vunpack.c.0.s8 %v12503
    %v12505 = vlaneseq
    %v12506 = vshrl.u32 %v12505, 7
    %v12507 = vsub.s32 %v12504, %v12506
    %v12508 = vrot.slane %v12494, %v12507
    %v12509 = vcombine.low %v12501, %v12508
    %v12510 = vcombine.low %v11944, %v11946
    %v12511 = vcombine.low %v11948, %v11950
    %v12513 = vunpack.c.l.s4 1983009808
    %v12514 = vunpack.c.0.s8 %v12513
    %v12515 = vlaneseq
    %v12516 = vshrl.u32 %v12515, 7
    %v12517 = vsub.s32 %v12514, %v12516
    %v12518 = vrot.slane %v12510, %v12517
    %v12520 = vunpack.c.l.s4 1983009808
    %v12521 = vunpack.c.0.s8 %v12520
    %v12522 = vlaneseq
    %v12523 = vshrl.u32 %v12522, 7
    %v12524 = vsub.s32 %v12521, %v12523
    %v12525 = vrot.slane %v12511, %v12524
    %v12526 = vcombine.low %v12518, %v12525
    %v12527 = vcombine.low %v11952, %v11954
    %v12528 = vcombine.low %v11956, %v11958
    %v12530 = vunpack.c.l.s4 1983009808
    %v12531 = vunpack.c.0.s8 %v12530
    %v12532 = vlaneseq
    %v12533 = vshrl.u32 %v12532, 7
    %v12534 = vsub.s32 %v12531, %v12533
    %v12535 = vrot.slane %v12527, %v12534
    %v12537 = vunpack.c.l.s4 1983009808
    %v12538 = vunpack.c.0.s8 %v12537
    %v12539 = vlaneseq
    %v12540 = vshrl.u32 %v12539, 7
    %v12541 = vsub.s32 %v12538, %v12540
    %v12542 = vrot.slane %v12528, %v12541
    %v12543 = vcombine.low %v12535, %v12542
    %v12544 = vcombine.low %v11960, %v11962
    %v12545 = vcombine.low %v11964, %v11966
    %v12547 = vunpack.c.l.s4 1983009808
    %v12548 = vunpack.c.0.s8 %v12547
    %v12549 = vlaneseq
    %v12550 = vshrl.u32 %v12549, 7
    %v12551 = vsub.s32 %v12548, %v12550
    %v12552 = vrot.slane %v12544, %v12551
    %v12554 = vunpack.c.l.s4 1983009808
    %v12555 = vunpack.c.0.s8 %v12554
    %v12556 = vlaneseq
    %v12557 = vshrl.u32 %v12556, 7
    %v12558 = vsub.s32 %v12555, %v12557
    %v12559 = vrot.slane %v12545, %v12558
    %v12560 = vcombine.low %v12552, %v12559
    %v12561 = vcombine.low %v11968, %v11970
    %v12562 = vcombine.low %v11972, %v11974
    %v12564 = vunpack.c.l.s4 1983009808
    %v12565 = vunpack.c.0.s8 %v12564
    %v12566 = vlaneseq
    %v12567 = vshrl.u32 %v12566, 7
    %v12568 = vsub.s32 %v12565, %v12567
    %v12569 = vrot.slane %v12561, %v12568
    %v12571 = vunpack.c.l.s4 1983009808
    %v12572 = vunpack.c.0.s8 %v12571
    %v12573 = vlaneseq
    %v12574 = vshrl.u32 %v12573, 7
    %v12575 = vsub.s32 %v12572, %v12574
    %v12576 = vrot.slane %v12562, %v12575
    %v12577 = vcombine.low %v12569, %v12576
    %v12578 = vcombine.low %v11976, %v11978
    %v12579 = vcombine.low %v11980, %v11982
    %v12581 = vunpack.c.l.s4 1983009808
    %v12582 = vunpack.c.0.s8 %v12581
    %v12583 = vlaneseq
    %v12584 = vshrl.u32 %v12583, 7
    %v12585 = vsub.s32 %v12582, %v12584
    %v12586 = vrot.slane %v12578, %v12585
    %v12588 = vunpack.c.l.s4 1983009808
    %v12589 = vunpack.c.0.s8 %v12588
    %v12590 = vlaneseq
    %v12591 = vshrl.u32 %v12590, 7
    %v12592 = vsub.s32 %v12589, %v12591
    %v12593 = vrot.slane %v12579, %v12592
    %v12594 = vcombine.low %v12586, %v12593
    %v12595 = vcombine.low %v11984, %v11986
    %v12596 = vcombine.low %v11988, %v11990
    %v12598 = vunpack.c.l.s4 1983009808
    %v12599 = vunpack.c.0.s8 %v12598
    %v12600 = vlaneseq
    %v12601 = vshrl.u32 %v12600, 7
    %v12602 = vsub.s32 %v12599, %v12601
    %v12603 = vrot.slane %v12595, %v12602
    %v12605 = vunpack.c.l.s4 1983009808
    %v12606 = vunpack.c.0.s8 %v12605
    %v12607 = vlaneseq
    %v12608 = vshrl.u32 %v12607, 7
    %v12609 = vsub.s32 %v12606, %v12608
    %v12610 = vrot.slane %v12596, %v12609
    %v12611 = vcombine.low %v12603, %v12610
    %v12612 = vcombine.low %v11992, %v11994
    %v12613 = vcombine.low %v11996, %v11998
    %v12615 = vunpack.c.l.s4 1983009808
    %v12616 = vunpack.c.0.s8 %v12615
    %v12617 = vlaneseq
    %v12618 = vshrl.u32 %v12617, 7
    %v12619 = vsub.s32 %v12616, %v12618
    %v12620 = vrot.slane %v12612, %v12619
    %v12622 = vunpack.c.l.s4 1983009808
    %v12623 = vunpack.c.0.s8 %v12622
    %v12624 = vlaneseq
    %v12625 = vshrl.u32 %v12624, 7
    %v12626 = vsub.s32 %v12623, %v12625
    %v12627 = vrot.slane %v12613, %v12626
    %v12628 = vcombine.low %v12620, %v12627
    %v12629 = vcombine.low %v12000, %v12002
    %v12630 = vcombine.low %v12004, %v12006
    %v12632 = vunpack.c.l.s4 1983009808
    %v12633 = vunpack.c.0.s8 %v12632
    %v12634 = vlaneseq
    %v12635 = vshrl.u32 %v12634, 7
    %v12636 = vsub.s32 %v12633, %v12635
    %v12637 = vrot.slane %v12629, %v12636
    %v12639 = vunpack.c.l.s4 1983009808
    %v12640 = vunpack.c.0.s8 %v12639
    %v12641 = vlaneseq
    %v12642 = vshrl.u32 %v12641, 7
    %v12643 = vsub.s32 %v12640, %v12642
    %v12644 = vrot.slane %v12630, %v12643
    %v12645 = vcombine.low %v12637, %v12644
    %v12646 = vcombine.low %v12008, %v12010
    %v12647 = vcombine.low %v12012, %v12014
    %v12649 = vunpack.c.l.s4 1983009808
    %v12650 = vunpack.c.0.s8 %v12649
    %v12651 = vlaneseq
    %v12652 = vshrl.u32 %v12651, 7
    %v12653 = vsub.s32 %v12650, %v12652
    %v12654 = vrot.slane %v12646, %v12653
    %v12656 = vunpack.c.l.s4 1983009808
    %v12657 = vunpack.c.0.s8 %v12656
    %v12658 = vlaneseq
    %v12659 = vshrl.u32 %v12658, 7
    %v12660 = vsub.s32 %v12657, %v12659
    %v12661 = vrot.slane %v12647, %v12660
    %v12662 = vcombine.low %v12654, %v12661
    %v12663 = vcombine.low %v12016, %v12018
    %v12664 = vcombine.low %v12020, %v12022
    %v12666 = vunpack.c.l.s4 1983009808
    %v12667 = vunpack.c.0.s8 %v12666
    %v12668 = vlaneseq
    %v12669 = vshrl.u32 %v12668, 7
    %v12670 = vsub.s32 %v12667, %v12669
    %v12671 = vrot.slane %v12663, %v12670
    %v12673 = vunpack.c.l.s4 1983009808
    %v12674 = vunpack.c.0.s8 %v12673
    %v12675 = vlaneseq
    %v12676 = vshrl.u32 %v12675, 7
    %v12677 = vsub.s32 %v12674, %v12676
    %v12678 = vrot.slane %v12664, %v12677
    %v12679 = vcombine.low %v12671, %v12678
    %v12680 = vcombine.low %v12024, %v12026
    %v12681 = vcombine.low %v12028, %v12030
    %v12683 = vunpack.c.l.s4 1983009808
    %v12684 = vunpack.c.0.s8 %v12683
    %v12685 = vlaneseq
    %v12686 = vshrl.u32 %v12685, 7
    %v12687 = vsub.s32 %v12684, %v12686
    %v12688 = vrot.slane %v12680, %v12687
    %v12690 = vunpack.c.l.s4 1983009808
    %v12691 = vunpack.c.0.s8 %v12690
    %v12692 = vlaneseq
    %v12693 = vshrl.u32 %v12692, 7
    %v12694 = vsub.s32 %v12691, %v12693
    %v12695 = vrot.slane %v12681, %v12694
    %v12696 = vcombine.low %v12688, %v12695
    %v12697 = vcombine.low %v12032, %v12034
    %v12698 = vcombine.low %v12036, %v12038
    %v12700 = vunpack.c.l.s4 1983009808
    %v12701 = vunpack.c.0.s8 %v12700
    %v12702 = vlaneseq
    %v12703 = vshrl.u32 %v12702, 7
    %v12704 = vsub.s32 %v12701, %v12703
    %v12705 = vrot.slane %v12697, %v12704
    %v12707 = vunpack.c.l.s4 1983009808
    %v12708 = vunpack.c.0.s8 %v12707
    %v12709 = vlaneseq
    %v12710 = vshrl.u32 %v12709, 7
    %v12711 = vsub.s32 %v12708, %v12710
    %v12712 = vrot.slane %v12698, %v12711
    %v12713 = vcombine.low %v12705, %v12712
    %v12714 = vcombine.low %v12040, %v12042
    %v12715 = vcombine.low %v12044, %v12046
    %v12717 = vunpack.c.l.s4 1983009808
    %v12718 = vunpack.c.0.s8 %v12717
    %v12719 = vlaneseq
    %v12720 = vshrl.u32 %v12719, 7
    %v12721 = vsub.s32 %v12718, %v12720
    %v12722 = vrot.slane %v12714, %v12721
    %v12724 = vunpack.c.l.s4 1983009808
    %v12725 = vunpack.c.0.s8 %v12724
    %v12726 = vlaneseq
    %v12727 = vshrl.u32 %v12726, 7
    %v12728 = vsub.s32 %v12725, %v12727
    %v12729 = vrot.slane %v12715, %v12728
    %v12730 = vcombine.low %v12722, %v12729
    %v12731 = vcombine.low %v12048, %v12050
    %v12732 = vcombine.low %v12052, %v12054
    %v12734 = vunpack.c.l.s4 1983009808
    %v12735 = vunpack.c.0.s8 %v12734
    %v12736 = vlaneseq
    %v12737 = vshrl.u32 %v12736, 7
    %v12738 = vsub.s32 %v12735, %v12737
    %v12739 = vrot.slane %v12731, %v12738
    %v12741 = vunpack.c.l.s4 1983009808
    %v12742 = vunpack.c.0.s8 %v12741
    %v12743 = vlaneseq
    %v12744 = vshrl.u32 %v12743, 7
    %v12745 = vsub.s32 %v12742, %v12744
    %v12746 = vrot.slane %v12732, %v12745
    %v12747 = vcombine.low %v12739, %v12746
    %v12748 = vcombine.low %v12056, %v12058
    %v12749 = vcombine.low %v12060, %v12062
    %v12751 = vunpack.c.l.s4 1983009808
    %v12752 = vunpack.c.0.s8 %v12751
    %v12753 = vlaneseq
    %v12754 = vshrl.u32 %v12753, 7
    %v12755 = vsub.s32 %v12752, %v12754
    %v12756 = vrot.slane %v12748, %v12755
    %v12758 = vunpack.c.l.s4 1983009808
    %v12759 = vunpack.c.0.s8 %v12758
    %v12760 = vlaneseq
    %v12761 = vshrl.u32 %v12760, 7
    %v12762 = vsub.s32 %v12759, %v12761
    %v12763 = vrot.slane %v12749, %v12762
    %v12764 = vcombine.low %v12756, %v12763
    %v12765 = vcombine.low %v12064, %v12066
    %v12766 = vcombine.low %v12068, %v12070
    %v12768 = vunpack.c.l.s4 1983009808
    %v12769 = vunpack.c.0.s8 %v12768
    %v12770 = vlaneseq
    %v12771 = vshrl.u32 %v12770, 7
    %v12772 = vsub.s32 %v12769, %v12771
    %v12773 = vrot.slane %v12765, %v12772
    %v12775 = vunpack.c.l.s4 1983009808
    %v12776 = vunpack.c.0.s8 %v12775
    %v12777 = vlaneseq
    %v12778 = vshrl.u32 %v12777, 7
    %v12779 = vsub.s32 %v12776, %v12778
    %v12780 = vrot.slane %v12766, %v12779
    %v12781 = vcombine.low %v12773, %v12780
    %v12782 = vcombine.low %v12072, %v12074
    %v12783 = vcombine.low %v12076, %v12078
    %v12785 = vunpack.c.l.s4 1983009808
    %v12786 = vunpack.c.0.s8 %v12785
    %v12787 = vlaneseq
    %v12788 = vshrl.u32 %v12787, 7
    %v12789 = vsub.s32 %v12786, %v12788
    %v12790 = vrot.slane %v12782, %v12789
    %v12792 = vunpack.c.l.s4 1983009808
    %v12793 = vunpack.c.0.s8 %v12792
    %v12794 = vlaneseq
    %v12795 = vshrl.u32 %v12794, 7
    %v12796 = vsub.s32 %v12793, %v12795
    %v12797 = vrot.slane %v12783, %v12796
    %v12798 = vcombine.low %v12790, %v12797
    %v12799 = vcombine.low %v12080, %v12082
    %v12801 = vunpack.c.l.s4 1983009808
    %v12802 = vunpack.c.0.s8 %v12801
    %v12803 = vlaneseq
    %v12804 = vshrl.u32 %v12803, 7
    %v12805 = vsub.s32 %v12802, %v12804
    %v12806 = vrot.slane %v12799, %v12805
    %12842 = vst [vmem:[#allocation16] sm:$0xff] %v12237
    %12843 = vst [vmem:[#allocation16 + $0x8] sm:$0xff] %v12254
    %12844 = vst [vmem:[#allocation16 + $0x10] sm:$0xff] %v12271
    %12845 = vst [vmem:[#allocation16 + $0x18] sm:$0xff] %v12288
    %12846 = vst [vmem:[#allocation16 + $0x20] sm:$0xff] %v12305
    %12847 = vst [vmem:[#allocation16 + $0x28] sm:$0xff] %v12322
    %12848 = vst [vmem:[#allocation16 + $0x30] sm:$0xff] %v12339
    %12849 = vst [vmem:[#allocation16 + $0x38] sm:$0xff] %v12356
    %12850 = vst [vmem:[#allocation16 + $0x40] sm:$0xff] %v12373
    %12851 = vst [vmem:[#allocation16 + $0x48] sm:$0xff] %v12390
    %12852 = vst [vmem:[#allocation16 + $0x50] sm:$0xff] %v12407
    %12853 = vst [vmem:[#allocation16 + $0x58] sm:$0xff] %v12424
    %12854 = vst [vmem:[#allocation16 + $0x60] sm:$0xff] %v12441
    %12855 = vst [vmem:[#allocation16 + $0x68] sm:$0xff] %v12458
    %12856 = vst [vmem:[#allocation16 + $0x70] sm:$0xff] %v12475
    %12857 = vst [vmem:[#allocation16 + $0x78] sm:$0xff] %v12492
    %12858 = vst [vmem:[#allocation16 + $0x80] sm:$0xff] %v12509
    %12859 = vst [vmem:[#allocation16 + $0x88] sm:$0xff] %v12526
    %12860 = vst [vmem:[#allocation16 + $0x90] sm:$0xff] %v12543
    %12861 = vst [vmem:[#allocation16 + $0x98] sm:$0xff] %v12560
    %12862 = vst [vmem:[#allocation16 + $0xa0] sm:$0xff] %v12577
    %12863 = vst [vmem:[#allocation16 + $0xa8] sm:$0xff] %v12594
    %12864 = vst [vmem:[#allocation16 + $0xb0] sm:$0xff] %v12611
    %12865 = vst [vmem:[#allocation16 + $0xb8] sm:$0xff] %v12628
    %12866 = vst [vmem:[#allocation16 + $0xc0] sm:$0xff] %v12645
    %12867 = vst [vmem:[#allocation16 + $0xc8] sm:$0xff] %v12662
    %12868 = vst [vmem:[#allocation16 + $0xd0] sm:$0xff] %v12679
    %12869 = vst [vmem:[#allocation16 + $0xd8] sm:$0xff] %v12696
    %12870 = vst [vmem:[#allocation16 + $0xe0] sm:$0xff] %v12713
    %12871 = vst [vmem:[#allocation16 + $0xe8] sm:$0xff] %v12730
    %12872 = vst [vmem:[#allocation16 + $0xf0] sm:$0xff] %v12747
    %12873 = vst [vmem:[#allocation16 + $0xf8] sm:$0xff] %v12764
    %12874 = vst [vmem:[#allocation16 + $0x100] sm:$0xff] %v12781
    %12875 = vst [vmem:[#allocation16 + $0x108] sm:$0xff] %v12798
    %vm12876 = vcmask 1041408
    %vm12877 = vcmask 519170
    %vm12878 = vmor %vm12877, %vm12876
    %12879 = vst.msk [vmem:[#allocation16 + $0x110] sm:$0xf] %vm12878, %v12806
    // Predicated region
    $region70: #{tpu_custom_call.1} parent=1 // pred_check
      _
    $region71: #{tpu_custom_call.1} parent=1 // pred_check_branch
      %12881 = sbr.rel (0) target = $region73
    $region72: #{tpu_custom_call.1} parent=1 // pred_region
      %s12883 = ssub.s32 4416, 4416
      %12884 = vsyncadd [#allocation4], %s12883
      %s12886 = sshll.u32 [#allocation16], 4
      %s12887 = int_to_ptr.vmem [resolvable:$true] %s12886
      %12889 = dma.vmem_to_hbm [thread:$0]  %s12887, 4416, %s9, [#allocation4]
    $region73: #{tpu_custom_call.1} parent=1 // pred_fallthru
      _
    // Predicated region
    $region74: #{tpu_custom_call.1} parent=1 // pred_check
      _
    $region75: #{tpu_custom_call.1} parent=1 // pred_check_branch
      %12891 = sbr.rel (0) target = $region77
    $region76: #{tpu_custom_call.1} parent=1 // pred_region
      %12892 = dma.done [#allocation4], 4416
    $region77: #{tpu_custom_call.1} parent=1 // pred_fallthru
      _
    %12893 = vsyncpa [#allocation3], 1
    %12894 = vsyncpa [#allocation6], 1
    %12895 = vsyncpa [#allocation9], 1
    %12896 = vsyncpa [#allocation12], 1
    %12897 = vsyncpa [#allocation15], 1
    %12898 = vsyncpa [#allocation4], 1

</llo_original>
